<compile_context>
chip_gen: v7x
topology: tpu7x:2x2x1
jax: 0.10.0
libtpu: 0.0.40
codegen_flags: <defaults>
</compile_context>

<pallas_src>
import jax
import jax.numpy as jnp
from jax.experimental import pallas as pl
from jax.experimental.pallas import tpu as pltpu


# ----------------------------------------------------------------------------- kernel

def _gru_gates(gx, gh, h):
    """PyTorch-order (r|z|n) GRU update; gx/gh are [N,3H] f32, h is [N,H] f32."""
    H = h.shape[-1]
    rz = jax.nn.sigmoid(gx[:, : 2 * H] + gh[:, : 2 * H])     # r and z in one EUP pass
    r, z = rz[:, :H], rz[:, H:]
    n = jnp.tanh(gx[:, 2 * H:] + r * gh[:, 2 * H:])
    return n + z * (h - n)                                   # == (1 - z) * n + z * h


def _feature_embedded_kernel(x_ref, len_ref,
                             wih0f_ref, wih0b_ref, whh0_ref,
                             w1ff_ref, w1fb_ref, w1bf_ref, w1bb_ref, whh1_ref,
                             out_ref,
                             gxf_ref, gxb_ref, h0f_ref, h0b_ref):
    BN, T, D = x_ref.shape
    H = h0f_ref.shape[-1]
    f32 = jnp.float32
    cdt = gxf_ref.dtype                                      # storage/compute dtype (bf16)

    lens = len_ref[...]                                      # [BN, 1] int32

    # ---- stage 1: layer-0 input projections, per timestep, straight into the
    #      time-major gx scratches (no wrapper-side HBM transpose of x needed).
    wih0f = wih0f_ref[...]
    wih0b = wih0b_ref[...]
    for t in range(T):
        x_t = x_ref[:, t, :]                                 # [BN, D]
        gxf_ref[t] = jnp.dot(x_t, wih0f, preferred_element_type=f32).astype(cdt)
        gxb_ref[t] = jnp.dot(x_t, wih0b, preferred_element_type=f32).astype(cdt)

    # ---- shared bidirectional recurrence: fwd + bwd fused per step with ONE
    #      block-diagonal [BN,2H] @ [2H,6H] dot.  Fully unrolled (T small & static).
    # TODO(synk): for large T switch to lax.fori_loop(..., unroll=2..4) to bound
    #             vreg live ranges / program size while keeping the fwd/bwd fusion.
    def birnn(whh_blk, capture_last):
        h_f = jnp.zeros((BN, H), f32)
        h_b = jnp.zeros((BN, H), f32)
        cap = jnp.zeros((BN, H), f32)
        for i in range(T):
            tf, tb = i, T - 1 - i
            if i == 0:                                       # h == 0 -> gh == 0: skip dot
                gh = jnp.zeros((BN, 6 * H), f32)
            else:
                h_cat = jnp.concatenate([h_f, h_b], axis=-1).astype(whh_blk.dtype)
                gh = jnp.dot(h_cat, whh_blk, preferred_element_type=f32)
            hf_new = _gru_gates(gxf_ref[tf].astype(f32), gh[:, : 3 * H], h_f)
            hb_new = _gru_gates(gxb_ref[tb].astype(f32), gh[:, 3 * H:], h_b)
            mf = (lens > tf).astype(f32)                     # fwd: freeze past len-1
            mb = (lens > tb).astype(f32)                     # bwd: reset for t >= len
            h_f = mf * hf_new + (1.0 - mf) * h_f
            h_b = mb * hb_new
            if capture_last:
                cap = cap + (lens == tb + 1).astype(f32) * h_b   # bwd_out[len-1]
            else:
                h0f_ref[tf] = h_f.astype(cdt)                # full-width stores
                h0b_ref[tb] = h_b.astype(cdt)
        return h_f, cap

    # ---- stage 2: layer-0 recurrence -> time-major layer-0 outputs.
    birnn(whh0_ref[...], capture_last=False)

    # ---- stage 3: layer-1 input projections, batched dots (off the serial chain),
    #      reusing the gx scratches.
    h0f_all = h0f_ref[...].reshape(T * BN, H)
    h0b_all = h0b_ref[...].reshape(T * BN, H)
    gxf_ref[...] = (jnp.dot(h0f_all, w1ff_ref[...], preferred_element_type=f32) +
                    jnp.dot(h0b_all, w1fb_ref[...], preferred_element_type=f32)
                    ).astype(cdt).reshape(T, BN, 3 * H)
    gxb_ref[...] = (jnp.dot(h0f_all, w1bf_ref[...], preferred_element_type=f32) +
                    jnp.dot(h0b_all, w1bb_ref[...], preferred_element_type=f32)
                    ).astype(cdt).reshape(T, BN, 3 * H)

    # ---- stage 4: layer-1 recurrence; final fwd carry == fwd_out[len-1],
    #      cap == bwd_out[len-1] (first valid backward step from h = 0).
    h_f, cap = birnn(whh1_ref[...], capture_last=True)

    res = jnp.concatenate([h_f, cap], axis=-1)               # [BN, 2H] f32
    pad = out_ref.shape[-1] - res.shape[-1]
    if pad > 0:                                              # lane-dense (unmasked) store
        res = jnp.concatenate([res, jnp.zeros((BN, pad), f32)], axis=-1)
    out_ref[...] = res


# ----------------------------------------------------------------------------- wrapper

def feature_embedded_forward(x, lengths, params, hidden_dim, block_n=None,
                             compute_dtype=jnp.bfloat16):
    """x: [B, W, T, D] float32, lengths: [B, W] int32 (1 <= len <= T).
    Returns squeeze([B, W, 2H]) in float32."""
    B, W, T, D = x.shape
    N = B * W
    H = hidden_dim

    if block_n is None:
        # Split into 2 blocks only when both halves keep plenty of MXU rows
        # (v7x: 2 TensorCores); otherwise one big block (v5e/v6e: single core,
        # extra grid steps are pure serial overhead).
        block_n = N // 2 if (N % 16 == 0 and N >= 512) else N
    assert N % block_n == 0, "N = B*W must be divisible by block_n"
    assert block_n == N or block_n % 8 == 0, "partial blocks must be a multiple of 8 rows"
    num_blocks = N // block_n

    out_w = max(128, ((2 * H + 127) // 128) * 128)           # lane-dense output width

    x_nm = x.reshape(N, T, D).astype(compute_dtype)          # batch-major; no HBM transpose
    lens = lengths.reshape(N, 1).astype(jnp.int32)

    # VMEM budget estimate (scratches + double-buffered I/O + weights); explicit scoped
    # limit, capped at 64 MiB so a block tuned here still fits v7x's physical VMEM.
    isz = jnp.dtype(compute_dtype).itemsize
    need = (T * block_n * 8 * H * isz                        # gxf+gxb (6H) + h0f+h0b (2H)
            + 2 * block_n * T * D * isz                      # x block (double-buffered)
            + 2 * block_n * out_w * 4                        # out block (double-buffered)
            + 2 * isz * (2 * D * 3 * H + 4 * H * 3 * H + 2 * (2 * H) * 6 * H))
    vmem_limit = int(min(max(2 * need, 32 << 20), 64 << 20))

    grid_spec = pltpu.PrefetchScalarGridSpec(
        num_scalar_prefetch=0,
        grid=(num_blocks,),
        in_specs=[
            pl.BlockSpec((block_n, T, D), lambda b: (b, 0, 0)),   # x  [N,T,D]
            pl.BlockSpec((block_n, 1), lambda b: (b, 0)),         # lengths
            pl.BlockSpec((D, 3 * H), lambda b: (0, 0)),           # Wih l0 fwd
            pl.BlockSpec((D, 3 * H), lambda b: (0, 0)),           # Wih l0 bwd
            pl.BlockSpec((2 * H, 6 * H), lambda b: (0, 0)),       # Whh l0 block-diag
            pl.BlockSpec((H, 3 * H), lambda b: (0, 0)),           # Wih l1 fwd <- h0_f
            pl.BlockSpec((H, 3 * H), lambda b: (0, 0)),           # Wih l1 fwd <- h0_b
            pl.BlockSpec((H, 3 * H), lambda b: (0, 0)),           # Wih l1 bwd <- h0_f
            pl.BlockSpec((H, 3 * H), lambda b: (0, 0)),           # Wih l1 bwd <- h0_b
            pl.BlockSpec((2 * H, 6 * H), lambda b: (0, 0)),       # Whh l1 block-diag
        ],
        out_specs=pl.BlockSpec((block_n, out_w), lambda b: (b, 0)),
        scratch_shapes=[
            pltpu.VMEM((T, block_n, 3 * H), compute_dtype),  # gx fwd   (reused l0/l1)
            pltpu.VMEM((T, block_n, 3 * H), compute_dtype),  # gx bwd   (reused l0/l1)
            pltpu.VMEM((T, block_n, H), compute_dtype),      # layer-0 fwd outputs
            pltpu.VMEM((T, block_n, H), compute_dtype),      # layer-0 bwd outputs
        ],
    )

    out = pl.pallas_call(
        _feature_embedded_kernel,
        out_shape=jax.ShapeDtypeStruct((N, out_w), jnp.float32),
        grid_spec=grid_spec,
        compiler_params=pltpu.CompilerParams(
            dimension_semantics=("parallel",),
            vmem_limit_bytes=vmem_limit),
    )(x_nm, lens,
      params["wih0_f"], params["wih0_b"], params["whh0_blk"],
      params["w1ff"], params["w1fb"], params["w1bf"], params["w1bb"],
      params["whh1_blk"])

    # mirrors torch.squeeze() on the stacked [B, W, 2H] result
    return jnp.squeeze(out[:, : 2 * H].reshape(B, W, 2 * H))


# ----------------------------------------------------------------------------- params

def _tp(w):
    """PyTorch GRU weight [3H, in] (rows ordered r, z, n) -> [in, 3H] (cols r|z|n)."""
    return jnp.asarray(w, jnp.float32).T


def _block_diag(whh_f, whh_b):
    """Two [H,3H] hidden->gate weights -> one [2H,6H] block-diagonal matrix so the
    fused carry [h_f | h_b] drives both directions with a single dot."""
    H = whh_f.shape[0]
    z = jnp.zeros((H, 3 * H), jnp.float32)
    return jnp.concatenate(
        [jnp.concatenate([whh_f, z], axis=1),
         jnp.concatenate([z, whh_b], axis=1)], axis=0)


def init_params(key, input_dim, hidden_dim, dtype=jnp.bfloat16):
    """Deterministic init mirroring the module: kaiming_normal for weight_ih,
    orthogonal for weight_hh, biases = 0 (hence omitted)."""
    H = hidden_dim
    orth = jax.nn.initializers.orthogonal()

    def kaiming(k, shape):  # fan_in = shape[1], gain = sqrt(2)
        return jax.random.normal(k, shape, jnp.float32) * jnp.sqrt(2.0 / shape[1])

    ks = jax.random.split(key, 8)
    wih_f0 = _tp(kaiming(ks[0], (3 * H, input_dim)))   # [D, 3H]
    whh_f0 = _tp(orth(ks[1], (3 * H, H)))              # [H, 3H]
    wih_b0 = _tp(kaiming(ks[2], (3 * H, input_dim)))
    whh_b0 = _tp(orth(ks[3], (3 * H, H)))
    wih_f1 = _tp(kaiming(ks[4], (3 * H, 2 * H)))       # [2H, 3H]
    whh_f1 = _tp(orth(ks[5], (3 * H, H)))
    wih_b1 = _tp(kaiming(ks[6], (3 * H, 2 * H)))
    whh_b1 = _tp(orth(ks[7], (3 * H, H)))

    p = {
        "wih0_f": wih_f0, "wih0_b": wih_b0,
        "whh0_blk": _block_diag(whh_f0, whh_b0),       # [2H, 6H]
        # layer-1 input weights split by which half of [h0_f | h0_b] they consume,
        # so layer-0 outputs never need to be re-concatenated in VMEM.
        "w1ff": wih_f1[:H], "w1fb": wih_f1[H:],        # [H, 3H] each
        "w1bf": wih_b1[:H], "w1bb": wih_b1[H:],
        "whh1_blk": _block_diag(whh_f1, whh_b1),       # [2H, 6H]
    }
    return {k: v.astype(dtype) for k, v in p.items()}


# ----------------------------------------------------------------------------- main

if __name__ == "__main__":
    # x: [B, W, T, D] (B sentences, W words each, T timesteps, D=input_dim features)
    B, W, T, D, H = 2, 4, 8, 32, 32

    key = jax.random.PRNGKey(0)
    k_x, k_len, k_p = jax.random.split(key, 3)

    x = jax.random.normal(k_x, (B, W, T, D), jnp.float32)
    lengths = jax.random.randint(k_len, (B, W), 1, T + 1, jnp.int32)  # lengths in [1, T]

    params = init_params(k_p, input_dim=D, hidden_dim=H)

    out = feature_embedded_forward(x, lengths, params, hidden_dim=H)
    out = jax.block_until_ready(out)

    assert out.shape == (B, W, 2 * H), out.shape
    print("KERNEL_OK")
</pallas_src>

<mosaic_0001>
module attributes {stable_mosaic.version = 11 : i64} {
  func.func @_feature_embedded_kernel(%arg0: i32, %arg1: memref<8x8x32xbf16, #tpu.memory_space<vmem>>, %arg2: memref<8x1xi32, #tpu.memory_space<vmem>>, %arg3: memref<32x96xbf16, #tpu.memory_space<vmem>>, %arg4: memref<32x96xbf16, #tpu.memory_space<vmem>>, %arg5: memref<64x192xbf16, #tpu.memory_space<vmem>>, %arg6: memref<32x96xbf16, #tpu.memory_space<vmem>>, %arg7: memref<32x96xbf16, #tpu.memory_space<vmem>>, %arg8: memref<32x96xbf16, #tpu.memory_space<vmem>>, %arg9: memref<32x96xbf16, #tpu.memory_space<vmem>>, %arg10: memref<64x192xbf16, #tpu.memory_space<vmem>>, %arg11: memref<8x128xf32, #tpu.memory_space<vmem>>, %arg12: memref<8x8x96xbf16, #tpu.memory_space<vmem>>, %arg13: memref<8x8x96xbf16, #tpu.memory_space<vmem>>, %arg14: memref<8x8x32xbf16, #tpu.memory_space<vmem>>, %arg15: memref<8x8x32xbf16, #tpu.memory_space<vmem>>) attributes {dimension_semantics = [#tpu.dimension_semantics<parallel>], iteration_bounds = array<i64: 1>, scalar_prefetch = 0 : i64, scratch_operands = 4 : i64, tpu.core_type = #tpu.core_type<tc>, window_params = [{transform_indices = @transform_0, window_bounds = array<i64: 8, 8, 32>}, {transform_indices = @transform_1, window_bounds = array<i64: 8, 1>}, {pipeline_mode = #tpu.pipeline_mode<synchronous>, transform_indices = @transform_2, window_bounds = array<i64: 32, 96>}, {pipeline_mode = #tpu.pipeline_mode<synchronous>, transform_indices = @transform_3, window_bounds = array<i64: 32, 96>}, {pipeline_mode = #tpu.pipeline_mode<synchronous>, transform_indices = @transform_4, window_bounds = array<i64: 64, 192>}, {pipeline_mode = #tpu.pipeline_mode<synchronous>, transform_indices = @transform_5, window_bounds = array<i64: 32, 96>}, {pipeline_mode = #tpu.pipeline_mode<synchronous>, transform_indices = @transform_6, window_bounds = array<i64: 32, 96>}, {pipeline_mode = #tpu.pipeline_mode<synchronous>, transform_indices = @transform_7, window_bounds = array<i64: 32, 96>}, {pipeline_mode = #tpu.pipeline_mode<synchronous>, transform_indices = @transform_8, window_bounds = array<i64: 32, 96>}, {pipeline_mode = #tpu.pipeline_mode<synchronous>, transform_indices = @transform_9, window_bounds = array<i64: 64, 192>}, {transform_indices = @transform_10, window_bounds = array<i64: 8, 128>}]} {
    %c0 = arith.constant 0 : index
    %c0_0 = arith.constant 0 : index
    %0 = vector.load %arg2[%c0, %c0_0] : memref<8x1xi32, #tpu.memory_space<vmem>>, vector<8x1xi32>
    %c0_1 = arith.constant 0 : index
    %c0_2 = arith.constant 0 : index
    %1 = vector.load %arg3[%c0_1, %c0_2] : memref<32x96xbf16, #tpu.memory_space<vmem>>, vector<32x96xbf16>
    %c0_3 = arith.constant 0 : index
    %c0_4 = arith.constant 0 : index
    %2 = vector.load %arg4[%c0_3, %c0_4] : memref<32x96xbf16, #tpu.memory_space<vmem>>, vector<32x96xbf16>
    %c0_5 = arith.constant 0 : index
    %c0_6 = arith.constant 0 : index
    %c0_7 = arith.constant 0 : index
    %3 = vector.load %arg1[%c0_5, %c0_6, %c0_7] : memref<8x8x32xbf16, #tpu.memory_space<vmem>>, vector<8x1x32xbf16>
    %4 = vector.shape_cast %3 : vector<8x1x32xbf16> to vector<8x32xbf16>
    %cst = arith.constant dense<0.000000e+00> : vector<8x96xf32>
    %5 = tpu.matmul %4, %1, %cst {dimension_numbers = #tpu.dot_dimension_numbers<[1], [0], [0], [1], [0, 0, 1, 1], [], []>} : vector<8x32xbf16>, vector<32x96xbf16>, vector<8x96xf32> -> vector<8x96xf32>
    %6 = arith.truncf %5 : vector<8x96xf32> to vector<8x96xbf16>
    %c0_8 = arith.constant 0 : index
    %c0_9 = arith.constant 0 : index
    %c0_10 = arith.constant 0 : index
    %7 = vector.load %arg12[%c0_8, %c0_9, %c0_10] : memref<8x8x96xbf16, #tpu.memory_space<vmem>>, vector<1x8x96xbf16>
    %8 = vector.shape_cast %7 : vector<1x8x96xbf16> to vector<8x96xbf16>
    %9 = vector.shape_cast %6 : vector<8x96xbf16> to vector<1x8x96xbf16>
    tpu.vector_store %arg12[%c0_8, %c0_9, %c0_10], %9 {strides = array<i32>} : memref<8x8x96xbf16, #tpu.memory_space<vmem>>, vector<1x8x96xbf16>,
    %cst_11 = arith.constant dense<0.000000e+00> : vector<8x96xf32>
    %10 = tpu.matmul %4, %2, %cst_11 {dimension_numbers = #tpu.dot_dimension_numbers<[1], [0], [0], [1], [0, 0, 1, 1], [], []>} : vector<8x32xbf16>, vector<32x96xbf16>, vector<8x96xf32> -> vector<8x96xf32>
    %11 = arith.truncf %10 : vector<8x96xf32> to vector<8x96xbf16>
    %c0_12 = arith.constant 0 : index
    %c0_13 = arith.constant 0 : index
    %c0_14 = arith.constant 0 : index
    %12 = vector.load %arg13[%c0_12, %c0_13, %c0_14] : memref<8x8x96xbf16, #tpu.memory_space<vmem>>, vector<1x8x96xbf16>
    %13 = vector.shape_cast %12 : vector<1x8x96xbf16> to vector<8x96xbf16>
    %14 = vector.shape_cast %11 : vector<8x96xbf16> to vector<1x8x96xbf16>
    tpu.vector_store %arg13[%c0_12, %c0_13, %c0_14], %14 {strides = array<i32>} : memref<8x8x96xbf16, #tpu.memory_space<vmem>>, vector<1x8x96xbf16>,
    %c0_15 = arith.constant 0 : index
    %c1 = arith.constant 1 : index
    %c0_16 = arith.constant 0 : index
    %15 = vector.load %arg1[%c0_15, %c1, %c0_16] : memref<8x8x32xbf16, #tpu.memory_space<vmem>>, vector<8x1x32xbf16>
    %16 = vector.shape_cast %15 : vector<8x1x32xbf16> to vector<8x32xbf16>
    %cst_17 = arith.constant dense<0.000000e+00> : vector<8x96xf32>
    %17 = tpu.matmul %16, %1, %cst_17 {dimension_numbers = #tpu.dot_dimension_numbers<[1], [0], [0], [1], [0, 0, 1, 1], [], []>} : vector<8x32xbf16>, vector<32x96xbf16>, vector<8x96xf32> -> vector<8x96xf32>
    %18 = arith.truncf %17 : vector<8x96xf32> to vector<8x96xbf16>
    %c1_18 = arith.constant 1 : index
    %c0_19 = arith.constant 0 : index
    %c0_20 = arith.constant 0 : index
    %19 = vector.load %arg12[%c1_18, %c0_19, %c0_20] : memref<8x8x96xbf16, #tpu.memory_space<vmem>>, vector<1x8x96xbf16>
    %20 = vector.shape_cast %19 : vector<1x8x96xbf16> to vector<8x96xbf16>
    %21 = vector.shape_cast %18 : vector<8x96xbf16> to vector<1x8x96xbf16>
    tpu.vector_store %arg12[%c1_18, %c0_19, %c0_20], %21 {strides = array<i32>} : memref<8x8x96xbf16, #tpu.memory_space<vmem>>, vector<1x8x96xbf16>,
    %cst_21 = arith.constant dense<0.000000e+00> : vector<8x96xf32>
    %22 = tpu.matmul %16, %2, %cst_21 {dimension_numbers = #tpu.dot_dimension_numbers<[1], [0], [0], [1], [0, 0, 1, 1], [], []>} : vector<8x32xbf16>, vector<32x96xbf16>, vector<8x96xf32> -> vector<8x96xf32>
    %23 = arith.truncf %22 : vector<8x96xf32> to vector<8x96xbf16>
    %c1_22 = arith.constant 1 : index
    %c0_23 = arith.constant 0 : index
    %c0_24 = arith.constant 0 : index
    %24 = vector.load %arg13[%c1_22, %c0_23, %c0_24] : memref<8x8x96xbf16, #tpu.memory_space<vmem>>, vector<1x8x96xbf16>
    %25 = vector.shape_cast %24 : vector<1x8x96xbf16> to vector<8x96xbf16>
    %26 = vector.shape_cast %23 : vector<8x96xbf16> to vector<1x8x96xbf16>
    tpu.vector_store %arg13[%c1_22, %c0_23, %c0_24], %26 {strides = array<i32>} : memref<8x8x96xbf16, #tpu.memory_space<vmem>>, vector<1x8x96xbf16>,
    %c0_25 = arith.constant 0 : index
    %c2 = arith.constant 2 : index
    %c0_26 = arith.constant 0 : index
    %27 = vector.load %arg1[%c0_25, %c2, %c0_26] : memref<8x8x32xbf16, #tpu.memory_space<vmem>>, vector<8x1x32xbf16>
    %28 = vector.shape_cast %27 : vector<8x1x32xbf16> to vector<8x32xbf16>
    %cst_27 = arith.constant dense<0.000000e+00> : vector<8x96xf32>
    %29 = tpu.matmul %28, %1, %cst_27 {dimension_numbers = #tpu.dot_dimension_numbers<[1], [0], [0], [1], [0, 0, 1, 1], [], []>} : vector<8x32xbf16>, vector<32x96xbf16>, vector<8x96xf32> -> vector<8x96xf32>
    %30 = arith.truncf %29 : vector<8x96xf32> to vector<8x96xbf16>
    %c2_28 = arith.constant 2 : index
    %c0_29 = arith.constant 0 : index
    %c0_30 = arith.constant 0 : index
    %31 = vector.load %arg12[%c2_28, %c0_29, %c0_30] : memref<8x8x96xbf16, #tpu.memory_space<vmem>>, vector<1x8x96xbf16>
    %32 = vector.shape_cast %31 : vector<1x8x96xbf16> to vector<8x96xbf16>
    %33 = vector.shape_cast %30 : vector<8x96xbf16> to vector<1x8x96xbf16>
    tpu.vector_store %arg12[%c2_28, %c0_29, %c0_30], %33 {strides = array<i32>} : memref<8x8x96xbf16, #tpu.memory_space<vmem>>, vector<1x8x96xbf16>,
    %cst_31 = arith.constant dense<0.000000e+00> : vector<8x96xf32>
    %34 = tpu.matmul %28, %2, %cst_31 {dimension_numbers = #tpu.dot_dimension_numbers<[1], [0], [0], [1], [0, 0, 1, 1], [], []>} : vector<8x32xbf16>, vector<32x96xbf16>, vector<8x96xf32> -> vector<8x96xf32>
    %35 = arith.truncf %34 : vector<8x96xf32> to vector<8x96xbf16>
    %c2_32 = arith.constant 2 : index
    %c0_33 = arith.constant 0 : index
    %c0_34 = arith.constant 0 : index
    %36 = vector.load %arg13[%c2_32, %c0_33, %c0_34] : memref<8x8x96xbf16, #tpu.memory_space<vmem>>, vector<1x8x96xbf16>
    %37 = vector.shape_cast %36 : vector<1x8x96xbf16> to vector<8x96xbf16>
    %38 = vector.shape_cast %35 : vector<8x96xbf16> to vector<1x8x96xbf16>
    tpu.vector_store %arg13[%c2_32, %c0_33, %c0_34], %38 {strides = array<i32>} : memref<8x8x96xbf16, #tpu.memory_space<vmem>>, vector<1x8x96xbf16>,
    %c0_35 = arith.constant 0 : index
    %c3 = arith.constant 3 : index
    %c0_36 = arith.constant 0 : index
    %39 = vector.load %arg1[%c0_35, %c3, %c0_36] : memref<8x8x32xbf16, #tpu.memory_space<vmem>>, vector<8x1x32xbf16>
    %40 = vector.shape_cast %39 : vector<8x1x32xbf16> to vector<8x32xbf16>
    %cst_37 = arith.constant dense<0.000000e+00> : vector<8x96xf32>
    %41 = tpu.matmul %40, %1, %cst_37 {dimension_numbers = #tpu.dot_dimension_numbers<[1], [0], [0], [1], [0, 0, 1, 1], [], []>} : vector<8x32xbf16>, vector<32x96xbf16>, vector<8x96xf32> -> vector<8x96xf32>
    %42 = arith.truncf %41 : vector<8x96xf32> to vector<8x96xbf16>
    %c3_38 = arith.constant 3 : index
    %c0_39 = arith.constant 0 : index
    %c0_40 = arith.constant 0 : index
    %43 = vector.load %arg12[%c3_38, %c0_39, %c0_40] : memref<8x8x96xbf16, #tpu.memory_space<vmem>>, vector<1x8x96xbf16>
    %44 = vector.shape_cast %43 : vector<1x8x96xbf16> to vector<8x96xbf16>
    %45 = vector.shape_cast %42 : vector<8x96xbf16> to vector<1x8x96xbf16>
    tpu.vector_store %arg12[%c3_38, %c0_39, %c0_40], %45 {strides = array<i32>} : memref<8x8x96xbf16, #tpu.memory_space<vmem>>, vector<1x8x96xbf16>,
    %cst_41 = arith.constant dense<0.000000e+00> : vector<8x96xf32>
    %46 = tpu.matmul %40, %2, %cst_41 {dimension_numbers = #tpu.dot_dimension_numbers<[1], [0], [0], [1], [0, 0, 1, 1], [], []>} : vector<8x32xbf16>, vector<32x96xbf16>, vector<8x96xf32> -> vector<8x96xf32>
    %47 = arith.truncf %46 : vector<8x96xf32> to vector<8x96xbf16>
    %c3_42 = arith.constant 3 : index
    %c0_43 = arith.constant 0 : index
    %c0_44 = arith.constant 0 : index
    %48 = vector.load %arg13[%c3_42, %c0_43, %c0_44] : memref<8x8x96xbf16, #tpu.memory_space<vmem>>, vector<1x8x96xbf16>
    %49 = vector.shape_cast %48 : vector<1x8x96xbf16> to vector<8x96xbf16>
    %50 = vector.shape_cast %47 : vector<8x96xbf16> to vector<1x8x96xbf16>
    tpu.vector_store %arg13[%c3_42, %c0_43, %c0_44], %50 {strides = array<i32>} : memref<8x8x96xbf16, #tpu.memory_space<vmem>>, vector<1x8x96xbf16>,
    %c0_45 = arith.constant 0 : index
    %c4 = arith.constant 4 : index
    %c0_46 = arith.constant 0 : index
    %51 = vector.load %arg1[%c0_45, %c4, %c0_46] : memref<8x8x32xbf16, #tpu.memory_space<vmem>>, vector<8x1x32xbf16>
    %52 = vector.shape_cast %51 : vector<8x1x32xbf16> to vector<8x32xbf16>
    %cst_47 = arith.constant dense<0.000000e+00> : vector<8x96xf32>
    %53 = tpu.matmul %52, %1, %cst_47 {dimension_numbers = #tpu.dot_dimension_numbers<[1], [0], [0], [1], [0, 0, 1, 1], [], []>} : vector<8x32xbf16>, vector<32x96xbf16>, vector<8x96xf32> -> vector<8x96xf32>
    %54 = arith.truncf %53 : vector<8x96xf32> to vector<8x96xbf16>
    %c4_48 = arith.constant 4 : index
    %c0_49 = arith.constant 0 : index
    %c0_50 = arith.constant 0 : index
    %55 = vector.load %arg12[%c4_48, %c0_49, %c0_50] : memref<8x8x96xbf16, #tpu.memory_space<vmem>>, vector<1x8x96xbf16>
    %56 = vector.shape_cast %55 : vector<1x8x96xbf16> to vector<8x96xbf16>
    %57 = vector.shape_cast %54 : vector<8x96xbf16> to vector<1x8x96xbf16>
    tpu.vector_store %arg12[%c4_48, %c0_49, %c0_50], %57 {strides = array<i32>} : memref<8x8x96xbf16, #tpu.memory_space<vmem>>, vector<1x8x96xbf16>,
    %cst_51 = arith.constant dense<0.000000e+00> : vector<8x96xf32>
    %58 = tpu.matmul %52, %2, %cst_51 {dimension_numbers = #tpu.dot_dimension_numbers<[1], [0], [0], [1], [0, 0, 1, 1], [], []>} : vector<8x32xbf16>, vector<32x96xbf16>, vector<8x96xf32> -> vector<8x96xf32>
    %59 = arith.truncf %58 : vector<8x96xf32> to vector<8x96xbf16>
    %c4_52 = arith.constant 4 : index
    %c0_53 = arith.constant 0 : index
    %c0_54 = arith.constant 0 : index
    %60 = vector.load %arg13[%c4_52, %c0_53, %c0_54] : memref<8x8x96xbf16, #tpu.memory_space<vmem>>, vector<1x8x96xbf16>
    %61 = vector.shape_cast %60 : vector<1x8x96xbf16> to vector<8x96xbf16>
    %62 = vector.shape_cast %59 : vector<8x96xbf16> to vector<1x8x96xbf16>
    tpu.vector_store %arg13[%c4_52, %c0_53, %c0_54], %62 {strides = array<i32>} : memref<8x8x96xbf16, #tpu.memory_space<vmem>>, vector<1x8x96xbf16>,
    %c0_55 = arith.constant 0 : index
    %c5 = arith.constant 5 : index
    %c0_56 = arith.constant 0 : index
    %63 = vector.load %arg1[%c0_55, %c5, %c0_56] : memref<8x8x32xbf16, #tpu.memory_space<vmem>>, vector<8x1x32xbf16>
    %64 = vector.shape_cast %63 : vector<8x1x32xbf16> to vector<8x32xbf16>
    %cst_57 = arith.constant dense<0.000000e+00> : vector<8x96xf32>
    %65 = tpu.matmul %64, %1, %cst_57 {dimension_numbers = #tpu.dot_dimension_numbers<[1], [0], [0], [1], [0, 0, 1, 1], [], []>} : vector<8x32xbf16>, vector<32x96xbf16>, vector<8x96xf32> -> vector<8x96xf32>
    %66 = arith.truncf %65 : vector<8x96xf32> to vector<8x96xbf16>
    %c5_58 = arith.constant 5 : index
    %c0_59 = arith.constant 0 : index
    %c0_60 = arith.constant 0 : index
    %67 = vector.load %arg12[%c5_58, %c0_59, %c0_60] : memref<8x8x96xbf16, #tpu.memory_space<vmem>>, vector<1x8x96xbf16>
    %68 = vector.shape_cast %67 : vector<1x8x96xbf16> to vector<8x96xbf16>
    %69 = vector.shape_cast %66 : vector<8x96xbf16> to vector<1x8x96xbf16>
    tpu.vector_store %arg12[%c5_58, %c0_59, %c0_60], %69 {strides = array<i32>} : memref<8x8x96xbf16, #tpu.memory_space<vmem>>, vector<1x8x96xbf16>,
    %cst_61 = arith.constant dense<0.000000e+00> : vector<8x96xf32>
    %70 = tpu.matmul %64, %2, %cst_61 {dimension_numbers = #tpu.dot_dimension_numbers<[1], [0], [0], [1], [0, 0, 1, 1], [], []>} : vector<8x32xbf16>, vector<32x96xbf16>, vector<8x96xf32> -> vector<8x96xf32>
    %71 = arith.truncf %70 : vector<8x96xf32> to vector<8x96xbf16>
    %c5_62 = arith.constant 5 : index
    %c0_63 = arith.constant 0 : index
    %c0_64 = arith.constant 0 : index
    %72 = vector.load %arg13[%c5_62, %c0_63, %c0_64] : memref<8x8x96xbf16, #tpu.memory_space<vmem>>, vector<1x8x96xbf16>
    %73 = vector.shape_cast %72 : vector<1x8x96xbf16> to vector<8x96xbf16>
    %74 = vector.shape_cast %71 : vector<8x96xbf16> to vector<1x8x96xbf16>
    tpu.vector_store %arg13[%c5_62, %c0_63, %c0_64], %74 {strides = array<i32>} : memref<8x8x96xbf16, #tpu.memory_space<vmem>>, vector<1x8x96xbf16>,
    %c0_65 = arith.constant 0 : index
    %c6 = arith.constant 6 : index
    %c0_66 = arith.constant 0 : index
    %75 = vector.load %arg1[%c0_65, %c6, %c0_66] : memref<8x8x32xbf16, #tpu.memory_space<vmem>>, vector<8x1x32xbf16>
    %76 = vector.shape_cast %75 : vector<8x1x32xbf16> to vector<8x32xbf16>
    %cst_67 = arith.constant dense<0.000000e+00> : vector<8x96xf32>
    %77 = tpu.matmul %76, %1, %cst_67 {dimension_numbers = #tpu.dot_dimension_numbers<[1], [0], [0], [1], [0, 0, 1, 1], [], []>} : vector<8x32xbf16>, vector<32x96xbf16>, vector<8x96xf32> -> vector<8x96xf32>
    %78 = arith.truncf %77 : vector<8x96xf32> to vector<8x96xbf16>
    %c6_68 = arith.constant 6 : index
    %c0_69 = arith.constant 0 : index
    %c0_70 = arith.constant 0 : index
    %79 = vector.load %arg12[%c6_68, %c0_69, %c0_70] : memref<8x8x96xbf16, #tpu.memory_space<vmem>>, vector<1x8x96xbf16>
    %80 = vector.shape_cast %79 : vector<1x8x96xbf16> to vector<8x96xbf16>
    %81 = vector.shape_cast %78 : vector<8x96xbf16> to vector<1x8x96xbf16>
    tpu.vector_store %arg12[%c6_68, %c0_69, %c0_70], %81 {strides = array<i32>} : memref<8x8x96xbf16, #tpu.memory_space<vmem>>, vector<1x8x96xbf16>,
    %cst_71 = arith.constant dense<0.000000e+00> : vector<8x96xf32>
    %82 = tpu.matmul %76, %2, %cst_71 {dimension_numbers = #tpu.dot_dimension_numbers<[1], [0], [0], [1], [0, 0, 1, 1], [], []>} : vector<8x32xbf16>, vector<32x96xbf16>, vector<8x96xf32> -> vector<8x96xf32>
    %83 = arith.truncf %82 : vector<8x96xf32> to vector<8x96xbf16>
    %c6_72 = arith.constant 6 : index
    %c0_73 = arith.constant 0 : index
    %c0_74 = arith.constant 0 : index
    %84 = vector.load %arg13[%c6_72, %c0_73, %c0_74] : memref<8x8x96xbf16, #tpu.memory_space<vmem>>, vector<1x8x96xbf16>
    %85 = vector.shape_cast %84 : vector<1x8x96xbf16> to vector<8x96xbf16>
    %86 = vector.shape_cast %83 : vector<8x96xbf16> to vector<1x8x96xbf16>
    tpu.vector_store %arg13[%c6_72, %c0_73, %c0_74], %86 {strides = array<i32>} : memref<8x8x96xbf16, #tpu.memory_space<vmem>>, vector<1x8x96xbf16>,
    %c0_75 = arith.constant 0 : index
    %c7 = arith.constant 7 : index
    %c0_76 = arith.constant 0 : index
    %87 = vector.load %arg1[%c0_75, %c7, %c0_76] : memref<8x8x32xbf16, #tpu.memory_space<vmem>>, vector<8x1x32xbf16>
    %88 = vector.shape_cast %87 : vector<8x1x32xbf16> to vector<8x32xbf16>
    %cst_77 = arith.constant dense<0.000000e+00> : vector<8x96xf32>
    %89 = tpu.matmul %88, %1, %cst_77 {dimension_numbers = #tpu.dot_dimension_numbers<[1], [0], [0], [1], [0, 0, 1, 1], [], []>} : vector<8x32xbf16>, vector<32x96xbf16>, vector<8x96xf32> -> vector<8x96xf32>
    %90 = arith.truncf %89 : vector<8x96xf32> to vector<8x96xbf16>
    %c7_78 = arith.constant 7 : index
    %c0_79 = arith.constant 0 : index
    %c0_80 = arith.constant 0 : index
    %91 = vector.load %arg12[%c7_78, %c0_79, %c0_80] : memref<8x8x96xbf16, #tpu.memory_space<vmem>>, vector<1x8x96xbf16>
    %92 = vector.shape_cast %91 : vector<1x8x96xbf16> to vector<8x96xbf16>
    %93 = vector.shape_cast %90 : vector<8x96xbf16> to vector<1x8x96xbf16>
    tpu.vector_store %arg12[%c7_78, %c0_79, %c0_80], %93 {strides = array<i32>} : memref<8x8x96xbf16, #tpu.memory_space<vmem>>, vector<1x8x96xbf16>,
    %cst_81 = arith.constant dense<0.000000e+00> : vector<8x96xf32>
    %94 = tpu.matmul %88, %2, %cst_81 {dimension_numbers = #tpu.dot_dimension_numbers<[1], [0], [0], [1], [0, 0, 1, 1], [], []>} : vector<8x32xbf16>, vector<32x96xbf16>, vector<8x96xf32> -> vector<8x96xf32>
    %95 = arith.truncf %94 : vector<8x96xf32> to vector<8x96xbf16>
    %c7_82 = arith.constant 7 : index
    %c0_83 = arith.constant 0 : index
    %c0_84 = arith.constant 0 : index
    %96 = vector.load %arg13[%c7_82, %c0_83, %c0_84] : memref<8x8x96xbf16, #tpu.memory_space<vmem>>, vector<1x8x96xbf16>
    %97 = vector.shape_cast %96 : vector<1x8x96xbf16> to vector<8x96xbf16>
    %98 = vector.shape_cast %95 : vector<8x96xbf16> to vector<1x8x96xbf16>
    tpu.vector_store %arg13[%c7_82, %c0_83, %c0_84], %98 {strides = array<i32>} : memref<8x8x96xbf16, #tpu.memory_space<vmem>>, vector<1x8x96xbf16>,
    %c0_85 = arith.constant 0 : index
    %c0_86 = arith.constant 0 : index
    %99 = vector.load %arg5[%c0_85, %c0_86] : memref<64x192xbf16, #tpu.memory_space<vmem>>, vector<64x192xbf16>
    %cst_87 = arith.constant 0.000000e+00 : f32
    %100 = vector.broadcast %cst_87 : f32 to vector<8x32xf32>
    %cst_88 = arith.constant 0.000000e+00 : f32
    %101 = vector.broadcast %cst_88 : f32 to vector<8x32xf32>
    %cst_89 = arith.constant 0.000000e+00 : f32
    %102 = vector.broadcast %cst_89 : f32 to vector<8x192xf32>
    %c0_90 = arith.constant 0 : index
    %c0_91 = arith.constant 0 : index
    %c0_92 = arith.constant 0 : index
    %103 = vector.load %arg12[%c0_90, %c0_91, %c0_92] : memref<8x8x96xbf16, #tpu.memory_space<vmem>>, vector<1x8x96xbf16>
    %104 = vector.shape_cast %103 : vector<1x8x96xbf16> to vector<8x96xbf16>
    %105 = arith.extf %104 : vector<8x96xbf16> to vector<8x96xf32>
    %106 = vector.extract_strided_slice %102 {offsets = [0, 0], sizes = [8, 96], strides = [1, 1]} : vector<8x192xf32> to vector<8x96xf32>
    %107 = vector.extract_strided_slice %105 {offsets = [0, 0], sizes = [8, 64], strides = [1, 1]} : vector<8x96xf32> to vector<8x64xf32>
    %108 = vector.extract_strided_slice %106 {offsets = [0, 0], sizes = [8, 64], strides = [1, 1]} : vector<8x96xf32> to vector<8x64xf32>
    %109 = arith.addf %107, %108 : vector<8x64xf32>
    %110 = arith.negf %109 : vector<8x64xf32>
    %111 = math.exp %110 : vector<8x64xf32>
    %cst_93 = arith.constant 1.000000e+00 : f32
    %112 = vector.broadcast %cst_93 : f32 to vector<8x64xf32>
    %113 = arith.addf %112, %111 : vector<8x64xf32>
    %114 = arith.divf %112, %113 : vector<8x64xf32>
    %115 = vector.extract_strided_slice %114 {offsets = [0, 0], sizes = [8, 32], strides = [1, 1]} : vector<8x64xf32> to vector<8x32xf32>
    %116 = vector.extract_strided_slice %114 {offsets = [0, 32], sizes = [8, 32], strides = [1, 1]} : vector<8x64xf32> to vector<8x32xf32>
    %117 = vector.extract_strided_slice %105 {offsets = [0, 64], sizes = [8, 32], strides = [1, 1]} : vector<8x96xf32> to vector<8x32xf32>
    %118 = vector.extract_strided_slice %106 {offsets = [0, 64], sizes = [8, 32], strides = [1, 1]} : vector<8x96xf32> to vector<8x32xf32>
    %119 = arith.mulf %115, %118 : vector<8x32xf32>
    %120 = arith.addf %117, %119 : vector<8x32xf32>
    %121 = math.tanh %120 : vector<8x32xf32>
    %122 = arith.subf %100, %121 : vector<8x32xf32>
    %123 = arith.mulf %116, %122 : vector<8x32xf32>
    %124 = arith.addf %121, %123 : vector<8x32xf32>
    %c7_94 = arith.constant 7 : index
    %c0_95 = arith.constant 0 : index
    %c0_96 = arith.constant 0 : index
    %125 = vector.load %arg13[%c7_94, %c0_95, %c0_96] : memref<8x8x96xbf16, #tpu.memory_space<vmem>>, vector<1x8x96xbf16>
    %126 = vector.shape_cast %125 : vector<1x8x96xbf16> to vector<8x96xbf16>
    %127 = arith.extf %126 : vector<8x96xbf16> to vector<8x96xf32>
    %128 = vector.extract_strided_slice %102 {offsets = [0, 96], sizes = [8, 96], strides = [1, 1]} : vector<8x192xf32> to vector<8x96xf32>
    %129 = vector.extract_strided_slice %127 {offsets = [0, 0], sizes = [8, 64], strides = [1, 1]} : vector<8x96xf32> to vector<8x64xf32>
    %130 = vector.extract_strided_slice %128 {offsets = [0, 0], sizes = [8, 64], strides = [1, 1]} : vector<8x96xf32> to vector<8x64xf32>
    %131 = arith.addf %129, %130 : vector<8x64xf32>
    %132 = arith.negf %131 : vector<8x64xf32>
    %133 = math.exp %132 : vector<8x64xf32>
    %cst_97 = arith.constant 1.000000e+00 : f32
    %134 = vector.broadcast %cst_97 : f32 to vector<8x64xf32>
    %135 = arith.addf %134, %133 : vector<8x64xf32>
    %136 = arith.divf %134, %135 : vector<8x64xf32>
    %137 = vector.extract_strided_slice %136 {offsets = [0, 0], sizes = [8, 32], strides = [1, 1]} : vector<8x64xf32> to vector<8x32xf32>
    %138 = vector.extract_strided_slice %136 {offsets = [0, 32], sizes = [8, 32], strides = [1, 1]} : vector<8x64xf32> to vector<8x32xf32>
    %139 = vector.extract_strided_slice %127 {offsets = [0, 64], sizes = [8, 32], strides = [1, 1]} : vector<8x96xf32> to vector<8x32xf32>
    %140 = vector.extract_strided_slice %128 {offsets = [0, 64], sizes = [8, 32], strides = [1, 1]} : vector<8x96xf32> to vector<8x32xf32>
    %141 = arith.mulf %137, %140 : vector<8x32xf32>
    %142 = arith.addf %139, %141 : vector<8x32xf32>
    %143 = math.tanh %142 : vector<8x32xf32>
    %144 = arith.subf %101, %143 : vector<8x32xf32>
    %145 = arith.mulf %138, %144 : vector<8x32xf32>
    %146 = arith.addf %143, %145 : vector<8x32xf32>
    %c0_i32 = arith.constant 0 : i32
    %147 = vector.broadcast %c0_i32 : i32 to vector<8x1xi32>
    %148 = arith.cmpi sgt, %0, %147 : vector<8x1xi32>
    %149 = arith.extui %148 : vector<8x1xi1> to vector<8x1xi32>
    %150 = arith.sitofp %149 : vector<8x1xi32> to vector<8x1xf32>
    %c7_i32 = arith.constant 7 : i32
    %151 = vector.broadcast %c7_i32 : i32 to vector<8x1xi32>
    %152 = arith.cmpi sgt, %0, %151 : vector<8x1xi32>
    %153 = arith.extui %152 : vector<8x1xi1> to vector<8x1xi32>
    %154 = arith.sitofp %153 : vector<8x1xi32> to vector<8x1xf32>
    %155 = vector.broadcast %150 : vector<8x1xf32> to vector<8x32xf32>
    %156 = arith.mulf %155, %124 : vector<8x32xf32>
    %cst_98 = arith.constant 1.000000e+00 : f32
    %157 = vector.broadcast %cst_98 : f32 to vector<8x1xf32>
    %158 = arith.subf %157, %150 : vector<8x1xf32>
    %159 = vector.broadcast %158 : vector<8x1xf32> to vector<8x32xf32>
    %160 = arith.mulf %159, %100 : vector<8x32xf32>
    %161 = arith.addf %156, %160 : vector<8x32xf32>
    %162 = vector.broadcast %154 : vector<8x1xf32> to vector<8x32xf32>
    %163 = arith.mulf %162, %146 : vector<8x32xf32>
    %164 = arith.truncf %161 : vector<8x32xf32> to vector<8x32xbf16>
    %c0_99 = arith.constant 0 : index
    %c0_100 = arith.constant 0 : index
    %c0_101 = arith.constant 0 : index
    %165 = vector.load %arg14[%c0_99, %c0_100, %c0_101] : memref<8x8x32xbf16, #tpu.memory_space<vmem>>, vector<1x8x32xbf16>
    %166 = vector.shape_cast %165 : vector<1x8x32xbf16> to vector<8x32xbf16>
    %167 = vector.shape_cast %164 : vector<8x32xbf16> to vector<1x8x32xbf16>
    tpu.vector_store %arg14[%c0_99, %c0_100, %c0_101], %167 {strides = array<i32>} : memref<8x8x32xbf16, #tpu.memory_space<vmem>>, vector<1x8x32xbf16>,
    %168 = arith.truncf %163 : vector<8x32xf32> to vector<8x32xbf16>
    %c7_102 = arith.constant 7 : index
    %c0_103 = arith.constant 0 : index
    %c0_104 = arith.constant 0 : index
    %169 = vector.load %arg15[%c7_102, %c0_103, %c0_104] : memref<8x8x32xbf16, #tpu.memory_space<vmem>>, vector<1x8x32xbf16>
    %170 = vector.shape_cast %169 : vector<1x8x32xbf16> to vector<8x32xbf16>
    %171 = vector.shape_cast %168 : vector<8x32xbf16> to vector<1x8x32xbf16>
    tpu.vector_store %arg15[%c7_102, %c0_103, %c0_104], %171 {strides = array<i32>} : memref<8x8x32xbf16, #tpu.memory_space<vmem>>, vector<1x8x32xbf16>,
    %172 = tpu.concatenate %161, %163 in 1 : vector<8x32xf32>, vector<8x32xf32> -> vector<8x64xf32>
    %173 = arith.truncf %172 : vector<8x64xf32> to vector<8x64xbf16>
    %cst_105 = arith.constant dense<0.000000e+00> : vector<8x192xf32>
    %174 = tpu.matmul %173, %99, %cst_105 {dimension_numbers = #tpu.dot_dimension_numbers<[1], [0], [0], [1], [0, 0, 1, 1], [], []>} : vector<8x64xbf16>, vector<64x192xbf16>, vector<8x192xf32> -> vector<8x192xf32>
    %c1_106 = arith.constant 1 : index
    %c0_107 = arith.constant 0 : index
    %c0_108 = arith.constant 0 : index
    %175 = vector.load %arg12[%c1_106, %c0_107, %c0_108] : memref<8x8x96xbf16, #tpu.memory_space<vmem>>, vector<1x8x96xbf16>
    %176 = vector.shape_cast %175 : vector<1x8x96xbf16> to vector<8x96xbf16>
    %177 = arith.extf %176 : vector<8x96xbf16> to vector<8x96xf32>
    %178 = vector.extract_strided_slice %174 {offsets = [0, 0], sizes = [8, 96], strides = [1, 1]} : vector<8x192xf32> to vector<8x96xf32>
    %179 = vector.extract_strided_slice %177 {offsets = [0, 0], sizes = [8, 64], strides = [1, 1]} : vector<8x96xf32> to vector<8x64xf32>
    %180 = vector.extract_strided_slice %178 {offsets = [0, 0], sizes = [8, 64], strides = [1, 1]} : vector<8x96xf32> to vector<8x64xf32>
    %181 = arith.addf %179, %180 : vector<8x64xf32>
    %182 = arith.negf %181 : vector<8x64xf32>
    %183 = math.exp %182 : vector<8x64xf32>
    %cst_109 = arith.constant 1.000000e+00 : f32
    %184 = vector.broadcast %cst_109 : f32 to vector<8x64xf32>
    %185 = arith.addf %184, %183 : vector<8x64xf32>
    %186 = arith.divf %184, %185 : vector<8x64xf32>
    %187 = vector.extract_strided_slice %186 {offsets = [0, 0], sizes = [8, 32], strides = [1, 1]} : vector<8x64xf32> to vector<8x32xf32>
    %188 = vector.extract_strided_slice %186 {offsets = [0, 32], sizes = [8, 32], strides = [1, 1]} : vector<8x64xf32> to vector<8x32xf32>
    %189 = vector.extract_strided_slice %177 {offsets = [0, 64], sizes = [8, 32], strides = [1, 1]} : vector<8x96xf32> to vector<8x32xf32>
    %190 = vector.extract_strided_slice %178 {offsets = [0, 64], sizes = [8, 32], strides = [1, 1]} : vector<8x96xf32> to vector<8x32xf32>
    %191 = arith.mulf %187, %190 : vector<8x32xf32>
    %192 = arith.addf %189, %191 : vector<8x32xf32>
    %193 = math.tanh %192 : vector<8x32xf32>
    %194 = arith.subf %161, %193 : vector<8x32xf32>
    %195 = arith.mulf %188, %194 : vector<8x32xf32>
    %196 = arith.addf %193, %195 : vector<8x32xf32>
    %c6_110 = arith.constant 6 : index
    %c0_111 = arith.constant 0 : index
    %c0_112 = arith.constant 0 : index
    %197 = vector.load %arg13[%c6_110, %c0_111, %c0_112] : memref<8x8x96xbf16, #tpu.memory_space<vmem>>, vector<1x8x96xbf16>
    %198 = vector.shape_cast %197 : vector<1x8x96xbf16> to vector<8x96xbf16>
    %199 = arith.extf %198 : vector<8x96xbf16> to vector<8x96xf32>
    %200 = vector.extract_strided_slice %174 {offsets = [0, 96], sizes = [8, 96], strides = [1, 1]} : vector<8x192xf32> to vector<8x96xf32>
    %201 = vector.extract_strided_slice %199 {offsets = [0, 0], sizes = [8, 64], strides = [1, 1]} : vector<8x96xf32> to vector<8x64xf32>
    %202 = vector.extract_strided_slice %200 {offsets = [0, 0], sizes = [8, 64], strides = [1, 1]} : vector<8x96xf32> to vector<8x64xf32>
    %203 = arith.addf %201, %202 : vector<8x64xf32>
    %204 = arith.negf %203 : vector<8x64xf32>
    %205 = math.exp %204 : vector<8x64xf32>
    %cst_113 = arith.constant 1.000000e+00 : f32
    %206 = vector.broadcast %cst_113 : f32 to vector<8x64xf32>
    %207 = arith.addf %206, %205 : vector<8x64xf32>
    %208 = arith.divf %206, %207 : vector<8x64xf32>
    %209 = vector.extract_strided_slice %208 {offsets = [0, 0], sizes = [8, 32], strides = [1, 1]} : vector<8x64xf32> to vector<8x32xf32>
    %210 = vector.extract_strided_slice %208 {offsets = [0, 32], sizes = [8, 32], strides = [1, 1]} : vector<8x64xf32> to vector<8x32xf32>
    %211 = vector.extract_strided_slice %199 {offsets = [0, 64], sizes = [8, 32], strides = [1, 1]} : vector<8x96xf32> to vector<8x32xf32>
    %212 = vector.extract_strided_slice %200 {offsets = [0, 64], sizes = [8, 32], strides = [1, 1]} : vector<8x96xf32> to vector<8x32xf32>
    %213 = arith.mulf %209, %212 : vector<8x32xf32>
    %214 = arith.addf %211, %213 : vector<8x32xf32>
    %215 = math.tanh %214 : vector<8x32xf32>
    %216 = arith.subf %163, %215 : vector<8x32xf32>
    %217 = arith.mulf %210, %216 : vector<8x32xf32>
    %218 = arith.addf %215, %217 : vector<8x32xf32>
    %c1_i32 = arith.constant 1 : i32
    %219 = vector.broadcast %c1_i32 : i32 to vector<8x1xi32>
    %220 = arith.cmpi sgt, %0, %219 : vector<8x1xi32>
    %221 = arith.extui %220 : vector<8x1xi1> to vector<8x1xi32>
    %222 = arith.sitofp %221 : vector<8x1xi32> to vector<8x1xf32>
    %c6_i32 = arith.constant 6 : i32
    %223 = vector.broadcast %c6_i32 : i32 to vector<8x1xi32>
    %224 = arith.cmpi sgt, %0, %223 : vector<8x1xi32>
    %225 = arith.extui %224 : vector<8x1xi1> to vector<8x1xi32>
    %226 = arith.sitofp %225 : vector<8x1xi32> to vector<8x1xf32>
    %227 = vector.broadcast %222 : vector<8x1xf32> to vector<8x32xf32>
    %228 = arith.mulf %227, %196 : vector<8x32xf32>
    %cst_114 = arith.constant 1.000000e+00 : f32
    %229 = vector.broadcast %cst_114 : f32 to vector<8x1xf32>
    %230 = arith.subf %229, %222 : vector<8x1xf32>
    %231 = vector.broadcast %230 : vector<8x1xf32> to vector<8x32xf32>
    %232 = arith.mulf %231, %161 : vector<8x32xf32>
    %233 = arith.addf %228, %232 : vector<8x32xf32>
    %234 = vector.broadcast %226 : vector<8x1xf32> to vector<8x32xf32>
    %235 = arith.mulf %234, %218 : vector<8x32xf32>
    %236 = arith.truncf %233 : vector<8x32xf32> to vector<8x32xbf16>
    %c1_115 = arith.constant 1 : index
    %c0_116 = arith.constant 0 : index
    %c0_117 = arith.constant 0 : index
    %237 = vector.load %arg14[%c1_115, %c0_116, %c0_117] : memref<8x8x32xbf16, #tpu.memory_space<vmem>>, vector<1x8x32xbf16>
    %238 = vector.shape_cast %237 : vector<1x8x32xbf16> to vector<8x32xbf16>
    %239 = vector.shape_cast %236 : vector<8x32xbf16> to vector<1x8x32xbf16>
    tpu.vector_store %arg14[%c1_115, %c0_116, %c0_117], %239 {strides = array<i32>} : memref<8x8x32xbf16, #tpu.memory_space<vmem>>, vector<1x8x32xbf16>,
    %240 = arith.truncf %235 : vector<8x32xf32> to vector<8x32xbf16>
    %c6_118 = arith.constant 6 : index
    %c0_119 = arith.constant 0 : index
    %c0_120 = arith.constant 0 : index
    %241 = vector.load %arg15[%c6_118, %c0_119, %c0_120] : memref<8x8x32xbf16, #tpu.memory_space<vmem>>, vector<1x8x32xbf16>
    %242 = vector.shape_cast %241 : vector<1x8x32xbf16> to vector<8x32xbf16>
    %243 = vector.shape_cast %240 : vector<8x32xbf16> to vector<1x8x32xbf16>
    tpu.vector_store %arg15[%c6_118, %c0_119, %c0_120], %243 {strides = array<i32>} : memref<8x8x32xbf16, #tpu.memory_space<vmem>>, vector<1x8x32xbf16>,
    %244 = tpu.concatenate %233, %235 in 1 : vector<8x32xf32>, vector<8x32xf32> -> vector<8x64xf32>
    %245 = arith.truncf %244 : vector<8x64xf32> to vector<8x64xbf16>
    %cst_121 = arith.constant dense<0.000000e+00> : vector<8x192xf32>
    %246 = tpu.matmul %245, %99, %cst_121 {dimension_numbers = #tpu.dot_dimension_numbers<[1], [0], [0], [1], [0, 0, 1, 1], [], []>} : vector<8x64xbf16>, vector<64x192xbf16>, vector<8x192xf32> -> vector<8x192xf32>
    %c2_122 = arith.constant 2 : index
    %c0_123 = arith.constant 0 : index
    %c0_124 = arith.constant 0 : index
    %247 = vector.load %arg12[%c2_122, %c0_123, %c0_124] : memref<8x8x96xbf16, #tpu.memory_space<vmem>>, vector<1x8x96xbf16>
    %248 = vector.shape_cast %247 : vector<1x8x96xbf16> to vector<8x96xbf16>
    %249 = arith.extf %248 : vector<8x96xbf16> to vector<8x96xf32>
    %250 = vector.extract_strided_slice %246 {offsets = [0, 0], sizes = [8, 96], strides = [1, 1]} : vector<8x192xf32> to vector<8x96xf32>
    %251 = vector.extract_strided_slice %249 {offsets = [0, 0], sizes = [8, 64], strides = [1, 1]} : vector<8x96xf32> to vector<8x64xf32>
    %252 = vector.extract_strided_slice %250 {offsets = [0, 0], sizes = [8, 64], strides = [1, 1]} : vector<8x96xf32> to vector<8x64xf32>
    %253 = arith.addf %251, %252 : vector<8x64xf32>
    %254 = arith.negf %253 : vector<8x64xf32>
    %255 = math.exp %254 : vector<8x64xf32>
    %cst_125 = arith.constant 1.000000e+00 : f32
    %256 = vector.broadcast %cst_125 : f32 to vector<8x64xf32>
    %257 = arith.addf %256, %255 : vector<8x64xf32>
    %258 = arith.divf %256, %257 : vector<8x64xf32>
    %259 = vector.extract_strided_slice %258 {offsets = [0, 0], sizes = [8, 32], strides = [1, 1]} : vector<8x64xf32> to vector<8x32xf32>
    %260 = vector.extract_strided_slice %258 {offsets = [0, 32], sizes = [8, 32], strides = [1, 1]} : vector<8x64xf32> to vector<8x32xf32>
    %261 = vector.extract_strided_slice %249 {offsets = [0, 64], sizes = [8, 32], strides = [1, 1]} : vector<8x96xf32> to vector<8x32xf32>
    %262 = vector.extract_strided_slice %250 {offsets = [0, 64], sizes = [8, 32], strides = [1, 1]} : vector<8x96xf32> to vector<8x32xf32>
    %263 = arith.mulf %259, %262 : vector<8x32xf32>
    %264 = arith.addf %261, %263 : vector<8x32xf32>
    %265 = math.tanh %264 : vector<8x32xf32>
    %266 = arith.subf %233, %265 : vector<8x32xf32>
    %267 = arith.mulf %260, %266 : vector<8x32xf32>
    %268 = arith.addf %265, %267 : vector<8x32xf32>
    %c5_126 = arith.constant 5 : index
    %c0_127 = arith.constant 0 : index
    %c0_128 = arith.constant 0 : index
    %269 = vector.load %arg13[%c5_126, %c0_127, %c0_128] : memref<8x8x96xbf16, #tpu.memory_space<vmem>>, vector<1x8x96xbf16>
    %270 = vector.shape_cast %269 : vector<1x8x96xbf16> to vector<8x96xbf16>
    %271 = arith.extf %270 : vector<8x96xbf16> to vector<8x96xf32>
    %272 = vector.extract_strided_slice %246 {offsets = [0, 96], sizes = [8, 96], strides = [1, 1]} : vector<8x192xf32> to vector<8x96xf32>
    %273 = vector.extract_strided_slice %271 {offsets = [0, 0], sizes = [8, 64], strides = [1, 1]} : vector<8x96xf32> to vector<8x64xf32>
    %274 = vector.extract_strided_slice %272 {offsets = [0, 0], sizes = [8, 64], strides = [1, 1]} : vector<8x96xf32> to vector<8x64xf32>
    %275 = arith.addf %273, %274 : vector<8x64xf32>
    %276 = arith.negf %275 : vector<8x64xf32>
    %277 = math.exp %276 : vector<8x64xf32>
    %cst_129 = arith.constant 1.000000e+00 : f32
    %278 = vector.broadcast %cst_129 : f32 to vector<8x64xf32>
    %279 = arith.addf %278, %277 : vector<8x64xf32>
    %280 = arith.divf %278, %279 : vector<8x64xf32>
    %281 = vector.extract_strided_slice %280 {offsets = [0, 0], sizes = [8, 32], strides = [1, 1]} : vector<8x64xf32> to vector<8x32xf32>
    %282 = vector.extract_strided_slice %280 {offsets = [0, 32], sizes = [8, 32], strides = [1, 1]} : vector<8x64xf32> to vector<8x32xf32>
    %283 = vector.extract_strided_slice %271 {offsets = [0, 64], sizes = [8, 32], strides = [1, 1]} : vector<8x96xf32> to vector<8x32xf32>
    %284 = vector.extract_strided_slice %272 {offsets = [0, 64], sizes = [8, 32], strides = [1, 1]} : vector<8x96xf32> to vector<8x32xf32>
    %285 = arith.mulf %281, %284 : vector<8x32xf32>
    %286 = arith.addf %283, %285 : vector<8x32xf32>
    %287 = math.tanh %286 : vector<8x32xf32>
    %288 = arith.subf %235, %287 : vector<8x32xf32>
    %289 = arith.mulf %282, %288 : vector<8x32xf32>
    %290 = arith.addf %287, %289 : vector<8x32xf32>
    %c2_i32 = arith.constant 2 : i32
    %291 = vector.broadcast %c2_i32 : i32 to vector<8x1xi32>
    %292 = arith.cmpi sgt, %0, %291 : vector<8x1xi32>
    %293 = arith.extui %292 : vector<8x1xi1> to vector<8x1xi32>
    %294 = arith.sitofp %293 : vector<8x1xi32> to vector<8x1xf32>
    %c5_i32 = arith.constant 5 : i32
    %295 = vector.broadcast %c5_i32 : i32 to vector<8x1xi32>
    %296 = arith.cmpi sgt, %0, %295 : vector<8x1xi32>
    %297 = arith.extui %296 : vector<8x1xi1> to vector<8x1xi32>
    %298 = arith.sitofp %297 : vector<8x1xi32> to vector<8x1xf32>
    %299 = vector.broadcast %294 : vector<8x1xf32> to vector<8x32xf32>
    %300 = arith.mulf %299, %268 : vector<8x32xf32>
    %cst_130 = arith.constant 1.000000e+00 : f32
    %301 = vector.broadcast %cst_130 : f32 to vector<8x1xf32>
    %302 = arith.subf %301, %294 : vector<8x1xf32>
    %303 = vector.broadcast %302 : vector<8x1xf32> to vector<8x32xf32>
    %304 = arith.mulf %303, %233 : vector<8x32xf32>
    %305 = arith.addf %300, %304 : vector<8x32xf32>
    %306 = vector.broadcast %298 : vector<8x1xf32> to vector<8x32xf32>
    %307 = arith.mulf %306, %290 : vector<8x32xf32>
    %308 = arith.truncf %305 : vector<8x32xf32> to vector<8x32xbf16>
    %c2_131 = arith.constant 2 : index
    %c0_132 = arith.constant 0 : index
    %c0_133 = arith.constant 0 : index
    %309 = vector.load %arg14[%c2_131, %c0_132, %c0_133] : memref<8x8x32xbf16, #tpu.memory_space<vmem>>, vector<1x8x32xbf16>
    %310 = vector.shape_cast %309 : vector<1x8x32xbf16> to vector<8x32xbf16>
    %311 = vector.shape_cast %308 : vector<8x32xbf16> to vector<1x8x32xbf16>
    tpu.vector_store %arg14[%c2_131, %c0_132, %c0_133], %311 {strides = array<i32>} : memref<8x8x32xbf16, #tpu.memory_space<vmem>>, vector<1x8x32xbf16>,
    %312 = arith.truncf %307 : vector<8x32xf32> to vector<8x32xbf16>
    %c5_134 = arith.constant 5 : index
    %c0_135 = arith.constant 0 : index
    %c0_136 = arith.constant 0 : index
    %313 = vector.load %arg15[%c5_134, %c0_135, %c0_136] : memref<8x8x32xbf16, #tpu.memory_space<vmem>>, vector<1x8x32xbf16>
    %314 = vector.shape_cast %313 : vector<1x8x32xbf16> to vector<8x32xbf16>
    %315 = vector.shape_cast %312 : vector<8x32xbf16> to vector<1x8x32xbf16>
    tpu.vector_store %arg15[%c5_134, %c0_135, %c0_136], %315 {strides = array<i32>} : memref<8x8x32xbf16, #tpu.memory_space<vmem>>, vector<1x8x32xbf16>,
    %316 = tpu.concatenate %305, %307 in 1 : vector<8x32xf32>, vector<8x32xf32> -> vector<8x64xf32>
    %317 = arith.truncf %316 : vector<8x64xf32> to vector<8x64xbf16>
    %cst_137 = arith.constant dense<0.000000e+00> : vector<8x192xf32>
    %318 = tpu.matmul %317, %99, %cst_137 {dimension_numbers = #tpu.dot_dimension_numbers<[1], [0], [0], [1], [0, 0, 1, 1], [], []>} : vector<8x64xbf16>, vector<64x192xbf16>, vector<8x192xf32> -> vector<8x192xf32>
    %c3_138 = arith.constant 3 : index
    %c0_139 = arith.constant 0 : index
    %c0_140 = arith.constant 0 : index
    %319 = vector.load %arg12[%c3_138, %c0_139, %c0_140] : memref<8x8x96xbf16, #tpu.memory_space<vmem>>, vector<1x8x96xbf16>
    %320 = vector.shape_cast %319 : vector<1x8x96xbf16> to vector<8x96xbf16>
    %321 = arith.extf %320 : vector<8x96xbf16> to vector<8x96xf32>
    %322 = vector.extract_strided_slice %318 {offsets = [0, 0], sizes = [8, 96], strides = [1, 1]} : vector<8x192xf32> to vector<8x96xf32>
    %323 = vector.extract_strided_slice %321 {offsets = [0, 0], sizes = [8, 64], strides = [1, 1]} : vector<8x96xf32> to vector<8x64xf32>
    %324 = vector.extract_strided_slice %322 {offsets = [0, 0], sizes = [8, 64], strides = [1, 1]} : vector<8x96xf32> to vector<8x64xf32>
    %325 = arith.addf %323, %324 : vector<8x64xf32>
    %326 = arith.negf %325 : vector<8x64xf32>
    %327 = math.exp %326 : vector<8x64xf32>
    %cst_141 = arith.constant 1.000000e+00 : f32
    %328 = vector.broadcast %cst_141 : f32 to vector<8x64xf32>
    %329 = arith.addf %328, %327 : vector<8x64xf32>
    %330 = arith.divf %328, %329 : vector<8x64xf32>
    %331 = vector.extract_strided_slice %330 {offsets = [0, 0], sizes = [8, 32], strides = [1, 1]} : vector<8x64xf32> to vector<8x32xf32>
    %332 = vector.extract_strided_slice %330 {offsets = [0, 32], sizes = [8, 32], strides = [1, 1]} : vector<8x64xf32> to vector<8x32xf32>
    %333 = vector.extract_strided_slice %321 {offsets = [0, 64], sizes = [8, 32], strides = [1, 1]} : vector<8x96xf32> to vector<8x32xf32>
    %334 = vector.extract_strided_slice %322 {offsets = [0, 64], sizes = [8, 32], strides = [1, 1]} : vector<8x96xf32> to vector<8x32xf32>
    %335 = arith.mulf %331, %334 : vector<8x32xf32>
    %336 = arith.addf %333, %335 : vector<8x32xf32>
    %337 = math.tanh %336 : vector<8x32xf32>
    %338 = arith.subf %305, %337 : vector<8x32xf32>
    %339 = arith.mulf %332, %338 : vector<8x32xf32>
    %340 = arith.addf %337, %339 : vector<8x32xf32>
    %c4_142 = arith.constant 4 : index
    %c0_143 = arith.constant 0 : index
    %c0_144 = arith.constant 0 : index
    %341 = vector.load %arg13[%c4_142, %c0_143, %c0_144] : memref<8x8x96xbf16, #tpu.memory_space<vmem>>, vector<1x8x96xbf16>
    %342 = vector.shape_cast %341 : vector<1x8x96xbf16> to vector<8x96xbf16>
    %343 = arith.extf %342 : vector<8x96xbf16> to vector<8x96xf32>
    %344 = vector.extract_strided_slice %318 {offsets = [0, 96], sizes = [8, 96], strides = [1, 1]} : vector<8x192xf32> to vector<8x96xf32>
    %345 = vector.extract_strided_slice %343 {offsets = [0, 0], sizes = [8, 64], strides = [1, 1]} : vector<8x96xf32> to vector<8x64xf32>
    %346 = vector.extract_strided_slice %344 {offsets = [0, 0], sizes = [8, 64], strides = [1, 1]} : vector<8x96xf32> to vector<8x64xf32>
    %347 = arith.addf %345, %346 : vector<8x64xf32>
    %348 = arith.negf %347 : vector<8x64xf32>
    %349 = math.exp %348 : vector<8x64xf32>
    %cst_145 = arith.constant 1.000000e+00 : f32
    %350 = vector.broadcast %cst_145 : f32 to vector<8x64xf32>
    %351 = arith.addf %350, %349 : vector<8x64xf32>
    %352 = arith.divf %350, %351 : vector<8x64xf32>
    %353 = vector.extract_strided_slice %352 {offsets = [0, 0], sizes = [8, 32], strides = [1, 1]} : vector<8x64xf32> to vector<8x32xf32>
    %354 = vector.extract_strided_slice %352 {offsets = [0, 32], sizes = [8, 32], strides = [1, 1]} : vector<8x64xf32> to vector<8x32xf32>
    %355 = vector.extract_strided_slice %343 {offsets = [0, 64], sizes = [8, 32], strides = [1, 1]} : vector<8x96xf32> to vector<8x32xf32>
    %356 = vector.extract_strided_slice %344 {offsets = [0, 64], sizes = [8, 32], strides = [1, 1]} : vector<8x96xf32> to vector<8x32xf32>
    %357 = arith.mulf %353, %356 : vector<8x32xf32>
    %358 = arith.addf %355, %357 : vector<8x32xf32>
    %359 = math.tanh %358 : vector<8x32xf32>
    %360 = arith.subf %307, %359 : vector<8x32xf32>
    %361 = arith.mulf %354, %360 : vector<8x32xf32>
    %362 = arith.addf %359, %361 : vector<8x32xf32>
    %c3_i32 = arith.constant 3 : i32
    %363 = vector.broadcast %c3_i32 : i32 to vector<8x1xi32>
    %364 = arith.cmpi sgt, %0, %363 : vector<8x1xi32>
    %365 = arith.extui %364 : vector<8x1xi1> to vector<8x1xi32>
    %366 = arith.sitofp %365 : vector<8x1xi32> to vector<8x1xf32>
    %c4_i32 = arith.constant 4 : i32
    %367 = vector.broadcast %c4_i32 : i32 to vector<8x1xi32>
    %368 = arith.cmpi sgt, %0, %367 : vector<8x1xi32>
    %369 = arith.extui %368 : vector<8x1xi1> to vector<8x1xi32>
    %370 = arith.sitofp %369 : vector<8x1xi32> to vector<8x1xf32>
    %371 = vector.broadcast %366 : vector<8x1xf32> to vector<8x32xf32>
    %372 = arith.mulf %371, %340 : vector<8x32xf32>
    %cst_146 = arith.constant 1.000000e+00 : f32
    %373 = vector.broadcast %cst_146 : f32 to vector<8x1xf32>
    %374 = arith.subf %373, %366 : vector<8x1xf32>
    %375 = vector.broadcast %374 : vector<8x1xf32> to vector<8x32xf32>
    %376 = arith.mulf %375, %305 : vector<8x32xf32>
    %377 = arith.addf %372, %376 : vector<8x32xf32>
    %378 = vector.broadcast %370 : vector<8x1xf32> to vector<8x32xf32>
    %379 = arith.mulf %378, %362 : vector<8x32xf32>
    %380 = arith.truncf %377 : vector<8x32xf32> to vector<8x32xbf16>
    %c3_147 = arith.constant 3 : index
    %c0_148 = arith.constant 0 : index
    %c0_149 = arith.constant 0 : index
    %381 = vector.load %arg14[%c3_147, %c0_148, %c0_149] : memref<8x8x32xbf16, #tpu.memory_space<vmem>>, vector<1x8x32xbf16>
    %382 = vector.shape_cast %381 : vector<1x8x32xbf16> to vector<8x32xbf16>
    %383 = vector.shape_cast %380 : vector<8x32xbf16> to vector<1x8x32xbf16>
    tpu.vector_store %arg14[%c3_147, %c0_148, %c0_149], %383 {strides = array<i32>} : memref<8x8x32xbf16, #tpu.memory_space<vmem>>, vector<1x8x32xbf16>,
    %384 = arith.truncf %379 : vector<8x32xf32> to vector<8x32xbf16>
    %c4_150 = arith.constant 4 : index
    %c0_151 = arith.constant 0 : index
    %c0_152 = arith.constant 0 : index
    %385 = vector.load %arg15[%c4_150, %c0_151, %c0_152] : memref<8x8x32xbf16, #tpu.memory_space<vmem>>, vector<1x8x32xbf16>
    %386 = vector.shape_cast %385 : vector<1x8x32xbf16> to vector<8x32xbf16>
    %387 = vector.shape_cast %384 : vector<8x32xbf16> to vector<1x8x32xbf16>
    tpu.vector_store %arg15[%c4_150, %c0_151, %c0_152], %387 {strides = array<i32>} : memref<8x8x32xbf16, #tpu.memory_space<vmem>>, vector<1x8x32xbf16>,
    %388 = tpu.concatenate %377, %379 in 1 : vector<8x32xf32>, vector<8x32xf32> -> vector<8x64xf32>
    %389 = arith.truncf %388 : vector<8x64xf32> to vector<8x64xbf16>
    %cst_153 = arith.constant dense<0.000000e+00> : vector<8x192xf32>
    %390 = tpu.matmul %389, %99, %cst_153 {dimension_numbers = #tpu.dot_dimension_numbers<[1], [0], [0], [1], [0, 0, 1, 1], [], []>} : vector<8x64xbf16>, vector<64x192xbf16>, vector<8x192xf32> -> vector<8x192xf32>
    %c4_154 = arith.constant 4 : index
    %c0_155 = arith.constant 0 : index
    %c0_156 = arith.constant 0 : index
    %391 = vector.load %arg12[%c4_154, %c0_155, %c0_156] : memref<8x8x96xbf16, #tpu.memory_space<vmem>>, vector<1x8x96xbf16>
    %392 = vector.shape_cast %391 : vector<1x8x96xbf16> to vector<8x96xbf16>
    %393 = arith.extf %392 : vector<8x96xbf16> to vector<8x96xf32>
    %394 = vector.extract_strided_slice %390 {offsets = [0, 0], sizes = [8, 96], strides = [1, 1]} : vector<8x192xf32> to vector<8x96xf32>
    %395 = vector.extract_strided_slice %393 {offsets = [0, 0], sizes = [8, 64], strides = [1, 1]} : vector<8x96xf32> to vector<8x64xf32>
    %396 = vector.extract_strided_slice %394 {offsets = [0, 0], sizes = [8, 64], strides = [1, 1]} : vector<8x96xf32> to vector<8x64xf32>
    %397 = arith.addf %395, %396 : vector<8x64xf32>
    %398 = arith.negf %397 : vector<8x64xf32>
    %399 = math.exp %398 : vector<8x64xf32>
    %cst_157 = arith.constant 1.000000e+00 : f32
    %400 = vector.broadcast %cst_157 : f32 to vector<8x64xf32>
    %401 = arith.addf %400, %399 : vector<8x64xf32>
    %402 = arith.divf %400, %401 : vector<8x64xf32>
    %403 = vector.extract_strided_slice %402 {offsets = [0, 0], sizes = [8, 32], strides = [1, 1]} : vector<8x64xf32> to vector<8x32xf32>
    %404 = vector.extract_strided_slice %402 {offsets = [0, 32], sizes = [8, 32], strides = [1, 1]} : vector<8x64xf32> to vector<8x32xf32>
    %405 = vector.extract_strided_slice %393 {offsets = [0, 64], sizes = [8, 32], strides = [1, 1]} : vector<8x96xf32> to vector<8x32xf32>
    %406 = vector.extract_strided_slice %394 {offsets = [0, 64], sizes = [8, 32], strides = [1, 1]} : vector<8x96xf32> to vector<8x32xf32>
    %407 = arith.mulf %403, %406 : vector<8x32xf32>
    %408 = arith.addf %405, %407 : vector<8x32xf32>
    %409 = math.tanh %408 : vector<8x32xf32>
    %410 = arith.subf %377, %409 : vector<8x32xf32>
    %411 = arith.mulf %404, %410 : vector<8x32xf32>
    %412 = arith.addf %409, %411 : vector<8x32xf32>
    %c3_158 = arith.constant 3 : index
    %c0_159 = arith.constant 0 : index
    %c0_160 = arith.constant 0 : index
    %413 = vector.load %arg13[%c3_158, %c0_159, %c0_160] : memref<8x8x96xbf16, #tpu.memory_space<vmem>>, vector<1x8x96xbf16>
    %414 = vector.shape_cast %413 : vector<1x8x96xbf16> to vector<8x96xbf16>
    %415 = arith.extf %414 : vector<8x96xbf16> to vector<8x96xf32>
    %416 = vector.extract_strided_slice %390 {offsets = [0, 96], sizes = [8, 96], strides = [1, 1]} : vector<8x192xf32> to vector<8x96xf32>
    %417 = vector.extract_strided_slice %415 {offsets = [0, 0], sizes = [8, 64], strides = [1, 1]} : vector<8x96xf32> to vector<8x64xf32>
    %418 = vector.extract_strided_slice %416 {offsets = [0, 0], sizes = [8, 64], strides = [1, 1]} : vector<8x96xf32> to vector<8x64xf32>
    %419 = arith.addf %417, %418 : vector<8x64xf32>
    %420 = arith.negf %419 : vector<8x64xf32>
    %421 = math.exp %420 : vector<8x64xf32>
    %cst_161 = arith.constant 1.000000e+00 : f32
    %422 = vector.broadcast %cst_161 : f32 to vector<8x64xf32>
    %423 = arith.addf %422, %421 : vector<8x64xf32>
    %424 = arith.divf %422, %423 : vector<8x64xf32>
    %425 = vector.extract_strided_slice %424 {offsets = [0, 0], sizes = [8, 32], strides = [1, 1]} : vector<8x64xf32> to vector<8x32xf32>
    %426 = vector.extract_strided_slice %424 {offsets = [0, 32], sizes = [8, 32], strides = [1, 1]} : vector<8x64xf32> to vector<8x32xf32>
    %427 = vector.extract_strided_slice %415 {offsets = [0, 64], sizes = [8, 32], strides = [1, 1]} : vector<8x96xf32> to vector<8x32xf32>
    %428 = vector.extract_strided_slice %416 {offsets = [0, 64], sizes = [8, 32], strides = [1, 1]} : vector<8x96xf32> to vector<8x32xf32>
    %429 = arith.mulf %425, %428 : vector<8x32xf32>
    %430 = arith.addf %427, %429 : vector<8x32xf32>
    %431 = math.tanh %430 : vector<8x32xf32>
    %432 = arith.subf %379, %431 : vector<8x32xf32>
    %433 = arith.mulf %426, %432 : vector<8x32xf32>
    %434 = arith.addf %431, %433 : vector<8x32xf32>
    %c4_i32_162 = arith.constant 4 : i32
    %435 = vector.broadcast %c4_i32_162 : i32 to vector<8x1xi32>
    %436 = arith.cmpi sgt, %0, %435 : vector<8x1xi32>
    %437 = arith.extui %436 : vector<8x1xi1> to vector<8x1xi32>
    %438 = arith.sitofp %437 : vector<8x1xi32> to vector<8x1xf32>
    %c3_i32_163 = arith.constant 3 : i32
    %439 = vector.broadcast %c3_i32_163 : i32 to vector<8x1xi32>
    %440 = arith.cmpi sgt, %0, %439 : vector<8x1xi32>
    %441 = arith.extui %440 : vector<8x1xi1> to vector<8x1xi32>
    %442 = arith.sitofp %441 : vector<8x1xi32> to vector<8x1xf32>
    %443 = vector.broadcast %438 : vector<8x1xf32> to vector<8x32xf32>
    %444 = arith.mulf %443, %412 : vector<8x32xf32>
    %cst_164 = arith.constant 1.000000e+00 : f32
    %445 = vector.broadcast %cst_164 : f32 to vector<8x1xf32>
    %446 = arith.subf %445, %438 : vector<8x1xf32>
    %447 = vector.broadcast %446 : vector<8x1xf32> to vector<8x32xf32>
    %448 = arith.mulf %447, %377 : vector<8x32xf32>
    %449 = arith.addf %444, %448 : vector<8x32xf32>
    %450 = vector.broadcast %442 : vector<8x1xf32> to vector<8x32xf32>
    %451 = arith.mulf %450, %434 : vector<8x32xf32>
    %452 = arith.truncf %449 : vector<8x32xf32> to vector<8x32xbf16>
    %c4_165 = arith.constant 4 : index
    %c0_166 = arith.constant 0 : index
    %c0_167 = arith.constant 0 : index
    %453 = vector.load %arg14[%c4_165, %c0_166, %c0_167] : memref<8x8x32xbf16, #tpu.memory_space<vmem>>, vector<1x8x32xbf16>
    %454 = vector.shape_cast %453 : vector<1x8x32xbf16> to vector<8x32xbf16>
    %455 = vector.shape_cast %452 : vector<8x32xbf16> to vector<1x8x32xbf16>
    tpu.vector_store %arg14[%c4_165, %c0_166, %c0_167], %455 {strides = array<i32>} : memref<8x8x32xbf16, #tpu.memory_space<vmem>>, vector<1x8x32xbf16>,
    %456 = arith.truncf %451 : vector<8x32xf32> to vector<8x32xbf16>
    %c3_168 = arith.constant 3 : index
    %c0_169 = arith.constant 0 : index
    %c0_170 = arith.constant 0 : index
    %457 = vector.load %arg15[%c3_168, %c0_169, %c0_170] : memref<8x8x32xbf16, #tpu.memory_space<vmem>>, vector<1x8x32xbf16>
    %458 = vector.shape_cast %457 : vector<1x8x32xbf16> to vector<8x32xbf16>
    %459 = vector.shape_cast %456 : vector<8x32xbf16> to vector<1x8x32xbf16>
    tpu.vector_store %arg15[%c3_168, %c0_169, %c0_170], %459 {strides = array<i32>} : memref<8x8x32xbf16, #tpu.memory_space<vmem>>, vector<1x8x32xbf16>,
    %460 = tpu.concatenate %449, %451 in 1 : vector<8x32xf32>, vector<8x32xf32> -> vector<8x64xf32>
    %461 = arith.truncf %460 : vector<8x64xf32> to vector<8x64xbf16>
    %cst_171 = arith.constant dense<0.000000e+00> : vector<8x192xf32>
    %462 = tpu.matmul %461, %99, %cst_171 {dimension_numbers = #tpu.dot_dimension_numbers<[1], [0], [0], [1], [0, 0, 1, 1], [], []>} : vector<8x64xbf16>, vector<64x192xbf16>, vector<8x192xf32> -> vector<8x192xf32>
    %c5_172 = arith.constant 5 : index
    %c0_173 = arith.constant 0 : index
    %c0_174 = arith.constant 0 : index
    %463 = vector.load %arg12[%c5_172, %c0_173, %c0_174] : memref<8x8x96xbf16, #tpu.memory_space<vmem>>, vector<1x8x96xbf16>
    %464 = vector.shape_cast %463 : vector<1x8x96xbf16> to vector<8x96xbf16>
    %465 = arith.extf %464 : vector<8x96xbf16> to vector<8x96xf32>
    %466 = vector.extract_strided_slice %462 {offsets = [0, 0], sizes = [8, 96], strides = [1, 1]} : vector<8x192xf32> to vector<8x96xf32>
    %467 = vector.extract_strided_slice %465 {offsets = [0, 0], sizes = [8, 64], strides = [1, 1]} : vector<8x96xf32> to vector<8x64xf32>
    %468 = vector.extract_strided_slice %466 {offsets = [0, 0], sizes = [8, 64], strides = [1, 1]} : vector<8x96xf32> to vector<8x64xf32>
    %469 = arith.addf %467, %468 : vector<8x64xf32>
    %470 = arith.negf %469 : vector<8x64xf32>
    %471 = math.exp %470 : vector<8x64xf32>
    %cst_175 = arith.constant 1.000000e+00 : f32
    %472 = vector.broadcast %cst_175 : f32 to vector<8x64xf32>
    %473 = arith.addf %472, %471 : vector<8x64xf32>
    %474 = arith.divf %472, %473 : vector<8x64xf32>
    %475 = vector.extract_strided_slice %474 {offsets = [0, 0], sizes = [8, 32], strides = [1, 1]} : vector<8x64xf32> to vector<8x32xf32>
    %476 = vector.extract_strided_slice %474 {offsets = [0, 32], sizes = [8, 32], strides = [1, 1]} : vector<8x64xf32> to vector<8x32xf32>
    %477 = vector.extract_strided_slice %465 {offsets = [0, 64], sizes = [8, 32], strides = [1, 1]} : vector<8x96xf32> to vector<8x32xf32>
    %478 = vector.extract_strided_slice %466 {offsets = [0, 64], sizes = [8, 32], strides = [1, 1]} : vector<8x96xf32> to vector<8x32xf32>
    %479 = arith.mulf %475, %478 : vector<8x32xf32>
    %480 = arith.addf %477, %479 : vector<8x32xf32>
    %481 = math.tanh %480 : vector<8x32xf32>
    %482 = arith.subf %449, %481 : vector<8x32xf32>
    %483 = arith.mulf %476, %482 : vector<8x32xf32>
    %484 = arith.addf %481, %483 : vector<8x32xf32>
    %c2_176 = arith.constant 2 : index
    %c0_177 = arith.constant 0 : index
    %c0_178 = arith.constant 0 : index
    %485 = vector.load %arg13[%c2_176, %c0_177, %c0_178] : memref<8x8x96xbf16, #tpu.memory_space<vmem>>, vector<1x8x96xbf16>
    %486 = vector.shape_cast %485 : vector<1x8x96xbf16> to vector<8x96xbf16>
    %487 = arith.extf %486 : vector<8x96xbf16> to vector<8x96xf32>
    %488 = vector.extract_strided_slice %462 {offsets = [0, 96], sizes = [8, 96], strides = [1, 1]} : vector<8x192xf32> to vector<8x96xf32>
    %489 = vector.extract_strided_slice %487 {offsets = [0, 0], sizes = [8, 64], strides = [1, 1]} : vector<8x96xf32> to vector<8x64xf32>
    %490 = vector.extract_strided_slice %488 {offsets = [0, 0], sizes = [8, 64], strides = [1, 1]} : vector<8x96xf32> to vector<8x64xf32>
    %491 = arith.addf %489, %490 : vector<8x64xf32>
    %492 = arith.negf %491 : vector<8x64xf32>
    %493 = math.exp %492 : vector<8x64xf32>
    %cst_179 = arith.constant 1.000000e+00 : f32
    %494 = vector.broadcast %cst_179 : f32 to vector<8x64xf32>
    %495 = arith.addf %494, %493 : vector<8x64xf32>
    %496 = arith.divf %494, %495 : vector<8x64xf32>
    %497 = vector.extract_strided_slice %496 {offsets = [0, 0], sizes = [8, 32], strides = [1, 1]} : vector<8x64xf32> to vector<8x32xf32>
    %498 = vector.extract_strided_slice %496 {offsets = [0, 32], sizes = [8, 32], strides = [1, 1]} : vector<8x64xf32> to vector<8x32xf32>
    %499 = vector.extract_strided_slice %487 {offsets = [0, 64], sizes = [8, 32], strides = [1, 1]} : vector<8x96xf32> to vector<8x32xf32>
    %500 = vector.extract_strided_slice %488 {offsets = [0, 64], sizes = [8, 32], strides = [1, 1]} : vector<8x96xf32> to vector<8x32xf32>
    %501 = arith.mulf %497, %500 : vector<8x32xf32>
    %502 = arith.addf %499, %501 : vector<8x32xf32>
    %503 = math.tanh %502 : vector<8x32xf32>
    %504 = arith.subf %451, %503 : vector<8x32xf32>
    %505 = arith.mulf %498, %504 : vector<8x32xf32>
    %506 = arith.addf %503, %505 : vector<8x32xf32>
    %c5_i32_180 = arith.constant 5 : i32
    %507 = vector.broadcast %c5_i32_180 : i32 to vector<8x1xi32>
    %508 = arith.cmpi sgt, %0, %507 : vector<8x1xi32>
    %509 = arith.extui %508 : vector<8x1xi1> to vector<8x1xi32>
    %510 = arith.sitofp %509 : vector<8x1xi32> to vector<8x1xf32>
    %c2_i32_181 = arith.constant 2 : i32
    %511 = vector.broadcast %c2_i32_181 : i32 to vector<8x1xi32>
    %512 = arith.cmpi sgt, %0, %511 : vector<8x1xi32>
    %513 = arith.extui %512 : vector<8x1xi1> to vector<8x1xi32>
    %514 = arith.sitofp %513 : vector<8x1xi32> to vector<8x1xf32>
    %515 = vector.broadcast %510 : vector<8x1xf32> to vector<8x32xf32>
    %516 = arith.mulf %515, %484 : vector<8x32xf32>
    %cst_182 = arith.constant 1.000000e+00 : f32
    %517 = vector.broadcast %cst_182 : f32 to vector<8x1xf32>
    %518 = arith.subf %517, %510 : vector<8x1xf32>
    %519 = vector.broadcast %518 : vector<8x1xf32> to vector<8x32xf32>
    %520 = arith.mulf %519, %449 : vector<8x32xf32>
    %521 = arith.addf %516, %520 : vector<8x32xf32>
    %522 = vector.broadcast %514 : vector<8x1xf32> to vector<8x32xf32>
    %523 = arith.mulf %522, %506 : vector<8x32xf32>
    %524 = arith.truncf %521 : vector<8x32xf32> to vector<8x32xbf16>
    %c5_183 = arith.constant 5 : index
    %c0_184 = arith.constant 0 : index
    %c0_185 = arith.constant 0 : index
    %525 = vector.load %arg14[%c5_183, %c0_184, %c0_185] : memref<8x8x32xbf16, #tpu.memory_space<vmem>>, vector<1x8x32xbf16>
    %526 = vector.shape_cast %525 : vector<1x8x32xbf16> to vector<8x32xbf16>
    %527 = vector.shape_cast %524 : vector<8x32xbf16> to vector<1x8x32xbf16>
    tpu.vector_store %arg14[%c5_183, %c0_184, %c0_185], %527 {strides = array<i32>} : memref<8x8x32xbf16, #tpu.memory_space<vmem>>, vector<1x8x32xbf16>,
    %528 = arith.truncf %523 : vector<8x32xf32> to vector<8x32xbf16>
    %c2_186 = arith.constant 2 : index
    %c0_187 = arith.constant 0 : index
    %c0_188 = arith.constant 0 : index
    %529 = vector.load %arg15[%c2_186, %c0_187, %c0_188] : memref<8x8x32xbf16, #tpu.memory_space<vmem>>, vector<1x8x32xbf16>
    %530 = vector.shape_cast %529 : vector<1x8x32xbf16> to vector<8x32xbf16>
    %531 = vector.shape_cast %528 : vector<8x32xbf16> to vector<1x8x32xbf16>
    tpu.vector_store %arg15[%c2_186, %c0_187, %c0_188], %531 {strides = array<i32>} : memref<8x8x32xbf16, #tpu.memory_space<vmem>>, vector<1x8x32xbf16>,
    %532 = tpu.concatenate %521, %523 in 1 : vector<8x32xf32>, vector<8x32xf32> -> vector<8x64xf32>
    %533 = arith.truncf %532 : vector<8x64xf32> to vector<8x64xbf16>
    %cst_189 = arith.constant dense<0.000000e+00> : vector<8x192xf32>
    %534 = tpu.matmul %533, %99, %cst_189 {dimension_numbers = #tpu.dot_dimension_numbers<[1], [0], [0], [1], [0, 0, 1, 1], [], []>} : vector<8x64xbf16>, vector<64x192xbf16>, vector<8x192xf32> -> vector<8x192xf32>
    %c6_190 = arith.constant 6 : index
    %c0_191 = arith.constant 0 : index
    %c0_192 = arith.constant 0 : index
    %535 = vector.load %arg12[%c6_190, %c0_191, %c0_192] : memref<8x8x96xbf16, #tpu.memory_space<vmem>>, vector<1x8x96xbf16>
    %536 = vector.shape_cast %535 : vector<1x8x96xbf16> to vector<8x96xbf16>
    %537 = arith.extf %536 : vector<8x96xbf16> to vector<8x96xf32>
    %538 = vector.extract_strided_slice %534 {offsets = [0, 0], sizes = [8, 96], strides = [1, 1]} : vector<8x192xf32> to vector<8x96xf32>
    %539 = vector.extract_strided_slice %537 {offsets = [0, 0], sizes = [8, 64], strides = [1, 1]} : vector<8x96xf32> to vector<8x64xf32>
    %540 = vector.extract_strided_slice %538 {offsets = [0, 0], sizes = [8, 64], strides = [1, 1]} : vector<8x96xf32> to vector<8x64xf32>
    %541 = arith.addf %539, %540 : vector<8x64xf32>
    %542 = arith.negf %541 : vector<8x64xf32>
    %543 = math.exp %542 : vector<8x64xf32>
    %cst_193 = arith.constant 1.000000e+00 : f32
    %544 = vector.broadcast %cst_193 : f32 to vector<8x64xf32>
    %545 = arith.addf %544, %543 : vector<8x64xf32>
    %546 = arith.divf %544, %545 : vector<8x64xf32>
    %547 = vector.extract_strided_slice %546 {offsets = [0, 0], sizes = [8, 32], strides = [1, 1]} : vector<8x64xf32> to vector<8x32xf32>
    %548 = vector.extract_strided_slice %546 {offsets = [0, 32], sizes = [8, 32], strides = [1, 1]} : vector<8x64xf32> to vector<8x32xf32>
    %549 = vector.extract_strided_slice %537 {offsets = [0, 64], sizes = [8, 32], strides = [1, 1]} : vector<8x96xf32> to vector<8x32xf32>
    %550 = vector.extract_strided_slice %538 {offsets = [0, 64], sizes = [8, 32], strides = [1, 1]} : vector<8x96xf32> to vector<8x32xf32>
    %551 = arith.mulf %547, %550 : vector<8x32xf32>
    %552 = arith.addf %549, %551 : vector<8x32xf32>
    %553 = math.tanh %552 : vector<8x32xf32>
    %554 = arith.subf %521, %553 : vector<8x32xf32>
    %555 = arith.mulf %548, %554 : vector<8x32xf32>
    %556 = arith.addf %553, %555 : vector<8x32xf32>
    %c1_194 = arith.constant 1 : index
    %c0_195 = arith.constant 0 : index
    %c0_196 = arith.constant 0 : index
    %557 = vector.load %arg13[%c1_194, %c0_195, %c0_196] : memref<8x8x96xbf16, #tpu.memory_space<vmem>>, vector<1x8x96xbf16>
    %558 = vector.shape_cast %557 : vector<1x8x96xbf16> to vector<8x96xbf16>
    %559 = arith.extf %558 : vector<8x96xbf16> to vector<8x96xf32>
    %560 = vector.extract_strided_slice %534 {offsets = [0, 96], sizes = [8, 96], strides = [1, 1]} : vector<8x192xf32> to vector<8x96xf32>
    %561 = vector.extract_strided_slice %559 {offsets = [0, 0], sizes = [8, 64], strides = [1, 1]} : vector<8x96xf32> to vector<8x64xf32>
    %562 = vector.extract_strided_slice %560 {offsets = [0, 0], sizes = [8, 64], strides = [1, 1]} : vector<8x96xf32> to vector<8x64xf32>
    %563 = arith.addf %561, %562 : vector<8x64xf32>
    %564 = arith.negf %563 : vector<8x64xf32>
    %565 = math.exp %564 : vector<8x64xf32>
    %cst_197 = arith.constant 1.000000e+00 : f32
    %566 = vector.broadcast %cst_197 : f32 to vector<8x64xf32>
    %567 = arith.addf %566, %565 : vector<8x64xf32>
    %568 = arith.divf %566, %567 : vector<8x64xf32>
    %569 = vector.extract_strided_slice %568 {offsets = [0, 0], sizes = [8, 32], strides = [1, 1]} : vector<8x64xf32> to vector<8x32xf32>
    %570 = vector.extract_strided_slice %568 {offsets = [0, 32], sizes = [8, 32], strides = [1, 1]} : vector<8x64xf32> to vector<8x32xf32>
    %571 = vector.extract_strided_slice %559 {offsets = [0, 64], sizes = [8, 32], strides = [1, 1]} : vector<8x96xf32> to vector<8x32xf32>
    %572 = vector.extract_strided_slice %560 {offsets = [0, 64], sizes = [8, 32], strides = [1, 1]} : vector<8x96xf32> to vector<8x32xf32>
    %573 = arith.mulf %569, %572 : vector<8x32xf32>
    %574 = arith.addf %571, %573 : vector<8x32xf32>
    %575 = math.tanh %574 : vector<8x32xf32>
    %576 = arith.subf %523, %575 : vector<8x32xf32>
    %577 = arith.mulf %570, %576 : vector<8x32xf32>
    %578 = arith.addf %575, %577 : vector<8x32xf32>
    %c6_i32_198 = arith.constant 6 : i32
    %579 = vector.broadcast %c6_i32_198 : i32 to vector<8x1xi32>
    %580 = arith.cmpi sgt, %0, %579 : vector<8x1xi32>
    %581 = arith.extui %580 : vector<8x1xi1> to vector<8x1xi32>
    %582 = arith.sitofp %581 : vector<8x1xi32> to vector<8x1xf32>
    %c1_i32_199 = arith.constant 1 : i32
    %583 = vector.broadcast %c1_i32_199 : i32 to vector<8x1xi32>
    %584 = arith.cmpi sgt, %0, %583 : vector<8x1xi32>
    %585 = arith.extui %584 : vector<8x1xi1> to vector<8x1xi32>
    %586 = arith.sitofp %585 : vector<8x1xi32> to vector<8x1xf32>
    %587 = vector.broadcast %582 : vector<8x1xf32> to vector<8x32xf32>
    %588 = arith.mulf %587, %556 : vector<8x32xf32>
    %cst_200 = arith.constant 1.000000e+00 : f32
    %589 = vector.broadcast %cst_200 : f32 to vector<8x1xf32>
    %590 = arith.subf %589, %582 : vector<8x1xf32>
    %591 = vector.broadcast %590 : vector<8x1xf32> to vector<8x32xf32>
    %592 = arith.mulf %591, %521 : vector<8x32xf32>
    %593 = arith.addf %588, %592 : vector<8x32xf32>
    %594 = vector.broadcast %586 : vector<8x1xf32> to vector<8x32xf32>
    %595 = arith.mulf %594, %578 : vector<8x32xf32>
    %596 = arith.truncf %593 : vector<8x32xf32> to vector<8x32xbf16>
    %c6_201 = arith.constant 6 : index
    %c0_202 = arith.constant 0 : index
    %c0_203 = arith.constant 0 : index
    %597 = vector.load %arg14[%c6_201, %c0_202, %c0_203] : memref<8x8x32xbf16, #tpu.memory_space<vmem>>, vector<1x8x32xbf16>
    %598 = vector.shape_cast %597 : vector<1x8x32xbf16> to vector<8x32xbf16>
    %599 = vector.shape_cast %596 : vector<8x32xbf16> to vector<1x8x32xbf16>
    tpu.vector_store %arg14[%c6_201, %c0_202, %c0_203], %599 {strides = array<i32>} : memref<8x8x32xbf16, #tpu.memory_space<vmem>>, vector<1x8x32xbf16>,
    %600 = arith.truncf %595 : vector<8x32xf32> to vector<8x32xbf16>
    %c1_204 = arith.constant 1 : index
    %c0_205 = arith.constant 0 : index
    %c0_206 = arith.constant 0 : index
    %601 = vector.load %arg15[%c1_204, %c0_205, %c0_206] : memref<8x8x32xbf16, #tpu.memory_space<vmem>>, vector<1x8x32xbf16>
    %602 = vector.shape_cast %601 : vector<1x8x32xbf16> to vector<8x32xbf16>
    %603 = vector.shape_cast %600 : vector<8x32xbf16> to vector<1x8x32xbf16>
    tpu.vector_store %arg15[%c1_204, %c0_205, %c0_206], %603 {strides = array<i32>} : memref<8x8x32xbf16, #tpu.memory_space<vmem>>, vector<1x8x32xbf16>,
    %604 = tpu.concatenate %593, %595 in 1 : vector<8x32xf32>, vector<8x32xf32> -> vector<8x64xf32>
    %605 = arith.truncf %604 : vector<8x64xf32> to vector<8x64xbf16>
    %cst_207 = arith.constant dense<0.000000e+00> : vector<8x192xf32>
    %606 = tpu.matmul %605, %99, %cst_207 {dimension_numbers = #tpu.dot_dimension_numbers<[1], [0], [0], [1], [0, 0, 1, 1], [], []>} : vector<8x64xbf16>, vector<64x192xbf16>, vector<8x192xf32> -> vector<8x192xf32>
    %c7_208 = arith.constant 7 : index
    %c0_209 = arith.constant 0 : index
    %c0_210 = arith.constant 0 : index
    %607 = vector.load %arg12[%c7_208, %c0_209, %c0_210] : memref<8x8x96xbf16, #tpu.memory_space<vmem>>, vector<1x8x96xbf16>
    %608 = vector.shape_cast %607 : vector<1x8x96xbf16> to vector<8x96xbf16>
    %609 = arith.extf %608 : vector<8x96xbf16> to vector<8x96xf32>
    %610 = vector.extract_strided_slice %606 {offsets = [0, 0], sizes = [8, 96], strides = [1, 1]} : vector<8x192xf32> to vector<8x96xf32>
    %611 = vector.extract_strided_slice %609 {offsets = [0, 0], sizes = [8, 64], strides = [1, 1]} : vector<8x96xf32> to vector<8x64xf32>
    %612 = vector.extract_strided_slice %610 {offsets = [0, 0], sizes = [8, 64], strides = [1, 1]} : vector<8x96xf32> to vector<8x64xf32>
    %613 = arith.addf %611, %612 : vector<8x64xf32>
    %614 = arith.negf %613 : vector<8x64xf32>
    %615 = math.exp %614 : vector<8x64xf32>
    %cst_211 = arith.constant 1.000000e+00 : f32
    %616 = vector.broadcast %cst_211 : f32 to vector<8x64xf32>
    %617 = arith.addf %616, %615 : vector<8x64xf32>
    %618 = arith.divf %616, %617 : vector<8x64xf32>
    %619 = vector.extract_strided_slice %618 {offsets = [0, 0], sizes = [8, 32], strides = [1, 1]} : vector<8x64xf32> to vector<8x32xf32>
    %620 = vector.extract_strided_slice %618 {offsets = [0, 32], sizes = [8, 32], strides = [1, 1]} : vector<8x64xf32> to vector<8x32xf32>
    %621 = vector.extract_strided_slice %609 {offsets = [0, 64], sizes = [8, 32], strides = [1, 1]} : vector<8x96xf32> to vector<8x32xf32>
    %622 = vector.extract_strided_slice %610 {offsets = [0, 64], sizes = [8, 32], strides = [1, 1]} : vector<8x96xf32> to vector<8x32xf32>
    %623 = arith.mulf %619, %622 : vector<8x32xf32>
    %624 = arith.addf %621, %623 : vector<8x32xf32>
    %625 = math.tanh %624 : vector<8x32xf32>
    %626 = arith.subf %593, %625 : vector<8x32xf32>
    %627 = arith.mulf %620, %626 : vector<8x32xf32>
    %628 = arith.addf %625, %627 : vector<8x32xf32>
    %c0_212 = arith.constant 0 : index
    %c0_213 = arith.constant 0 : index
    %c0_214 = arith.constant 0 : index
    %629 = vector.load %arg13[%c0_212, %c0_213, %c0_214] : memref<8x8x96xbf16, #tpu.memory_space<vmem>>, vector<1x8x96xbf16>
    %630 = vector.shape_cast %629 : vector<1x8x96xbf16> to vector<8x96xbf16>
    %631 = arith.extf %630 : vector<8x96xbf16> to vector<8x96xf32>
    %632 = vector.extract_strided_slice %606 {offsets = [0, 96], sizes = [8, 96], strides = [1, 1]} : vector<8x192xf32> to vector<8x96xf32>
    %633 = vector.extract_strided_slice %631 {offsets = [0, 0], sizes = [8, 64], strides = [1, 1]} : vector<8x96xf32> to vector<8x64xf32>
    %634 = vector.extract_strided_slice %632 {offsets = [0, 0], sizes = [8, 64], strides = [1, 1]} : vector<8x96xf32> to vector<8x64xf32>
    %635 = arith.addf %633, %634 : vector<8x64xf32>
    %636 = arith.negf %635 : vector<8x64xf32>
    %637 = math.exp %636 : vector<8x64xf32>
    %cst_215 = arith.constant 1.000000e+00 : f32
    %638 = vector.broadcast %cst_215 : f32 to vector<8x64xf32>
    %639 = arith.addf %638, %637 : vector<8x64xf32>
    %640 = arith.divf %638, %639 : vector<8x64xf32>
    %641 = vector.extract_strided_slice %640 {offsets = [0, 0], sizes = [8, 32], strides = [1, 1]} : vector<8x64xf32> to vector<8x32xf32>
    %642 = vector.extract_strided_slice %640 {offsets = [0, 32], sizes = [8, 32], strides = [1, 1]} : vector<8x64xf32> to vector<8x32xf32>
    %643 = vector.extract_strided_slice %631 {offsets = [0, 64], sizes = [8, 32], strides = [1, 1]} : vector<8x96xf32> to vector<8x32xf32>
    %644 = vector.extract_strided_slice %632 {offsets = [0, 64], sizes = [8, 32], strides = [1, 1]} : vector<8x96xf32> to vector<8x32xf32>
    %645 = arith.mulf %641, %644 : vector<8x32xf32>
    %646 = arith.addf %643, %645 : vector<8x32xf32>
    %647 = math.tanh %646 : vector<8x32xf32>
    %648 = arith.subf %595, %647 : vector<8x32xf32>
    %649 = arith.mulf %642, %648 : vector<8x32xf32>
    %650 = arith.addf %647, %649 : vector<8x32xf32>
    %c7_i32_216 = arith.constant 7 : i32
    %651 = vector.broadcast %c7_i32_216 : i32 to vector<8x1xi32>
    %652 = arith.cmpi sgt, %0, %651 : vector<8x1xi32>
    %653 = arith.extui %652 : vector<8x1xi1> to vector<8x1xi32>
    %654 = arith.sitofp %653 : vector<8x1xi32> to vector<8x1xf32>
    %c0_i32_217 = arith.constant 0 : i32
    %655 = vector.broadcast %c0_i32_217 : i32 to vector<8x1xi32>
    %656 = arith.cmpi sgt, %0, %655 : vector<8x1xi32>
    %657 = arith.extui %656 : vector<8x1xi1> to vector<8x1xi32>
    %658 = arith.sitofp %657 : vector<8x1xi32> to vector<8x1xf32>
    %659 = vector.broadcast %654 : vector<8x1xf32> to vector<8x32xf32>
    %660 = arith.mulf %659, %628 : vector<8x32xf32>
    %cst_218 = arith.constant 1.000000e+00 : f32
    %661 = vector.broadcast %cst_218 : f32 to vector<8x1xf32>
    %662 = arith.subf %661, %654 : vector<8x1xf32>
    %663 = vector.broadcast %662 : vector<8x1xf32> to vector<8x32xf32>
    %664 = arith.mulf %663, %593 : vector<8x32xf32>
    %665 = arith.addf %660, %664 : vector<8x32xf32>
    %666 = vector.broadcast %658 : vector<8x1xf32> to vector<8x32xf32>
    %667 = arith.mulf %666, %650 : vector<8x32xf32>
    %668 = arith.truncf %665 : vector<8x32xf32> to vector<8x32xbf16>
    %c7_219 = arith.constant 7 : index
    %c0_220 = arith.constant 0 : index
    %c0_221 = arith.constant 0 : index
    %669 = vector.load %arg14[%c7_219, %c0_220, %c0_221] : memref<8x8x32xbf16, #tpu.memory_space<vmem>>, vector<1x8x32xbf16>
    %670 = vector.shape_cast %669 : vector<1x8x32xbf16> to vector<8x32xbf16>
    %671 = vector.shape_cast %668 : vector<8x32xbf16> to vector<1x8x32xbf16>
    tpu.vector_store %arg14[%c7_219, %c0_220, %c0_221], %671 {strides = array<i32>} : memref<8x8x32xbf16, #tpu.memory_space<vmem>>, vector<1x8x32xbf16>,
    %672 = arith.truncf %667 : vector<8x32xf32> to vector<8x32xbf16>
    %c0_222 = arith.constant 0 : index
    %c0_223 = arith.constant 0 : index
    %c0_224 = arith.constant 0 : index
    %673 = vector.load %arg15[%c0_222, %c0_223, %c0_224] : memref<8x8x32xbf16, #tpu.memory_space<vmem>>, vector<1x8x32xbf16>
    %674 = vector.shape_cast %673 : vector<1x8x32xbf16> to vector<8x32xbf16>
    %675 = vector.shape_cast %672 : vector<8x32xbf16> to vector<1x8x32xbf16>
    tpu.vector_store %arg15[%c0_222, %c0_223, %c0_224], %675 {strides = array<i32>} : memref<8x8x32xbf16, #tpu.memory_space<vmem>>, vector<1x8x32xbf16>,
    %c0_225 = arith.constant 0 : index
    %c0_226 = arith.constant 0 : index
    %c0_227 = arith.constant 0 : index
    %676 = vector.load %arg14[%c0_225, %c0_226, %c0_227] : memref<8x8x32xbf16, #tpu.memory_space<vmem>>, vector<8x8x32xbf16>
    %677 = vector.shape_cast %676 : vector<8x8x32xbf16> to vector<64x32xbf16>
    %c0_228 = arith.constant 0 : index
    %c0_229 = arith.constant 0 : index
    %c0_230 = arith.constant 0 : index
    %678 = vector.load %arg15[%c0_228, %c0_229, %c0_230] : memref<8x8x32xbf16, #tpu.memory_space<vmem>>, vector<8x8x32xbf16>
    %679 = vector.shape_cast %678 : vector<8x8x32xbf16> to vector<64x32xbf16>
    %c0_231 = arith.constant 0 : index
    %c0_232 = arith.constant 0 : index
    %680 = vector.load %arg6[%c0_231, %c0_232] : memref<32x96xbf16, #tpu.memory_space<vmem>>, vector<32x96xbf16>
    %cst_233 = arith.constant dense<0.000000e+00> : vector<64x96xf32>
    %681 = tpu.matmul %677, %680, %cst_233 {dimension_numbers = #tpu.dot_dimension_numbers<[1], [0], [0], [1], [0, 0, 1, 1], [], []>} : vector<64x32xbf16>, vector<32x96xbf16>, vector<64x96xf32> -> vector<64x96xf32>
    %c0_234 = arith.constant 0 : index
    %c0_235 = arith.constant 0 : index
    %682 = vector.load %arg7[%c0_234, %c0_235] : memref<32x96xbf16, #tpu.memory_space<vmem>>, vector<32x96xbf16>
    %cst_236 = arith.constant dense<0.000000e+00> : vector<64x96xf32>
    %683 = tpu.matmul %679, %682, %cst_236 {dimension_numbers = #tpu.dot_dimension_numbers<[1], [0], [0], [1], [0, 0, 1, 1], [], []>} : vector<64x32xbf16>, vector<32x96xbf16>, vector<64x96xf32> -> vector<64x96xf32>
    %684 = arith.addf %681, %683 : vector<64x96xf32>
    %685 = arith.truncf %684 : vector<64x96xf32> to vector<64x96xbf16>
    %686 = vector.shape_cast %685 : vector<64x96xbf16> to vector<8x8x96xbf16>
    %c0_237 = arith.constant 0 : index
    %c0_238 = arith.constant 0 : index
    %c0_239 = arith.constant 0 : index
    %687 = vector.load %arg12[%c0_237, %c0_238, %c0_239] : memref<8x8x96xbf16, #tpu.memory_space<vmem>>, vector<8x8x96xbf16>
    tpu.vector_store %arg12[%c0_237, %c0_238, %c0_239], %686 {strides = array<i32>} : memref<8x8x96xbf16, #tpu.memory_space<vmem>>, vector<8x8x96xbf16>,
    %c0_240 = arith.constant 0 : index
    %c0_241 = arith.constant 0 : index
    %688 = vector.load %arg8[%c0_240, %c0_241] : memref<32x96xbf16, #tpu.memory_space<vmem>>, vector<32x96xbf16>
    %cst_242 = arith.constant dense<0.000000e+00> : vector<64x96xf32>
    %689 = tpu.matmul %677, %688, %cst_242 {dimension_numbers = #tpu.dot_dimension_numbers<[1], [0], [0], [1], [0, 0, 1, 1], [], []>} : vector<64x32xbf16>, vector<32x96xbf16>, vector<64x96xf32> -> vector<64x96xf32>
    %c0_243 = arith.constant 0 : index
    %c0_244 = arith.constant 0 : index
    %690 = vector.load %arg9[%c0_243, %c0_244] : memref<32x96xbf16, #tpu.memory_space<vmem>>, vector<32x96xbf16>
    %cst_245 = arith.constant dense<0.000000e+00> : vector<64x96xf32>
    %691 = tpu.matmul %679, %690, %cst_245 {dimension_numbers = #tpu.dot_dimension_numbers<[1], [0], [0], [1], [0, 0, 1, 1], [], []>} : vector<64x32xbf16>, vector<32x96xbf16>, vector<64x96xf32> -> vector<64x96xf32>
    %692 = arith.addf %689, %691 : vector<64x96xf32>
    %693 = arith.truncf %692 : vector<64x96xf32> to vector<64x96xbf16>
    %694 = vector.shape_cast %693 : vector<64x96xbf16> to vector<8x8x96xbf16>
    %c0_246 = arith.constant 0 : index
    %c0_247 = arith.constant 0 : index
    %c0_248 = arith.constant 0 : index
    %695 = vector.load %arg13[%c0_246, %c0_247, %c0_248] : memref<8x8x96xbf16, #tpu.memory_space<vmem>>, vector<8x8x96xbf16>
    tpu.vector_store %arg13[%c0_246, %c0_247, %c0_248], %694 {strides = array<i32>} : memref<8x8x96xbf16, #tpu.memory_space<vmem>>, vector<8x8x96xbf16>,
    %c0_249 = arith.constant 0 : index
    %c0_250 = arith.constant 0 : index
    %696 = vector.load %arg10[%c0_249, %c0_250] : memref<64x192xbf16, #tpu.memory_space<vmem>>, vector<64x192xbf16>
    %cst_251 = arith.constant 0.000000e+00 : f32
    %697 = vector.broadcast %cst_251 : f32 to vector<8x32xf32>
    %cst_252 = arith.constant 0.000000e+00 : f32
    %698 = vector.broadcast %cst_252 : f32 to vector<8x32xf32>
    %cst_253 = arith.constant 0.000000e+00 : f32
    %699 = vector.broadcast %cst_253 : f32 to vector<8x32xf32>
    %cst_254 = arith.constant 0.000000e+00 : f32
    %700 = vector.broadcast %cst_254 : f32 to vector<8x192xf32>
    %c0_255 = arith.constant 0 : index
    %c0_256 = arith.constant 0 : index
    %c0_257 = arith.constant 0 : index
    %701 = vector.load %arg12[%c0_255, %c0_256, %c0_257] : memref<8x8x96xbf16, #tpu.memory_space<vmem>>, vector<1x8x96xbf16>
    %702 = vector.shape_cast %701 : vector<1x8x96xbf16> to vector<8x96xbf16>
    %703 = arith.extf %702 : vector<8x96xbf16> to vector<8x96xf32>
    %704 = vector.extract_strided_slice %700 {offsets = [0, 0], sizes = [8, 96], strides = [1, 1]} : vector<8x192xf32> to vector<8x96xf32>
    %705 = vector.extract_strided_slice %703 {offsets = [0, 0], sizes = [8, 64], strides = [1, 1]} : vector<8x96xf32> to vector<8x64xf32>
    %706 = vector.extract_strided_slice %704 {offsets = [0, 0], sizes = [8, 64], strides = [1, 1]} : vector<8x96xf32> to vector<8x64xf32>
    %707 = arith.addf %705, %706 : vector<8x64xf32>
    %708 = arith.negf %707 : vector<8x64xf32>
    %709 = math.exp %708 : vector<8x64xf32>
    %cst_258 = arith.constant 1.000000e+00 : f32
    %710 = vector.broadcast %cst_258 : f32 to vector<8x64xf32>
    %711 = arith.addf %710, %709 : vector<8x64xf32>
    %712 = arith.divf %710, %711 : vector<8x64xf32>
    %713 = vector.extract_strided_slice %712 {offsets = [0, 0], sizes = [8, 32], strides = [1, 1]} : vector<8x64xf32> to vector<8x32xf32>
    %714 = vector.extract_strided_slice %712 {offsets = [0, 32], sizes = [8, 32], strides = [1, 1]} : vector<8x64xf32> to vector<8x32xf32>
    %715 = vector.extract_strided_slice %703 {offsets = [0, 64], sizes = [8, 32], strides = [1, 1]} : vector<8x96xf32> to vector<8x32xf32>
    %716 = vector.extract_strided_slice %704 {offsets = [0, 64], sizes = [8, 32], strides = [1, 1]} : vector<8x96xf32> to vector<8x32xf32>
    %717 = arith.mulf %713, %716 : vector<8x32xf32>
    %718 = arith.addf %715, %717 : vector<8x32xf32>
    %719 = math.tanh %718 : vector<8x32xf32>
    %720 = arith.subf %697, %719 : vector<8x32xf32>
    %721 = arith.mulf %714, %720 : vector<8x32xf32>
    %722 = arith.addf %719, %721 : vector<8x32xf32>
    %c7_259 = arith.constant 7 : index
    %c0_260 = arith.constant 0 : index
    %c0_261 = arith.constant 0 : index
    %723 = vector.load %arg13[%c7_259, %c0_260, %c0_261] : memref<8x8x96xbf16, #tpu.memory_space<vmem>>, vector<1x8x96xbf16>
    %724 = vector.shape_cast %723 : vector<1x8x96xbf16> to vector<8x96xbf16>
    %725 = arith.extf %724 : vector<8x96xbf16> to vector<8x96xf32>
    %726 = vector.extract_strided_slice %700 {offsets = [0, 96], sizes = [8, 96], strides = [1, 1]} : vector<8x192xf32> to vector<8x96xf32>
    %727 = vector.extract_strided_slice %725 {offsets = [0, 0], sizes = [8, 64], strides = [1, 1]} : vector<8x96xf32> to vector<8x64xf32>
    %728 = vector.extract_strided_slice %726 {offsets = [0, 0], sizes = [8, 64], strides = [1, 1]} : vector<8x96xf32> to vector<8x64xf32>
    %729 = arith.addf %727, %728 : vector<8x64xf32>
    %730 = arith.negf %729 : vector<8x64xf32>
    %731 = math.exp %730 : vector<8x64xf32>
    %cst_262 = arith.constant 1.000000e+00 : f32
    %732 = vector.broadcast %cst_262 : f32 to vector<8x64xf32>
    %733 = arith.addf %732, %731 : vector<8x64xf32>
    %734 = arith.divf %732, %733 : vector<8x64xf32>
    %735 = vector.extract_strided_slice %734 {offsets = [0, 0], sizes = [8, 32], strides = [1, 1]} : vector<8x64xf32> to vector<8x32xf32>
    %736 = vector.extract_strided_slice %734 {offsets = [0, 32], sizes = [8, 32], strides = [1, 1]} : vector<8x64xf32> to vector<8x32xf32>
    %737 = vector.extract_strided_slice %725 {offsets = [0, 64], sizes = [8, 32], strides = [1, 1]} : vector<8x96xf32> to vector<8x32xf32>
    %738 = vector.extract_strided_slice %726 {offsets = [0, 64], sizes = [8, 32], strides = [1, 1]} : vector<8x96xf32> to vector<8x32xf32>
    %739 = arith.mulf %735, %738 : vector<8x32xf32>
    %740 = arith.addf %737, %739 : vector<8x32xf32>
    %741 = math.tanh %740 : vector<8x32xf32>
    %742 = arith.subf %698, %741 : vector<8x32xf32>
    %743 = arith.mulf %736, %742 : vector<8x32xf32>
    %744 = arith.addf %741, %743 : vector<8x32xf32>
    %c0_i32_263 = arith.constant 0 : i32
    %745 = vector.broadcast %c0_i32_263 : i32 to vector<8x1xi32>
    %746 = arith.cmpi sgt, %0, %745 : vector<8x1xi32>
    %747 = arith.extui %746 : vector<8x1xi1> to vector<8x1xi32>
    %748 = arith.sitofp %747 : vector<8x1xi32> to vector<8x1xf32>
    %c7_i32_264 = arith.constant 7 : i32
    %749 = vector.broadcast %c7_i32_264 : i32 to vector<8x1xi32>
    %750 = arith.cmpi sgt, %0, %749 : vector<8x1xi32>
    %751 = arith.extui %750 : vector<8x1xi1> to vector<8x1xi32>
    %752 = arith.sitofp %751 : vector<8x1xi32> to vector<8x1xf32>
    %753 = vector.broadcast %748 : vector<8x1xf32> to vector<8x32xf32>
    %754 = arith.mulf %753, %722 : vector<8x32xf32>
    %cst_265 = arith.constant 1.000000e+00 : f32
    %755 = vector.broadcast %cst_265 : f32 to vector<8x1xf32>
    %756 = arith.subf %755, %748 : vector<8x1xf32>
    %757 = vector.broadcast %756 : vector<8x1xf32> to vector<8x32xf32>
    %758 = arith.mulf %757, %697 : vector<8x32xf32>
    %759 = arith.addf %754, %758 : vector<8x32xf32>
    %760 = vector.broadcast %752 : vector<8x1xf32> to vector<8x32xf32>
    %761 = arith.mulf %760, %744 : vector<8x32xf32>
    %c8_i32 = arith.constant 8 : i32
    %762 = vector.broadcast %c8_i32 : i32 to vector<8x1xi32>
    %763 = arith.cmpi eq, %0, %762 : vector<8x1xi32>
    %764 = arith.extui %763 : vector<8x1xi1> to vector<8x1xi32>
    %765 = arith.sitofp %764 : vector<8x1xi32> to vector<8x1xf32>
    %766 = vector.broadcast %765 : vector<8x1xf32> to vector<8x32xf32>
    %767 = arith.mulf %766, %761 : vector<8x32xf32>
    %768 = arith.addf %699, %767 : vector<8x32xf32>
    %769 = tpu.concatenate %759, %761 in 1 : vector<8x32xf32>, vector<8x32xf32> -> vector<8x64xf32>
    %770 = arith.truncf %769 : vector<8x64xf32> to vector<8x64xbf16>
    %cst_266 = arith.constant dense<0.000000e+00> : vector<8x192xf32>
    %771 = tpu.matmul %770, %696, %cst_266 {dimension_numbers = #tpu.dot_dimension_numbers<[1], [0], [0], [1], [0, 0, 1, 1], [], []>} : vector<8x64xbf16>, vector<64x192xbf16>, vector<8x192xf32> -> vector<8x192xf32>
    %c1_267 = arith.constant 1 : index
    %c0_268 = arith.constant 0 : index
    %c0_269 = arith.constant 0 : index
    %772 = vector.load %arg12[%c1_267, %c0_268, %c0_269] : memref<8x8x96xbf16, #tpu.memory_space<vmem>>, vector<1x8x96xbf16>
    %773 = vector.shape_cast %772 : vector<1x8x96xbf16> to vector<8x96xbf16>
    %774 = arith.extf %773 : vector<8x96xbf16> to vector<8x96xf32>
    %775 = vector.extract_strided_slice %771 {offsets = [0, 0], sizes = [8, 96], strides = [1, 1]} : vector<8x192xf32> to vector<8x96xf32>
    %776 = vector.extract_strided_slice %774 {offsets = [0, 0], sizes = [8, 64], strides = [1, 1]} : vector<8x96xf32> to vector<8x64xf32>
    %777 = vector.extract_strided_slice %775 {offsets = [0, 0], sizes = [8, 64], strides = [1, 1]} : vector<8x96xf32> to vector<8x64xf32>
    %778 = arith.addf %776, %777 : vector<8x64xf32>
    %779 = arith.negf %778 : vector<8x64xf32>
    %780 = math.exp %779 : vector<8x64xf32>
    %cst_270 = arith.constant 1.000000e+00 : f32
    %781 = vector.broadcast %cst_270 : f32 to vector<8x64xf32>
    %782 = arith.addf %781, %780 : vector<8x64xf32>
    %783 = arith.divf %781, %782 : vector<8x64xf32>
    %784 = vector.extract_strided_slice %783 {offsets = [0, 0], sizes = [8, 32], strides = [1, 1]} : vector<8x64xf32> to vector<8x32xf32>
    %785 = vector.extract_strided_slice %783 {offsets = [0, 32], sizes = [8, 32], strides = [1, 1]} : vector<8x64xf32> to vector<8x32xf32>
    %786 = vector.extract_strided_slice %774 {offsets = [0, 64], sizes = [8, 32], strides = [1, 1]} : vector<8x96xf32> to vector<8x32xf32>
    %787 = vector.extract_strided_slice %775 {offsets = [0, 64], sizes = [8, 32], strides = [1, 1]} : vector<8x96xf32> to vector<8x32xf32>
    %788 = arith.mulf %784, %787 : vector<8x32xf32>
    %789 = arith.addf %786, %788 : vector<8x32xf32>
    %790 = math.tanh %789 : vector<8x32xf32>
    %791 = arith.subf %759, %790 : vector<8x32xf32>
    %792 = arith.mulf %785, %791 : vector<8x32xf32>
    %793 = arith.addf %790, %792 : vector<8x32xf32>
    %c6_271 = arith.constant 6 : index
    %c0_272 = arith.constant 0 : index
    %c0_273 = arith.constant 0 : index
    %794 = vector.load %arg13[%c6_271, %c0_272, %c0_273] : memref<8x8x96xbf16, #tpu.memory_space<vmem>>, vector<1x8x96xbf16>
    %795 = vector.shape_cast %794 : vector<1x8x96xbf16> to vector<8x96xbf16>
    %796 = arith.extf %795 : vector<8x96xbf16> to vector<8x96xf32>
    %797 = vector.extract_strided_slice %771 {offsets = [0, 96], sizes = [8, 96], strides = [1, 1]} : vector<8x192xf32> to vector<8x96xf32>
    %798 = vector.extract_strided_slice %796 {offsets = [0, 0], sizes = [8, 64], strides = [1, 1]} : vector<8x96xf32> to vector<8x64xf32>
    %799 = vector.extract_strided_slice %797 {offsets = [0, 0], sizes = [8, 64], strides = [1, 1]} : vector<8x96xf32> to vector<8x64xf32>
    %800 = arith.addf %798, %799 : vector<8x64xf32>
    %801 = arith.negf %800 : vector<8x64xf32>
    %802 = math.exp %801 : vector<8x64xf32>
    %cst_274 = arith.constant 1.000000e+00 : f32
    %803 = vector.broadcast %cst_274 : f32 to vector<8x64xf32>
    %804 = arith.addf %803, %802 : vector<8x64xf32>
    %805 = arith.divf %803, %804 : vector<8x64xf32>
    %806 = vector.extract_strided_slice %805 {offsets = [0, 0], sizes = [8, 32], strides = [1, 1]} : vector<8x64xf32> to vector<8x32xf32>
    %807 = vector.extract_strided_slice %805 {offsets = [0, 32], sizes = [8, 32], strides = [1, 1]} : vector<8x64xf32> to vector<8x32xf32>
    %808 = vector.extract_strided_slice %796 {offsets = [0, 64], sizes = [8, 32], strides = [1, 1]} : vector<8x96xf32> to vector<8x32xf32>
    %809 = vector.extract_strided_slice %797 {offsets = [0, 64], sizes = [8, 32], strides = [1, 1]} : vector<8x96xf32> to vector<8x32xf32>
    %810 = arith.mulf %806, %809 : vector<8x32xf32>
    %811 = arith.addf %808, %810 : vector<8x32xf32>
    %812 = math.tanh %811 : vector<8x32xf32>
    %813 = arith.subf %761, %812 : vector<8x32xf32>
    %814 = arith.mulf %807, %813 : vector<8x32xf32>
    %815 = arith.addf %812, %814 : vector<8x32xf32>
    %c1_i32_275 = arith.constant 1 : i32
    %816 = vector.broadcast %c1_i32_275 : i32 to vector<8x1xi32>
    %817 = arith.cmpi sgt, %0, %816 : vector<8x1xi32>
    %818 = arith.extui %817 : vector<8x1xi1> to vector<8x1xi32>
    %819 = arith.sitofp %818 : vector<8x1xi32> to vector<8x1xf32>
    %c6_i32_276 = arith.constant 6 : i32
    %820 = vector.broadcast %c6_i32_276 : i32 to vector<8x1xi32>
    %821 = arith.cmpi sgt, %0, %820 : vector<8x1xi32>
    %822 = arith.extui %821 : vector<8x1xi1> to vector<8x1xi32>
    %823 = arith.sitofp %822 : vector<8x1xi32> to vector<8x1xf32>
    %824 = vector.broadcast %819 : vector<8x1xf32> to vector<8x32xf32>
    %825 = arith.mulf %824, %793 : vector<8x32xf32>
    %cst_277 = arith.constant 1.000000e+00 : f32
    %826 = vector.broadcast %cst_277 : f32 to vector<8x1xf32>
    %827 = arith.subf %826, %819 : vector<8x1xf32>
    %828 = vector.broadcast %827 : vector<8x1xf32> to vector<8x32xf32>
    %829 = arith.mulf %828, %759 : vector<8x32xf32>
    %830 = arith.addf %825, %829 : vector<8x32xf32>
    %831 = vector.broadcast %823 : vector<8x1xf32> to vector<8x32xf32>
    %832 = arith.mulf %831, %815 : vector<8x32xf32>
    %c7_i32_278 = arith.constant 7 : i32
    %833 = vector.broadcast %c7_i32_278 : i32 to vector<8x1xi32>
    %834 = arith.cmpi eq, %0, %833 : vector<8x1xi32>
    %835 = arith.extui %834 : vector<8x1xi1> to vector<8x1xi32>
    %836 = arith.sitofp %835 : vector<8x1xi32> to vector<8x1xf32>
    %837 = vector.broadcast %836 : vector<8x1xf32> to vector<8x32xf32>
    %838 = arith.mulf %837, %832 : vector<8x32xf32>
    %839 = arith.addf %768, %838 : vector<8x32xf32>
    %840 = tpu.concatenate %830, %832 in 1 : vector<8x32xf32>, vector<8x32xf32> -> vector<8x64xf32>
    %841 = arith.truncf %840 : vector<8x64xf32> to vector<8x64xbf16>
    %cst_279 = arith.constant dense<0.000000e+00> : vector<8x192xf32>
    %842 = tpu.matmul %841, %696, %cst_279 {dimension_numbers = #tpu.dot_dimension_numbers<[1], [0], [0], [1], [0, 0, 1, 1], [], []>} : vector<8x64xbf16>, vector<64x192xbf16>, vector<8x192xf32> -> vector<8x192xf32>
    %c2_280 = arith.constant 2 : index
    %c0_281 = arith.constant 0 : index
    %c0_282 = arith.constant 0 : index
    %843 = vector.load %arg12[%c2_280, %c0_281, %c0_282] : memref<8x8x96xbf16, #tpu.memory_space<vmem>>, vector<1x8x96xbf16>
    %844 = vector.shape_cast %843 : vector<1x8x96xbf16> to vector<8x96xbf16>
    %845 = arith.extf %844 : vector<8x96xbf16> to vector<8x96xf32>
    %846 = vector.extract_strided_slice %842 {offsets = [0, 0], sizes = [8, 96], strides = [1, 1]} : vector<8x192xf32> to vector<8x96xf32>
    %847 = vector.extract_strided_slice %845 {offsets = [0, 0], sizes = [8, 64], strides = [1, 1]} : vector<8x96xf32> to vector<8x64xf32>
    %848 = vector.extract_strided_slice %846 {offsets = [0, 0], sizes = [8, 64], strides = [1, 1]} : vector<8x96xf32> to vector<8x64xf32>
    %849 = arith.addf %847, %848 : vector<8x64xf32>
    %850 = arith.negf %849 : vector<8x64xf32>
    %851 = math.exp %850 : vector<8x64xf32>
    %cst_283 = arith.constant 1.000000e+00 : f32
    %852 = vector.broadcast %cst_283 : f32 to vector<8x64xf32>
    %853 = arith.addf %852, %851 : vector<8x64xf32>
    %854 = arith.divf %852, %853 : vector<8x64xf32>
    %855 = vector.extract_strided_slice %854 {offsets = [0, 0], sizes = [8, 32], strides = [1, 1]} : vector<8x64xf32> to vector<8x32xf32>
    %856 = vector.extract_strided_slice %854 {offsets = [0, 32], sizes = [8, 32], strides = [1, 1]} : vector<8x64xf32> to vector<8x32xf32>
    %857 = vector.extract_strided_slice %845 {offsets = [0, 64], sizes = [8, 32], strides = [1, 1]} : vector<8x96xf32> to vector<8x32xf32>
    %858 = vector.extract_strided_slice %846 {offsets = [0, 64], sizes = [8, 32], strides = [1, 1]} : vector<8x96xf32> to vector<8x32xf32>
    %859 = arith.mulf %855, %858 : vector<8x32xf32>
    %860 = arith.addf %857, %859 : vector<8x32xf32>
    %861 = math.tanh %860 : vector<8x32xf32>
    %862 = arith.subf %830, %861 : vector<8x32xf32>
    %863 = arith.mulf %856, %862 : vector<8x32xf32>
    %864 = arith.addf %861, %863 : vector<8x32xf32>
    %c5_284 = arith.constant 5 : index
    %c0_285 = arith.constant 0 : index
    %c0_286 = arith.constant 0 : index
    %865 = vector.load %arg13[%c5_284, %c0_285, %c0_286] : memref<8x8x96xbf16, #tpu.memory_space<vmem>>, vector<1x8x96xbf16>
    %866 = vector.shape_cast %865 : vector<1x8x96xbf16> to vector<8x96xbf16>
    %867 = arith.extf %866 : vector<8x96xbf16> to vector<8x96xf32>
    %868 = vector.extract_strided_slice %842 {offsets = [0, 96], sizes = [8, 96], strides = [1, 1]} : vector<8x192xf32> to vector<8x96xf32>
    %869 = vector.extract_strided_slice %867 {offsets = [0, 0], sizes = [8, 64], strides = [1, 1]} : vector<8x96xf32> to vector<8x64xf32>
    %870 = vector.extract_strided_slice %868 {offsets = [0, 0], sizes = [8, 64], strides = [1, 1]} : vector<8x96xf32> to vector<8x64xf32>
    %871 = arith.addf %869, %870 : vector<8x64xf32>
    %872 = arith.negf %871 : vector<8x64xf32>
    %873 = math.exp %872 : vector<8x64xf32>
    %cst_287 = arith.constant 1.000000e+00 : f32
    %874 = vector.broadcast %cst_287 : f32 to vector<8x64xf32>
    %875 = arith.addf %874, %873 : vector<8x64xf32>
    %876 = arith.divf %874, %875 : vector<8x64xf32>
    %877 = vector.extract_strided_slice %876 {offsets = [0, 0], sizes = [8, 32], strides = [1, 1]} : vector<8x64xf32> to vector<8x32xf32>
    %878 = vector.extract_strided_slice %876 {offsets = [0, 32], sizes = [8, 32], strides = [1, 1]} : vector<8x64xf32> to vector<8x32xf32>
    %879 = vector.extract_strided_slice %867 {offsets = [0, 64], sizes = [8, 32], strides = [1, 1]} : vector<8x96xf32> to vector<8x32xf32>
    %880 = vector.extract_strided_slice %868 {offsets = [0, 64], sizes = [8, 32], strides = [1, 1]} : vector<8x96xf32> to vector<8x32xf32>
    %881 = arith.mulf %877, %880 : vector<8x32xf32>
    %882 = arith.addf %879, %881 : vector<8x32xf32>
    %883 = math.tanh %882 : vector<8x32xf32>
    %884 = arith.subf %832, %883 : vector<8x32xf32>
    %885 = arith.mulf %878, %884 : vector<8x32xf32>
    %886 = arith.addf %883, %885 : vector<8x32xf32>
    %c2_i32_288 = arith.constant 2 : i32
    %887 = vector.broadcast %c2_i32_288 : i32 to vector<8x1xi32>
    %888 = arith.cmpi sgt, %0, %887 : vector<8x1xi32>
    %889 = arith.extui %888 : vector<8x1xi1> to vector<8x1xi32>
    %890 = arith.sitofp %889 : vector<8x1xi32> to vector<8x1xf32>
    %c5_i32_289 = arith.constant 5 : i32
    %891 = vector.broadcast %c5_i32_289 : i32 to vector<8x1xi32>
    %892 = arith.cmpi sgt, %0, %891 : vector<8x1xi32>
    %893 = arith.extui %892 : vector<8x1xi1> to vector<8x1xi32>
    %894 = arith.sitofp %893 : vector<8x1xi32> to vector<8x1xf32>
    %895 = vector.broadcast %890 : vector<8x1xf32> to vector<8x32xf32>
    %896 = arith.mulf %895, %864 : vector<8x32xf32>
    %cst_290 = arith.constant 1.000000e+00 : f32
    %897 = vector.broadcast %cst_290 : f32 to vector<8x1xf32>
    %898 = arith.subf %897, %890 : vector<8x1xf32>
    %899 = vector.broadcast %898 : vector<8x1xf32> to vector<8x32xf32>
    %900 = arith.mulf %899, %830 : vector<8x32xf32>
    %901 = arith.addf %896, %900 : vector<8x32xf32>
    %902 = vector.broadcast %894 : vector<8x1xf32> to vector<8x32xf32>
    %903 = arith.mulf %902, %886 : vector<8x32xf32>
    %c6_i32_291 = arith.constant 6 : i32
    %904 = vector.broadcast %c6_i32_291 : i32 to vector<8x1xi32>
    %905 = arith.cmpi eq, %0, %904 : vector<8x1xi32>
    %906 = arith.extui %905 : vector<8x1xi1> to vector<8x1xi32>
    %907 = arith.sitofp %906 : vector<8x1xi32> to vector<8x1xf32>
    %908 = vector.broadcast %907 : vector<8x1xf32> to vector<8x32xf32>
    %909 = arith.mulf %908, %903 : vector<8x32xf32>
    %910 = arith.addf %839, %909 : vector<8x32xf32>
    %911 = tpu.concatenate %901, %903 in 1 : vector<8x32xf32>, vector<8x32xf32> -> vector<8x64xf32>
    %912 = arith.truncf %911 : vector<8x64xf32> to vector<8x64xbf16>
    %cst_292 = arith.constant dense<0.000000e+00> : vector<8x192xf32>
    %913 = tpu.matmul %912, %696, %cst_292 {dimension_numbers = #tpu.dot_dimension_numbers<[1], [0], [0], [1], [0, 0, 1, 1], [], []>} : vector<8x64xbf16>, vector<64x192xbf16>, vector<8x192xf32> -> vector<8x192xf32>
    %c3_293 = arith.constant 3 : index
    %c0_294 = arith.constant 0 : index
    %c0_295 = arith.constant 0 : index
    %914 = vector.load %arg12[%c3_293, %c0_294, %c0_295] : memref<8x8x96xbf16, #tpu.memory_space<vmem>>, vector<1x8x96xbf16>
    %915 = vector.shape_cast %914 : vector<1x8x96xbf16> to vector<8x96xbf16>
    %916 = arith.extf %915 : vector<8x96xbf16> to vector<8x96xf32>
    %917 = vector.extract_strided_slice %913 {offsets = [0, 0], sizes = [8, 96], strides = [1, 1]} : vector<8x192xf32> to vector<8x96xf32>
    %918 = vector.extract_strided_slice %916 {offsets = [0, 0], sizes = [8, 64], strides = [1, 1]} : vector<8x96xf32> to vector<8x64xf32>
    %919 = vector.extract_strided_slice %917 {offsets = [0, 0], sizes = [8, 64], strides = [1, 1]} : vector<8x96xf32> to vector<8x64xf32>
    %920 = arith.addf %918, %919 : vector<8x64xf32>
    %921 = arith.negf %920 : vector<8x64xf32>
    %922 = math.exp %921 : vector<8x64xf32>
    %cst_296 = arith.constant 1.000000e+00 : f32
    %923 = vector.broadcast %cst_296 : f32 to vector<8x64xf32>
    %924 = arith.addf %923, %922 : vector<8x64xf32>
    %925 = arith.divf %923, %924 : vector<8x64xf32>
    %926 = vector.extract_strided_slice %925 {offsets = [0, 0], sizes = [8, 32], strides = [1, 1]} : vector<8x64xf32> to vector<8x32xf32>
    %927 = vector.extract_strided_slice %925 {offsets = [0, 32], sizes = [8, 32], strides = [1, 1]} : vector<8x64xf32> to vector<8x32xf32>
    %928 = vector.extract_strided_slice %916 {offsets = [0, 64], sizes = [8, 32], strides = [1, 1]} : vector<8x96xf32> to vector<8x32xf32>
    %929 = vector.extract_strided_slice %917 {offsets = [0, 64], sizes = [8, 32], strides = [1, 1]} : vector<8x96xf32> to vector<8x32xf32>
    %930 = arith.mulf %926, %929 : vector<8x32xf32>
    %931 = arith.addf %928, %930 : vector<8x32xf32>
    %932 = math.tanh %931 : vector<8x32xf32>
    %933 = arith.subf %901, %932 : vector<8x32xf32>
    %934 = arith.mulf %927, %933 : vector<8x32xf32>
    %935 = arith.addf %932, %934 : vector<8x32xf32>
    %c4_297 = arith.constant 4 : index
    %c0_298 = arith.constant 0 : index
    %c0_299 = arith.constant 0 : index
    %936 = vector.load %arg13[%c4_297, %c0_298, %c0_299] : memref<8x8x96xbf16, #tpu.memory_space<vmem>>, vector<1x8x96xbf16>
    %937 = vector.shape_cast %936 : vector<1x8x96xbf16> to vector<8x96xbf16>
    %938 = arith.extf %937 : vector<8x96xbf16> to vector<8x96xf32>
    %939 = vector.extract_strided_slice %913 {offsets = [0, 96], sizes = [8, 96], strides = [1, 1]} : vector<8x192xf32> to vector<8x96xf32>
    %940 = vector.extract_strided_slice %938 {offsets = [0, 0], sizes = [8, 64], strides = [1, 1]} : vector<8x96xf32> to vector<8x64xf32>
    %941 = vector.extract_strided_slice %939 {offsets = [0, 0], sizes = [8, 64], strides = [1, 1]} : vector<8x96xf32> to vector<8x64xf32>
    %942 = arith.addf %940, %941 : vector<8x64xf32>
    %943 = arith.negf %942 : vector<8x64xf32>
    %944 = math.exp %943 : vector<8x64xf32>
    %cst_300 = arith.constant 1.000000e+00 : f32
    %945 = vector.broadcast %cst_300 : f32 to vector<8x64xf32>
    %946 = arith.addf %945, %944 : vector<8x64xf32>
    %947 = arith.divf %945, %946 : vector<8x64xf32>
    %948 = vector.extract_strided_slice %947 {offsets = [0, 0], sizes = [8, 32], strides = [1, 1]} : vector<8x64xf32> to vector<8x32xf32>
    %949 = vector.extract_strided_slice %947 {offsets = [0, 32], sizes = [8, 32], strides = [1, 1]} : vector<8x64xf32> to vector<8x32xf32>
    %950 = vector.extract_strided_slice %938 {offsets = [0, 64], sizes = [8, 32], strides = [1, 1]} : vector<8x96xf32> to vector<8x32xf32>
    %951 = vector.extract_strided_slice %939 {offsets = [0, 64], sizes = [8, 32], strides = [1, 1]} : vector<8x96xf32> to vector<8x32xf32>
    %952 = arith.mulf %948, %951 : vector<8x32xf32>
    %953 = arith.addf %950, %952 : vector<8x32xf32>
    %954 = math.tanh %953 : vector<8x32xf32>
    %955 = arith.subf %903, %954 : vector<8x32xf32>
    %956 = arith.mulf %949, %955 : vector<8x32xf32>
    %957 = arith.addf %954, %956 : vector<8x32xf32>
    %c3_i32_301 = arith.constant 3 : i32
    %958 = vector.broadcast %c3_i32_301 : i32 to vector<8x1xi32>
    %959 = arith.cmpi sgt, %0, %958 : vector<8x1xi32>
    %960 = arith.extui %959 : vector<8x1xi1> to vector<8x1xi32>
    %961 = arith.sitofp %960 : vector<8x1xi32> to vector<8x1xf32>
    %c4_i32_302 = arith.constant 4 : i32
    %962 = vector.broadcast %c4_i32_302 : i32 to vector<8x1xi32>
    %963 = arith.cmpi sgt, %0, %962 : vector<8x1xi32>
    %964 = arith.extui %963 : vector<8x1xi1> to vector<8x1xi32>
    %965 = arith.sitofp %964 : vector<8x1xi32> to vector<8x1xf32>
    %966 = vector.broadcast %961 : vector<8x1xf32> to vector<8x32xf32>
    %967 = arith.mulf %966, %935 : vector<8x32xf32>
    %cst_303 = arith.constant 1.000000e+00 : f32
    %968 = vector.broadcast %cst_303 : f32 to vector<8x1xf32>
    %969 = arith.subf %968, %961 : vector<8x1xf32>
    %970 = vector.broadcast %969 : vector<8x1xf32> to vector<8x32xf32>
    %971 = arith.mulf %970, %901 : vector<8x32xf32>
    %972 = arith.addf %967, %971 : vector<8x32xf32>
    %973 = vector.broadcast %965 : vector<8x1xf32> to vector<8x32xf32>
    %974 = arith.mulf %973, %957 : vector<8x32xf32>
    %c5_i32_304 = arith.constant 5 : i32
    %975 = vector.broadcast %c5_i32_304 : i32 to vector<8x1xi32>
    %976 = arith.cmpi eq, %0, %975 : vector<8x1xi32>
    %977 = arith.extui %976 : vector<8x1xi1> to vector<8x1xi32>
    %978 = arith.sitofp %977 : vector<8x1xi32> to vector<8x1xf32>
    %979 = vector.broadcast %978 : vector<8x1xf32> to vector<8x32xf32>
    %980 = arith.mulf %979, %974 : vector<8x32xf32>
    %981 = arith.addf %910, %980 : vector<8x32xf32>
    %982 = tpu.concatenate %972, %974 in 1 : vector<8x32xf32>, vector<8x32xf32> -> vector<8x64xf32>
    %983 = arith.truncf %982 : vector<8x64xf32> to vector<8x64xbf16>
    %cst_305 = arith.constant dense<0.000000e+00> : vector<8x192xf32>
    %984 = tpu.matmul %983, %696, %cst_305 {dimension_numbers = #tpu.dot_dimension_numbers<[1], [0], [0], [1], [0, 0, 1, 1], [], []>} : vector<8x64xbf16>, vector<64x192xbf16>, vector<8x192xf32> -> vector<8x192xf32>
    %c4_306 = arith.constant 4 : index
    %c0_307 = arith.constant 0 : index
    %c0_308 = arith.constant 0 : index
    %985 = vector.load %arg12[%c4_306, %c0_307, %c0_308] : memref<8x8x96xbf16, #tpu.memory_space<vmem>>, vector<1x8x96xbf16>
    %986 = vector.shape_cast %985 : vector<1x8x96xbf16> to vector<8x96xbf16>
    %987 = arith.extf %986 : vector<8x96xbf16> to vector<8x96xf32>
    %988 = vector.extract_strided_slice %984 {offsets = [0, 0], sizes = [8, 96], strides = [1, 1]} : vector<8x192xf32> to vector<8x96xf32>
    %989 = vector.extract_strided_slice %987 {offsets = [0, 0], sizes = [8, 64], strides = [1, 1]} : vector<8x96xf32> to vector<8x64xf32>
    %990 = vector.extract_strided_slice %988 {offsets = [0, 0], sizes = [8, 64], strides = [1, 1]} : vector<8x96xf32> to vector<8x64xf32>
    %991 = arith.addf %989, %990 : vector<8x64xf32>
    %992 = arith.negf %991 : vector<8x64xf32>
    %993 = math.exp %992 : vector<8x64xf32>
    %cst_309 = arith.constant 1.000000e+00 : f32
    %994 = vector.broadcast %cst_309 : f32 to vector<8x64xf32>
    %995 = arith.addf %994, %993 : vector<8x64xf32>
    %996 = arith.divf %994, %995 : vector<8x64xf32>
    %997 = vector.extract_strided_slice %996 {offsets = [0, 0], sizes = [8, 32], strides = [1, 1]} : vector<8x64xf32> to vector<8x32xf32>
    %998 = vector.extract_strided_slice %996 {offsets = [0, 32], sizes = [8, 32], strides = [1, 1]} : vector<8x64xf32> to vector<8x32xf32>
    %999 = vector.extract_strided_slice %987 {offsets = [0, 64], sizes = [8, 32], strides = [1, 1]} : vector<8x96xf32> to vector<8x32xf32>
    %1000 = vector.extract_strided_slice %988 {offsets = [0, 64], sizes = [8, 32], strides = [1, 1]} : vector<8x96xf32> to vector<8x32xf32>
    %1001 = arith.mulf %997, %1000 : vector<8x32xf32>
    %1002 = arith.addf %999, %1001 : vector<8x32xf32>
    %1003 = math.tanh %1002 : vector<8x32xf32>
    %1004 = arith.subf %972, %1003 : vector<8x32xf32>
    %1005 = arith.mulf %998, %1004 : vector<8x32xf32>
    %1006 = arith.addf %1003, %1005 : vector<8x32xf32>
    %c3_310 = arith.constant 3 : index
    %c0_311 = arith.constant 0 : index
    %c0_312 = arith.constant 0 : index
    %1007 = vector.load %arg13[%c3_310, %c0_311, %c0_312] : memref<8x8x96xbf16, #tpu.memory_space<vmem>>, vector<1x8x96xbf16>
    %1008 = vector.shape_cast %1007 : vector<1x8x96xbf16> to vector<8x96xbf16>
    %1009 = arith.extf %1008 : vector<8x96xbf16> to vector<8x96xf32>
    %1010 = vector.extract_strided_slice %984 {offsets = [0, 96], sizes = [8, 96], strides = [1, 1]} : vector<8x192xf32> to vector<8x96xf32>
    %1011 = vector.extract_strided_slice %1009 {offsets = [0, 0], sizes = [8, 64], strides = [1, 1]} : vector<8x96xf32> to vector<8x64xf32>
    %1012 = vector.extract_strided_slice %1010 {offsets = [0, 0], sizes = [8, 64], strides = [1, 1]} : vector<8x96xf32> to vector<8x64xf32>
    %1013 = arith.addf %1011, %1012 : vector<8x64xf32>
    %1014 = arith.negf %1013 : vector<8x64xf32>
    %1015 = math.exp %1014 : vector<8x64xf32>
    %cst_313 = arith.constant 1.000000e+00 : f32
    %1016 = vector.broadcast %cst_313 : f32 to vector<8x64xf32>
    %1017 = arith.addf %1016, %1015 : vector<8x64xf32>
    %1018 = arith.divf %1016, %1017 : vector<8x64xf32>
    %1019 = vector.extract_strided_slice %1018 {offsets = [0, 0], sizes = [8, 32], strides = [1, 1]} : vector<8x64xf32> to vector<8x32xf32>
    %1020 = vector.extract_strided_slice %1018 {offsets = [0, 32], sizes = [8, 32], strides = [1, 1]} : vector<8x64xf32> to vector<8x32xf32>
    %1021 = vector.extract_strided_slice %1009 {offsets = [0, 64], sizes = [8, 32], strides = [1, 1]} : vector<8x96xf32> to vector<8x32xf32>
    %1022 = vector.extract_strided_slice %1010 {offsets = [0, 64], sizes = [8, 32], strides = [1, 1]} : vector<8x96xf32> to vector<8x32xf32>
    %1023 = arith.mulf %1019, %1022 : vector<8x32xf32>
    %1024 = arith.addf %1021, %1023 : vector<8x32xf32>
    %1025 = math.tanh %1024 : vector<8x32xf32>
    %1026 = arith.subf %974, %1025 : vector<8x32xf32>
    %1027 = arith.mulf %1020, %1026 : vector<8x32xf32>
    %1028 = arith.addf %1025, %1027 : vector<8x32xf32>
    %c4_i32_314 = arith.constant 4 : i32
    %1029 = vector.broadcast %c4_i32_314 : i32 to vector<8x1xi32>
    %1030 = arith.cmpi sgt, %0, %1029 : vector<8x1xi32>
    %1031 = arith.extui %1030 : vector<8x1xi1> to vector<8x1xi32>
    %1032 = arith.sitofp %1031 : vector<8x1xi32> to vector<8x1xf32>
    %c3_i32_315 = arith.constant 3 : i32
    %1033 = vector.broadcast %c3_i32_315 : i32 to vector<8x1xi32>
    %1034 = arith.cmpi sgt, %0, %1033 : vector<8x1xi32>
    %1035 = arith.extui %1034 : vector<8x1xi1> to vector<8x1xi32>
    %1036 = arith.sitofp %1035 : vector<8x1xi32> to vector<8x1xf32>
    %1037 = vector.broadcast %1032 : vector<8x1xf32> to vector<8x32xf32>
    %1038 = arith.mulf %1037, %1006 : vector<8x32xf32>
    %cst_316 = arith.constant 1.000000e+00 : f32
    %1039 = vector.broadcast %cst_316 : f32 to vector<8x1xf32>
    %1040 = arith.subf %1039, %1032 : vector<8x1xf32>
    %1041 = vector.broadcast %1040 : vector<8x1xf32> to vector<8x32xf32>
    %1042 = arith.mulf %1041, %972 : vector<8x32xf32>
    %1043 = arith.addf %1038, %1042 : vector<8x32xf32>
    %1044 = vector.broadcast %1036 : vector<8x1xf32> to vector<8x32xf32>
    %1045 = arith.mulf %1044, %1028 : vector<8x32xf32>
    %c4_i32_317 = arith.constant 4 : i32
    %1046 = vector.broadcast %c4_i32_317 : i32 to vector<8x1xi32>
    %1047 = arith.cmpi eq, %0, %1046 : vector<8x1xi32>
    %1048 = arith.extui %1047 : vector<8x1xi1> to vector<8x1xi32>
    %1049 = arith.sitofp %1048 : vector<8x1xi32> to vector<8x1xf32>
    %1050 = vector.broadcast %1049 : vector<8x1xf32> to vector<8x32xf32>
    %1051 = arith.mulf %1050, %1045 : vector<8x32xf32>
    %1052 = arith.addf %981, %1051 : vector<8x32xf32>
    %1053 = tpu.concatenate %1043, %1045 in 1 : vector<8x32xf32>, vector<8x32xf32> -> vector<8x64xf32>
    %1054 = arith.truncf %1053 : vector<8x64xf32> to vector<8x64xbf16>
    %cst_318 = arith.constant dense<0.000000e+00> : vector<8x192xf32>
    %1055 = tpu.matmul %1054, %696, %cst_318 {dimension_numbers = #tpu.dot_dimension_numbers<[1], [0], [0], [1], [0, 0, 1, 1], [], []>} : vector<8x64xbf16>, vector<64x192xbf16>, vector<8x192xf32> -> vector<8x192xf32>
    %c5_319 = arith.constant 5 : index
    %c0_320 = arith.constant 0 : index
    %c0_321 = arith.constant 0 : index
    %1056 = vector.load %arg12[%c5_319, %c0_320, %c0_321] : memref<8x8x96xbf16, #tpu.memory_space<vmem>>, vector<1x8x96xbf16>
    %1057 = vector.shape_cast %1056 : vector<1x8x96xbf16> to vector<8x96xbf16>
    %1058 = arith.extf %1057 : vector<8x96xbf16> to vector<8x96xf32>
    %1059 = vector.extract_strided_slice %1055 {offsets = [0, 0], sizes = [8, 96], strides = [1, 1]} : vector<8x192xf32> to vector<8x96xf32>
    %1060 = vector.extract_strided_slice %1058 {offsets = [0, 0], sizes = [8, 64], strides = [1, 1]} : vector<8x96xf32> to vector<8x64xf32>
    %1061 = vector.extract_strided_slice %1059 {offsets = [0, 0], sizes = [8, 64], strides = [1, 1]} : vector<8x96xf32> to vector<8x64xf32>
    %1062 = arith.addf %1060, %1061 : vector<8x64xf32>
    %1063 = arith.negf %1062 : vector<8x64xf32>
    %1064 = math.exp %1063 : vector<8x64xf32>
    %cst_322 = arith.constant 1.000000e+00 : f32
    %1065 = vector.broadcast %cst_322 : f32 to vector<8x64xf32>
    %1066 = arith.addf %1065, %1064 : vector<8x64xf32>
    %1067 = arith.divf %1065, %1066 : vector<8x64xf32>
    %1068 = vector.extract_strided_slice %1067 {offsets = [0, 0], sizes = [8, 32], strides = [1, 1]} : vector<8x64xf32> to vector<8x32xf32>
    %1069 = vector.extract_strided_slice %1067 {offsets = [0, 32], sizes = [8, 32], strides = [1, 1]} : vector<8x64xf32> to vector<8x32xf32>
    %1070 = vector.extract_strided_slice %1058 {offsets = [0, 64], sizes = [8, 32], strides = [1, 1]} : vector<8x96xf32> to vector<8x32xf32>
    %1071 = vector.extract_strided_slice %1059 {offsets = [0, 64], sizes = [8, 32], strides = [1, 1]} : vector<8x96xf32> to vector<8x32xf32>
    %1072 = arith.mulf %1068, %1071 : vector<8x32xf32>
    %1073 = arith.addf %1070, %1072 : vector<8x32xf32>
    %1074 = math.tanh %1073 : vector<8x32xf32>
    %1075 = arith.subf %1043, %1074 : vector<8x32xf32>
    %1076 = arith.mulf %1069, %1075 : vector<8x32xf32>
    %1077 = arith.addf %1074, %1076 : vector<8x32xf32>
    %c2_323 = arith.constant 2 : index
    %c0_324 = arith.constant 0 : index
    %c0_325 = arith.constant 0 : index
    %1078 = vector.load %arg13[%c2_323, %c0_324, %c0_325] : memref<8x8x96xbf16, #tpu.memory_space<vmem>>, vector<1x8x96xbf16>
    %1079 = vector.shape_cast %1078 : vector<1x8x96xbf16> to vector<8x96xbf16>
    %1080 = arith.extf %1079 : vector<8x96xbf16> to vector<8x96xf32>
    %1081 = vector.extract_strided_slice %1055 {offsets = [0, 96], sizes = [8, 96], strides = [1, 1]} : vector<8x192xf32> to vector<8x96xf32>
    %1082 = vector.extract_strided_slice %1080 {offsets = [0, 0], sizes = [8, 64], strides = [1, 1]} : vector<8x96xf32> to vector<8x64xf32>
    %1083 = vector.extract_strided_slice %1081 {offsets = [0, 0], sizes = [8, 64], strides = [1, 1]} : vector<8x96xf32> to vector<8x64xf32>
    %1084 = arith.addf %1082, %1083 : vector<8x64xf32>
    %1085 = arith.negf %1084 : vector<8x64xf32>
    %1086 = math.exp %1085 : vector<8x64xf32>
    %cst_326 = arith.constant 1.000000e+00 : f32
    %1087 = vector.broadcast %cst_326 : f32 to vector<8x64xf32>
    %1088 = arith.addf %1087, %1086 : vector<8x64xf32>
    %1089 = arith.divf %1087, %1088 : vector<8x64xf32>
    %1090 = vector.extract_strided_slice %1089 {offsets = [0, 0], sizes = [8, 32], strides = [1, 1]} : vector<8x64xf32> to vector<8x32xf32>
    %1091 = vector.extract_strided_slice %1089 {offsets = [0, 32], sizes = [8, 32], strides = [1, 1]} : vector<8x64xf32> to vector<8x32xf32>
    %1092 = vector.extract_strided_slice %1080 {offsets = [0, 64], sizes = [8, 32], strides = [1, 1]} : vector<8x96xf32> to vector<8x32xf32>
    %1093 = vector.extract_strided_slice %1081 {offsets = [0, 64], sizes = [8, 32], strides = [1, 1]} : vector<8x96xf32> to vector<8x32xf32>
    %1094 = arith.mulf %1090, %1093 : vector<8x32xf32>
    %1095 = arith.addf %1092, %1094 : vector<8x32xf32>
    %1096 = math.tanh %1095 : vector<8x32xf32>
    %1097 = arith.subf %1045, %1096 : vector<8x32xf32>
    %1098 = arith.mulf %1091, %1097 : vector<8x32xf32>
    %1099 = arith.addf %1096, %1098 : vector<8x32xf32>
    %c5_i32_327 = arith.constant 5 : i32
    %1100 = vector.broadcast %c5_i32_327 : i32 to vector<8x1xi32>
    %1101 = arith.cmpi sgt, %0, %1100 : vector<8x1xi32>
    %1102 = arith.extui %1101 : vector<8x1xi1> to vector<8x1xi32>
    %1103 = arith.sitofp %1102 : vector<8x1xi32> to vector<8x1xf32>
    %c2_i32_328 = arith.constant 2 : i32
    %1104 = vector.broadcast %c2_i32_328 : i32 to vector<8x1xi32>
    %1105 = arith.cmpi sgt, %0, %1104 : vector<8x1xi32>
    %1106 = arith.extui %1105 : vector<8x1xi1> to vector<8x1xi32>
    %1107 = arith.sitofp %1106 : vector<8x1xi32> to vector<8x1xf32>
    %1108 = vector.broadcast %1103 : vector<8x1xf32> to vector<8x32xf32>
    %1109 = arith.mulf %1108, %1077 : vector<8x32xf32>
    %cst_329 = arith.constant 1.000000e+00 : f32
    %1110 = vector.broadcast %cst_329 : f32 to vector<8x1xf32>
    %1111 = arith.subf %1110, %1103 : vector<8x1xf32>
    %1112 = vector.broadcast %1111 : vector<8x1xf32> to vector<8x32xf32>
    %1113 = arith.mulf %1112, %1043 : vector<8x32xf32>
    %1114 = arith.addf %1109, %1113 : vector<8x32xf32>
    %1115 = vector.broadcast %1107 : vector<8x1xf32> to vector<8x32xf32>
    %1116 = arith.mulf %1115, %1099 : vector<8x32xf32>
    %c3_i32_330 = arith.constant 3 : i32
    %1117 = vector.broadcast %c3_i32_330 : i32 to vector<8x1xi32>
    %1118 = arith.cmpi eq, %0, %1117 : vector<8x1xi32>
    %1119 = arith.extui %1118 : vector<8x1xi1> to vector<8x1xi32>
    %1120 = arith.sitofp %1119 : vector<8x1xi32> to vector<8x1xf32>
    %1121 = vector.broadcast %1120 : vector<8x1xf32> to vector<8x32xf32>
    %1122 = arith.mulf %1121, %1116 : vector<8x32xf32>
    %1123 = arith.addf %1052, %1122 : vector<8x32xf32>
    %1124 = tpu.concatenate %1114, %1116 in 1 : vector<8x32xf32>, vector<8x32xf32> -> vector<8x64xf32>
    %1125 = arith.truncf %1124 : vector<8x64xf32> to vector<8x64xbf16>
    %cst_331 = arith.constant dense<0.000000e+00> : vector<8x192xf32>
    %1126 = tpu.matmul %1125, %696, %cst_331 {dimension_numbers = #tpu.dot_dimension_numbers<[1], [0], [0], [1], [0, 0, 1, 1], [], []>} : vector<8x64xbf16>, vector<64x192xbf16>, vector<8x192xf32> -> vector<8x192xf32>
    %c6_332 = arith.constant 6 : index
    %c0_333 = arith.constant 0 : index
    %c0_334 = arith.constant 0 : index
    %1127 = vector.load %arg12[%c6_332, %c0_333, %c0_334] : memref<8x8x96xbf16, #tpu.memory_space<vmem>>, vector<1x8x96xbf16>
    %1128 = vector.shape_cast %1127 : vector<1x8x96xbf16> to vector<8x96xbf16>
    %1129 = arith.extf %1128 : vector<8x96xbf16> to vector<8x96xf32>
    %1130 = vector.extract_strided_slice %1126 {offsets = [0, 0], sizes = [8, 96], strides = [1, 1]} : vector<8x192xf32> to vector<8x96xf32>
    %1131 = vector.extract_strided_slice %1129 {offsets = [0, 0], sizes = [8, 64], strides = [1, 1]} : vector<8x96xf32> to vector<8x64xf32>
    %1132 = vector.extract_strided_slice %1130 {offsets = [0, 0], sizes = [8, 64], strides = [1, 1]} : vector<8x96xf32> to vector<8x64xf32>
    %1133 = arith.addf %1131, %1132 : vector<8x64xf32>
    %1134 = arith.negf %1133 : vector<8x64xf32>
    %1135 = math.exp %1134 : vector<8x64xf32>
    %cst_335 = arith.constant 1.000000e+00 : f32
    %1136 = vector.broadcast %cst_335 : f32 to vector<8x64xf32>
    %1137 = arith.addf %1136, %1135 : vector<8x64xf32>
    %1138 = arith.divf %1136, %1137 : vector<8x64xf32>
    %1139 = vector.extract_strided_slice %1138 {offsets = [0, 0], sizes = [8, 32], strides = [1, 1]} : vector<8x64xf32> to vector<8x32xf32>
    %1140 = vector.extract_strided_slice %1138 {offsets = [0, 32], sizes = [8, 32], strides = [1, 1]} : vector<8x64xf32> to vector<8x32xf32>
    %1141 = vector.extract_strided_slice %1129 {offsets = [0, 64], sizes = [8, 32], strides = [1, 1]} : vector<8x96xf32> to vector<8x32xf32>
    %1142 = vector.extract_strided_slice %1130 {offsets = [0, 64], sizes = [8, 32], strides = [1, 1]} : vector<8x96xf32> to vector<8x32xf32>
    %1143 = arith.mulf %1139, %1142 : vector<8x32xf32>
    %1144 = arith.addf %1141, %1143 : vector<8x32xf32>
    %1145 = math.tanh %1144 : vector<8x32xf32>
    %1146 = arith.subf %1114, %1145 : vector<8x32xf32>
    %1147 = arith.mulf %1140, %1146 : vector<8x32xf32>
    %1148 = arith.addf %1145, %1147 : vector<8x32xf32>
    %c1_336 = arith.constant 1 : index
    %c0_337 = arith.constant 0 : index
    %c0_338 = arith.constant 0 : index
    %1149 = vector.load %arg13[%c1_336, %c0_337, %c0_338] : memref<8x8x96xbf16, #tpu.memory_space<vmem>>, vector<1x8x96xbf16>
    %1150 = vector.shape_cast %1149 : vector<1x8x96xbf16> to vector<8x96xbf16>
    %1151 = arith.extf %1150 : vector<8x96xbf16> to vector<8x96xf32>
    %1152 = vector.extract_strided_slice %1126 {offsets = [0, 96], sizes = [8, 96], strides = [1, 1]} : vector<8x192xf32> to vector<8x96xf32>
    %1153 = vector.extract_strided_slice %1151 {offsets = [0, 0], sizes = [8, 64], strides = [1, 1]} : vector<8x96xf32> to vector<8x64xf32>
    %1154 = vector.extract_strided_slice %1152 {offsets = [0, 0], sizes = [8, 64], strides = [1, 1]} : vector<8x96xf32> to vector<8x64xf32>
    %1155 = arith.addf %1153, %1154 : vector<8x64xf32>
    %1156 = arith.negf %1155 : vector<8x64xf32>
    %1157 = math.exp %1156 : vector<8x64xf32>
    %cst_339 = arith.constant 1.000000e+00 : f32
    %1158 = vector.broadcast %cst_339 : f32 to vector<8x64xf32>
    %1159 = arith.addf %1158, %1157 : vector<8x64xf32>
    %1160 = arith.divf %1158, %1159 : vector<8x64xf32>
    %1161 = vector.extract_strided_slice %1160 {offsets = [0, 0], sizes = [8, 32], strides = [1, 1]} : vector<8x64xf32> to vector<8x32xf32>
    %1162 = vector.extract_strided_slice %1160 {offsets = [0, 32], sizes = [8, 32], strides = [1, 1]} : vector<8x64xf32> to vector<8x32xf32>
    %1163 = vector.extract_strided_slice %1151 {offsets = [0, 64], sizes = [8, 32], strides = [1, 1]} : vector<8x96xf32> to vector<8x32xf32>
    %1164 = vector.extract_strided_slice %1152 {offsets = [0, 64], sizes = [8, 32], strides = [1, 1]} : vector<8x96xf32> to vector<8x32xf32>
    %1165 = arith.mulf %1161, %1164 : vector<8x32xf32>
    %1166 = arith.addf %1163, %1165 : vector<8x32xf32>
    %1167 = math.tanh %1166 : vector<8x32xf32>
    %1168 = arith.subf %1116, %1167 : vector<8x32xf32>
    %1169 = arith.mulf %1162, %1168 : vector<8x32xf32>
    %1170 = arith.addf %1167, %1169 : vector<8x32xf32>
    %c6_i32_340 = arith.constant 6 : i32
    %1171 = vector.broadcast %c6_i32_340 : i32 to vector<8x1xi32>
    %1172 = arith.cmpi sgt, %0, %1171 : vector<8x1xi32>
    %1173 = arith.extui %1172 : vector<8x1xi1> to vector<8x1xi32>
    %1174 = arith.sitofp %1173 : vector<8x1xi32> to vector<8x1xf32>
    %c1_i32_341 = arith.constant 1 : i32
    %1175 = vector.broadcast %c1_i32_341 : i32 to vector<8x1xi32>
    %1176 = arith.cmpi sgt, %0, %1175 : vector<8x1xi32>
    %1177 = arith.extui %1176 : vector<8x1xi1> to vector<8x1xi32>
    %1178 = arith.sitofp %1177 : vector<8x1xi32> to vector<8x1xf32>
    %1179 = vector.broadcast %1174 : vector<8x1xf32> to vector<8x32xf32>
    %1180 = arith.mulf %1179, %1148 : vector<8x32xf32>
    %cst_342 = arith.constant 1.000000e+00 : f32
    %1181 = vector.broadcast %cst_342 : f32 to vector<8x1xf32>
    %1182 = arith.subf %1181, %1174 : vector<8x1xf32>
    %1183 = vector.broadcast %1182 : vector<8x1xf32> to vector<8x32xf32>
    %1184 = arith.mulf %1183, %1114 : vector<8x32xf32>
    %1185 = arith.addf %1180, %1184 : vector<8x32xf32>
    %1186 = vector.broadcast %1178 : vector<8x1xf32> to vector<8x32xf32>
    %1187 = arith.mulf %1186, %1170 : vector<8x32xf32>
    %c2_i32_343 = arith.constant 2 : i32
    %1188 = vector.broadcast %c2_i32_343 : i32 to vector<8x1xi32>
    %1189 = arith.cmpi eq, %0, %1188 : vector<8x1xi32>
    %1190 = arith.extui %1189 : vector<8x1xi1> to vector<8x1xi32>
    %1191 = arith.sitofp %1190 : vector<8x1xi32> to vector<8x1xf32>
    %1192 = vector.broadcast %1191 : vector<8x1xf32> to vector<8x32xf32>
    %1193 = arith.mulf %1192, %1187 : vector<8x32xf32>
    %1194 = arith.addf %1123, %1193 : vector<8x32xf32>
    %1195 = tpu.concatenate %1185, %1187 in 1 : vector<8x32xf32>, vector<8x32xf32> -> vector<8x64xf32>
    %1196 = arith.truncf %1195 : vector<8x64xf32> to vector<8x64xbf16>
    %cst_344 = arith.constant dense<0.000000e+00> : vector<8x192xf32>
    %1197 = tpu.matmul %1196, %696, %cst_344 {dimension_numbers = #tpu.dot_dimension_numbers<[1], [0], [0], [1], [0, 0, 1, 1], [], []>} : vector<8x64xbf16>, vector<64x192xbf16>, vector<8x192xf32> -> vector<8x192xf32>
    %c7_345 = arith.constant 7 : index
    %c0_346 = arith.constant 0 : index
    %c0_347 = arith.constant 0 : index
    %1198 = vector.load %arg12[%c7_345, %c0_346, %c0_347] : memref<8x8x96xbf16, #tpu.memory_space<vmem>>, vector<1x8x96xbf16>
    %1199 = vector.shape_cast %1198 : vector<1x8x96xbf16> to vector<8x96xbf16>
    %1200 = arith.extf %1199 : vector<8x96xbf16> to vector<8x96xf32>
    %1201 = vector.extract_strided_slice %1197 {offsets = [0, 0], sizes = [8, 96], strides = [1, 1]} : vector<8x192xf32> to vector<8x96xf32>
    %1202 = vector.extract_strided_slice %1200 {offsets = [0, 0], sizes = [8, 64], strides = [1, 1]} : vector<8x96xf32> to vector<8x64xf32>
    %1203 = vector.extract_strided_slice %1201 {offsets = [0, 0], sizes = [8, 64], strides = [1, 1]} : vector<8x96xf32> to vector<8x64xf32>
    %1204 = arith.addf %1202, %1203 : vector<8x64xf32>
    %1205 = arith.negf %1204 : vector<8x64xf32>
    %1206 = math.exp %1205 : vector<8x64xf32>
    %cst_348 = arith.constant 1.000000e+00 : f32
    %1207 = vector.broadcast %cst_348 : f32 to vector<8x64xf32>
    %1208 = arith.addf %1207, %1206 : vector<8x64xf32>
    %1209 = arith.divf %1207, %1208 : vector<8x64xf32>
    %1210 = vector.extract_strided_slice %1209 {offsets = [0, 0], sizes = [8, 32], strides = [1, 1]} : vector<8x64xf32> to vector<8x32xf32>
    %1211 = vector.extract_strided_slice %1209 {offsets = [0, 32], sizes = [8, 32], strides = [1, 1]} : vector<8x64xf32> to vector<8x32xf32>
    %1212 = vector.extract_strided_slice %1200 {offsets = [0, 64], sizes = [8, 32], strides = [1, 1]} : vector<8x96xf32> to vector<8x32xf32>
    %1213 = vector.extract_strided_slice %1201 {offsets = [0, 64], sizes = [8, 32], strides = [1, 1]} : vector<8x96xf32> to vector<8x32xf32>
    %1214 = arith.mulf %1210, %1213 : vector<8x32xf32>
    %1215 = arith.addf %1212, %1214 : vector<8x32xf32>
    %1216 = math.tanh %1215 : vector<8x32xf32>
    %1217 = arith.subf %1185, %1216 : vector<8x32xf32>
    %1218 = arith.mulf %1211, %1217 : vector<8x32xf32>
    %1219 = arith.addf %1216, %1218 : vector<8x32xf32>
    %c0_349 = arith.constant 0 : index
    %c0_350 = arith.constant 0 : index
    %c0_351 = arith.constant 0 : index
    %1220 = vector.load %arg13[%c0_349, %c0_350, %c0_351] : memref<8x8x96xbf16, #tpu.memory_space<vmem>>, vector<1x8x96xbf16>
    %1221 = vector.shape_cast %1220 : vector<1x8x96xbf16> to vector<8x96xbf16>
    %1222 = arith.extf %1221 : vector<8x96xbf16> to vector<8x96xf32>
    %1223 = vector.extract_strided_slice %1197 {offsets = [0, 96], sizes = [8, 96], strides = [1, 1]} : vector<8x192xf32> to vector<8x96xf32>
    %1224 = vector.extract_strided_slice %1222 {offsets = [0, 0], sizes = [8, 64], strides = [1, 1]} : vector<8x96xf32> to vector<8x64xf32>
    %1225 = vector.extract_strided_slice %1223 {offsets = [0, 0], sizes = [8, 64], strides = [1, 1]} : vector<8x96xf32> to vector<8x64xf32>
    %1226 = arith.addf %1224, %1225 : vector<8x64xf32>
    %1227 = arith.negf %1226 : vector<8x64xf32>
    %1228 = math.exp %1227 : vector<8x64xf32>
    %cst_352 = arith.constant 1.000000e+00 : f32
    %1229 = vector.broadcast %cst_352 : f32 to vector<8x64xf32>
    %1230 = arith.addf %1229, %1228 : vector<8x64xf32>
    %1231 = arith.divf %1229, %1230 : vector<8x64xf32>
    %1232 = vector.extract_strided_slice %1231 {offsets = [0, 0], sizes = [8, 32], strides = [1, 1]} : vector<8x64xf32> to vector<8x32xf32>
    %1233 = vector.extract_strided_slice %1231 {offsets = [0, 32], sizes = [8, 32], strides = [1, 1]} : vector<8x64xf32> to vector<8x32xf32>
    %1234 = vector.extract_strided_slice %1222 {offsets = [0, 64], sizes = [8, 32], strides = [1, 1]} : vector<8x96xf32> to vector<8x32xf32>
    %1235 = vector.extract_strided_slice %1223 {offsets = [0, 64], sizes = [8, 32], strides = [1, 1]} : vector<8x96xf32> to vector<8x32xf32>
    %1236 = arith.mulf %1232, %1235 : vector<8x32xf32>
    %1237 = arith.addf %1234, %1236 : vector<8x32xf32>
    %1238 = math.tanh %1237 : vector<8x32xf32>
    %1239 = arith.subf %1187, %1238 : vector<8x32xf32>
    %1240 = arith.mulf %1233, %1239 : vector<8x32xf32>
    %1241 = arith.addf %1238, %1240 : vector<8x32xf32>
    %c7_i32_353 = arith.constant 7 : i32
    %1242 = vector.broadcast %c7_i32_353 : i32 to vector<8x1xi32>
    %1243 = arith.cmpi sgt, %0, %1242 : vector<8x1xi32>
    %1244 = arith.extui %1243 : vector<8x1xi1> to vector<8x1xi32>
    %1245 = arith.sitofp %1244 : vector<8x1xi32> to vector<8x1xf32>
    %c0_i32_354 = arith.constant 0 : i32
    %1246 = vector.broadcast %c0_i32_354 : i32 to vector<8x1xi32>
    %1247 = arith.cmpi sgt, %0, %1246 : vector<8x1xi32>
    %1248 = arith.extui %1247 : vector<8x1xi1> to vector<8x1xi32>
    %1249 = arith.sitofp %1248 : vector<8x1xi32> to vector<8x1xf32>
    %1250 = vector.broadcast %1245 : vector<8x1xf32> to vector<8x32xf32>
    %1251 = arith.mulf %1250, %1219 : vector<8x32xf32>
    %cst_355 = arith.constant 1.000000e+00 : f32
    %1252 = vector.broadcast %cst_355 : f32 to vector<8x1xf32>
    %1253 = arith.subf %1252, %1245 : vector<8x1xf32>
    %1254 = vector.broadcast %1253 : vector<8x1xf32> to vector<8x32xf32>
    %1255 = arith.mulf %1254, %1185 : vector<8x32xf32>
    %1256 = arith.addf %1251, %1255 : vector<8x32xf32>
    %1257 = vector.broadcast %1249 : vector<8x1xf32> to vector<8x32xf32>
    %1258 = arith.mulf %1257, %1241 : vector<8x32xf32>
    %c1_i32_356 = arith.constant 1 : i32
    %1259 = vector.broadcast %c1_i32_356 : i32 to vector<8x1xi32>
    %1260 = arith.cmpi eq, %0, %1259 : vector<8x1xi32>
    %1261 = arith.extui %1260 : vector<8x1xi1> to vector<8x1xi32>
    %1262 = arith.sitofp %1261 : vector<8x1xi32> to vector<8x1xf32>
    %1263 = vector.broadcast %1262 : vector<8x1xf32> to vector<8x32xf32>
    %1264 = arith.mulf %1263, %1258 : vector<8x32xf32>
    %1265 = arith.addf %1194, %1264 : vector<8x32xf32>
    %1266 = tpu.concatenate %1256, %1265 in 1 : vector<8x32xf32>, vector<8x32xf32> -> vector<8x64xf32>
    %cst_357 = arith.constant 0.000000e+00 : f32
    %1267 = vector.broadcast %cst_357 : f32 to vector<8x64xf32>
    %1268 = tpu.concatenate %1266, %1267 in 1 : vector<8x64xf32>, vector<8x64xf32> -> vector<8x128xf32>
    %c0_358 = arith.constant 0 : index
    %c0_359 = arith.constant 0 : index
    %1269 = vector.load %arg11[%c0_358, %c0_359] : memref<8x128xf32, #tpu.memory_space<vmem>>, vector<8x128xf32>
    tpu.vector_store %arg11[%c0_358, %c0_359], %1268 {strides = array<i32>} : memref<8x128xf32, #tpu.memory_space<vmem>>, vector<8x128xf32>,
    return
  }
  func.func @transform_0(%arg0: i32) -> (i32, i32, i32) {
    %c0_i32 = arith.constant 0 : i32
    %c0_i32_0 = arith.constant 0 : i32
    %c0_i32_1 = arith.constant 0 : i32
    return %arg0, %c0_i32, %c0_i32_0 : i32, i32, i32
  }
  func.func @transform_1(%arg0: i32) -> (i32, i32) {
    %c0_i32 = arith.constant 0 : i32
    %c0_i32_0 = arith.constant 0 : i32
    return %arg0, %c0_i32 : i32, i32
  }
  func.func @transform_2(%arg0: i32) -> (i32, i32) {
    %c0_i32 = arith.constant 0 : i32
    %c0_i32_0 = arith.constant 0 : i32
    %c0_i32_1 = arith.constant 0 : i32
    return %c0_i32, %c0_i32_0 : i32, i32
  }
  func.func @transform_3(%arg0: i32) -> (i32, i32) {
    %c0_i32 = arith.constant 0 : i32
    %c0_i32_0 = arith.constant 0 : i32
    %c0_i32_1 = arith.constant 0 : i32
    return %c0_i32, %c0_i32_0 : i32, i32
  }
  func.func @transform_4(%arg0: i32) -> (i32, i32) {
    %c0_i32 = arith.constant 0 : i32
    %c0_i32_0 = arith.constant 0 : i32
    %c0_i32_1 = arith.constant 0 : i32
    return %c0_i32, %c0_i32_0 : i32, i32
  }
  func.func @transform_5(%arg0: i32) -> (i32, i32) {
    %c0_i32 = arith.constant 0 : i32
    %c0_i32_0 = arith.constant 0 : i32
    %c0_i32_1 = arith.constant 0 : i32
    return %c0_i32, %c0_i32_0 : i32, i32
  }
  func.func @transform_6(%arg0: i32) -> (i32, i32) {
    %c0_i32 = arith.constant 0 : i32
    %c0_i32_0 = arith.constant 0 : i32
    %c0_i32_1 = arith.constant 0 : i32
    return %c0_i32, %c0_i32_0 : i32, i32
  }
  func.func @transform_7(%arg0: i32) -> (i32, i32) {
    %c0_i32 = arith.constant 0 : i32
    %c0_i32_0 = arith.constant 0 : i32
    %c0_i32_1 = arith.constant 0 : i32
    return %c0_i32, %c0_i32_0 : i32, i32
  }
  func.func @transform_8(%arg0: i32) -> (i32, i32) {
    %c0_i32 = arith.constant 0 : i32
    %c0_i32_0 = arith.constant 0 : i32
    %c0_i32_1 = arith.constant 0 : i32
    return %c0_i32, %c0_i32_0 : i32, i32
  }
  func.func @transform_9(%arg0: i32) -> (i32, i32) {
    %c0_i32 = arith.constant 0 : i32
    %c0_i32_0 = arith.constant 0 : i32
    %c0_i32_1 = arith.constant 0 : i32
    return %c0_i32, %c0_i32_0 : i32, i32
  }
  func.func @transform_10(%arg0: i32) -> (i32, i32) {
    %c0_i32 = arith.constant 0 : i32
    %c0_i32_0 = arith.constant 0 : i32
    return %arg0, %c0_i32 : i32, i32
  }
}

</mosaic_0001>

<llo_original>
// kernel: tpu_custom_call.1
$region0: #{tpu_custom_call.1}
  #allocation0 [shape = 'u32[]', space=smem, size = 0x4, offset = 0x4, fixed_abs, tag = 'smem constant byte address 0x4 - core index']
  #allocation1 [shape = 'u32[144,128]{1,0:T(1,128)}', space=vmem, size = 0x12000, scoped, tag = 'internal scratch']
  #allocation2 [shape = 'bf16[8,8,96]{2,1,0:T(8,128)(2,1)}', space=vmem, size = 0x4000, scoped, tag = 'scratch operand']
  #allocation3 [shape = 'bf16[8,8,96]{2,1,0:T(8,128)(2,1)}', space=vmem, size = 0x4000, scoped, tag = 'scratch operand']
  #allocation4 [shape = 'bf16[8,8,32]{2,1,0:T(8,128)(2,1)}', space=vmem, size = 0x4000, scoped, tag = 'scratch operand']
  #allocation5 [shape = 'bf16[8,8,32]{2,1,0:T(8,128)(2,1)}', space=vmem, size = 0x4000, scoped, tag = 'scratch operand']
  %s0 = inlined_call_operand.hbm [shape: bf16[8,8,32], index: 0, kind: input, shape index: {}]
  %s1 = inlined_call_operand.vmem [shape: s32[8,1], index: 1, kind: input, shape index: {}]
  %s2 = inlined_call_operand.vmem [shape: bf16[32,96], index: 2, kind: input, shape index: {}]
  %s3 = inlined_call_operand.hbm [shape: bf16[32,96], index: 3, kind: input, shape index: {}]
  %s4 = inlined_call_operand.hbm [shape: bf16[64,192], index: 4, kind: input, shape index: {}]
  %s5 = inlined_call_operand.hbm [shape: bf16[32,96], index: 5, kind: input, shape index: {}]
  %s6 = inlined_call_operand.hbm [shape: bf16[32,96], index: 6, kind: input, shape index: {}]
  %s7 = inlined_call_operand.vmem [shape: bf16[32,96], index: 7, kind: input, shape index: {}]
  %s8 = inlined_call_operand.hbm [shape: bf16[32,96], index: 8, kind: input, shape index: {}]
  %s9 = inlined_call_operand.hbm [shape: bf16[64,192], index: 9, kind: input, shape index: {}]
  %s10 = inlined_call_operand.hbm [shape: f32[8,128], index: 10, kind: output, shape index: {}]
  %s11 = sld [smem:[#allocation0]]
  $region78: #{tpu_custom_call.1} parent=0
    _
  %s13 = ssub.s32 1, %s11
  %s14 = scalar_select 0, %s13, %s11
  $region1: #{tpu_custom_call.1} parent=0
    #allocation6 [shape = 'u8[16384]{0}', space=vmem, size = 0x4000, scoped, tag = 'input window, operand 0, single buffered']
    #allocation7 [shape = 's32[1]{0}', space=sflag, size = 0x4, scoped, tag = 'scoped memory for tpu_custom_call.1']
    #allocation8 [shape = 's32[1]{0}', space=sflag, size = 0x4, scoped, tag = 'scoped memory for tpu_custom_call.1']
    #allocation9 [shape = 'u8[8192]{0}', space=vmem, size = 0x2000, scoped, tag = 'input window, operand 3, single buffered']
    #allocation10 [shape = 's32[1]{0}', space=sflag, size = 0x4, scoped, tag = 'scoped memory for tpu_custom_call.1']
    #allocation11 [shape = 'u8[32768]{0}', space=vmem, size = 0x8000, scoped, tag = 'input window, operand 4, single buffered']
    #allocation12 [shape = 'u8[8192]{0}', space=vmem, size = 0x2000, scoped, tag = 'input window, operand 5, single buffered']
    #allocation13 [shape = 's32[1]{0}', space=sflag, size = 0x4, scoped, tag = 'scoped memory for tpu_custom_call.1']
    #allocation14 [shape = 'u8[8192]{0}', space=vmem, size = 0x2000, scoped, tag = 'input window, operand 6, single buffered']
    #allocation15 [shape = 'u8[8192]{0}', space=vmem, size = 0x2000, scoped, tag = 'input window, operand 8, single buffered']
    #allocation16 [shape = 's32[1]{0}', space=sflag, size = 0x4, scoped, tag = 'scoped memory for tpu_custom_call.1']
    #allocation17 [shape = 'u8[32768]{0}', space=vmem, size = 0x8000, scoped, tag = 'input window, operand 9, single buffered']
    #allocation18 [shape = 'u8[4096]{0}', space=vmem, size = 0x1000, scoped, tag = 'output window, operand 0, single buffered']
    %15 = vsyncpa [#allocation7], 0
    %16 = vsyncpa [#allocation10], 0
    %17 = vsyncpa [#allocation13], 0
    %18 = vsyncpa [#allocation16], 0
    %19 = vsyncpa [#allocation8], 0
    // Predicated region
    $region2: #{tpu_custom_call.1} parent=1 // pred_check
      _
    $region3: #{tpu_custom_call.1} parent=1 // pred_check_branch
      %21 = sbr.rel (0) target = $region5
    $region4: #{tpu_custom_call.1} parent=1 // pred_region
      %s23 = ssub.s32 512, 512
      %24 = vsyncadd [#allocation7], %s23
      %s25 = sshll.u32 [#allocation6], 4
      %s26 = int_to_ptr.vmem [resolvable:$true] %s25
      %31 = dma.hbm_to_vmem [thread:$0]  %s0, 512, %s26, [#allocation7], 64, 64, 4
    $region5: #{tpu_custom_call.1} parent=1 // pred_fallthru
      _
    // Predicated region
    $region6: #{tpu_custom_call.1} parent=1 // pred_check
      _
    $region7: #{tpu_custom_call.1} parent=1 // pred_check_branch
      %33 = sbr.rel (0) target = $region9
    $region8: #{tpu_custom_call.1} parent=1 // pred_region
      _
    $region9: #{tpu_custom_call.1} parent=1 // pred_fallthru
      _
    // Predicated region
    $region10: #{tpu_custom_call.1} parent=1 // pred_check
      _
    $region11: #{tpu_custom_call.1} parent=1 // pred_check_branch
      %35 = sbr.rel (0) target = $region13
    $region12: #{tpu_custom_call.1} parent=1 // pred_region
      _
    $region13: #{tpu_custom_call.1} parent=1 // pred_fallthru
      _
    // Predicated region
    $region14: #{tpu_custom_call.1} parent=1 // pred_check
      _
    $region15: #{tpu_custom_call.1} parent=1 // pred_check_branch
      %37 = sbr.rel (0) target = $region17
    $region16: #{tpu_custom_call.1} parent=1 // pred_region
      %s39 = ssub.s32 256, 256
      %40 = vsyncadd [#allocation10], %s39
      %s41 = sshll.u32 [#allocation9], 4
      %s42 = int_to_ptr.vmem [resolvable:$true] %s41
      %47 = dma.hbm_to_vmem [thread:$0]  %s3, 256, %s42, [#allocation10], 64, 64, 4
    $region17: #{tpu_custom_call.1} parent=1 // pred_fallthru
      _
    // Predicated region
    $region18: #{tpu_custom_call.1} parent=1 // pred_check
      _
    $region19: #{tpu_custom_call.1} parent=1 // pred_check_branch
      %49 = sbr.rel (0) target = $region21
    $region20: #{tpu_custom_call.1} parent=1 // pred_region
      %s51 = ssub.s32 1024, 1024
      %52 = vsyncadd [#allocation10], %s51
      %s53 = sshll.u32 [#allocation11], 4
      %s54 = int_to_ptr.vmem [resolvable:$true] %s53
      %59 = dma.hbm_to_vmem [thread:$0]  %s4, 1024, %s54, [#allocation10], 128, 128, 8
    $region21: #{tpu_custom_call.1} parent=1 // pred_fallthru
      _
    // Predicated region
    $region22: #{tpu_custom_call.1} parent=1 // pred_check
      _
    $region23: #{tpu_custom_call.1} parent=1 // pred_check_branch
      %61 = sbr.rel (0) target = $region25
    $region24: #{tpu_custom_call.1} parent=1 // pred_region
      %s63 = ssub.s32 256, 256
      %64 = vsyncadd [#allocation13], %s63
      %s65 = sshll.u32 [#allocation12], 4
      %s66 = int_to_ptr.vmem [resolvable:$true] %s65
      %71 = dma.hbm_to_vmem [thread:$0]  %s5, 256, %s66, [#allocation13], 64, 64, 4
    $region25: #{tpu_custom_call.1} parent=1 // pred_fallthru
      _
    // Predicated region
    $region26: #{tpu_custom_call.1} parent=1 // pred_check
      _
    $region27: #{tpu_custom_call.1} parent=1 // pred_check_branch
      %73 = sbr.rel (0) target = $region29
    $region28: #{tpu_custom_call.1} parent=1 // pred_region
      %s75 = ssub.s32 256, 256
      %76 = vsyncadd [#allocation13], %s75
      %s77 = sshll.u32 [#allocation14], 4
      %s78 = int_to_ptr.vmem [resolvable:$true] %s77
      %83 = dma.hbm_to_vmem [thread:$0]  %s6, 256, %s78, [#allocation13], 64, 64, 4
    $region29: #{tpu_custom_call.1} parent=1 // pred_fallthru
      _
    // Predicated region
    $region30: #{tpu_custom_call.1} parent=1 // pred_check
      _
    $region31: #{tpu_custom_call.1} parent=1 // pred_check_branch
      %85 = sbr.rel (0) target = $region33
    $region32: #{tpu_custom_call.1} parent=1 // pred_region
      _
    $region33: #{tpu_custom_call.1} parent=1 // pred_fallthru
      _
    // Predicated region
    $region34: #{tpu_custom_call.1} parent=1 // pred_check
      _
    $region35: #{tpu_custom_call.1} parent=1 // pred_check_branch
      %87 = sbr.rel (0) target = $region37
    $region36: #{tpu_custom_call.1} parent=1 // pred_region
      %s89 = ssub.s32 256, 256
      %90 = vsyncadd [#allocation16], %s89
      %s91 = sshll.u32 [#allocation15], 4
      %s92 = int_to_ptr.vmem [resolvable:$true] %s91
      %97 = dma.hbm_to_vmem [thread:$0]  %s8, 256, %s92, [#allocation16], 64, 64, 4
    $region37: #{tpu_custom_call.1} parent=1 // pred_fallthru
      _
    // Predicated region
    $region38: #{tpu_custom_call.1} parent=1 // pred_check
      _
    $region39: #{tpu_custom_call.1} parent=1 // pred_check_branch
      %99 = sbr.rel (0) target = $region41
    $region40: #{tpu_custom_call.1} parent=1 // pred_region
      %s101 = ssub.s32 1024, 1024
      %102 = vsyncadd [#allocation16], %s101
      %s103 = sshll.u32 [#allocation17], 4
      %s104 = int_to_ptr.vmem [resolvable:$true] %s103
      %109 = dma.hbm_to_vmem [thread:$0]  %s9, 1024, %s104, [#allocation16], 128, 128, 8
    $region41: #{tpu_custom_call.1} parent=1 // pred_fallthru
      _
    // Predicated region
    $region42: #{tpu_custom_call.1} parent=1 // pred_check
      _
    $region43: #{tpu_custom_call.1} parent=1 // pred_check_branch
      %111 = sbr.rel (0) target = $region45
    $region44: #{tpu_custom_call.1} parent=1 // pred_region
      %112 = dma.done [#allocation7], 512
    $region45: #{tpu_custom_call.1} parent=1 // pred_fallthru
      _
    // Predicated region
    $region46: #{tpu_custom_call.1} parent=1 // pred_check
      _
    $region47: #{tpu_custom_call.1} parent=1 // pred_check_branch
      %114 = sbr.rel (0) target = $region49
    $region48: #{tpu_custom_call.1} parent=1 // pred_region
      %115 = dma.done [#allocation10], 256
    $region49: #{tpu_custom_call.1} parent=1 // pred_fallthru
      _
    // Predicated region
    $region50: #{tpu_custom_call.1} parent=1 // pred_check
      _
    $region51: #{tpu_custom_call.1} parent=1 // pred_check_branch
      %117 = sbr.rel (0) target = $region53
    $region52: #{tpu_custom_call.1} parent=1 // pred_region
      %118 = dma.done [#allocation10], 1024
    $region53: #{tpu_custom_call.1} parent=1 // pred_fallthru
      _
    // Predicated region
    $region54: #{tpu_custom_call.1} parent=1 // pred_check
      _
    $region55: #{tpu_custom_call.1} parent=1 // pred_check_branch
      %120 = sbr.rel (0) target = $region57
    $region56: #{tpu_custom_call.1} parent=1 // pred_region
      %121 = dma.done [#allocation13], 256
    $region57: #{tpu_custom_call.1} parent=1 // pred_fallthru
      _
    // Predicated region
    $region58: #{tpu_custom_call.1} parent=1 // pred_check
      _
    $region59: #{tpu_custom_call.1} parent=1 // pred_check_branch
      %123 = sbr.rel (0) target = $region61
    $region60: #{tpu_custom_call.1} parent=1 // pred_region
      %124 = dma.done [#allocation13], 256
    $region61: #{tpu_custom_call.1} parent=1 // pred_fallthru
      _
    // Predicated region
    $region62: #{tpu_custom_call.1} parent=1 // pred_check
      _
    $region63: #{tpu_custom_call.1} parent=1 // pred_check_branch
      %126 = sbr.rel (0) target = $region65
    $region64: #{tpu_custom_call.1} parent=1 // pred_region
      %127 = dma.done [#allocation16], 256
    $region65: #{tpu_custom_call.1} parent=1 // pred_fallthru
      _
    // Predicated region
    $region66: #{tpu_custom_call.1} parent=1 // pred_check
      _
    $region67: #{tpu_custom_call.1} parent=1 // pred_check_branch
      %129 = sbr.rel (0) target = $region69
    $region68: #{tpu_custom_call.1} parent=1 // pred_region
      %130 = dma.done [#allocation16], 1024
    $region69: #{tpu_custom_call.1} parent=1 // pred_fallthru
      _
    %v132 = vld [vmem:[%s1] sm:$0xff]
    %v133 = vld [vmem:[%s2] sm:$0xf]
    %v134 = vld [vmem:[%s2 + $0x4] sm:$0xf]
    %v135 = vld [vmem:[%s2 + $0x8] sm:$0xf]
    %v136 = vld [vmem:[%s2 + $0xc] sm:$0xf]
    %v137 = vld [vmem:[#allocation9] sm:$0xf]
    %v138 = vld [vmem:[#allocation9 + $0x4] sm:$0xf]
    %v139 = vld [vmem:[#allocation9 + $0x8] sm:$0xf]
    %v140 = vld [vmem:[#allocation9 + $0xc] sm:$0xf]
    %v141 = vld [vmem:[#allocation6] sm:$0x1]
    %v142 = vld [vmem:[#allocation6 + $0x4] sm:$0x1]
    %v143 = vld [vmem:[#allocation6 + $0x8] sm:$0x1]
    %v144 = vld [vmem:[#allocation6 + $0xc] sm:$0x1]
    %v145 = vld [vmem:[#allocation6 + $0x10] sm:$0x1]
    %v146 = vld [vmem:[#allocation6 + $0x14] sm:$0x1]
    %v147 = vld [vmem:[#allocation6 + $0x18] sm:$0x1]
    %v148 = vld [vmem:[#allocation6 + $0x1c] sm:$0x1]
    %v157 = vunpack.c.l.b16 %v141
    %v158 = vunpack.c.l.b16 %v142
    %v159 = vunpack.c.l.b16 %v143
    %v160 = vunpack.c.l.b16 %v144
    %v161 = vunpack.c.l.b16 %v145
    %v162 = vunpack.c.l.b16 %v146
    %v163 = vunpack.c.l.b16 %v147
    %v164 = vunpack.c.l.b16 %v148
    %v165 = vpack.c.b16 %v157, %v157
    %v166 = vpack.c.b16 %v158, %v158
    %v167 = vpack.c.b16 %v159, %v159
    %v168 = vpack.c.b16 %v160, %v160
    %v169 = vpack.c.b16 %v161, %v161
    %v170 = vpack.c.b16 %v162, %v162
    %v171 = vpack.c.b16 %v163, %v163
    %v172 = vpack.c.b16 %v164, %v164
    %v173 = vunpack.c.l.b16 %v165
    %v174 = vunpack.c.l.b16 %v166
    %v175 = vunpack.c.l.b16 %v167
    %v176 = vunpack.c.l.b16 %v168
    %v177 = vunpack.c.l.b16 %v169
    %v178 = vunpack.c.l.b16 %v170
    %v179 = vunpack.c.l.b16 %v171
    %v180 = vunpack.c.l.b16 %v172
    %v181 = vrot.slane %v174, 7
    %vm182 = vcmask 1041409
    %v183 = vsel %vm182, %v181, %v173
    %v184 = vrot.slane %v175, 6
    %vm185 = vcmask 1042434
    %v186 = vsel %vm185, %v184, %v183
    %v187 = vrot.slane %v176, 5
    %vm188 = vcmask 1043459
    %v189 = vsel %vm188, %v187, %v186
    %v190 = vrot.slane %v177, 4
    %vm191 = vcmask 1044484
    %v192 = vsel %vm191, %v190, %v189
    %v193 = vrot.slane %v178, 3
    %vm194 = vcmask 1045509
    %v195 = vsel %vm194, %v193, %v192
    %v196 = vrot.slane %v179, 2
    %vm197 = vcmask 1046534
    %v198 = vsel %vm197, %v196, %v195
    %v199 = vrot.slane %v180, 1
    %vm200 = vcmask 1047559
    %v201 = vsel %vm200, %v199, %v198
    %v202 = vpack.c.b16 %v201, %v201
    %v207 = vunpack.c.l.b16 %v133
    %v208 = vunpack.c.l.b16 %v134
    %v209 = vunpack.c.l.b16 %v135
    %v210 = vunpack.c.l.b16 %v136
    %v211 = vpack.c.b16 %v208, %v207
    %v212 = vpack.c.b16 %v210, %v209
    %vm215 = vcmask 261120
    %v217 = vsel %vm215, %v202, 0
    %219 = vmatprep.subr.bf16.mxu0 0
    %220 = vmatpush1.bf16.msra.mxu0 %v211
    %221 = vmatprep.subr.bf16.mxu0 0
    %222 = vmatpush1.bf16.msra.mxu0 %v212
    %223 = vmatprep.subr.bf16.mxu0 0
    %224 = vmatpush1.bf16.msra.mxu0 0
    %225 = vmatprep.subr.bf16.mxu0 0
    %226 = vmatpush1.bf16.msra.mxu0 0
    %227 = vmatprep.subr.bf16.mxu0 0
    %228 = vmatpush1.bf16.msra.mxu0 0
    %229 = vmatprep.subr.bf16.mxu0 0
    %230 = vmatpush1.bf16.msra.mxu0 0
    %231 = vmatprep.subr.bf16.mxu0 0
    %232 = vmatpush1.bf16.msra.mxu0 0
    %233 = vmatprep.subr.bf16.mxu0 0
    %234 = vmatpush1.bf16.msra.mxu0 0
    %235 = vmatprep.subr.bf16.mxu0 0
    %236 = vmatpush1.bf16.msra.mxu0 0
    %237 = vmatprep.subr.bf16.mxu0 0
    %238 = vmatpush1.bf16.msra.mxu0 0
    %239 = vmatprep.subr.bf16.mxu0 0
    %240 = vmatpush1.bf16.msra.mxu0 0
    %241 = vmatprep.subr.bf16.mxu0 0
    %242 = vmatpush1.bf16.msra.mxu0 0
    %243 = vmatprep.subr.bf16.mxu0 0
    %244 = vmatpush1.bf16.msra.mxu0 0
    %245 = vmatprep.subr.bf16.mxu0 0
    %246 = vmatpush1.bf16.msra.mxu0 0
    %247 = vmatprep.subr.bf16.mxu0 0
    %248 = vmatpush1.bf16.msra.mxu0 0
    %249 = vmatprep.subr.bf16.mxu0 0
    %250 = vmatpush1.bf16.msra.mxu0 0
    %251 = vmatprep.mubr.bf16.mxu0 0
    %252 = vmatmul.mubr.bf16.gmra.mrb[0].mxu0 %v217
    %v253 = vpop.f32.mrb[0].mxu0
    %v254 = vadd.f32 0.0, %v253
    %v255 = vpop.f32.mrb[0].mxu0
    %v256 = vpop.f32.mrb[0].mxu0
    %v257 = vpop.f32.mrb[0].mxu0
    %258 = vdwg.mxu0
    %v259 = vpack.c.bf16 %v254, %v254
    %vm260 = vcmask 781312
    %261 = vst.msk [vmem:[#allocation2] sm:$0xf] %vm260, %v259
    %v266 = vunpack.c.l.b16 %v137
    %v267 = vunpack.c.l.b16 %v138
    %v268 = vunpack.c.l.b16 %v139
    %v269 = vunpack.c.l.b16 %v140
    %v270 = vpack.c.b16 %v267, %v266
    %v271 = vpack.c.b16 %v269, %v268
    %274 = vmatprep.subr.bf16.mxu0 0
    %275 = vmatpush1.bf16.msra.mxu0 %v270
    %276 = vmatprep.subr.bf16.mxu0 0
    %277 = vmatpush1.bf16.msra.mxu0 %v271
    %278 = vmatprep.subr.bf16.mxu0 0
    %279 = vmatpush1.bf16.msra.mxu0 0
    %280 = vmatprep.subr.bf16.mxu0 0
    %281 = vmatpush1.bf16.msra.mxu0 0
    %282 = vmatprep.subr.bf16.mxu0 0
    %283 = vmatpush1.bf16.msra.mxu0 0
    %284 = vmatprep.subr.bf16.mxu0 0
    %285 = vmatpush1.bf16.msra.mxu0 0
    %286 = vmatprep.subr.bf16.mxu0 0
    %287 = vmatpush1.bf16.msra.mxu0 0
    %288 = vmatprep.subr.bf16.mxu0 0
    %289 = vmatpush1.bf16.msra.mxu0 0
    %290 = vmatprep.subr.bf16.mxu0 0
    %291 = vmatpush1.bf16.msra.mxu0 0
    %292 = vmatprep.subr.bf16.mxu0 0
    %293 = vmatpush1.bf16.msra.mxu0 0
    %294 = vmatprep.subr.bf16.mxu0 0
    %295 = vmatpush1.bf16.msra.mxu0 0
    %296 = vmatprep.subr.bf16.mxu0 0
    %297 = vmatpush1.bf16.msra.mxu0 0
    %298 = vmatprep.subr.bf16.mxu0 0
    %299 = vmatpush1.bf16.msra.mxu0 0
    %300 = vmatprep.subr.bf16.mxu0 0
    %301 = vmatpush1.bf16.msra.mxu0 0
    %302 = vmatprep.subr.bf16.mxu0 0
    %303 = vmatpush1.bf16.msra.mxu0 0
    %304 = vmatprep.subr.bf16.mxu0 0
    %305 = vmatpush1.bf16.msra.mxu0 0
    %306 = vmatprep.mubr.bf16.mxu0 0
    %307 = vmatmul.mubr.bf16.gmra.mrb[0].mxu0 %v217
    %v308 = vpop.f32.mrb[0].mxu0
    %v309 = vadd.f32 0.0, %v308
    %v310 = vpop.f32.mrb[0].mxu0
    %v311 = vpop.f32.mrb[0].mxu0
    %v312 = vpop.f32.mrb[0].mxu0
    %313 = vdwg.mxu0
    %v314 = vpack.c.bf16 %v309, %v309
    %315 = vst.msk [vmem:[#allocation3] sm:$0xf] %vm260, %v314
    %v316 = vld [vmem:[#allocation6] sm:$0x1]
    %v317 = vld [vmem:[#allocation6 + $0x4] sm:$0x1]
    %v318 = vld [vmem:[#allocation6 + $0x8] sm:$0x1]
    %v319 = vld [vmem:[#allocation6 + $0xc] sm:$0x1]
    %v320 = vld [vmem:[#allocation6 + $0x10] sm:$0x1]
    %v321 = vld [vmem:[#allocation6 + $0x14] sm:$0x1]
    %v322 = vld [vmem:[#allocation6 + $0x18] sm:$0x1]
    %v323 = vld [vmem:[#allocation6 + $0x1c] sm:$0x1]
    %v332 = vunpack.c.l.b16 %v316
    %v333 = vunpack.c.l.b16 %v317
    %v334 = vunpack.c.l.b16 %v318
    %v335 = vunpack.c.l.b16 %v319
    %v336 = vunpack.c.l.b16 %v320
    %v337 = vunpack.c.l.b16 %v321
    %v338 = vunpack.c.l.b16 %v322
    %v339 = vunpack.c.l.b16 %v323
    %v340 = vpack.c.b16 %v332, %v332
    %v341 = vpack.c.b16 %v333, %v333
    %v342 = vpack.c.b16 %v334, %v334
    %v343 = vpack.c.b16 %v335, %v335
    %v344 = vpack.c.b16 %v336, %v336
    %v345 = vpack.c.b16 %v337, %v337
    %v346 = vpack.c.b16 %v338, %v338
    %v347 = vpack.c.b16 %v339, %v339
    %v348 = vunpack.c.l.b16 %v340
    %v349 = vunpack.c.l.b16 %v341
    %v350 = vunpack.c.l.b16 %v342
    %v351 = vunpack.c.l.b16 %v343
    %v352 = vunpack.c.l.b16 %v344
    %v353 = vunpack.c.l.b16 %v345
    %v354 = vunpack.c.l.b16 %v346
    %v355 = vunpack.c.l.b16 %v347
    %v356 = vrot.slane %v348, 1
    %v357 = vsel %vm182, %v349, %v356
    %v358 = vrot.slane %v350, 7
    %v359 = vsel %vm185, %v358, %v357
    %v360 = vrot.slane %v351, 6
    %v361 = vsel %vm188, %v360, %v359
    %v362 = vrot.slane %v352, 5
    %v363 = vsel %vm191, %v362, %v361
    %v364 = vrot.slane %v353, 4
    %v365 = vsel %vm194, %v364, %v363
    %v366 = vrot.slane %v354, 3
    %v367 = vsel %vm197, %v366, %v365
    %v368 = vrot.slane %v355, 2
    %v369 = vsel %vm200, %v368, %v367
    %v370 = vpack.c.b16 %v369, %v369
    %v372 = vsel %vm215, %v370, 0
    %374 = vmatprep.subr.bf16.mxu0 0
    %375 = vmatpush1.bf16.msra.mxu0 %v211
    %376 = vmatprep.subr.bf16.mxu0 0
    %377 = vmatpush1.bf16.msra.mxu0 %v212
    %378 = vmatprep.subr.bf16.mxu0 0
    %379 = vmatpush1.bf16.msra.mxu0 0
    %380 = vmatprep.subr.bf16.mxu0 0
    %381 = vmatpush1.bf16.msra.mxu0 0
    %382 = vmatprep.subr.bf16.mxu0 0
    %383 = vmatpush1.bf16.msra.mxu0 0
    %384 = vmatprep.subr.bf16.mxu0 0
    %385 = vmatpush1.bf16.msra.mxu0 0
    %386 = vmatprep.subr.bf16.mxu0 0
    %387 = vmatpush1.bf16.msra.mxu0 0
    %388 = vmatprep.subr.bf16.mxu0 0
    %389 = vmatpush1.bf16.msra.mxu0 0
    %390 = vmatprep.subr.bf16.mxu0 0
    %391 = vmatpush1.bf16.msra.mxu0 0
    %392 = vmatprep.subr.bf16.mxu0 0
    %393 = vmatpush1.bf16.msra.mxu0 0
    %394 = vmatprep.subr.bf16.mxu0 0
    %395 = vmatpush1.bf16.msra.mxu0 0
    %396 = vmatprep.subr.bf16.mxu0 0
    %397 = vmatpush1.bf16.msra.mxu0 0
    %398 = vmatprep.subr.bf16.mxu0 0
    %399 = vmatpush1.bf16.msra.mxu0 0
    %400 = vmatprep.subr.bf16.mxu0 0
    %401 = vmatpush1.bf16.msra.mxu0 0
    %402 = vmatprep.subr.bf16.mxu0 0
    %403 = vmatpush1.bf16.msra.mxu0 0
    %404 = vmatprep.subr.bf16.mxu0 0
    %405 = vmatpush1.bf16.msra.mxu0 0
    %406 = vmatprep.mubr.bf16.mxu0 0
    %407 = vmatmul.mubr.bf16.gmra.mrb[0].mxu0 %v372
    %v408 = vpop.f32.mrb[0].mxu0
    %v409 = vadd.f32 0.0, %v408
    %v410 = vpop.f32.mrb[0].mxu0
    %v411 = vpop.f32.mrb[0].mxu0
    %v412 = vpop.f32.mrb[0].mxu0
    %413 = vdwg.mxu0
    %v414 = vpack.c.bf16 %v409, %v409
    %s415 = scalar_lea.vmem [#allocation2], 4
    %416 = vst.msk [vmem:[%s415] sm:$0xf] %vm260, %v414
    %417 = vmatprep.subr.bf16.mxu0 0
    %418 = vmatpush1.bf16.msra.mxu0 %v270
    %419 = vmatprep.subr.bf16.mxu0 0
    %420 = vmatpush1.bf16.msra.mxu0 %v271
    %421 = vmatprep.subr.bf16.mxu0 0
    %422 = vmatpush1.bf16.msra.mxu0 0
    %423 = vmatprep.subr.bf16.mxu0 0
    %424 = vmatpush1.bf16.msra.mxu0 0
    %425 = vmatprep.subr.bf16.mxu0 0
    %426 = vmatpush1.bf16.msra.mxu0 0
    %427 = vmatprep.subr.bf16.mxu0 0
    %428 = vmatpush1.bf16.msra.mxu0 0
    %429 = vmatprep.subr.bf16.mxu0 0
    %430 = vmatpush1.bf16.msra.mxu0 0
    %431 = vmatprep.subr.bf16.mxu0 0
    %432 = vmatpush1.bf16.msra.mxu0 0
    %433 = vmatprep.subr.bf16.mxu0 0
    %434 = vmatpush1.bf16.msra.mxu0 0
    %435 = vmatprep.subr.bf16.mxu0 0
    %436 = vmatpush1.bf16.msra.mxu0 0
    %437 = vmatprep.subr.bf16.mxu0 0
    %438 = vmatpush1.bf16.msra.mxu0 0
    %439 = vmatprep.subr.bf16.mxu0 0
    %440 = vmatpush1.bf16.msra.mxu0 0
    %441 = vmatprep.subr.bf16.mxu0 0
    %442 = vmatpush1.bf16.msra.mxu0 0
    %443 = vmatprep.subr.bf16.mxu0 0
    %444 = vmatpush1.bf16.msra.mxu0 0
    %445 = vmatprep.subr.bf16.mxu0 0
    %446 = vmatpush1.bf16.msra.mxu0 0
    %447 = vmatprep.subr.bf16.mxu0 0
    %448 = vmatpush1.bf16.msra.mxu0 0
    %449 = vmatprep.mubr.bf16.mxu0 0
    %450 = vmatmul.mubr.bf16.gmra.mrb[0].mxu0 %v372
    %v451 = vpop.f32.mrb[0].mxu0
    %v452 = vadd.f32 0.0, %v451
    %v453 = vpop.f32.mrb[0].mxu0
    %v454 = vpop.f32.mrb[0].mxu0
    %v455 = vpop.f32.mrb[0].mxu0
    %456 = vdwg.mxu0
    %v457 = vpack.c.bf16 %v452, %v452
    %s458 = scalar_lea.vmem [#allocation3], 4
    %459 = vst.msk [vmem:[%s458] sm:$0xf] %vm260, %v457
    %v460 = vld [vmem:[#allocation6] sm:$0x2]
    %v461 = vld [vmem:[#allocation6 + $0x4] sm:$0x2]
    %v462 = vld [vmem:[#allocation6 + $0x8] sm:$0x2]
    %v463 = vld [vmem:[#allocation6 + $0xc] sm:$0x2]
    %v464 = vld [vmem:[#allocation6 + $0x10] sm:$0x2]
    %v465 = vld [vmem:[#allocation6 + $0x14] sm:$0x2]
    %v466 = vld [vmem:[#allocation6 + $0x18] sm:$0x2]
    %v467 = vld [vmem:[#allocation6 + $0x1c] sm:$0x2]
    %v476 = vunpack.c.l.b16 %v460
    %v477 = vunpack.c.l.b16 %v461
    %v478 = vunpack.c.l.b16 %v462
    %v479 = vunpack.c.l.b16 %v463
    %v480 = vunpack.c.l.b16 %v464
    %v481 = vunpack.c.l.b16 %v465
    %v482 = vunpack.c.l.b16 %v466
    %v483 = vunpack.c.l.b16 %v467
    %v484 = vpack.c.b16 %v476, %v476
    %v485 = vpack.c.b16 %v477, %v477
    %v486 = vpack.c.b16 %v478, %v478
    %v487 = vpack.c.b16 %v479, %v479
    %v488 = vpack.c.b16 %v480, %v480
    %v489 = vpack.c.b16 %v481, %v481
    %v490 = vpack.c.b16 %v482, %v482
    %v491 = vpack.c.b16 %v483, %v483
    %v492 = vunpack.c.l.b16 %v484
    %v493 = vunpack.c.l.b16 %v485
    %v494 = vunpack.c.l.b16 %v486
    %v495 = vunpack.c.l.b16 %v487
    %v496 = vunpack.c.l.b16 %v488
    %v497 = vunpack.c.l.b16 %v489
    %v498 = vunpack.c.l.b16 %v490
    %v499 = vunpack.c.l.b16 %v491
    %v500 = vrot.slane %v492, 2
    %v501 = vrot.slane %v493, 1
    %v502 = vsel %vm182, %v501, %v500
    %v503 = vsel %vm185, %v494, %v502
    %v504 = vrot.slane %v495, 7
    %v505 = vsel %vm188, %v504, %v503
    %v506 = vrot.slane %v496, 6
    %v507 = vsel %vm191, %v506, %v505
    %v508 = vrot.slane %v497, 5
    %v509 = vsel %vm194, %v508, %v507
    %v510 = vrot.slane %v498, 4
    %v511 = vsel %vm197, %v510, %v509
    %v512 = vrot.slane %v499, 3
    %v513 = vsel %vm200, %v512, %v511
    %v514 = vpack.c.b16 %v513, %v513
    %v516 = vsel %vm215, %v514, 0
    %518 = vmatprep.subr.bf16.mxu0 0
    %519 = vmatpush1.bf16.msra.mxu0 %v211
    %520 = vmatprep.subr.bf16.mxu0 0
    %521 = vmatpush1.bf16.msra.mxu0 %v212
    %522 = vmatprep.subr.bf16.mxu0 0
    %523 = vmatpush1.bf16.msra.mxu0 0
    %524 = vmatprep.subr.bf16.mxu0 0
    %525 = vmatpush1.bf16.msra.mxu0 0
    %526 = vmatprep.subr.bf16.mxu0 0
    %527 = vmatpush1.bf16.msra.mxu0 0
    %528 = vmatprep.subr.bf16.mxu0 0
    %529 = vmatpush1.bf16.msra.mxu0 0
    %530 = vmatprep.subr.bf16.mxu0 0
    %531 = vmatpush1.bf16.msra.mxu0 0
    %532 = vmatprep.subr.bf16.mxu0 0
    %533 = vmatpush1.bf16.msra.mxu0 0
    %534 = vmatprep.subr.bf16.mxu0 0
    %535 = vmatpush1.bf16.msra.mxu0 0
    %536 = vmatprep.subr.bf16.mxu0 0
    %537 = vmatpush1.bf16.msra.mxu0 0
    %538 = vmatprep.subr.bf16.mxu0 0
    %539 = vmatpush1.bf16.msra.mxu0 0
    %540 = vmatprep.subr.bf16.mxu0 0
    %541 = vmatpush1.bf16.msra.mxu0 0
    %542 = vmatprep.subr.bf16.mxu0 0
    %543 = vmatpush1.bf16.msra.mxu0 0
    %544 = vmatprep.subr.bf16.mxu0 0
    %545 = vmatpush1.bf16.msra.mxu0 0
    %546 = vmatprep.subr.bf16.mxu0 0
    %547 = vmatpush1.bf16.msra.mxu0 0
    %548 = vmatprep.subr.bf16.mxu0 0
    %549 = vmatpush1.bf16.msra.mxu0 0
    %550 = vmatprep.mubr.bf16.mxu0 0
    %551 = vmatmul.mubr.bf16.gmra.mrb[0].mxu0 %v516
    %v552 = vpop.f32.mrb[0].mxu0
    %v553 = vadd.f32 0.0, %v552
    %v554 = vpop.f32.mrb[0].mxu0
    %v555 = vpop.f32.mrb[0].mxu0
    %v556 = vpop.f32.mrb[0].mxu0
    %557 = vdwg.mxu0
    %v558 = vpack.c.bf16 %v553, %v553
    %s559 = scalar_lea.vmem [#allocation2], 8
    %560 = vst.msk [vmem:[%s559] sm:$0xf] %vm260, %v558
    %561 = vmatprep.subr.bf16.mxu0 0
    %562 = vmatpush1.bf16.msra.mxu0 %v270
    %563 = vmatprep.subr.bf16.mxu0 0
    %564 = vmatpush1.bf16.msra.mxu0 %v271
    %565 = vmatprep.subr.bf16.mxu0 0
    %566 = vmatpush1.bf16.msra.mxu0 0
    %567 = vmatprep.subr.bf16.mxu0 0
    %568 = vmatpush1.bf16.msra.mxu0 0
    %569 = vmatprep.subr.bf16.mxu0 0
    %570 = vmatpush1.bf16.msra.mxu0 0
    %571 = vmatprep.subr.bf16.mxu0 0
    %572 = vmatpush1.bf16.msra.mxu0 0
    %573 = vmatprep.subr.bf16.mxu0 0
    %574 = vmatpush1.bf16.msra.mxu0 0
    %575 = vmatprep.subr.bf16.mxu0 0
    %576 = vmatpush1.bf16.msra.mxu0 0
    %577 = vmatprep.subr.bf16.mxu0 0
    %578 = vmatpush1.bf16.msra.mxu0 0
    %579 = vmatprep.subr.bf16.mxu0 0
    %580 = vmatpush1.bf16.msra.mxu0 0
    %581 = vmatprep.subr.bf16.mxu0 0
    %582 = vmatpush1.bf16.msra.mxu0 0
    %583 = vmatprep.subr.bf16.mxu0 0
    %584 = vmatpush1.bf16.msra.mxu0 0
    %585 = vmatprep.subr.bf16.mxu0 0
    %586 = vmatpush1.bf16.msra.mxu0 0
    %587 = vmatprep.subr.bf16.mxu0 0
    %588 = vmatpush1.bf16.msra.mxu0 0
    %589 = vmatprep.subr.bf16.mxu0 0
    %590 = vmatpush1.bf16.msra.mxu0 0
    %591 = vmatprep.subr.bf16.mxu0 0
    %592 = vmatpush1.bf16.msra.mxu0 0
    %593 = vmatprep.mubr.bf16.mxu0 0
    %594 = vmatmul.mubr.bf16.gmra.mrb[0].mxu0 %v516
    %v595 = vpop.f32.mrb[0].mxu0
    %v596 = vadd.f32 0.0, %v595
    %v597 = vpop.f32.mrb[0].mxu0
    %v598 = vpop.f32.mrb[0].mxu0
    %v599 = vpop.f32.mrb[0].mxu0
    %600 = vdwg.mxu0
    %v601 = vpack.c.bf16 %v596, %v596
    %s602 = scalar_lea.vmem [#allocation3], 8
    %603 = vst.msk [vmem:[%s602] sm:$0xf] %vm260, %v601
    %v604 = vld [vmem:[#allocation6] sm:$0x2]
    %v605 = vld [vmem:[#allocation6 + $0x4] sm:$0x2]
    %v606 = vld [vmem:[#allocation6 + $0x8] sm:$0x2]
    %v607 = vld [vmem:[#allocation6 + $0xc] sm:$0x2]
    %v608 = vld [vmem:[#allocation6 + $0x10] sm:$0x2]
    %v609 = vld [vmem:[#allocation6 + $0x14] sm:$0x2]
    %v610 = vld [vmem:[#allocation6 + $0x18] sm:$0x2]
    %v611 = vld [vmem:[#allocation6 + $0x1c] sm:$0x2]
    %v620 = vunpack.c.l.b16 %v604
    %v621 = vunpack.c.l.b16 %v605
    %v622 = vunpack.c.l.b16 %v606
    %v623 = vunpack.c.l.b16 %v607
    %v624 = vunpack.c.l.b16 %v608
    %v625 = vunpack.c.l.b16 %v609
    %v626 = vunpack.c.l.b16 %v610
    %v627 = vunpack.c.l.b16 %v611
    %v628 = vpack.c.b16 %v620, %v620
    %v629 = vpack.c.b16 %v621, %v621
    %v630 = vpack.c.b16 %v622, %v622
    %v631 = vpack.c.b16 %v623, %v623
    %v632 = vpack.c.b16 %v624, %v624
    %v633 = vpack.c.b16 %v625, %v625
    %v634 = vpack.c.b16 %v626, %v626
    %v635 = vpack.c.b16 %v627, %v627
    %v636 = vunpack.c.l.b16 %v628
    %v637 = vunpack.c.l.b16 %v629
    %v638 = vunpack.c.l.b16 %v630
    %v639 = vunpack.c.l.b16 %v631
    %v640 = vunpack.c.l.b16 %v632
    %v641 = vunpack.c.l.b16 %v633
    %v642 = vunpack.c.l.b16 %v634
    %v643 = vunpack.c.l.b16 %v635
    %v644 = vrot.slane %v636, 3
    %v645 = vrot.slane %v637, 2
    %v646 = vsel %vm182, %v645, %v644
    %v647 = vrot.slane %v638, 1
    %v648 = vsel %vm185, %v647, %v646
    %v649 = vsel %vm188, %v639, %v648
    %v650 = vrot.slane %v640, 7
    %v651 = vsel %vm191, %v650, %v649
    %v652 = vrot.slane %v641, 6
    %v653 = vsel %vm194, %v652, %v651
    %v654 = vrot.slane %v642, 5
    %v655 = vsel %vm197, %v654, %v653
    %v656 = vrot.slane %v643, 4
    %v657 = vsel %vm200, %v656, %v655
    %v658 = vpack.c.b16 %v657, %v657
    %v660 = vsel %vm215, %v658, 0
    %662 = vmatprep.subr.bf16.mxu0 0
    %663 = vmatpush1.bf16.msra.mxu0 %v211
    %664 = vmatprep.subr.bf16.mxu0 0
    %665 = vmatpush1.bf16.msra.mxu0 %v212
    %666 = vmatprep.subr.bf16.mxu0 0
    %667 = vmatpush1.bf16.msra.mxu0 0
    %668 = vmatprep.subr.bf16.mxu0 0
    %669 = vmatpush1.bf16.msra.mxu0 0
    %670 = vmatprep.subr.bf16.mxu0 0
    %671 = vmatpush1.bf16.msra.mxu0 0
    %672 = vmatprep.subr.bf16.mxu0 0
    %673 = vmatpush1.bf16.msra.mxu0 0
    %674 = vmatprep.subr.bf16.mxu0 0
    %675 = vmatpush1.bf16.msra.mxu0 0
    %676 = vmatprep.subr.bf16.mxu0 0
    %677 = vmatpush1.bf16.msra.mxu0 0
    %678 = vmatprep.subr.bf16.mxu0 0
    %679 = vmatpush1.bf16.msra.mxu0 0
    %680 = vmatprep.subr.bf16.mxu0 0
    %681 = vmatpush1.bf16.msra.mxu0 0
    %682 = vmatprep.subr.bf16.mxu0 0
    %683 = vmatpush1.bf16.msra.mxu0 0
    %684 = vmatprep.subr.bf16.mxu0 0
    %685 = vmatpush1.bf16.msra.mxu0 0
    %686 = vmatprep.subr.bf16.mxu0 0
    %687 = vmatpush1.bf16.msra.mxu0 0
    %688 = vmatprep.subr.bf16.mxu0 0
    %689 = vmatpush1.bf16.msra.mxu0 0
    %690 = vmatprep.subr.bf16.mxu0 0
    %691 = vmatpush1.bf16.msra.mxu0 0
    %692 = vmatprep.subr.bf16.mxu0 0
    %693 = vmatpush1.bf16.msra.mxu0 0
    %694 = vmatprep.mubr.bf16.mxu0 0
    %695 = vmatmul.mubr.bf16.gmra.mrb[0].mxu0 %v660
    %v696 = vpop.f32.mrb[0].mxu0
    %v697 = vadd.f32 0.0, %v696
    %v698 = vpop.f32.mrb[0].mxu0
    %v699 = vpop.f32.mrb[0].mxu0
    %v700 = vpop.f32.mrb[0].mxu0
    %701 = vdwg.mxu0
    %v702 = vpack.c.bf16 %v697, %v697
    %s703 = scalar_lea.vmem [#allocation2], 12
    %704 = vst.msk [vmem:[%s703] sm:$0xf] %vm260, %v702
    %705 = vmatprep.subr.bf16.mxu0 0
    %706 = vmatpush1.bf16.msra.mxu0 %v270
    %707 = vmatprep.subr.bf16.mxu0 0
    %708 = vmatpush1.bf16.msra.mxu0 %v271
    %709 = vmatprep.subr.bf16.mxu0 0
    %710 = vmatpush1.bf16.msra.mxu0 0
    %711 = vmatprep.subr.bf16.mxu0 0
    %712 = vmatpush1.bf16.msra.mxu0 0
    %713 = vmatprep.subr.bf16.mxu0 0
    %714 = vmatpush1.bf16.msra.mxu0 0
    %715 = vmatprep.subr.bf16.mxu0 0
    %716 = vmatpush1.bf16.msra.mxu0 0
    %717 = vmatprep.subr.bf16.mxu0 0
    %718 = vmatpush1.bf16.msra.mxu0 0
    %719 = vmatprep.subr.bf16.mxu0 0
    %720 = vmatpush1.bf16.msra.mxu0 0
    %721 = vmatprep.subr.bf16.mxu0 0
    %722 = vmatpush1.bf16.msra.mxu0 0
    %723 = vmatprep.subr.bf16.mxu0 0
    %724 = vmatpush1.bf16.msra.mxu0 0
    %725 = vmatprep.subr.bf16.mxu0 0
    %726 = vmatpush1.bf16.msra.mxu0 0
    %727 = vmatprep.subr.bf16.mxu0 0
    %728 = vmatpush1.bf16.msra.mxu0 0
    %729 = vmatprep.subr.bf16.mxu0 0
    %730 = vmatpush1.bf16.msra.mxu0 0
    %731 = vmatprep.subr.bf16.mxu0 0
    %732 = vmatpush1.bf16.msra.mxu0 0
    %733 = vmatprep.subr.bf16.mxu0 0
    %734 = vmatpush1.bf16.msra.mxu0 0
    %735 = vmatprep.subr.bf16.mxu0 0
    %736 = vmatpush1.bf16.msra.mxu0 0
    %737 = vmatprep.mubr.bf16.mxu0 0
    %738 = vmatmul.mubr.bf16.gmra.mrb[0].mxu0 %v660
    %v739 = vpop.f32.mrb[0].mxu0
    %v740 = vadd.f32 0.0, %v739
    %v741 = vpop.f32.mrb[0].mxu0
    %v742 = vpop.f32.mrb[0].mxu0
    %v743 = vpop.f32.mrb[0].mxu0
    %744 = vdwg.mxu0
    %v745 = vpack.c.bf16 %v740, %v740
    %s746 = scalar_lea.vmem [#allocation3], 12
    %747 = vst.msk [vmem:[%s746] sm:$0xf] %vm260, %v745
    %v748 = vld [vmem:[#allocation6] sm:$0x4]
    %v749 = vld [vmem:[#allocation6 + $0x4] sm:$0x4]
    %v750 = vld [vmem:[#allocation6 + $0x8] sm:$0x4]
    %v751 = vld [vmem:[#allocation6 + $0xc] sm:$0x4]
    %v752 = vld [vmem:[#allocation6 + $0x10] sm:$0x4]
    %v753 = vld [vmem:[#allocation6 + $0x14] sm:$0x4]
    %v754 = vld [vmem:[#allocation6 + $0x18] sm:$0x4]
    %v755 = vld [vmem:[#allocation6 + $0x1c] sm:$0x4]
    %v764 = vunpack.c.l.b16 %v748
    %v765 = vunpack.c.l.b16 %v749
    %v766 = vunpack.c.l.b16 %v750
    %v767 = vunpack.c.l.b16 %v751
    %v768 = vunpack.c.l.b16 %v752
    %v769 = vunpack.c.l.b16 %v753
    %v770 = vunpack.c.l.b16 %v754
    %v771 = vunpack.c.l.b16 %v755
    %v772 = vpack.c.b16 %v764, %v764
    %v773 = vpack.c.b16 %v765, %v765
    %v774 = vpack.c.b16 %v766, %v766
    %v775 = vpack.c.b16 %v767, %v767
    %v776 = vpack.c.b16 %v768, %v768
    %v777 = vpack.c.b16 %v769, %v769
    %v778 = vpack.c.b16 %v770, %v770
    %v779 = vpack.c.b16 %v771, %v771
    %v780 = vunpack.c.l.b16 %v772
    %v781 = vunpack.c.l.b16 %v773
    %v782 = vunpack.c.l.b16 %v774
    %v783 = vunpack.c.l.b16 %v775
    %v784 = vunpack.c.l.b16 %v776
    %v785 = vunpack.c.l.b16 %v777
    %v786 = vunpack.c.l.b16 %v778
    %v787 = vunpack.c.l.b16 %v779
    %v788 = vrot.slane %v780, 4
    %v789 = vrot.slane %v781, 3
    %v790 = vsel %vm182, %v789, %v788
    %v791 = vrot.slane %v782, 2
    %v792 = vsel %vm185, %v791, %v790
    %v793 = vrot.slane %v783, 1
    %v794 = vsel %vm188, %v793, %v792
    %v795 = vsel %vm191, %v784, %v794
    %v796 = vrot.slane %v785, 7
    %v797 = vsel %vm194, %v796, %v795
    %v798 = vrot.slane %v786, 6
    %v799 = vsel %vm197, %v798, %v797
    %v800 = vrot.slane %v787, 5
    %v801 = vsel %vm200, %v800, %v799
    %v802 = vpack.c.b16 %v801, %v801
    %v804 = vsel %vm215, %v802, 0
    %806 = vmatprep.subr.bf16.mxu0 0
    %807 = vmatpush1.bf16.msra.mxu0 %v211
    %808 = vmatprep.subr.bf16.mxu0 0
    %809 = vmatpush1.bf16.msra.mxu0 %v212
    %810 = vmatprep.subr.bf16.mxu0 0
    %811 = vmatpush1.bf16.msra.mxu0 0
    %812 = vmatprep.subr.bf16.mxu0 0
    %813 = vmatpush1.bf16.msra.mxu0 0
    %814 = vmatprep.subr.bf16.mxu0 0
    %815 = vmatpush1.bf16.msra.mxu0 0
    %816 = vmatprep.subr.bf16.mxu0 0
    %817 = vmatpush1.bf16.msra.mxu0 0
    %818 = vmatprep.subr.bf16.mxu0 0
    %819 = vmatpush1.bf16.msra.mxu0 0
    %820 = vmatprep.subr.bf16.mxu0 0
    %821 = vmatpush1.bf16.msra.mxu0 0
    %822 = vmatprep.subr.bf16.mxu0 0
    %823 = vmatpush1.bf16.msra.mxu0 0
    %824 = vmatprep.subr.bf16.mxu0 0
    %825 = vmatpush1.bf16.msra.mxu0 0
    %826 = vmatprep.subr.bf16.mxu0 0
    %827 = vmatpush1.bf16.msra.mxu0 0
    %828 = vmatprep.subr.bf16.mxu0 0
    %829 = vmatpush1.bf16.msra.mxu0 0
    %830 = vmatprep.subr.bf16.mxu0 0
    %831 = vmatpush1.bf16.msra.mxu0 0
    %832 = vmatprep.subr.bf16.mxu0 0
    %833 = vmatpush1.bf16.msra.mxu0 0
    %834 = vmatprep.subr.bf16.mxu0 0
    %835 = vmatpush1.bf16.msra.mxu0 0
    %836 = vmatprep.subr.bf16.mxu0 0
    %837 = vmatpush1.bf16.msra.mxu0 0
    %838 = vmatprep.mubr.bf16.mxu0 0
    %839 = vmatmul.mubr.bf16.gmra.mrb[0].mxu0 %v804
    %v840 = vpop.f32.mrb[0].mxu0
    %v841 = vadd.f32 0.0, %v840
    %v842 = vpop.f32.mrb[0].mxu0
    %v843 = vpop.f32.mrb[0].mxu0
    %v844 = vpop.f32.mrb[0].mxu0
    %845 = vdwg.mxu0
    %v846 = vpack.c.bf16 %v841, %v841
    %s847 = scalar_lea.vmem [#allocation2], 16
    %848 = vst.msk [vmem:[%s847] sm:$0xf] %vm260, %v846
    %849 = vmatprep.subr.bf16.mxu0 0
    %850 = vmatpush1.bf16.msra.mxu0 %v270
    %851 = vmatprep.subr.bf16.mxu0 0
    %852 = vmatpush1.bf16.msra.mxu0 %v271
    %853 = vmatprep.subr.bf16.mxu0 0
    %854 = vmatpush1.bf16.msra.mxu0 0
    %855 = vmatprep.subr.bf16.mxu0 0
    %856 = vmatpush1.bf16.msra.mxu0 0
    %857 = vmatprep.subr.bf16.mxu0 0
    %858 = vmatpush1.bf16.msra.mxu0 0
    %859 = vmatprep.subr.bf16.mxu0 0
    %860 = vmatpush1.bf16.msra.mxu0 0
    %861 = vmatprep.subr.bf16.mxu0 0
    %862 = vmatpush1.bf16.msra.mxu0 0
    %863 = vmatprep.subr.bf16.mxu0 0
    %864 = vmatpush1.bf16.msra.mxu0 0
    %865 = vmatprep.subr.bf16.mxu0 0
    %866 = vmatpush1.bf16.msra.mxu0 0
    %867 = vmatprep.subr.bf16.mxu0 0
    %868 = vmatpush1.bf16.msra.mxu0 0
    %869 = vmatprep.subr.bf16.mxu0 0
    %870 = vmatpush1.bf16.msra.mxu0 0
    %871 = vmatprep.subr.bf16.mxu0 0
    %872 = vmatpush1.bf16.msra.mxu0 0
    %873 = vmatprep.subr.bf16.mxu0 0
    %874 = vmatpush1.bf16.msra.mxu0 0
    %875 = vmatprep.subr.bf16.mxu0 0
    %876 = vmatpush1.bf16.msra.mxu0 0
    %877 = vmatprep.subr.bf16.mxu0 0
    %878 = vmatpush1.bf16.msra.mxu0 0
    %879 = vmatprep.subr.bf16.mxu0 0
    %880 = vmatpush1.bf16.msra.mxu0 0
    %881 = vmatprep.mubr.bf16.mxu0 0
    %882 = vmatmul.mubr.bf16.gmra.mrb[0].mxu0 %v804
    %v883 = vpop.f32.mrb[0].mxu0
    %v884 = vadd.f32 0.0, %v883
    %v885 = vpop.f32.mrb[0].mxu0
    %v886 = vpop.f32.mrb[0].mxu0
    %v887 = vpop.f32.mrb[0].mxu0
    %888 = vdwg.mxu0
    %v889 = vpack.c.bf16 %v884, %v884
    %s890 = scalar_lea.vmem [#allocation3], 16
    %891 = vst.msk [vmem:[%s890] sm:$0xf] %vm260, %v889
    %v892 = vld [vmem:[#allocation6] sm:$0x4]
    %v893 = vld [vmem:[#allocation6 + $0x4] sm:$0x4]
    %v894 = vld [vmem:[#allocation6 + $0x8] sm:$0x4]
    %v895 = vld [vmem:[#allocation6 + $0xc] sm:$0x4]
    %v896 = vld [vmem:[#allocation6 + $0x10] sm:$0x4]
    %v897 = vld [vmem:[#allocation6 + $0x14] sm:$0x4]
    %v898 = vld [vmem:[#allocation6 + $0x18] sm:$0x4]
    %v899 = vld [vmem:[#allocation6 + $0x1c] sm:$0x4]
    %v908 = vunpack.c.l.b16 %v892
    %v909 = vunpack.c.l.b16 %v893
    %v910 = vunpack.c.l.b16 %v894
    %v911 = vunpack.c.l.b16 %v895
    %v912 = vunpack.c.l.b16 %v896
    %v913 = vunpack.c.l.b16 %v897
    %v914 = vunpack.c.l.b16 %v898
    %v915 = vunpack.c.l.b16 %v899
    %v916 = vpack.c.b16 %v908, %v908
    %v917 = vpack.c.b16 %v909, %v909
    %v918 = vpack.c.b16 %v910, %v910
    %v919 = vpack.c.b16 %v911, %v911
    %v920 = vpack.c.b16 %v912, %v912
    %v921 = vpack.c.b16 %v913, %v913
    %v922 = vpack.c.b16 %v914, %v914
    %v923 = vpack.c.b16 %v915, %v915
    %v924 = vunpack.c.l.b16 %v916
    %v925 = vunpack.c.l.b16 %v917
    %v926 = vunpack.c.l.b16 %v918
    %v927 = vunpack.c.l.b16 %v919
    %v928 = vunpack.c.l.b16 %v920
    %v929 = vunpack.c.l.b16 %v921
    %v930 = vunpack.c.l.b16 %v922
    %v931 = vunpack.c.l.b16 %v923
    %v932 = vrot.slane %v924, 5
    %v933 = vrot.slane %v925, 4
    %v934 = vsel %vm182, %v933, %v932
    %v935 = vrot.slane %v926, 3
    %v936 = vsel %vm185, %v935, %v934
    %v937 = vrot.slane %v927, 2
    %v938 = vsel %vm188, %v937, %v936
    %v939 = vrot.slane %v928, 1
    %v940 = vsel %vm191, %v939, %v938
    %v941 = vsel %vm194, %v929, %v940
    %v942 = vrot.slane %v930, 7
    %v943 = vsel %vm197, %v942, %v941
    %v944 = vrot.slane %v931, 6
    %v945 = vsel %vm200, %v944, %v943
    %v946 = vpack.c.b16 %v945, %v945
    %v948 = vsel %vm215, %v946, 0
    %950 = vmatprep.subr.bf16.mxu0 0
    %951 = vmatpush1.bf16.msra.mxu0 %v211
    %952 = vmatprep.subr.bf16.mxu0 0
    %953 = vmatpush1.bf16.msra.mxu0 %v212
    %954 = vmatprep.subr.bf16.mxu0 0
    %955 = vmatpush1.bf16.msra.mxu0 0
    %956 = vmatprep.subr.bf16.mxu0 0
    %957 = vmatpush1.bf16.msra.mxu0 0
    %958 = vmatprep.subr.bf16.mxu0 0
    %959 = vmatpush1.bf16.msra.mxu0 0
    %960 = vmatprep.subr.bf16.mxu0 0
    %961 = vmatpush1.bf16.msra.mxu0 0
    %962 = vmatprep.subr.bf16.mxu0 0
    %963 = vmatpush1.bf16.msra.mxu0 0
    %964 = vmatprep.subr.bf16.mxu0 0
    %965 = vmatpush1.bf16.msra.mxu0 0
    %966 = vmatprep.subr.bf16.mxu0 0
    %967 = vmatpush1.bf16.msra.mxu0 0
    %968 = vmatprep.subr.bf16.mxu0 0
    %969 = vmatpush1.bf16.msra.mxu0 0
    %970 = vmatprep.subr.bf16.mxu0 0
    %971 = vmatpush1.bf16.msra.mxu0 0
    %972 = vmatprep.subr.bf16.mxu0 0
    %973 = vmatpush1.bf16.msra.mxu0 0
    %974 = vmatprep.subr.bf16.mxu0 0
    %975 = vmatpush1.bf16.msra.mxu0 0
    %976 = vmatprep.subr.bf16.mxu0 0
    %977 = vmatpush1.bf16.msra.mxu0 0
    %978 = vmatprep.subr.bf16.mxu0 0
    %979 = vmatpush1.bf16.msra.mxu0 0
    %980 = vmatprep.subr.bf16.mxu0 0
    %981 = vmatpush1.bf16.msra.mxu0 0
    %982 = vmatprep.mubr.bf16.mxu0 0
    %983 = vmatmul.mubr.bf16.gmra.mrb[0].mxu0 %v948
    %v984 = vpop.f32.mrb[0].mxu0
    %v985 = vadd.f32 0.0, %v984
    %v986 = vpop.f32.mrb[0].mxu0
    %v987 = vpop.f32.mrb[0].mxu0
    %v988 = vpop.f32.mrb[0].mxu0
    %989 = vdwg.mxu0
    %v990 = vpack.c.bf16 %v985, %v985
    %s991 = scalar_lea.vmem [#allocation2], 20
    %992 = vst.msk [vmem:[%s991] sm:$0xf] %vm260, %v990
    %993 = vmatprep.subr.bf16.mxu0 0
    %994 = vmatpush1.bf16.msra.mxu0 %v270
    %995 = vmatprep.subr.bf16.mxu0 0
    %996 = vmatpush1.bf16.msra.mxu0 %v271
    %997 = vmatprep.subr.bf16.mxu0 0
    %998 = vmatpush1.bf16.msra.mxu0 0
    %999 = vmatprep.subr.bf16.mxu0 0
    %1000 = vmatpush1.bf16.msra.mxu0 0
    %1001 = vmatprep.subr.bf16.mxu0 0
    %1002 = vmatpush1.bf16.msra.mxu0 0
    %1003 = vmatprep.subr.bf16.mxu0 0
    %1004 = vmatpush1.bf16.msra.mxu0 0
    %1005 = vmatprep.subr.bf16.mxu0 0
    %1006 = vmatpush1.bf16.msra.mxu0 0
    %1007 = vmatprep.subr.bf16.mxu0 0
    %1008 = vmatpush1.bf16.msra.mxu0 0
    %1009 = vmatprep.subr.bf16.mxu0 0
    %1010 = vmatpush1.bf16.msra.mxu0 0
    %1011 = vmatprep.subr.bf16.mxu0 0
    %1012 = vmatpush1.bf16.msra.mxu0 0
    %1013 = vmatprep.subr.bf16.mxu0 0
    %1014 = vmatpush1.bf16.msra.mxu0 0
    %1015 = vmatprep.subr.bf16.mxu0 0
    %1016 = vmatpush1.bf16.msra.mxu0 0
    %1017 = vmatprep.subr.bf16.mxu0 0
    %1018 = vmatpush1.bf16.msra.mxu0 0
    %1019 = vmatprep.subr.bf16.mxu0 0
    %1020 = vmatpush1.bf16.msra.mxu0 0
    %1021 = vmatprep.subr.bf16.mxu0 0
    %1022 = vmatpush1.bf16.msra.mxu0 0
    %1023 = vmatprep.subr.bf16.mxu0 0
    %1024 = vmatpush1.bf16.msra.mxu0 0
    %1025 = vmatprep.mubr.bf16.mxu0 0
    %1026 = vmatmul.mubr.bf16.gmra.mrb[0].mxu0 %v948
    %v1027 = vpop.f32.mrb[0].mxu0
    %v1028 = vadd.f32 0.0, %v1027
    %v1029 = vpop.f32.mrb[0].mxu0
    %v1030 = vpop.f32.mrb[0].mxu0
    %v1031 = vpop.f32.mrb[0].mxu0
    %1032 = vdwg.mxu0
    %v1033 = vpack.c.bf16 %v1028, %v1028
    %s1034 = scalar_lea.vmem [#allocation3], 20
    %1035 = vst.msk [vmem:[%s1034] sm:$0xf] %vm260, %v1033
    %v1036 = vld [vmem:[#allocation6] sm:$0x8]
    %v1037 = vld [vmem:[#allocation6 + $0x4] sm:$0x8]
    %v1038 = vld [vmem:[#allocation6 + $0x8] sm:$0x8]
    %v1039 = vld [vmem:[#allocation6 + $0xc] sm:$0x8]
    %v1040 = vld [vmem:[#allocation6 + $0x10] sm:$0x8]
    %v1041 = vld [vmem:[#allocation6 + $0x14] sm:$0x8]
    %v1042 = vld [vmem:[#allocation6 + $0x18] sm:$0x8]
    %v1043 = vld [vmem:[#allocation6 + $0x1c] sm:$0x8]
    %v1052 = vunpack.c.l.b16 %v1036
    %v1053 = vunpack.c.l.b16 %v1037
    %v1054 = vunpack.c.l.b16 %v1038
    %v1055 = vunpack.c.l.b16 %v1039
    %v1056 = vunpack.c.l.b16 %v1040
    %v1057 = vunpack.c.l.b16 %v1041
    %v1058 = vunpack.c.l.b16 %v1042
    %v1059 = vunpack.c.l.b16 %v1043
    %v1060 = vpack.c.b16 %v1052, %v1052
    %v1061 = vpack.c.b16 %v1053, %v1053
    %v1062 = vpack.c.b16 %v1054, %v1054
    %v1063 = vpack.c.b16 %v1055, %v1055
    %v1064 = vpack.c.b16 %v1056, %v1056
    %v1065 = vpack.c.b16 %v1057, %v1057
    %v1066 = vpack.c.b16 %v1058, %v1058
    %v1067 = vpack.c.b16 %v1059, %v1059
    %v1068 = vunpack.c.l.b16 %v1060
    %v1069 = vunpack.c.l.b16 %v1061
    %v1070 = vunpack.c.l.b16 %v1062
    %v1071 = vunpack.c.l.b16 %v1063
    %v1072 = vunpack.c.l.b16 %v1064
    %v1073 = vunpack.c.l.b16 %v1065
    %v1074 = vunpack.c.l.b16 %v1066
    %v1075 = vunpack.c.l.b16 %v1067
    %v1076 = vrot.slane %v1068, 6
    %v1077 = vrot.slane %v1069, 5
    %v1078 = vsel %vm182, %v1077, %v1076
    %v1079 = vrot.slane %v1070, 4
    %v1080 = vsel %vm185, %v1079, %v1078
    %v1081 = vrot.slane %v1071, 3
    %v1082 = vsel %vm188, %v1081, %v1080
    %v1083 = vrot.slane %v1072, 2
    %v1084 = vsel %vm191, %v1083, %v1082
    %v1085 = vrot.slane %v1073, 1
    %v1086 = vsel %vm194, %v1085, %v1084
    %v1087 = vsel %vm197, %v1074, %v1086
    %v1088 = vrot.slane %v1075, 7
    %v1089 = vsel %vm200, %v1088, %v1087
    %v1090 = vpack.c.b16 %v1089, %v1089
    %v1092 = vsel %vm215, %v1090, 0
    %1094 = vmatprep.subr.bf16.mxu0 0
    %1095 = vmatpush1.bf16.msra.mxu0 %v211
    %1096 = vmatprep.subr.bf16.mxu0 0
    %1097 = vmatpush1.bf16.msra.mxu0 %v212
    %1098 = vmatprep.subr.bf16.mxu0 0
    %1099 = vmatpush1.bf16.msra.mxu0 0
    %1100 = vmatprep.subr.bf16.mxu0 0
    %1101 = vmatpush1.bf16.msra.mxu0 0
    %1102 = vmatprep.subr.bf16.mxu0 0
    %1103 = vmatpush1.bf16.msra.mxu0 0
    %1104 = vmatprep.subr.bf16.mxu0 0
    %1105 = vmatpush1.bf16.msra.mxu0 0
    %1106 = vmatprep.subr.bf16.mxu0 0
    %1107 = vmatpush1.bf16.msra.mxu0 0
    %1108 = vmatprep.subr.bf16.mxu0 0
    %1109 = vmatpush1.bf16.msra.mxu0 0
    %1110 = vmatprep.subr.bf16.mxu0 0
    %1111 = vmatpush1.bf16.msra.mxu0 0
    %1112 = vmatprep.subr.bf16.mxu0 0
    %1113 = vmatpush1.bf16.msra.mxu0 0
    %1114 = vmatprep.subr.bf16.mxu0 0
    %1115 = vmatpush1.bf16.msra.mxu0 0
    %1116 = vmatprep.subr.bf16.mxu0 0
    %1117 = vmatpush1.bf16.msra.mxu0 0
    %1118 = vmatprep.subr.bf16.mxu0 0
    %1119 = vmatpush1.bf16.msra.mxu0 0
    %1120 = vmatprep.subr.bf16.mxu0 0
    %1121 = vmatpush1.bf16.msra.mxu0 0
    %1122 = vmatprep.subr.bf16.mxu0 0
    %1123 = vmatpush1.bf16.msra.mxu0 0
    %1124 = vmatprep.subr.bf16.mxu0 0
    %1125 = vmatpush1.bf16.msra.mxu0 0
    %1126 = vmatprep.mubr.bf16.mxu0 0
    %1127 = vmatmul.mubr.bf16.gmra.mrb[0].mxu0 %v1092
    %v1128 = vpop.f32.mrb[0].mxu0
    %v1129 = vadd.f32 0.0, %v1128
    %v1130 = vpop.f32.mrb[0].mxu0
    %v1131 = vpop.f32.mrb[0].mxu0
    %v1132 = vpop.f32.mrb[0].mxu0
    %1133 = vdwg.mxu0
    %v1134 = vpack.c.bf16 %v1129, %v1129
    %s1135 = scalar_lea.vmem [#allocation2], 24
    %1136 = vst.msk [vmem:[%s1135] sm:$0xf] %vm260, %v1134
    %1137 = vmatprep.subr.bf16.mxu0 0
    %1138 = vmatpush1.bf16.msra.mxu0 %v270
    %1139 = vmatprep.subr.bf16.mxu0 0
    %1140 = vmatpush1.bf16.msra.mxu0 %v271
    %1141 = vmatprep.subr.bf16.mxu0 0
    %1142 = vmatpush1.bf16.msra.mxu0 0
    %1143 = vmatprep.subr.bf16.mxu0 0
    %1144 = vmatpush1.bf16.msra.mxu0 0
    %1145 = vmatprep.subr.bf16.mxu0 0
    %1146 = vmatpush1.bf16.msra.mxu0 0
    %1147 = vmatprep.subr.bf16.mxu0 0
    %1148 = vmatpush1.bf16.msra.mxu0 0
    %1149 = vmatprep.subr.bf16.mxu0 0
    %1150 = vmatpush1.bf16.msra.mxu0 0
    %1151 = vmatprep.subr.bf16.mxu0 0
    %1152 = vmatpush1.bf16.msra.mxu0 0
    %1153 = vmatprep.subr.bf16.mxu0 0
    %1154 = vmatpush1.bf16.msra.mxu0 0
    %1155 = vmatprep.subr.bf16.mxu0 0
    %1156 = vmatpush1.bf16.msra.mxu0 0
    %1157 = vmatprep.subr.bf16.mxu0 0
    %1158 = vmatpush1.bf16.msra.mxu0 0
    %1159 = vmatprep.subr.bf16.mxu0 0
    %1160 = vmatpush1.bf16.msra.mxu0 0
    %1161 = vmatprep.subr.bf16.mxu0 0
    %1162 = vmatpush1.bf16.msra.mxu0 0
    %1163 = vmatprep.subr.bf16.mxu0 0
    %1164 = vmatpush1.bf16.msra.mxu0 0
    %1165 = vmatprep.subr.bf16.mxu0 0
    %1166 = vmatpush1.bf16.msra.mxu0 0
    %1167 = vmatprep.subr.bf16.mxu0 0
    %1168 = vmatpush1.bf16.msra.mxu0 0
    %1169 = vmatprep.mubr.bf16.mxu0 0
    %1170 = vmatmul.mubr.bf16.gmra.mrb[0].mxu0 %v1092
    %v1171 = vpop.f32.mrb[0].mxu0
    %v1172 = vadd.f32 0.0, %v1171
    %v1173 = vpop.f32.mrb[0].mxu0
    %v1174 = vpop.f32.mrb[0].mxu0
    %v1175 = vpop.f32.mrb[0].mxu0
    %1176 = vdwg.mxu0
    %v1177 = vpack.c.bf16 %v1172, %v1172
    %s1178 = scalar_lea.vmem [#allocation3], 24
    %1179 = vst.msk [vmem:[%s1178] sm:$0xf] %vm260, %v1177
    %v1180 = vld [vmem:[#allocation6] sm:$0x8]
    %v1181 = vld [vmem:[#allocation6 + $0x4] sm:$0x8]
    %v1182 = vld [vmem:[#allocation6 + $0x8] sm:$0x8]
    %v1183 = vld [vmem:[#allocation6 + $0xc] sm:$0x8]
    %v1184 = vld [vmem:[#allocation6 + $0x10] sm:$0x8]
    %v1185 = vld [vmem:[#allocation6 + $0x14] sm:$0x8]
    %v1186 = vld [vmem:[#allocation6 + $0x18] sm:$0x8]
    %v1187 = vld [vmem:[#allocation6 + $0x1c] sm:$0x8]
    %v1196 = vunpack.c.l.b16 %v1180
    %v1197 = vunpack.c.l.b16 %v1181
    %v1198 = vunpack.c.l.b16 %v1182
    %v1199 = vunpack.c.l.b16 %v1183
    %v1200 = vunpack.c.l.b16 %v1184
    %v1201 = vunpack.c.l.b16 %v1185
    %v1202 = vunpack.c.l.b16 %v1186
    %v1203 = vunpack.c.l.b16 %v1187
    %v1204 = vpack.c.b16 %v1196, %v1196
    %v1205 = vpack.c.b16 %v1197, %v1197
    %v1206 = vpack.c.b16 %v1198, %v1198
    %v1207 = vpack.c.b16 %v1199, %v1199
    %v1208 = vpack.c.b16 %v1200, %v1200
    %v1209 = vpack.c.b16 %v1201, %v1201
    %v1210 = vpack.c.b16 %v1202, %v1202
    %v1211 = vpack.c.b16 %v1203, %v1203
    %v1212 = vunpack.c.l.b16 %v1204
    %v1213 = vunpack.c.l.b16 %v1205
    %v1214 = vunpack.c.l.b16 %v1206
    %v1215 = vunpack.c.l.b16 %v1207
    %v1216 = vunpack.c.l.b16 %v1208
    %v1217 = vunpack.c.l.b16 %v1209
    %v1218 = vunpack.c.l.b16 %v1210
    %v1219 = vunpack.c.l.b16 %v1211
    %v1220 = vrot.slane %v1212, 7
    %v1221 = vrot.slane %v1213, 6
    %v1222 = vsel %vm182, %v1221, %v1220
    %v1223 = vrot.slane %v1214, 5
    %v1224 = vsel %vm185, %v1223, %v1222
    %v1225 = vrot.slane %v1215, 4
    %v1226 = vsel %vm188, %v1225, %v1224
    %v1227 = vrot.slane %v1216, 3
    %v1228 = vsel %vm191, %v1227, %v1226
    %v1229 = vrot.slane %v1217, 2
    %v1230 = vsel %vm194, %v1229, %v1228
    %v1231 = vrot.slane %v1218, 1
    %v1232 = vsel %vm197, %v1231, %v1230
    %v1233 = vsel %vm200, %v1219, %v1232
    %v1234 = vpack.c.b16 %v1233, %v1233
    %v1236 = vsel %vm215, %v1234, 0
    %1238 = vmatprep.subr.bf16.mxu0 0
    %1239 = vmatpush1.bf16.msra.mxu0 %v211
    %1240 = vmatprep.subr.bf16.mxu0 0
    %1241 = vmatpush1.bf16.msra.mxu0 %v212
    %1242 = vmatprep.subr.bf16.mxu0 0
    %1243 = vmatpush1.bf16.msra.mxu0 0
    %1244 = vmatprep.subr.bf16.mxu0 0
    %1245 = vmatpush1.bf16.msra.mxu0 0
    %1246 = vmatprep.subr.bf16.mxu0 0
    %1247 = vmatpush1.bf16.msra.mxu0 0
    %1248 = vmatprep.subr.bf16.mxu0 0
    %1249 = vmatpush1.bf16.msra.mxu0 0
    %1250 = vmatprep.subr.bf16.mxu0 0
    %1251 = vmatpush1.bf16.msra.mxu0 0
    %1252 = vmatprep.subr.bf16.mxu0 0
    %1253 = vmatpush1.bf16.msra.mxu0 0
    %1254 = vmatprep.subr.bf16.mxu0 0
    %1255 = vmatpush1.bf16.msra.mxu0 0
    %1256 = vmatprep.subr.bf16.mxu0 0
    %1257 = vmatpush1.bf16.msra.mxu0 0
    %1258 = vmatprep.subr.bf16.mxu0 0
    %1259 = vmatpush1.bf16.msra.mxu0 0
    %1260 = vmatprep.subr.bf16.mxu0 0
    %1261 = vmatpush1.bf16.msra.mxu0 0
    %1262 = vmatprep.subr.bf16.mxu0 0
    %1263 = vmatpush1.bf16.msra.mxu0 0
    %1264 = vmatprep.subr.bf16.mxu0 0
    %1265 = vmatpush1.bf16.msra.mxu0 0
    %1266 = vmatprep.subr.bf16.mxu0 0
    %1267 = vmatpush1.bf16.msra.mxu0 0
    %1268 = vmatprep.subr.bf16.mxu0 0
    %1269 = vmatpush1.bf16.msra.mxu0 0
    %1270 = vmatprep.mubr.bf16.mxu0 0
    %1271 = vmatmul.mubr.bf16.gmra.mrb[0].mxu0 %v1236
    %v1272 = vpop.f32.mrb[0].mxu0
    %v1273 = vadd.f32 0.0, %v1272
    %v1274 = vpop.f32.mrb[0].mxu0
    %v1275 = vpop.f32.mrb[0].mxu0
    %v1276 = vpop.f32.mrb[0].mxu0
    %1277 = vdwg.mxu0
    %v1278 = vpack.c.bf16 %v1273, %v1273
    %s1279 = scalar_lea.vmem [#allocation2], 28
    %1280 = vst.msk [vmem:[%s1279] sm:$0xf] %vm260, %v1278
    %1281 = vmatprep.subr.bf16.mxu0 0
    %1282 = vmatpush1.bf16.msra.mxu0 %v270
    %1283 = vmatprep.subr.bf16.mxu0 0
    %1284 = vmatpush1.bf16.msra.mxu0 %v271
    %1285 = vmatprep.subr.bf16.mxu0 0
    %1286 = vmatpush1.bf16.msra.mxu0 0
    %1287 = vmatprep.subr.bf16.mxu0 0
    %1288 = vmatpush1.bf16.msra.mxu0 0
    %1289 = vmatprep.subr.bf16.mxu0 0
    %1290 = vmatpush1.bf16.msra.mxu0 0
    %1291 = vmatprep.subr.bf16.mxu0 0
    %1292 = vmatpush1.bf16.msra.mxu0 0
    %1293 = vmatprep.subr.bf16.mxu0 0
    %1294 = vmatpush1.bf16.msra.mxu0 0
    %1295 = vmatprep.subr.bf16.mxu0 0
    %1296 = vmatpush1.bf16.msra.mxu0 0
    %1297 = vmatprep.subr.bf16.mxu0 0
    %1298 = vmatpush1.bf16.msra.mxu0 0
    %1299 = vmatprep.subr.bf16.mxu0 0
    %1300 = vmatpush1.bf16.msra.mxu0 0
    %1301 = vmatprep.subr.bf16.mxu0 0
    %1302 = vmatpush1.bf16.msra.mxu0 0
    %1303 = vmatprep.subr.bf16.mxu0 0
    %1304 = vmatpush1.bf16.msra.mxu0 0
    %1305 = vmatprep.subr.bf16.mxu0 0
    %1306 = vmatpush1.bf16.msra.mxu0 0
    %1307 = vmatprep.subr.bf16.mxu0 0
    %1308 = vmatpush1.bf16.msra.mxu0 0
    %1309 = vmatprep.subr.bf16.mxu0 0
    %1310 = vmatpush1.bf16.msra.mxu0 0
    %1311 = vmatprep.subr.bf16.mxu0 0
    %1312 = vmatpush1.bf16.msra.mxu0 0
    %1313 = vmatprep.mubr.bf16.mxu0 0
    %1314 = vmatmul.mubr.bf16.gmra.mrb[0].mxu0 %v1236
    %v1315 = vpop.f32.mrb[0].mxu0
    %v1316 = vadd.f32 0.0, %v1315
    %v1317 = vpop.f32.mrb[0].mxu0
    %v1318 = vpop.f32.mrb[0].mxu0
    %v1319 = vpop.f32.mrb[0].mxu0
    %1320 = vdwg.mxu0
    %v1321 = vpack.c.bf16 %v1316, %v1316
    %s1322 = scalar_lea.vmem [#allocation3], 28
    %1323 = vst.msk [vmem:[%s1322] sm:$0xf] %vm260, %v1321
    %v1324 = vld [vmem:[#allocation11] sm:$0xff]
    %v1325 = vld [vmem:[#allocation11 + $0x8] sm:$0xff]
    %v1326 = vld [vmem:[#allocation11 + $0x10] sm:$0xff]
    %v1327 = vld [vmem:[#allocation11 + $0x18] sm:$0xff]
    %v1328 = vld [vmem:[#allocation11 + $0x20] sm:$0xff]
    %v1329 = vld [vmem:[#allocation11 + $0x28] sm:$0xff]
    %v1330 = vld [vmem:[#allocation11 + $0x30] sm:$0xff]
    %v1331 = vld [vmem:[#allocation11 + $0x38] sm:$0xff]
    %v1332 = vld [vmem:[#allocation2] sm:$0xf]
    %v1333 = vunpack.c.l.bf16 %v1332
    %v1334 = vadd.f32 %v1333, 0.0
    %v1335 = vxor.u32 %v1334, 2147483648
    %v1336 = vmul.f32 %v1335, 1.442695
    %v1337 = vpow.pop %v1336
    %v1338 = vadd.f32 %v1337, 1.0
    %v1339 = vrcp.pop %v1338
    %v1340 = vmul.f32 1.0, %v1339
    %v1341 = vmul.f32 %v1340, 0.0
    %1343 = vrot.lane.b32.xlu0 %v1341, 64
    %v1344 = vpop.permute.xlu0 %1343
    %v1346 = vadd.f32 %v1333, %v1344
    %v1347 = vtanh.pop %v1346
    %v1348 = vsub.f32 0.0, %v1347
    %1350 = vrot.lane.b32.xlu0 %v1348, 96
    %v1351 = vpop.permute.xlu0 %1350
    %v1353 = vmul.f32 %v1340, %v1351
    %1355 = vrot.lane.b32.xlu0 %v1353, 32
    %v1356 = vpop.permute.xlu0 %1355
    %v1358 = vadd.f32 %v1347, %v1356
    %v1359 = vld [vmem:[%s1322] sm:$0xf]
    %v1360 = vunpack.c.l.bf16 %v1359
    %v1361 = vadd.f32 %v1360, 0.0
    %v1362 = vxor.u32 %v1361, 2147483648
    %v1363 = vmul.f32 %v1362, 1.442695
    %v1364 = vpow.pop %v1363
    %v1365 = vadd.f32 %v1364, 1.0
    %v1366 = vrcp.pop %v1365
    %v1367 = vmul.f32 1.0, %v1366
    %v1368 = vmul.f32 %v1367, 0.0
    %1370 = vrot.lane.b32.xlu0 %v1368, 64
    %v1371 = vpop.permute.xlu0 %1370
    %v1373 = vadd.f32 %v1360, %v1371
    %v1374 = vtanh.pop %v1373
    %v1375 = vsub.f32 0.0, %v1374
    %1377 = vrot.lane.b32.xlu0 %v1375, 96
    %v1378 = vpop.permute.xlu0 %1377
    %v1380 = vmul.f32 %v1367, %v1378
    %1382 = vrot.lane.b32.xlu0 %v1380, 32
    %v1383 = vpop.permute.xlu0 %1382
    %v1385 = vadd.f32 %v1374, %v1383
    %vm1386 = vcmp.gt.s32.totalorder %v132, 0
    %v1387 = vsel %vm1386, 1, 0
    %v1388 = vcvt.s32.f32 %v1387
    %vm1389 = vcmp.gt.s32.totalorder %v132, 7
    %v1390 = vsel %vm1389, 1, 0
    %v1391 = vcvt.s32.f32 %v1390
    %1393 = vset.pattern.permute.xlu0 0
    %1394 = vperm.xlu0 %1393, %v1388
    %v1395 = vpop.permute.xlu0 %1394
    %v1397 = vmul.f32 %v1395, %v1358
    %v1398 = vsub.f32 1.0, %v1388
    %1400 = vset.pattern.permute.xlu0 0
    %1401 = vperm.xlu0 %1400, %v1398
    %v1402 = vpop.permute.xlu0 %1401
    %v1404 = vmul.f32 %v1402, 0.0
    %v1405 = vadd.f32 %v1397, %v1404
    %1407 = vset.pattern.permute.xlu0 0
    %1408 = vperm.xlu0 %1407, %v1391
    %v1409 = vpop.permute.xlu0 %1408
    %v1411 = vmul.f32 %v1409, %v1385
    %v1412 = vpack.c.bf16 %v1405, %v1405
    %v1414 = vunpack.c.l.b16 %v1412
    %v1415 = vpack.c.b16 %v1414, %v1414
    %1416 = vrot.lane.b32.xlu0 %v1415, 64
    %v1417 = vpop.permute.xlu0 %1416
    %vm1419 = vcmask 257024
    %1420 = vst.msk [vmem:[#allocation4] sm:$0xf] %vm1419, %v1417
    %v1421 = vpack.c.bf16 %v1411, %v1411
    %v1423 = vunpack.c.l.b16 %v1421
    %v1424 = vpack.c.b16 %v1423, %v1423
    %1425 = vrot.lane.b32.xlu0 %v1424, 64
    %v1426 = vpop.permute.xlu0 %1425
    %s1428 = scalar_lea.vmem [#allocation5], 28
    %1429 = vst.msk [vmem:[%s1428] sm:$0xf] %vm1419, %v1426
    %1431 = vrot.lane.b32.xlu0 %v1405, 64
    %v1432 = vpop.permute.xlu0 %1431
    %1435 = vrot.lane.b32.xlu0 %v1411, 96
    %v1436 = vpop.permute.xlu0 %1435
    %v1438 = vsel %vm215, %v1432, %v1436
    %v1439 = vpack.c.bf16 %v1438, %v1438
    %v1448 = vunpack.c.l.b16 %v1324
    %v1449 = vunpack.c.h.b16 %v1324
    %v1450 = vunpack.c.l.b16 %v1325
    %v1451 = vunpack.c.h.b16 %v1325
    %v1452 = vunpack.c.l.b16 %v1326
    %v1453 = vunpack.c.h.b16 %v1326
    %v1454 = vunpack.c.l.b16 %v1327
    %v1455 = vunpack.c.h.b16 %v1327
    %v1456 = vunpack.c.l.b16 %v1328
    %v1457 = vunpack.c.h.b16 %v1328
    %v1458 = vunpack.c.l.b16 %v1329
    %v1459 = vunpack.c.h.b16 %v1329
    %v1460 = vunpack.c.l.b16 %v1330
    %v1461 = vunpack.c.h.b16 %v1330
    %v1462 = vunpack.c.l.b16 %v1331
    %v1463 = vunpack.c.h.b16 %v1331
    %v1464 = vpack.c.b16 %v1450, %v1448
    %v1465 = vpack.c.b16 %v1451, %v1449
    %v1466 = vpack.c.b16 %v1454, %v1452
    %v1467 = vpack.c.b16 %v1455, %v1453
    %v1468 = vpack.c.b16 %v1458, %v1456
    %v1469 = vpack.c.b16 %v1459, %v1457
    %v1470 = vpack.c.b16 %v1462, %v1460
    %v1471 = vpack.c.b16 %v1463, %v1461
    %vm1480 = vcmask 523264
    %v1482 = vsel %vm1480, %v1439, 0
    %1484 = vmatprep.subr.bf16.mxu0 %v1465
    %1485 = vmatpush1.bf16.msra.mxu0 %v1464
    %1486 = vmatprep.subr.bf16.mxu0 %v1467
    %1487 = vmatpush1.bf16.msra.mxu0 %v1466
    %1488 = vmatprep.subr.bf16.mxu0 %v1469
    %1489 = vmatpush1.bf16.msra.mxu0 %v1468
    %1490 = vmatprep.subr.bf16.mxu0 %v1471
    %1491 = vmatpush1.bf16.msra.mxu0 %v1470
    %1492 = vmatprep.subr.bf16.mxu0 0
    %1493 = vmatpush1.bf16.msra.mxu0 0
    %1494 = vmatprep.subr.bf16.mxu0 0
    %1495 = vmatpush1.bf16.msra.mxu0 0
    %1496 = vmatprep.subr.bf16.mxu0 0
    %1497 = vmatpush1.bf16.msra.mxu0 0
    %1498 = vmatprep.subr.bf16.mxu0 0
    %1499 = vmatpush1.bf16.msra.mxu0 0
    %1500 = vmatprep.subr.bf16.mxu0 0
    %1501 = vmatpush1.bf16.msra.mxu0 0
    %1502 = vmatprep.subr.bf16.mxu0 0
    %1503 = vmatpush1.bf16.msra.mxu0 0
    %1504 = vmatprep.subr.bf16.mxu0 0
    %1505 = vmatpush1.bf16.msra.mxu0 0
    %1506 = vmatprep.subr.bf16.mxu0 0
    %1507 = vmatpush1.bf16.msra.mxu0 0
    %1508 = vmatprep.subr.bf16.mxu0 0
    %1509 = vmatpush1.bf16.msra.mxu0 0
    %1510 = vmatprep.subr.bf16.mxu0 0
    %1511 = vmatpush1.bf16.msra.mxu0 0
    %1512 = vmatprep.subr.bf16.mxu0 0
    %1513 = vmatpush1.bf16.msra.mxu0 0
    %1514 = vmatprep.subr.bf16.mxu0 0
    %1515 = vmatpush1.bf16.msra.mxu0 0
    %1516 = vmatprep.mubr.bf16.mxu0 0
    %1517 = vmatmul.mubr.bf16.gmra.mrb[0].mxu0 %v1482
    %v1518 = vpop.f32.mrb[0].mxu0
    %v1519 = vadd.f32 0.0, %v1518
    %v1520 = vpop.f32.mrb[0].mxu0
    %v1521 = vadd.f32 0.0, %v1520
    %v1522 = vpop.f32.mrb[0].mxu0
    %v1523 = vpop.f32.mrb[0].mxu0
    %1524 = vdwg.mxu0
    %v1525 = vld [vmem:[%s415] sm:$0xf]
    %v1526 = vunpack.c.l.bf16 %v1525
    %v1527 = vadd.f32 %v1526, %v1519
    %v1528 = vxor.u32 %v1527, 2147483648
    %v1529 = vmul.f32 %v1528, 1.442695
    %v1530 = vpow.pop %v1529
    %v1531 = vadd.f32 %v1530, 1.0
    %v1532 = vrcp.pop %v1531
    %v1533 = vmul.f32 1.0, %v1532
    %1535 = vrot.lane.b32.xlu0 %v1519, 64
    %v1536 = vpop.permute.xlu0 %1535
    %v1538 = vmul.f32 %v1533, %v1536
    %1540 = vrot.lane.b32.xlu0 %v1538, 64
    %v1541 = vpop.permute.xlu0 %1540
    %v1543 = vadd.f32 %v1526, %v1541
    %v1544 = vtanh.pop %v1543
    %v1545 = vsub.f32 %v1405, %v1544
    %1547 = vrot.lane.b32.xlu0 %v1545, 96
    %v1548 = vpop.permute.xlu0 %1547
    %v1550 = vmul.f32 %v1533, %v1548
    %1552 = vrot.lane.b32.xlu0 %v1550, 32
    %v1553 = vpop.permute.xlu0 %1552
    %v1555 = vadd.f32 %v1544, %v1553
    %v1556 = vld [vmem:[%s1178] sm:$0xf]
    %v1557 = vunpack.c.l.bf16 %v1556
    %1559 = vrot.lane.b32.xlu0 %v1519, 32
    %v1560 = vpop.permute.xlu0 %1559
    %1561 = vrot.lane.b32.xlu0 %v1521, 32
    %v1562 = vpop.permute.xlu0 %1561
    %v1563 = vsel %vm215, %v1560, %v1562
    %v1565 = vadd.f32 %v1557, %v1563
    %v1566 = vxor.u32 %v1565, 2147483648
    %v1567 = vmul.f32 %v1566, 1.442695
    %v1568 = vpow.pop %v1567
    %v1569 = vadd.f32 %v1568, 1.0
    %v1570 = vrcp.pop %v1569
    %v1571 = vmul.f32 1.0, %v1570
    %1572 = vrot.lane.b32.xlu0 %v1521, 96
    %v1573 = vpop.permute.xlu0 %1572
    %v1575 = vmul.f32 %v1571, %v1573
    %1577 = vrot.lane.b32.xlu0 %v1575, 64
    %v1578 = vpop.permute.xlu0 %1577
    %v1580 = vadd.f32 %v1557, %v1578
    %v1581 = vtanh.pop %v1580
    %v1582 = vsub.f32 %v1411, %v1581
    %1584 = vrot.lane.b32.xlu0 %v1582, 96
    %v1585 = vpop.permute.xlu0 %1584
    %v1587 = vmul.f32 %v1571, %v1585
    %1589 = vrot.lane.b32.xlu0 %v1587, 32
    %v1590 = vpop.permute.xlu0 %1589
    %v1592 = vadd.f32 %v1581, %v1590
    %vm1593 = vcmp.gt.s32.totalorder %v132, 1
    %v1594 = vsel %vm1593, 1, 0
    %v1595 = vcvt.s32.f32 %v1594
    %vm1596 = vcmp.gt.s32.totalorder %v132, 6
    %v1597 = vsel %vm1596, 1, 0
    %v1598 = vcvt.s32.f32 %v1597
    %1600 = vset.pattern.permute.xlu0 0
    %1601 = vperm.xlu0 %1600, %v1595
    %v1602 = vpop.permute.xlu0 %1601
    %v1604 = vmul.f32 %v1602, %v1555
    %v1605 = vsub.f32 1.0, %v1595
    %1607 = vset.pattern.permute.xlu0 0
    %1608 = vperm.xlu0 %1607, %v1605
    %v1609 = vpop.permute.xlu0 %1608
    %v1611 = vmul.f32 %v1609, %v1405
    %v1612 = vadd.f32 %v1604, %v1611
    %1614 = vset.pattern.permute.xlu0 0
    %1615 = vperm.xlu0 %1614, %v1598
    %v1616 = vpop.permute.xlu0 %1615
    %v1618 = vmul.f32 %v1616, %v1592
    %v1619 = vpack.c.bf16 %v1612, %v1612
    %v1621 = vunpack.c.l.b16 %v1619
    %v1622 = vpack.c.b16 %v1621, %v1621
    %1623 = vrot.lane.b32.xlu0 %v1622, 64
    %v1624 = vpop.permute.xlu0 %1623
    %s1626 = scalar_lea.vmem [#allocation4], 4
    %1627 = vst.msk [vmem:[%s1626] sm:$0xf] %vm1419, %v1624
    %v1628 = vpack.c.bf16 %v1618, %v1618
    %v1630 = vunpack.c.l.b16 %v1628
    %v1631 = vpack.c.b16 %v1630, %v1630
    %1632 = vrot.lane.b32.xlu0 %v1631, 64
    %v1633 = vpop.permute.xlu0 %1632
    %s1635 = scalar_lea.vmem [#allocation5], 24
    %1636 = vst.msk [vmem:[%s1635] sm:$0xf] %vm1419, %v1633
    %1638 = vrot.lane.b32.xlu0 %v1612, 64
    %v1639 = vpop.permute.xlu0 %1638
    %1642 = vrot.lane.b32.xlu0 %v1618, 96
    %v1643 = vpop.permute.xlu0 %1642
    %v1645 = vsel %vm215, %v1639, %v1643
    %v1646 = vpack.c.bf16 %v1645, %v1645
    %v1648 = vsel %vm1480, %v1646, 0
    %1650 = vmatprep.subr.bf16.mxu0 %v1465
    %1651 = vmatpush1.bf16.msra.mxu0 %v1464
    %1652 = vmatprep.subr.bf16.mxu0 %v1467
    %1653 = vmatpush1.bf16.msra.mxu0 %v1466
    %1654 = vmatprep.subr.bf16.mxu0 %v1469
    %1655 = vmatpush1.bf16.msra.mxu0 %v1468
    %1656 = vmatprep.subr.bf16.mxu0 %v1471
    %1657 = vmatpush1.bf16.msra.mxu0 %v1470
    %1658 = vmatprep.subr.bf16.mxu0 0
    %1659 = vmatpush1.bf16.msra.mxu0 0
    %1660 = vmatprep.subr.bf16.mxu0 0
    %1661 = vmatpush1.bf16.msra.mxu0 0
    %1662 = vmatprep.subr.bf16.mxu0 0
    %1663 = vmatpush1.bf16.msra.mxu0 0
    %1664 = vmatprep.subr.bf16.mxu0 0
    %1665 = vmatpush1.bf16.msra.mxu0 0
    %1666 = vmatprep.subr.bf16.mxu0 0
    %1667 = vmatpush1.bf16.msra.mxu0 0
    %1668 = vmatprep.subr.bf16.mxu0 0
    %1669 = vmatpush1.bf16.msra.mxu0 0
    %1670 = vmatprep.subr.bf16.mxu0 0
    %1671 = vmatpush1.bf16.msra.mxu0 0
    %1672 = vmatprep.subr.bf16.mxu0 0
    %1673 = vmatpush1.bf16.msra.mxu0 0
    %1674 = vmatprep.subr.bf16.mxu0 0
    %1675 = vmatpush1.bf16.msra.mxu0 0
    %1676 = vmatprep.subr.bf16.mxu0 0
    %1677 = vmatpush1.bf16.msra.mxu0 0
    %1678 = vmatprep.subr.bf16.mxu0 0
    %1679 = vmatpush1.bf16.msra.mxu0 0
    %1680 = vmatprep.subr.bf16.mxu0 0
    %1681 = vmatpush1.bf16.msra.mxu0 0
    %1682 = vmatprep.mubr.bf16.mxu0 0
    %1683 = vmatmul.mubr.bf16.gmra.mrb[0].mxu0 %v1648
    %v1684 = vpop.f32.mrb[0].mxu0
    %v1685 = vadd.f32 0.0, %v1684
    %v1686 = vpop.f32.mrb[0].mxu0
    %v1687 = vadd.f32 0.0, %v1686
    %v1688 = vpop.f32.mrb[0].mxu0
    %v1689 = vpop.f32.mrb[0].mxu0
    %1690 = vdwg.mxu0
    %v1691 = vld [vmem:[%s559] sm:$0xf]
    %v1692 = vunpack.c.l.bf16 %v1691
    %v1693 = vadd.f32 %v1692, %v1685
    %v1694 = vxor.u32 %v1693, 2147483648
    %v1695 = vmul.f32 %v1694, 1.442695
    %v1696 = vpow.pop %v1695
    %v1697 = vadd.f32 %v1696, 1.0
    %v1698 = vrcp.pop %v1697
    %v1699 = vmul.f32 1.0, %v1698
    %1701 = vrot.lane.b32.xlu0 %v1685, 64
    %v1702 = vpop.permute.xlu0 %1701
    %v1704 = vmul.f32 %v1699, %v1702
    %1706 = vrot.lane.b32.xlu0 %v1704, 64
    %v1707 = vpop.permute.xlu0 %1706
    %v1709 = vadd.f32 %v1692, %v1707
    %v1710 = vtanh.pop %v1709
    %v1711 = vsub.f32 %v1612, %v1710
    %1713 = vrot.lane.b32.xlu0 %v1711, 96
    %v1714 = vpop.permute.xlu0 %1713
    %v1716 = vmul.f32 %v1699, %v1714
    %1718 = vrot.lane.b32.xlu0 %v1716, 32
    %v1719 = vpop.permute.xlu0 %1718
    %v1721 = vadd.f32 %v1710, %v1719
    %v1722 = vld [vmem:[%s1034] sm:$0xf]
    %v1723 = vunpack.c.l.bf16 %v1722
    %1725 = vrot.lane.b32.xlu0 %v1685, 32
    %v1726 = vpop.permute.xlu0 %1725
    %1727 = vrot.lane.b32.xlu0 %v1687, 32
    %v1728 = vpop.permute.xlu0 %1727
    %v1729 = vsel %vm215, %v1726, %v1728
    %v1731 = vadd.f32 %v1723, %v1729
    %v1732 = vxor.u32 %v1731, 2147483648
    %v1733 = vmul.f32 %v1732, 1.442695
    %v1734 = vpow.pop %v1733
    %v1735 = vadd.f32 %v1734, 1.0
    %v1736 = vrcp.pop %v1735
    %v1737 = vmul.f32 1.0, %v1736
    %1738 = vrot.lane.b32.xlu0 %v1687, 96
    %v1739 = vpop.permute.xlu0 %1738
    %v1741 = vmul.f32 %v1737, %v1739
    %1743 = vrot.lane.b32.xlu0 %v1741, 64
    %v1744 = vpop.permute.xlu0 %1743
    %v1746 = vadd.f32 %v1723, %v1744
    %v1747 = vtanh.pop %v1746
    %v1748 = vsub.f32 %v1618, %v1747
    %1750 = vrot.lane.b32.xlu0 %v1748, 96
    %v1751 = vpop.permute.xlu0 %1750
    %v1753 = vmul.f32 %v1737, %v1751
    %1755 = vrot.lane.b32.xlu0 %v1753, 32
    %v1756 = vpop.permute.xlu0 %1755
    %v1758 = vadd.f32 %v1747, %v1756
    %vm1759 = vcmp.gt.s32.totalorder %v132, 2
    %v1760 = vsel %vm1759, 1, 0
    %v1761 = vcvt.s32.f32 %v1760
    %vm1762 = vcmp.gt.s32.totalorder %v132, 5
    %v1763 = vsel %vm1762, 1, 0
    %v1764 = vcvt.s32.f32 %v1763
    %1766 = vset.pattern.permute.xlu0 0
    %1767 = vperm.xlu0 %1766, %v1761
    %v1768 = vpop.permute.xlu0 %1767
    %v1770 = vmul.f32 %v1768, %v1721
    %v1771 = vsub.f32 1.0, %v1761
    %1773 = vset.pattern.permute.xlu0 0
    %1774 = vperm.xlu0 %1773, %v1771
    %v1775 = vpop.permute.xlu0 %1774
    %v1777 = vmul.f32 %v1775, %v1612
    %v1778 = vadd.f32 %v1770, %v1777
    %1780 = vset.pattern.permute.xlu0 0
    %1781 = vperm.xlu0 %1780, %v1764
    %v1782 = vpop.permute.xlu0 %1781
    %v1784 = vmul.f32 %v1782, %v1758
    %v1785 = vpack.c.bf16 %v1778, %v1778
    %v1787 = vunpack.c.l.b16 %v1785
    %v1788 = vpack.c.b16 %v1787, %v1787
    %1789 = vrot.lane.b32.xlu0 %v1788, 64
    %v1790 = vpop.permute.xlu0 %1789
    %s1792 = scalar_lea.vmem [#allocation4], 8
    %1793 = vst.msk [vmem:[%s1792] sm:$0xf] %vm1419, %v1790
    %v1794 = vpack.c.bf16 %v1784, %v1784
    %v1796 = vunpack.c.l.b16 %v1794
    %v1797 = vpack.c.b16 %v1796, %v1796
    %1798 = vrot.lane.b32.xlu0 %v1797, 64
    %v1799 = vpop.permute.xlu0 %1798
    %s1801 = scalar_lea.vmem [#allocation5], 20
    %1802 = vst.msk [vmem:[%s1801] sm:$0xf] %vm1419, %v1799
    %1804 = vrot.lane.b32.xlu0 %v1778, 64
    %v1805 = vpop.permute.xlu0 %1804
    %1808 = vrot.lane.b32.xlu0 %v1784, 96
    %v1809 = vpop.permute.xlu0 %1808
    %v1811 = vsel %vm215, %v1805, %v1809
    %v1812 = vpack.c.bf16 %v1811, %v1811
    %v1814 = vsel %vm1480, %v1812, 0
    %1816 = vmatprep.subr.bf16.mxu0 %v1465
    %1817 = vmatpush1.bf16.msra.mxu0 %v1464
    %1818 = vmatprep.subr.bf16.mxu0 %v1467
    %1819 = vmatpush1.bf16.msra.mxu0 %v1466
    %1820 = vmatprep.subr.bf16.mxu0 %v1469
    %1821 = vmatpush1.bf16.msra.mxu0 %v1468
    %1822 = vmatprep.subr.bf16.mxu0 %v1471
    %1823 = vmatpush1.bf16.msra.mxu0 %v1470
    %1824 = vmatprep.subr.bf16.mxu0 0
    %1825 = vmatpush1.bf16.msra.mxu0 0
    %1826 = vmatprep.subr.bf16.mxu0 0
    %1827 = vmatpush1.bf16.msra.mxu0 0
    %1828 = vmatprep.subr.bf16.mxu0 0
    %1829 = vmatpush1.bf16.msra.mxu0 0
    %1830 = vmatprep.subr.bf16.mxu0 0
    %1831 = vmatpush1.bf16.msra.mxu0 0
    %1832 = vmatprep.subr.bf16.mxu0 0
    %1833 = vmatpush1.bf16.msra.mxu0 0
    %1834 = vmatprep.subr.bf16.mxu0 0
    %1835 = vmatpush1.bf16.msra.mxu0 0
    %1836 = vmatprep.subr.bf16.mxu0 0
    %1837 = vmatpush1.bf16.msra.mxu0 0
    %1838 = vmatprep.subr.bf16.mxu0 0
    %1839 = vmatpush1.bf16.msra.mxu0 0
    %1840 = vmatprep.subr.bf16.mxu0 0
    %1841 = vmatpush1.bf16.msra.mxu0 0
    %1842 = vmatprep.subr.bf16.mxu0 0
    %1843 = vmatpush1.bf16.msra.mxu0 0
    %1844 = vmatprep.subr.bf16.mxu0 0
    %1845 = vmatpush1.bf16.msra.mxu0 0
    %1846 = vmatprep.subr.bf16.mxu0 0
    %1847 = vmatpush1.bf16.msra.mxu0 0
    %1848 = vmatprep.mubr.bf16.mxu0 0
    %1849 = vmatmul.mubr.bf16.gmra.mrb[0].mxu0 %v1814
    %v1850 = vpop.f32.mrb[0].mxu0
    %v1851 = vadd.f32 0.0, %v1850
    %v1852 = vpop.f32.mrb[0].mxu0
    %v1853 = vadd.f32 0.0, %v1852
    %v1854 = vpop.f32.mrb[0].mxu0
    %v1855 = vpop.f32.mrb[0].mxu0
    %1856 = vdwg.mxu0
    %v1857 = vld [vmem:[%s703] sm:$0xf]
    %v1858 = vunpack.c.l.bf16 %v1857
    %v1859 = vadd.f32 %v1858, %v1851
    %v1860 = vxor.u32 %v1859, 2147483648
    %v1861 = vmul.f32 %v1860, 1.442695
    %v1862 = vpow.pop %v1861
    %v1863 = vadd.f32 %v1862, 1.0
    %v1864 = vrcp.pop %v1863
    %v1865 = vmul.f32 1.0, %v1864
    %1867 = vrot.lane.b32.xlu0 %v1851, 64
    %v1868 = vpop.permute.xlu0 %1867
    %v1870 = vmul.f32 %v1865, %v1868
    %1872 = vrot.lane.b32.xlu0 %v1870, 64
    %v1873 = vpop.permute.xlu0 %1872
    %v1875 = vadd.f32 %v1858, %v1873
    %v1876 = vtanh.pop %v1875
    %v1877 = vsub.f32 %v1778, %v1876
    %1879 = vrot.lane.b32.xlu0 %v1877, 96
    %v1880 = vpop.permute.xlu0 %1879
    %v1882 = vmul.f32 %v1865, %v1880
    %1884 = vrot.lane.b32.xlu0 %v1882, 32
    %v1885 = vpop.permute.xlu0 %1884
    %v1887 = vadd.f32 %v1876, %v1885
    %v1888 = vld [vmem:[%s890] sm:$0xf]
    %v1889 = vunpack.c.l.bf16 %v1888
    %1891 = vrot.lane.b32.xlu0 %v1851, 32
    %v1892 = vpop.permute.xlu0 %1891
    %1893 = vrot.lane.b32.xlu0 %v1853, 32
    %v1894 = vpop.permute.xlu0 %1893
    %v1895 = vsel %vm215, %v1892, %v1894
    %v1897 = vadd.f32 %v1889, %v1895
    %v1898 = vxor.u32 %v1897, 2147483648
    %v1899 = vmul.f32 %v1898, 1.442695
    %v1900 = vpow.pop %v1899
    %v1901 = vadd.f32 %v1900, 1.0
    %v1902 = vrcp.pop %v1901
    %v1903 = vmul.f32 1.0, %v1902
    %1904 = vrot.lane.b32.xlu0 %v1853, 96
    %v1905 = vpop.permute.xlu0 %1904
    %v1907 = vmul.f32 %v1903, %v1905
    %1909 = vrot.lane.b32.xlu0 %v1907, 64
    %v1910 = vpop.permute.xlu0 %1909
    %v1912 = vadd.f32 %v1889, %v1910
    %v1913 = vtanh.pop %v1912
    %v1914 = vsub.f32 %v1784, %v1913
    %1916 = vrot.lane.b32.xlu0 %v1914, 96
    %v1917 = vpop.permute.xlu0 %1916
    %v1919 = vmul.f32 %v1903, %v1917
    %1921 = vrot.lane.b32.xlu0 %v1919, 32
    %v1922 = vpop.permute.xlu0 %1921
    %v1924 = vadd.f32 %v1913, %v1922
    %vm1925 = vcmp.gt.s32.totalorder %v132, 3
    %v1926 = vsel %vm1925, 1, 0
    %v1927 = vcvt.s32.f32 %v1926
    %vm1928 = vcmp.gt.s32.totalorder %v132, 4
    %v1929 = vsel %vm1928, 1, 0
    %v1930 = vcvt.s32.f32 %v1929
    %1932 = vset.pattern.permute.xlu0 0
    %1933 = vperm.xlu0 %1932, %v1927
    %v1934 = vpop.permute.xlu0 %1933
    %v1936 = vmul.f32 %v1934, %v1887
    %v1937 = vsub.f32 1.0, %v1927
    %1939 = vset.pattern.permute.xlu0 0
    %1940 = vperm.xlu0 %1939, %v1937
    %v1941 = vpop.permute.xlu0 %1940
    %v1943 = vmul.f32 %v1941, %v1778
    %v1944 = vadd.f32 %v1936, %v1943
    %1946 = vset.pattern.permute.xlu0 0
    %1947 = vperm.xlu0 %1946, %v1930
    %v1948 = vpop.permute.xlu0 %1947
    %v1950 = vmul.f32 %v1948, %v1924
    %v1951 = vpack.c.bf16 %v1944, %v1944
    %v1953 = vunpack.c.l.b16 %v1951
    %v1954 = vpack.c.b16 %v1953, %v1953
    %1955 = vrot.lane.b32.xlu0 %v1954, 64
    %v1956 = vpop.permute.xlu0 %1955
    %s1958 = scalar_lea.vmem [#allocation4], 12
    %1959 = vst.msk [vmem:[%s1958] sm:$0xf] %vm1419, %v1956
    %v1960 = vpack.c.bf16 %v1950, %v1950
    %v1962 = vunpack.c.l.b16 %v1960
    %v1963 = vpack.c.b16 %v1962, %v1962
    %1964 = vrot.lane.b32.xlu0 %v1963, 64
    %v1965 = vpop.permute.xlu0 %1964
    %s1967 = scalar_lea.vmem [#allocation5], 16
    %1968 = vst.msk [vmem:[%s1967] sm:$0xf] %vm1419, %v1965
    %1970 = vrot.lane.b32.xlu0 %v1944, 64
    %v1971 = vpop.permute.xlu0 %1970
    %1974 = vrot.lane.b32.xlu0 %v1950, 96
    %v1975 = vpop.permute.xlu0 %1974
    %v1977 = vsel %vm215, %v1971, %v1975
    %v1978 = vpack.c.bf16 %v1977, %v1977
    %v1980 = vsel %vm1480, %v1978, 0
    %1982 = vmatprep.subr.bf16.mxu0 %v1465
    %1983 = vmatpush1.bf16.msra.mxu0 %v1464
    %1984 = vmatprep.subr.bf16.mxu0 %v1467
    %1985 = vmatpush1.bf16.msra.mxu0 %v1466
    %1986 = vmatprep.subr.bf16.mxu0 %v1469
    %1987 = vmatpush1.bf16.msra.mxu0 %v1468
    %1988 = vmatprep.subr.bf16.mxu0 %v1471
    %1989 = vmatpush1.bf16.msra.mxu0 %v1470
    %1990 = vmatprep.subr.bf16.mxu0 0
    %1991 = vmatpush1.bf16.msra.mxu0 0
    %1992 = vmatprep.subr.bf16.mxu0 0
    %1993 = vmatpush1.bf16.msra.mxu0 0
    %1994 = vmatprep.subr.bf16.mxu0 0
    %1995 = vmatpush1.bf16.msra.mxu0 0
    %1996 = vmatprep.subr.bf16.mxu0 0
    %1997 = vmatpush1.bf16.msra.mxu0 0
    %1998 = vmatprep.subr.bf16.mxu0 0
    %1999 = vmatpush1.bf16.msra.mxu0 0
    %2000 = vmatprep.subr.bf16.mxu0 0
    %2001 = vmatpush1.bf16.msra.mxu0 0
    %2002 = vmatprep.subr.bf16.mxu0 0
    %2003 = vmatpush1.bf16.msra.mxu0 0
    %2004 = vmatprep.subr.bf16.mxu0 0
    %2005 = vmatpush1.bf16.msra.mxu0 0
    %2006 = vmatprep.subr.bf16.mxu0 0
    %2007 = vmatpush1.bf16.msra.mxu0 0
    %2008 = vmatprep.subr.bf16.mxu0 0
    %2009 = vmatpush1.bf16.msra.mxu0 0
    %2010 = vmatprep.subr.bf16.mxu0 0
    %2011 = vmatpush1.bf16.msra.mxu0 0
    %2012 = vmatprep.subr.bf16.mxu0 0
    %2013 = vmatpush1.bf16.msra.mxu0 0
    %2014 = vmatprep.mubr.bf16.mxu0 0
    %2015 = vmatmul.mubr.bf16.gmra.mrb[0].mxu0 %v1980
    %v2016 = vpop.f32.mrb[0].mxu0
    %v2017 = vadd.f32 0.0, %v2016
    %v2018 = vpop.f32.mrb[0].mxu0
    %v2019 = vadd.f32 0.0, %v2018
    %v2020 = vpop.f32.mrb[0].mxu0
    %v2021 = vpop.f32.mrb[0].mxu0
    %2022 = vdwg.mxu0
    %v2023 = vld [vmem:[%s847] sm:$0xf]
    %v2024 = vunpack.c.l.bf16 %v2023
    %v2025 = vadd.f32 %v2024, %v2017
    %v2026 = vxor.u32 %v2025, 2147483648
    %v2027 = vmul.f32 %v2026, 1.442695
    %v2028 = vpow.pop %v2027
    %v2029 = vadd.f32 %v2028, 1.0
    %v2030 = vrcp.pop %v2029
    %v2031 = vmul.f32 1.0, %v2030
    %2033 = vrot.lane.b32.xlu0 %v2017, 64
    %v2034 = vpop.permute.xlu0 %2033
    %v2036 = vmul.f32 %v2031, %v2034
    %2038 = vrot.lane.b32.xlu0 %v2036, 64
    %v2039 = vpop.permute.xlu0 %2038
    %v2041 = vadd.f32 %v2024, %v2039
    %v2042 = vtanh.pop %v2041
    %v2043 = vsub.f32 %v1944, %v2042
    %2045 = vrot.lane.b32.xlu0 %v2043, 96
    %v2046 = vpop.permute.xlu0 %2045
    %v2048 = vmul.f32 %v2031, %v2046
    %2050 = vrot.lane.b32.xlu0 %v2048, 32
    %v2051 = vpop.permute.xlu0 %2050
    %v2053 = vadd.f32 %v2042, %v2051
    %v2054 = vld [vmem:[%s746] sm:$0xf]
    %v2055 = vunpack.c.l.bf16 %v2054
    %2057 = vrot.lane.b32.xlu0 %v2017, 32
    %v2058 = vpop.permute.xlu0 %2057
    %2059 = vrot.lane.b32.xlu0 %v2019, 32
    %v2060 = vpop.permute.xlu0 %2059
    %v2061 = vsel %vm215, %v2058, %v2060
    %v2063 = vadd.f32 %v2055, %v2061
    %v2064 = vxor.u32 %v2063, 2147483648
    %v2065 = vmul.f32 %v2064, 1.442695
    %v2066 = vpow.pop %v2065
    %v2067 = vadd.f32 %v2066, 1.0
    %v2068 = vrcp.pop %v2067
    %v2069 = vmul.f32 1.0, %v2068
    %2070 = vrot.lane.b32.xlu0 %v2019, 96
    %v2071 = vpop.permute.xlu0 %2070
    %v2073 = vmul.f32 %v2069, %v2071
    %2075 = vrot.lane.b32.xlu0 %v2073, 64
    %v2076 = vpop.permute.xlu0 %2075
    %v2078 = vadd.f32 %v2055, %v2076
    %v2079 = vtanh.pop %v2078
    %v2080 = vsub.f32 %v1950, %v2079
    %2082 = vrot.lane.b32.xlu0 %v2080, 96
    %v2083 = vpop.permute.xlu0 %2082
    %v2085 = vmul.f32 %v2069, %v2083
    %2087 = vrot.lane.b32.xlu0 %v2085, 32
    %v2088 = vpop.permute.xlu0 %2087
    %v2090 = vadd.f32 %v2079, %v2088
    %v2091 = vmul.f32 %v1948, %v2053
    %v2092 = vsub.f32 1.0, %v1930
    %2094 = vset.pattern.permute.xlu0 0
    %2095 = vperm.xlu0 %2094, %v2092
    %v2096 = vpop.permute.xlu0 %2095
    %v2098 = vmul.f32 %v2096, %v1944
    %v2099 = vadd.f32 %v2091, %v2098
    %v2100 = vmul.f32 %v1934, %v2090
    %v2101 = vpack.c.bf16 %v2099, %v2099
    %v2103 = vunpack.c.l.b16 %v2101
    %v2104 = vpack.c.b16 %v2103, %v2103
    %2105 = vrot.lane.b32.xlu0 %v2104, 64
    %v2106 = vpop.permute.xlu0 %2105
    %s2108 = scalar_lea.vmem [#allocation4], 16
    %2109 = vst.msk [vmem:[%s2108] sm:$0xf] %vm1419, %v2106
    %v2110 = vpack.c.bf16 %v2100, %v2100
    %v2112 = vunpack.c.l.b16 %v2110
    %v2113 = vpack.c.b16 %v2112, %v2112
    %2114 = vrot.lane.b32.xlu0 %v2113, 64
    %v2115 = vpop.permute.xlu0 %2114
    %s2117 = scalar_lea.vmem [#allocation5], 12
    %2118 = vst.msk [vmem:[%s2117] sm:$0xf] %vm1419, %v2115
    %2120 = vrot.lane.b32.xlu0 %v2099, 64
    %v2121 = vpop.permute.xlu0 %2120
    %2124 = vrot.lane.b32.xlu0 %v2100, 96
    %v2125 = vpop.permute.xlu0 %2124
    %v2127 = vsel %vm215, %v2121, %v2125
    %v2128 = vpack.c.bf16 %v2127, %v2127
    %v2130 = vsel %vm1480, %v2128, 0
    %2132 = vmatprep.subr.bf16.mxu0 %v1465
    %2133 = vmatpush1.bf16.msra.mxu0 %v1464
    %2134 = vmatprep.subr.bf16.mxu0 %v1467
    %2135 = vmatpush1.bf16.msra.mxu0 %v1466
    %2136 = vmatprep.subr.bf16.mxu0 %v1469
    %2137 = vmatpush1.bf16.msra.mxu0 %v1468
    %2138 = vmatprep.subr.bf16.mxu0 %v1471
    %2139 = vmatpush1.bf16.msra.mxu0 %v1470
    %2140 = vmatprep.subr.bf16.mxu0 0
    %2141 = vmatpush1.bf16.msra.mxu0 0
    %2142 = vmatprep.subr.bf16.mxu0 0
    %2143 = vmatpush1.bf16.msra.mxu0 0
    %2144 = vmatprep.subr.bf16.mxu0 0
    %2145 = vmatpush1.bf16.msra.mxu0 0
    %2146 = vmatprep.subr.bf16.mxu0 0
    %2147 = vmatpush1.bf16.msra.mxu0 0
    %2148 = vmatprep.subr.bf16.mxu0 0
    %2149 = vmatpush1.bf16.msra.mxu0 0
    %2150 = vmatprep.subr.bf16.mxu0 0
    %2151 = vmatpush1.bf16.msra.mxu0 0
    %2152 = vmatprep.subr.bf16.mxu0 0
    %2153 = vmatpush1.bf16.msra.mxu0 0
    %2154 = vmatprep.subr.bf16.mxu0 0
    %2155 = vmatpush1.bf16.msra.mxu0 0
    %2156 = vmatprep.subr.bf16.mxu0 0
    %2157 = vmatpush1.bf16.msra.mxu0 0
    %2158 = vmatprep.subr.bf16.mxu0 0
    %2159 = vmatpush1.bf16.msra.mxu0 0
    %2160 = vmatprep.subr.bf16.mxu0 0
    %2161 = vmatpush1.bf16.msra.mxu0 0
    %2162 = vmatprep.subr.bf16.mxu0 0
    %2163 = vmatpush1.bf16.msra.mxu0 0
    %2164 = vmatprep.mubr.bf16.mxu0 0
    %2165 = vmatmul.mubr.bf16.gmra.mrb[0].mxu0 %v2130
    %v2166 = vpop.f32.mrb[0].mxu0
    %v2167 = vadd.f32 0.0, %v2166
    %v2168 = vpop.f32.mrb[0].mxu0
    %v2169 = vadd.f32 0.0, %v2168
    %v2170 = vpop.f32.mrb[0].mxu0
    %v2171 = vpop.f32.mrb[0].mxu0
    %2172 = vdwg.mxu0
    %v2173 = vld [vmem:[%s991] sm:$0xf]
    %v2174 = vunpack.c.l.bf16 %v2173
    %v2175 = vadd.f32 %v2174, %v2167
    %v2176 = vxor.u32 %v2175, 2147483648
    %v2177 = vmul.f32 %v2176, 1.442695
    %v2178 = vpow.pop %v2177
    %v2179 = vadd.f32 %v2178, 1.0
    %v2180 = vrcp.pop %v2179
    %v2181 = vmul.f32 1.0, %v2180
    %2183 = vrot.lane.b32.xlu0 %v2167, 64
    %v2184 = vpop.permute.xlu0 %2183
    %v2186 = vmul.f32 %v2181, %v2184
    %2188 = vrot.lane.b32.xlu0 %v2186, 64
    %v2189 = vpop.permute.xlu0 %2188
    %v2191 = vadd.f32 %v2174, %v2189
    %v2192 = vtanh.pop %v2191
    %v2193 = vsub.f32 %v2099, %v2192
    %2195 = vrot.lane.b32.xlu0 %v2193, 96
    %v2196 = vpop.permute.xlu0 %2195
    %v2198 = vmul.f32 %v2181, %v2196
    %2200 = vrot.lane.b32.xlu0 %v2198, 32
    %v2201 = vpop.permute.xlu0 %2200
    %v2203 = vadd.f32 %v2192, %v2201
    %v2204 = vld [vmem:[%s602] sm:$0xf]
    %v2205 = vunpack.c.l.bf16 %v2204
    %2207 = vrot.lane.b32.xlu0 %v2167, 32
    %v2208 = vpop.permute.xlu0 %2207
    %2209 = vrot.lane.b32.xlu0 %v2169, 32
    %v2210 = vpop.permute.xlu0 %2209
    %v2211 = vsel %vm215, %v2208, %v2210
    %v2213 = vadd.f32 %v2205, %v2211
    %v2214 = vxor.u32 %v2213, 2147483648
    %v2215 = vmul.f32 %v2214, 1.442695
    %v2216 = vpow.pop %v2215
    %v2217 = vadd.f32 %v2216, 1.0
    %v2218 = vrcp.pop %v2217
    %v2219 = vmul.f32 1.0, %v2218
    %2220 = vrot.lane.b32.xlu0 %v2169, 96
    %v2221 = vpop.permute.xlu0 %2220
    %v2223 = vmul.f32 %v2219, %v2221
    %2225 = vrot.lane.b32.xlu0 %v2223, 64
    %v2226 = vpop.permute.xlu0 %2225
    %v2228 = vadd.f32 %v2205, %v2226
    %v2229 = vtanh.pop %v2228
    %v2230 = vsub.f32 %v2100, %v2229
    %2232 = vrot.lane.b32.xlu0 %v2230, 96
    %v2233 = vpop.permute.xlu0 %2232
    %v2235 = vmul.f32 %v2219, %v2233
    %2237 = vrot.lane.b32.xlu0 %v2235, 32
    %v2238 = vpop.permute.xlu0 %2237
    %v2240 = vadd.f32 %v2229, %v2238
    %v2241 = vmul.f32 %v1782, %v2203
    %v2242 = vsub.f32 1.0, %v1764
    %2244 = vset.pattern.permute.xlu0 0
    %2245 = vperm.xlu0 %2244, %v2242
    %v2246 = vpop.permute.xlu0 %2245
    %v2248 = vmul.f32 %v2246, %v2099
    %v2249 = vadd.f32 %v2241, %v2248
    %v2250 = vmul.f32 %v1768, %v2240
    %v2251 = vpack.c.bf16 %v2249, %v2249
    %v2253 = vunpack.c.l.b16 %v2251
    %v2254 = vpack.c.b16 %v2253, %v2253
    %2255 = vrot.lane.b32.xlu0 %v2254, 64
    %v2256 = vpop.permute.xlu0 %2255
    %s2258 = scalar_lea.vmem [#allocation4], 20
    %2259 = vst.msk [vmem:[%s2258] sm:$0xf] %vm1419, %v2256
    %v2260 = vpack.c.bf16 %v2250, %v2250
    %v2262 = vunpack.c.l.b16 %v2260
    %v2263 = vpack.c.b16 %v2262, %v2262
    %2264 = vrot.lane.b32.xlu0 %v2263, 64
    %v2265 = vpop.permute.xlu0 %2264
    %s2267 = scalar_lea.vmem [#allocation5], 8
    %2268 = vst.msk [vmem:[%s2267] sm:$0xf] %vm1419, %v2265
    %2270 = vrot.lane.b32.xlu0 %v2249, 64
    %v2271 = vpop.permute.xlu0 %2270
    %2274 = vrot.lane.b32.xlu0 %v2250, 96
    %v2275 = vpop.permute.xlu0 %2274
    %v2277 = vsel %vm215, %v2271, %v2275
    %v2278 = vpack.c.bf16 %v2277, %v2277
    %v2280 = vsel %vm1480, %v2278, 0
    %2282 = vmatprep.subr.bf16.mxu0 %v1465
    %2283 = vmatpush1.bf16.msra.mxu0 %v1464
    %2284 = vmatprep.subr.bf16.mxu0 %v1467
    %2285 = vmatpush1.bf16.msra.mxu0 %v1466
    %2286 = vmatprep.subr.bf16.mxu0 %v1469
    %2287 = vmatpush1.bf16.msra.mxu0 %v1468
    %2288 = vmatprep.subr.bf16.mxu0 %v1471
    %2289 = vmatpush1.bf16.msra.mxu0 %v1470
    %2290 = vmatprep.subr.bf16.mxu0 0
    %2291 = vmatpush1.bf16.msra.mxu0 0
    %2292 = vmatprep.subr.bf16.mxu0 0
    %2293 = vmatpush1.bf16.msra.mxu0 0
    %2294 = vmatprep.subr.bf16.mxu0 0
    %2295 = vmatpush1.bf16.msra.mxu0 0
    %2296 = vmatprep.subr.bf16.mxu0 0
    %2297 = vmatpush1.bf16.msra.mxu0 0
    %2298 = vmatprep.subr.bf16.mxu0 0
    %2299 = vmatpush1.bf16.msra.mxu0 0
    %2300 = vmatprep.subr.bf16.mxu0 0
    %2301 = vmatpush1.bf16.msra.mxu0 0
    %2302 = vmatprep.subr.bf16.mxu0 0
    %2303 = vmatpush1.bf16.msra.mxu0 0
    %2304 = vmatprep.subr.bf16.mxu0 0
    %2305 = vmatpush1.bf16.msra.mxu0 0
    %2306 = vmatprep.subr.bf16.mxu0 0
    %2307 = vmatpush1.bf16.msra.mxu0 0
    %2308 = vmatprep.subr.bf16.mxu0 0
    %2309 = vmatpush1.bf16.msra.mxu0 0
    %2310 = vmatprep.subr.bf16.mxu0 0
    %2311 = vmatpush1.bf16.msra.mxu0 0
    %2312 = vmatprep.subr.bf16.mxu0 0
    %2313 = vmatpush1.bf16.msra.mxu0 0
    %2314 = vmatprep.mubr.bf16.mxu0 0
    %2315 = vmatmul.mubr.bf16.gmra.mrb[0].mxu0 %v2280
    %v2316 = vpop.f32.mrb[0].mxu0
    %v2317 = vadd.f32 0.0, %v2316
    %v2318 = vpop.f32.mrb[0].mxu0
    %v2319 = vadd.f32 0.0, %v2318
    %v2320 = vpop.f32.mrb[0].mxu0
    %v2321 = vpop.f32.mrb[0].mxu0
    %2322 = vdwg.mxu0
    %v2323 = vld [vmem:[%s1135] sm:$0xf]
    %v2324 = vunpack.c.l.bf16 %v2323
    %v2325 = vadd.f32 %v2324, %v2317
    %v2326 = vxor.u32 %v2325, 2147483648
    %v2327 = vmul.f32 %v2326, 1.442695
    %v2328 = vpow.pop %v2327
    %v2329 = vadd.f32 %v2328, 1.0
    %v2330 = vrcp.pop %v2329
    %v2331 = vmul.f32 1.0, %v2330
    %2333 = vrot.lane.b32.xlu0 %v2317, 64
    %v2334 = vpop.permute.xlu0 %2333
    %v2336 = vmul.f32 %v2331, %v2334
    %2338 = vrot.lane.b32.xlu0 %v2336, 64
    %v2339 = vpop.permute.xlu0 %2338
    %v2341 = vadd.f32 %v2324, %v2339
    %v2342 = vtanh.pop %v2341
    %v2343 = vsub.f32 %v2249, %v2342
    %2345 = vrot.lane.b32.xlu0 %v2343, 96
    %v2346 = vpop.permute.xlu0 %2345
    %v2348 = vmul.f32 %v2331, %v2346
    %2350 = vrot.lane.b32.xlu0 %v2348, 32
    %v2351 = vpop.permute.xlu0 %2350
    %v2353 = vadd.f32 %v2342, %v2351
    %v2354 = vld [vmem:[%s458] sm:$0xf]
    %v2355 = vunpack.c.l.bf16 %v2354
    %2357 = vrot.lane.b32.xlu0 %v2317, 32
    %v2358 = vpop.permute.xlu0 %2357
    %2359 = vrot.lane.b32.xlu0 %v2319, 32
    %v2360 = vpop.permute.xlu0 %2359
    %v2361 = vsel %vm215, %v2358, %v2360
    %v2363 = vadd.f32 %v2355, %v2361
    %v2364 = vxor.u32 %v2363, 2147483648
    %v2365 = vmul.f32 %v2364, 1.442695
    %v2366 = vpow.pop %v2365
    %v2367 = vadd.f32 %v2366, 1.0
    %v2368 = vrcp.pop %v2367
    %v2369 = vmul.f32 1.0, %v2368
    %2370 = vrot.lane.b32.xlu0 %v2319, 96
    %v2371 = vpop.permute.xlu0 %2370
    %v2373 = vmul.f32 %v2369, %v2371
    %2375 = vrot.lane.b32.xlu0 %v2373, 64
    %v2376 = vpop.permute.xlu0 %2375
    %v2378 = vadd.f32 %v2355, %v2376
    %v2379 = vtanh.pop %v2378
    %v2380 = vsub.f32 %v2250, %v2379
    %2382 = vrot.lane.b32.xlu0 %v2380, 96
    %v2383 = vpop.permute.xlu0 %2382
    %v2385 = vmul.f32 %v2369, %v2383
    %2387 = vrot.lane.b32.xlu0 %v2385, 32
    %v2388 = vpop.permute.xlu0 %2387
    %v2390 = vadd.f32 %v2379, %v2388
    %v2391 = vmul.f32 %v1616, %v2353
    %v2392 = vsub.f32 1.0, %v1598
    %2394 = vset.pattern.permute.xlu0 0
    %2395 = vperm.xlu0 %2394, %v2392
    %v2396 = vpop.permute.xlu0 %2395
    %v2398 = vmul.f32 %v2396, %v2249
    %v2399 = vadd.f32 %v2391, %v2398
    %v2400 = vmul.f32 %v1602, %v2390
    %v2401 = vpack.c.bf16 %v2399, %v2399
    %v2403 = vunpack.c.l.b16 %v2401
    %v2404 = vpack.c.b16 %v2403, %v2403
    %2405 = vrot.lane.b32.xlu0 %v2404, 64
    %v2406 = vpop.permute.xlu0 %2405
    %s2408 = scalar_lea.vmem [#allocation4], 24
    %2409 = vst.msk [vmem:[%s2408] sm:$0xf] %vm1419, %v2406
    %v2410 = vpack.c.bf16 %v2400, %v2400
    %v2412 = vunpack.c.l.b16 %v2410
    %v2413 = vpack.c.b16 %v2412, %v2412
    %2414 = vrot.lane.b32.xlu0 %v2413, 64
    %v2415 = vpop.permute.xlu0 %2414
    %s2417 = scalar_lea.vmem [#allocation5], 4
    %2418 = vst.msk [vmem:[%s2417] sm:$0xf] %vm1419, %v2415
    %2420 = vrot.lane.b32.xlu0 %v2399, 64
    %v2421 = vpop.permute.xlu0 %2420
    %2424 = vrot.lane.b32.xlu0 %v2400, 96
    %v2425 = vpop.permute.xlu0 %2424
    %v2427 = vsel %vm215, %v2421, %v2425
    %v2428 = vpack.c.bf16 %v2427, %v2427
    %v2430 = vsel %vm1480, %v2428, 0
    %2432 = vmatprep.subr.bf16.mxu0 %v1465
    %2433 = vmatpush1.bf16.msra.mxu0 %v1464
    %2434 = vmatprep.subr.bf16.mxu0 %v1467
    %2435 = vmatpush1.bf16.msra.mxu0 %v1466
    %2436 = vmatprep.subr.bf16.mxu0 %v1469
    %2437 = vmatpush1.bf16.msra.mxu0 %v1468
    %2438 = vmatprep.subr.bf16.mxu0 %v1471
    %2439 = vmatpush1.bf16.msra.mxu0 %v1470
    %2440 = vmatprep.subr.bf16.mxu0 0
    %2441 = vmatpush1.bf16.msra.mxu0 0
    %2442 = vmatprep.subr.bf16.mxu0 0
    %2443 = vmatpush1.bf16.msra.mxu0 0
    %2444 = vmatprep.subr.bf16.mxu0 0
    %2445 = vmatpush1.bf16.msra.mxu0 0
    %2446 = vmatprep.subr.bf16.mxu0 0
    %2447 = vmatpush1.bf16.msra.mxu0 0
    %2448 = vmatprep.subr.bf16.mxu0 0
    %2449 = vmatpush1.bf16.msra.mxu0 0
    %2450 = vmatprep.subr.bf16.mxu0 0
    %2451 = vmatpush1.bf16.msra.mxu0 0
    %2452 = vmatprep.subr.bf16.mxu0 0
    %2453 = vmatpush1.bf16.msra.mxu0 0
    %2454 = vmatprep.subr.bf16.mxu0 0
    %2455 = vmatpush1.bf16.msra.mxu0 0
    %2456 = vmatprep.subr.bf16.mxu0 0
    %2457 = vmatpush1.bf16.msra.mxu0 0
    %2458 = vmatprep.subr.bf16.mxu0 0
    %2459 = vmatpush1.bf16.msra.mxu0 0
    %2460 = vmatprep.subr.bf16.mxu0 0
    %2461 = vmatpush1.bf16.msra.mxu0 0
    %2462 = vmatprep.subr.bf16.mxu0 0
    %2463 = vmatpush1.bf16.msra.mxu0 0
    %2464 = vmatprep.mubr.bf16.mxu0 0
    %2465 = vmatmul.mubr.bf16.gmra.mrb[0].mxu0 %v2430
    %v2466 = vpop.f32.mrb[0].mxu0
    %v2467 = vadd.f32 0.0, %v2466
    %v2468 = vpop.f32.mrb[0].mxu0
    %v2469 = vadd.f32 0.0, %v2468
    %v2470 = vpop.f32.mrb[0].mxu0
    %v2471 = vpop.f32.mrb[0].mxu0
    %2472 = vdwg.mxu0
    %v2473 = vld [vmem:[%s1279] sm:$0xf]
    %v2474 = vunpack.c.l.bf16 %v2473
    %v2475 = vadd.f32 %v2474, %v2467
    %v2476 = vxor.u32 %v2475, 2147483648
    %v2477 = vmul.f32 %v2476, 1.442695
    %v2478 = vpow.pop %v2477
    %v2479 = vadd.f32 %v2478, 1.0
    %v2480 = vrcp.pop %v2479
    %v2481 = vmul.f32 1.0, %v2480
    %2483 = vrot.lane.b32.xlu0 %v2467, 64
    %v2484 = vpop.permute.xlu0 %2483
    %v2486 = vmul.f32 %v2481, %v2484
    %2488 = vrot.lane.b32.xlu0 %v2486, 64
    %v2489 = vpop.permute.xlu0 %2488
    %v2491 = vadd.f32 %v2474, %v2489
    %v2492 = vtanh.pop %v2491
    %v2493 = vsub.f32 %v2399, %v2492
    %2495 = vrot.lane.b32.xlu0 %v2493, 96
    %v2496 = vpop.permute.xlu0 %2495
    %v2498 = vmul.f32 %v2481, %v2496
    %2500 = vrot.lane.b32.xlu0 %v2498, 32
    %v2501 = vpop.permute.xlu0 %2500
    %v2503 = vadd.f32 %v2492, %v2501
    %v2504 = vld [vmem:[#allocation3] sm:$0xf]
    %v2505 = vunpack.c.l.bf16 %v2504
    %2507 = vrot.lane.b32.xlu0 %v2467, 32
    %v2508 = vpop.permute.xlu0 %2507
    %2509 = vrot.lane.b32.xlu0 %v2469, 32
    %v2510 = vpop.permute.xlu0 %2509
    %v2511 = vsel %vm215, %v2508, %v2510
    %v2513 = vadd.f32 %v2505, %v2511
    %v2514 = vxor.u32 %v2513, 2147483648
    %v2515 = vmul.f32 %v2514, 1.442695
    %v2516 = vpow.pop %v2515
    %v2517 = vadd.f32 %v2516, 1.0
    %v2518 = vrcp.pop %v2517
    %v2519 = vmul.f32 1.0, %v2518
    %2520 = vrot.lane.b32.xlu0 %v2469, 96
    %v2521 = vpop.permute.xlu0 %2520
    %v2523 = vmul.f32 %v2519, %v2521
    %2525 = vrot.lane.b32.xlu0 %v2523, 64
    %v2526 = vpop.permute.xlu0 %2525
    %v2528 = vadd.f32 %v2505, %v2526
    %v2529 = vtanh.pop %v2528
    %v2530 = vsub.f32 %v2400, %v2529
    %2532 = vrot.lane.b32.xlu0 %v2530, 96
    %v2533 = vpop.permute.xlu0 %2532
    %v2535 = vmul.f32 %v2519, %v2533
    %2537 = vrot.lane.b32.xlu0 %v2535, 32
    %v2538 = vpop.permute.xlu0 %2537
    %v2540 = vadd.f32 %v2529, %v2538
    %v2541 = vmul.f32 %v1409, %v2503
    %v2542 = vsub.f32 1.0, %v1391
    %2544 = vset.pattern.permute.xlu0 0
    %2545 = vperm.xlu0 %2544, %v2542
    %v2546 = vpop.permute.xlu0 %2545
    %v2548 = vmul.f32 %v2546, %v2399
    %v2549 = vadd.f32 %v2541, %v2548
    %v2550 = vmul.f32 %v1395, %v2540
    %v2551 = vpack.c.bf16 %v2549, %v2549
    %v2553 = vunpack.c.l.b16 %v2551
    %v2554 = vpack.c.b16 %v2553, %v2553
    %2555 = vrot.lane.b32.xlu0 %v2554, 64
    %v2556 = vpop.permute.xlu0 %2555
    %s2558 = scalar_lea.vmem [#allocation4], 28
    %2559 = vst.msk [vmem:[%s2558] sm:$0xf] %vm1419, %v2556
    %v2560 = vpack.c.bf16 %v2550, %v2550
    %v2562 = vunpack.c.l.b16 %v2560
    %v2563 = vpack.c.b16 %v2562, %v2562
    %2564 = vrot.lane.b32.xlu0 %v2563, 64
    %v2565 = vpop.permute.xlu0 %2564
    %2567 = vst.msk [vmem:[#allocation5] sm:$0xf] %vm1419, %v2565
    %v2568 = vld [vmem:[#allocation4] sm:$0xf]
    %v2569 = vld [vmem:[#allocation4 + $0x4] sm:$0xf]
    %v2570 = vld [vmem:[#allocation4 + $0x8] sm:$0xf]
    %v2571 = vld [vmem:[#allocation4 + $0xc] sm:$0xf]
    %v2572 = vld [vmem:[#allocation4 + $0x10] sm:$0xf]
    %v2573 = vld [vmem:[#allocation4 + $0x14] sm:$0xf]
    %v2574 = vld [vmem:[#allocation4 + $0x18] sm:$0xf]
    %v2575 = vld [vmem:[#allocation4 + $0x1c] sm:$0xf]
    %v2576 = vld [vmem:[#allocation5] sm:$0xf]
    %v2577 = vld [vmem:[#allocation5 + $0x4] sm:$0xf]
    %v2578 = vld [vmem:[#allocation5 + $0x8] sm:$0xf]
    %v2579 = vld [vmem:[#allocation5 + $0xc] sm:$0xf]
    %v2580 = vld [vmem:[#allocation5 + $0x10] sm:$0xf]
    %v2581 = vld [vmem:[#allocation5 + $0x14] sm:$0xf]
    %v2582 = vld [vmem:[#allocation5 + $0x18] sm:$0xf]
    %v2583 = vld [vmem:[#allocation5 + $0x1c] sm:$0xf]
    %v2584 = vld [vmem:[#allocation12] sm:$0xf]
    %v2585 = vld [vmem:[#allocation12 + $0x4] sm:$0xf]
    %v2586 = vld [vmem:[#allocation12 + $0x8] sm:$0xf]
    %v2587 = vld [vmem:[#allocation12 + $0xc] sm:$0xf]
    %v2588 = vld [vmem:[#allocation14] sm:$0xf]
    %v2589 = vld [vmem:[#allocation14 + $0x4] sm:$0xf]
    %v2590 = vld [vmem:[#allocation14 + $0x8] sm:$0xf]
    %v2591 = vld [vmem:[#allocation14 + $0xc] sm:$0xf]
    %v2600 = vunpack.c.l.b16 %v2576
    %v2601 = vunpack.c.l.b16 %v2577
    %v2602 = vunpack.c.l.b16 %v2578
    %v2603 = vunpack.c.l.b16 %v2579
    %v2604 = vunpack.c.l.b16 %v2580
    %v2605 = vunpack.c.l.b16 %v2581
    %v2606 = vunpack.c.l.b16 %v2582
    %v2607 = vunpack.c.l.b16 %v2583
    %v2608 = vpack.c.b16 %v2601, %v2600
    %v2609 = vpack.c.b16 %v2603, %v2602
    %v2610 = vpack.c.b16 %v2605, %v2604
    %v2611 = vpack.c.b16 %v2607, %v2606
    %v2616 = vunpack.c.l.b16 %v2588
    %v2617 = vunpack.c.l.b16 %v2589
    %v2618 = vunpack.c.l.b16 %v2590
    %v2619 = vunpack.c.l.b16 %v2591
    %v2620 = vpack.c.b16 %v2617, %v2616
    %v2621 = vpack.c.b16 %v2619, %v2618
    %v2625 = vsel %vm215, %v2608, 0
    %v2628 = vsel %vm215, %v2609, 0
    %v2631 = vsel %vm215, %v2610, 0
    %v2634 = vsel %vm215, %v2611, 0
    %2636 = vmatprep.subr.bf16.mxu0 0
    %2637 = vmatpush1.bf16.msra.mxu0 %v2620
    %2638 = vmatprep.subr.bf16.mxu0 0
    %2639 = vmatpush1.bf16.msra.mxu0 %v2621
    %2640 = vmatprep.subr.bf16.mxu0 0
    %2641 = vmatpush1.bf16.msra.mxu0 0
    %2642 = vmatprep.subr.bf16.mxu0 0
    %2643 = vmatpush1.bf16.msra.mxu0 0
    %2644 = vmatprep.subr.bf16.mxu0 0
    %2645 = vmatpush1.bf16.msra.mxu0 0
    %2646 = vmatprep.subr.bf16.mxu0 0
    %2647 = vmatpush1.bf16.msra.mxu0 0
    %2648 = vmatprep.subr.bf16.mxu0 0
    %2649 = vmatpush1.bf16.msra.mxu0 0
    %2650 = vmatprep.subr.bf16.mxu0 0
    %2651 = vmatpush1.bf16.msra.mxu0 0
    %2652 = vmatprep.subr.bf16.mxu0 0
    %2653 = vmatpush1.bf16.msra.mxu0 0
    %2654 = vmatprep.subr.bf16.mxu0 0
    %2655 = vmatpush1.bf16.msra.mxu0 0
    %2656 = vmatprep.subr.bf16.mxu0 0
    %2657 = vmatpush1.bf16.msra.mxu0 0
    %2658 = vmatprep.subr.bf16.mxu0 0
    %2659 = vmatpush1.bf16.msra.mxu0 0
    %2660 = vmatprep.subr.bf16.mxu0 0
    %2661 = vmatpush1.bf16.msra.mxu0 0
    %2662 = vmatprep.subr.bf16.mxu0 0
    %2663 = vmatpush1.bf16.msra.mxu0 0
    %2664 = vmatprep.subr.bf16.mxu0 0
    %2665 = vmatpush1.bf16.msra.mxu0 0
    %2666 = vmatprep.subr.bf16.mxu0 0
    %2667 = vmatpush1.bf16.msra.mxu0 0
    %2668 = vmatprep.mubr.bf16.mxu0 0
    %2669 = vmatmul.mubr.bf16.gmra.mrb[0].mxu0 %v2625
    %v2670 = vpop.f32.mrb[0].mxu0
    %v2671 = vadd.f32 0.0, %v2670
    %v2672 = vpop.f32.mrb[0].mxu0
    %v2673 = vpop.f32.mrb[0].mxu0
    %v2674 = vadd.f32 0.0, %v2673
    %v2675 = vpop.f32.mrb[0].mxu0
    %2676 = vmatprep.mubr.bf16.mxu0 0
    %2677 = vmatmul.mubr.bf16.gmra.mrb[0].mxu0 %v2628
    %v2678 = vpop.f32.mrb[0].mxu0
    %v2679 = vadd.f32 0.0, %v2678
    %v2680 = vpop.f32.mrb[0].mxu0
    %v2681 = vpop.f32.mrb[0].mxu0
    %v2682 = vadd.f32 0.0, %v2681
    %v2683 = vpop.f32.mrb[0].mxu0
    %2684 = vmatprep.mubr.bf16.mxu0 0
    %2685 = vmatmul.mubr.bf16.gmra.mrb[0].mxu0 %v2631
    %v2686 = vpop.f32.mrb[0].mxu0
    %v2687 = vadd.f32 0.0, %v2686
    %v2688 = vpop.f32.mrb[0].mxu0
    %v2689 = vpop.f32.mrb[0].mxu0
    %v2690 = vadd.f32 0.0, %v2689
    %v2691 = vpop.f32.mrb[0].mxu0
    %2692 = vmatprep.mubr.bf16.mxu0 0
    %2693 = vmatmul.mubr.bf16.gmra.mrb[0].mxu0 %v2634
    %v2694 = vpop.f32.mrb[0].mxu0
    %v2695 = vadd.f32 0.0, %v2694
    %v2696 = vpop.f32.mrb[0].mxu0
    %v2697 = vpop.f32.mrb[0].mxu0
    %v2698 = vadd.f32 0.0, %v2697
    %v2699 = vpop.f32.mrb[0].mxu0
    %2700 = vdwg.mxu0
    %v2709 = vunpack.c.l.b16 %v2568
    %v2710 = vunpack.c.l.b16 %v2569
    %v2711 = vunpack.c.l.b16 %v2570
    %v2712 = vunpack.c.l.b16 %v2571
    %v2713 = vunpack.c.l.b16 %v2572
    %v2714 = vunpack.c.l.b16 %v2573
    %v2715 = vunpack.c.l.b16 %v2574
    %v2716 = vunpack.c.l.b16 %v2575
    %v2717 = vpack.c.b16 %v2710, %v2709
    %v2718 = vpack.c.b16 %v2712, %v2711
    %v2719 = vpack.c.b16 %v2714, %v2713
    %v2720 = vpack.c.b16 %v2716, %v2715
    %v2725 = vunpack.c.l.b16 %v2584
    %v2726 = vunpack.c.l.b16 %v2585
    %v2727 = vunpack.c.l.b16 %v2586
    %v2728 = vunpack.c.l.b16 %v2587
    %v2729 = vpack.c.b16 %v2726, %v2725
    %v2730 = vpack.c.b16 %v2728, %v2727
    %v2734 = vsel %vm215, %v2717, 0
    %v2737 = vsel %vm215, %v2718, 0
    %v2740 = vsel %vm215, %v2719, 0
    %v2743 = vsel %vm215, %v2720, 0
    %2745 = vmatprep.subr.bf16.mxu0 0
    %2746 = vmatpush1.bf16.msra.mxu0 %v2729
    %2747 = vmatprep.subr.bf16.mxu0 0
    %2748 = vmatpush1.bf16.msra.mxu0 %v2730
    %2749 = vmatprep.subr.bf16.mxu0 0
    %2750 = vmatpush1.bf16.msra.mxu0 0
    %2751 = vmatprep.subr.bf16.mxu0 0
    %2752 = vmatpush1.bf16.msra.mxu0 0
    %2753 = vmatprep.subr.bf16.mxu0 0
    %2754 = vmatpush1.bf16.msra.mxu0 0
    %2755 = vmatprep.subr.bf16.mxu0 0
    %2756 = vmatpush1.bf16.msra.mxu0 0
    %2757 = vmatprep.subr.bf16.mxu0 0
    %2758 = vmatpush1.bf16.msra.mxu0 0
    %2759 = vmatprep.subr.bf16.mxu0 0
    %2760 = vmatpush1.bf16.msra.mxu0 0
    %2761 = vmatprep.subr.bf16.mxu0 0
    %2762 = vmatpush1.bf16.msra.mxu0 0
    %2763 = vmatprep.subr.bf16.mxu0 0
    %2764 = vmatpush1.bf16.msra.mxu0 0
    %2765 = vmatprep.subr.bf16.mxu0 0
    %2766 = vmatpush1.bf16.msra.mxu0 0
    %2767 = vmatprep.subr.bf16.mxu0 0
    %2768 = vmatpush1.bf16.msra.mxu0 0
    %2769 = vmatprep.subr.bf16.mxu0 0
    %2770 = vmatpush1.bf16.msra.mxu0 0
    %2771 = vmatprep.subr.bf16.mxu0 0
    %2772 = vmatpush1.bf16.msra.mxu0 0
    %2773 = vmatprep.subr.bf16.mxu0 0
    %2774 = vmatpush1.bf16.msra.mxu0 0
    %2775 = vmatprep.subr.bf16.mxu0 0
    %2776 = vmatpush1.bf16.msra.mxu0 0
    %2777 = vmatprep.mubr.bf16.mxu0 0
    %2778 = vmatmul.mubr.bf16.gmra.mrb[0].mxu0 %v2734
    %v2779 = vpop.f32.mrb[0].mxu0
    %v2780 = vadd.f32 %v2671, %v2779
    %v2781 = vpop.f32.mrb[0].mxu0
    %v2782 = vpop.f32.mrb[0].mxu0
    %v2783 = vadd.f32 %v2674, %v2782
    %v2784 = vpop.f32.mrb[0].mxu0
    %2785 = vmatprep.mubr.bf16.mxu0 0
    %2786 = vmatmul.mubr.bf16.gmra.mrb[0].mxu0 %v2737
    %v2787 = vpop.f32.mrb[0].mxu0
    %v2788 = vadd.f32 %v2679, %v2787
    %v2789 = vpop.f32.mrb[0].mxu0
    %v2790 = vpop.f32.mrb[0].mxu0
    %v2791 = vadd.f32 %v2682, %v2790
    %v2792 = vpop.f32.mrb[0].mxu0
    %2793 = vmatprep.mubr.bf16.mxu0 0
    %2794 = vmatmul.mubr.bf16.gmra.mrb[0].mxu0 %v2740
    %v2795 = vpop.f32.mrb[0].mxu0
    %v2796 = vadd.f32 %v2687, %v2795
    %v2797 = vpop.f32.mrb[0].mxu0
    %v2798 = vpop.f32.mrb[0].mxu0
    %v2799 = vadd.f32 %v2690, %v2798
    %v2800 = vpop.f32.mrb[0].mxu0
    %2801 = vmatprep.mubr.bf16.mxu0 0
    %2802 = vmatmul.mubr.bf16.gmra.mrb[0].mxu0 %v2743
    %v2803 = vpop.f32.mrb[0].mxu0
    %v2804 = vadd.f32 %v2695, %v2803
    %v2805 = vpop.f32.mrb[0].mxu0
    %v2806 = vpop.f32.mrb[0].mxu0
    %v2807 = vadd.f32 %v2698, %v2806
    %v2808 = vpop.f32.mrb[0].mxu0
    %2809 = vdwg.mxu0
    %v2810 = vpack.c.bf16 %v2783, %v2780
    %v2811 = vpack.c.bf16 %v2791, %v2788
    %v2812 = vpack.c.bf16 %v2799, %v2796
    %v2813 = vpack.c.bf16 %v2807, %v2804
    %v2818 = vunpack.c.l.b16 %v2810
    %v2819 = vunpack.c.h.b16 %v2810
    %v2820 = vunpack.c.l.b16 %v2811
    %v2821 = vunpack.c.h.b16 %v2811
    %v2822 = vunpack.c.l.b16 %v2812
    %v2823 = vunpack.c.h.b16 %v2812
    %v2824 = vunpack.c.l.b16 %v2813
    %v2825 = vunpack.c.h.b16 %v2813
    %v2826 = vpack.c.b16 %v2818, %v2818
    %v2827 = vpack.c.b16 %v2819, %v2819
    %v2828 = vpack.c.b16 %v2820, %v2820
    %v2829 = vpack.c.b16 %v2821, %v2821
    %v2830 = vpack.c.b16 %v2822, %v2822
    %v2831 = vpack.c.b16 %v2823, %v2823
    %v2832 = vpack.c.b16 %v2824, %v2824
    %v2833 = vpack.c.b16 %v2825, %v2825
    %2842 = vst.msk [vmem:[#allocation2] sm:$0xf] %vm260, %v2826
    %2843 = vst.msk [vmem:[#allocation2 + $0x4] sm:$0xf] %vm260, %v2827
    %2844 = vst.msk [vmem:[#allocation2 + $0x8] sm:$0xf] %vm260, %v2828
    %2845 = vst.msk [vmem:[#allocation2 + $0xc] sm:$0xf] %vm260, %v2829
    %2846 = vst.msk [vmem:[#allocation2 + $0x10] sm:$0xf] %vm260, %v2830
    %2847 = vst.msk [vmem:[#allocation2 + $0x14] sm:$0xf] %vm260, %v2831
    %2848 = vst.msk [vmem:[#allocation2 + $0x18] sm:$0xf] %vm260, %v2832
    %2849 = vst.msk [vmem:[#allocation2 + $0x1c] sm:$0xf] %vm260, %v2833
    %v2850 = vld [vmem:[%s7] sm:$0xf]
    %v2851 = vld [vmem:[%s7 + $0x4] sm:$0xf]
    %v2852 = vld [vmem:[%s7 + $0x8] sm:$0xf]
    %v2853 = vld [vmem:[%s7 + $0xc] sm:$0xf]
    %v2854 = vld [vmem:[#allocation15] sm:$0xf]
    %v2855 = vld [vmem:[#allocation15 + $0x4] sm:$0xf]
    %v2856 = vld [vmem:[#allocation15 + $0x8] sm:$0xf]
    %v2857 = vld [vmem:[#allocation15 + $0xc] sm:$0xf]
    %v2862 = vunpack.c.l.b16 %v2854
    %v2863 = vunpack.c.l.b16 %v2855
    %v2864 = vunpack.c.l.b16 %v2856
    %v2865 = vunpack.c.l.b16 %v2857
    %v2866 = vpack.c.b16 %v2863, %v2862
    %v2867 = vpack.c.b16 %v2865, %v2864
    %2870 = vmatprep.subr.bf16.mxu0 0
    %2871 = vmatpush1.bf16.msra.mxu0 %v2866
    %2872 = vmatprep.subr.bf16.mxu0 0
    %2873 = vmatpush1.bf16.msra.mxu0 %v2867
    %2874 = vmatprep.subr.bf16.mxu0 0
    %2875 = vmatpush1.bf16.msra.mxu0 0
    %2876 = vmatprep.subr.bf16.mxu0 0
    %2877 = vmatpush1.bf16.msra.mxu0 0
    %2878 = vmatprep.subr.bf16.mxu0 0
    %2879 = vmatpush1.bf16.msra.mxu0 0
    %2880 = vmatprep.subr.bf16.mxu0 0
    %2881 = vmatpush1.bf16.msra.mxu0 0
    %2882 = vmatprep.subr.bf16.mxu0 0
    %2883 = vmatpush1.bf16.msra.mxu0 0
    %2884 = vmatprep.subr.bf16.mxu0 0
    %2885 = vmatpush1.bf16.msra.mxu0 0
    %2886 = vmatprep.subr.bf16.mxu0 0
    %2887 = vmatpush1.bf16.msra.mxu0 0
    %2888 = vmatprep.subr.bf16.mxu0 0
    %2889 = vmatpush1.bf16.msra.mxu0 0
    %2890 = vmatprep.subr.bf16.mxu0 0
    %2891 = vmatpush1.bf16.msra.mxu0 0
    %2892 = vmatprep.subr.bf16.mxu0 0
    %2893 = vmatpush1.bf16.msra.mxu0 0
    %2894 = vmatprep.subr.bf16.mxu0 0
    %2895 = vmatpush1.bf16.msra.mxu0 0
    %2896 = vmatprep.subr.bf16.mxu0 0
    %2897 = vmatpush1.bf16.msra.mxu0 0
    %2898 = vmatprep.subr.bf16.mxu0 0
    %2899 = vmatpush1.bf16.msra.mxu0 0
    %2900 = vmatprep.subr.bf16.mxu0 0
    %2901 = vmatpush1.bf16.msra.mxu0 0
    %2902 = vmatprep.mubr.bf16.mxu0 0
    %2903 = vmatmul.mubr.bf16.gmra.mrb[0].mxu0 %v2625
    %v2904 = vpop.f32.mrb[0].mxu0
    %v2905 = vadd.f32 0.0, %v2904
    %v2906 = vpop.f32.mrb[0].mxu0
    %v2907 = vpop.f32.mrb[0].mxu0
    %v2908 = vadd.f32 0.0, %v2907
    %v2909 = vpop.f32.mrb[0].mxu0
    %2910 = vmatprep.mubr.bf16.mxu0 0
    %2911 = vmatmul.mubr.bf16.gmra.mrb[0].mxu0 %v2628
    %v2912 = vpop.f32.mrb[0].mxu0
    %v2913 = vadd.f32 0.0, %v2912
    %v2914 = vpop.f32.mrb[0].mxu0
    %v2915 = vpop.f32.mrb[0].mxu0
    %v2916 = vadd.f32 0.0, %v2915
    %v2917 = vpop.f32.mrb[0].mxu0
    %2918 = vmatprep.mubr.bf16.mxu0 0
    %2919 = vmatmul.mubr.bf16.gmra.mrb[0].mxu0 %v2631
    %v2920 = vpop.f32.mrb[0].mxu0
    %v2921 = vadd.f32 0.0, %v2920
    %v2922 = vpop.f32.mrb[0].mxu0
    %v2923 = vpop.f32.mrb[0].mxu0
    %v2924 = vadd.f32 0.0, %v2923
    %v2925 = vpop.f32.mrb[0].mxu0
    %2926 = vmatprep.mubr.bf16.mxu0 0
    %2927 = vmatmul.mubr.bf16.gmra.mrb[0].mxu0 %v2634
    %v2928 = vpop.f32.mrb[0].mxu0
    %v2929 = vadd.f32 0.0, %v2928
    %v2930 = vpop.f32.mrb[0].mxu0
    %v2931 = vpop.f32.mrb[0].mxu0
    %v2932 = vadd.f32 0.0, %v2931
    %v2933 = vpop.f32.mrb[0].mxu0
    %2934 = vdwg.mxu0
    %v2939 = vunpack.c.l.b16 %v2850
    %v2940 = vunpack.c.l.b16 %v2851
    %v2941 = vunpack.c.l.b16 %v2852
    %v2942 = vunpack.c.l.b16 %v2853
    %v2943 = vpack.c.b16 %v2940, %v2939
    %v2944 = vpack.c.b16 %v2942, %v2941
    %2947 = vmatprep.subr.bf16.mxu0 0
    %2948 = vmatpush1.bf16.msra.mxu0 %v2943
    %2949 = vmatprep.subr.bf16.mxu0 0
    %2950 = vmatpush1.bf16.msra.mxu0 %v2944
    %2951 = vmatprep.subr.bf16.mxu0 0
    %2952 = vmatpush1.bf16.msra.mxu0 0
    %2953 = vmatprep.subr.bf16.mxu0 0
    %2954 = vmatpush1.bf16.msra.mxu0 0
    %2955 = vmatprep.subr.bf16.mxu0 0
    %2956 = vmatpush1.bf16.msra.mxu0 0
    %2957 = vmatprep.subr.bf16.mxu0 0
    %2958 = vmatpush1.bf16.msra.mxu0 0
    %2959 = vmatprep.subr.bf16.mxu0 0
    %2960 = vmatpush1.bf16.msra.mxu0 0
    %2961 = vmatprep.subr.bf16.mxu0 0
    %2962 = vmatpush1.bf16.msra.mxu0 0
    %2963 = vmatprep.subr.bf16.mxu0 0
    %2964 = vmatpush1.bf16.msra.mxu0 0
    %2965 = vmatprep.subr.bf16.mxu0 0
    %2966 = vmatpush1.bf16.msra.mxu0 0
    %2967 = vmatprep.subr.bf16.mxu0 0
    %2968 = vmatpush1.bf16.msra.mxu0 0
    %2969 = vmatprep.subr.bf16.mxu0 0
    %2970 = vmatpush1.bf16.msra.mxu0 0
    %2971 = vmatprep.subr.bf16.mxu0 0
    %2972 = vmatpush1.bf16.msra.mxu0 0
    %2973 = vmatprep.subr.bf16.mxu0 0
    %2974 = vmatpush1.bf16.msra.mxu0 0
    %2975 = vmatprep.subr.bf16.mxu0 0
    %2976 = vmatpush1.bf16.msra.mxu0 0
    %2977 = vmatprep.subr.bf16.mxu0 0
    %2978 = vmatpush1.bf16.msra.mxu0 0
    %2979 = vmatprep.mubr.bf16.mxu0 0
    %2980 = vmatmul.mubr.bf16.gmra.mrb[0].mxu0 %v2734
    %v2981 = vpop.f32.mrb[0].mxu0
    %v2982 = vadd.f32 %v2905, %v2981
    %v2983 = vpop.f32.mrb[0].mxu0
    %v2984 = vpop.f32.mrb[0].mxu0
    %v2985 = vadd.f32 %v2908, %v2984
    %v2986 = vpop.f32.mrb[0].mxu0
    %2987 = vmatprep.mubr.bf16.mxu0 0
    %2988 = vmatmul.mubr.bf16.gmra.mrb[0].mxu0 %v2737
    %v2989 = vpop.f32.mrb[0].mxu0
    %v2990 = vadd.f32 %v2913, %v2989
    %v2991 = vpop.f32.mrb[0].mxu0
    %v2992 = vpop.f32.mrb[0].mxu0
    %v2993 = vadd.f32 %v2916, %v2992
    %v2994 = vpop.f32.mrb[0].mxu0
    %2995 = vmatprep.mubr.bf16.mxu0 0
    %2996 = vmatmul.mubr.bf16.gmra.mrb[0].mxu0 %v2740
    %v2997 = vpop.f32.mrb[0].mxu0
    %v2998 = vadd.f32 %v2921, %v2997
    %v2999 = vpop.f32.mrb[0].mxu0
    %v3000 = vpop.f32.mrb[0].mxu0
    %v3001 = vadd.f32 %v2924, %v3000
    %v3002 = vpop.f32.mrb[0].mxu0
    %3003 = vmatprep.mubr.bf16.mxu0 0
    %3004 = vmatmul.mubr.bf16.gmra.mrb[0].mxu0 %v2743
    %v3005 = vpop.f32.mrb[0].mxu0
    %v3006 = vadd.f32 %v2929, %v3005
    %v3007 = vpop.f32.mrb[0].mxu0
    %v3008 = vpop.f32.mrb[0].mxu0
    %v3009 = vadd.f32 %v2932, %v3008
    %v3010 = vpop.f32.mrb[0].mxu0
    %3011 = vdwg.mxu0
    %v3012 = vpack.c.bf16 %v2985, %v2982
    %v3013 = vpack.c.bf16 %v2993, %v2990
    %v3014 = vpack.c.bf16 %v3001, %v2998
    %v3015 = vpack.c.bf16 %v3009, %v3006
    %v3020 = vunpack.c.l.b16 %v3012
    %v3021 = vunpack.c.h.b16 %v3012
    %v3022 = vunpack.c.l.b16 %v3013
    %v3023 = vunpack.c.h.b16 %v3013
    %v3024 = vunpack.c.l.b16 %v3014
    %v3025 = vunpack.c.h.b16 %v3014
    %v3026 = vunpack.c.l.b16 %v3015
    %v3027 = vunpack.c.h.b16 %v3015
    %v3028 = vpack.c.b16 %v3020, %v3020
    %v3029 = vpack.c.b16 %v3021, %v3021
    %v3030 = vpack.c.b16 %v3022, %v3022
    %v3031 = vpack.c.b16 %v3023, %v3023
    %v3032 = vpack.c.b16 %v3024, %v3024
    %v3033 = vpack.c.b16 %v3025, %v3025
    %v3034 = vpack.c.b16 %v3026, %v3026
    %v3035 = vpack.c.b16 %v3027, %v3027
    %3044 = vst.msk [vmem:[#allocation3] sm:$0xf] %vm260, %v3028
    %3045 = vst.msk [vmem:[#allocation3 + $0x4] sm:$0xf] %vm260, %v3029
    %3046 = vst.msk [vmem:[#allocation3 + $0x8] sm:$0xf] %vm260, %v3030
    %3047 = vst.msk [vmem:[#allocation3 + $0xc] sm:$0xf] %vm260, %v3031
    %3048 = vst.msk [vmem:[#allocation3 + $0x10] sm:$0xf] %vm260, %v3032
    %3049 = vst.msk [vmem:[#allocation3 + $0x14] sm:$0xf] %vm260, %v3033
    %3050 = vst.msk [vmem:[#allocation3 + $0x18] sm:$0xf] %vm260, %v3034
    %3051 = vst.msk [vmem:[#allocation3 + $0x1c] sm:$0xf] %vm260, %v3035
    %v3052 = vld [vmem:[#allocation17] sm:$0xff]
    %v3053 = vld [vmem:[#allocation17 + $0x8] sm:$0xff]
    %v3054 = vld [vmem:[#allocation17 + $0x10] sm:$0xff]
    %v3055 = vld [vmem:[#allocation17 + $0x18] sm:$0xff]
    %v3056 = vld [vmem:[#allocation17 + $0x20] sm:$0xff]
    %v3057 = vld [vmem:[#allocation17 + $0x28] sm:$0xff]
    %v3058 = vld [vmem:[#allocation17 + $0x30] sm:$0xff]
    %v3059 = vld [vmem:[#allocation17 + $0x38] sm:$0xff]
    %v3060 = vld [vmem:[#allocation2] sm:$0xf]
    %v3061 = vunpack.c.l.bf16 %v3060
    %v3062 = vadd.f32 %v3061, 0.0
    %v3063 = vxor.u32 %v3062, 2147483648
    %v3064 = vmul.f32 %v3063, 1.442695
    %v3065 = vpow.pop %v3064
    %v3066 = vadd.f32 %v3065, 1.0
    %v3067 = vrcp.pop %v3066
    %v3068 = vmul.f32 1.0, %v3067
    %v3069 = vmul.f32 %v3068, 0.0
    %3071 = vrot.lane.b32.xlu0 %v3069, 64
    %v3072 = vpop.permute.xlu0 %3071
    %v3074 = vadd.f32 %v3061, %v3072
    %v3075 = vtanh.pop %v3074
    %v3076 = vsub.f32 0.0, %v3075
    %3078 = vrot.lane.b32.xlu0 %v3076, 96
    %v3079 = vpop.permute.xlu0 %3078
    %v3081 = vmul.f32 %v3068, %v3079
    %3083 = vrot.lane.b32.xlu0 %v3081, 32
    %v3084 = vpop.permute.xlu0 %3083
    %v3086 = vadd.f32 %v3075, %v3084
    %v3087 = vld [vmem:[%s1322] sm:$0xf]
    %v3088 = vunpack.c.l.bf16 %v3087
    %v3089 = vadd.f32 %v3088, 0.0
    %v3090 = vxor.u32 %v3089, 2147483648
    %v3091 = vmul.f32 %v3090, 1.442695
    %v3092 = vpow.pop %v3091
    %v3093 = vadd.f32 %v3092, 1.0
    %v3094 = vrcp.pop %v3093
    %v3095 = vmul.f32 1.0, %v3094
    %v3096 = vmul.f32 %v3095, 0.0
    %3098 = vrot.lane.b32.xlu0 %v3096, 64
    %v3099 = vpop.permute.xlu0 %3098
    %v3101 = vadd.f32 %v3088, %v3099
    %v3102 = vtanh.pop %v3101
    %v3103 = vsub.f32 0.0, %v3102
    %3105 = vrot.lane.b32.xlu0 %v3103, 96
    %v3106 = vpop.permute.xlu0 %3105
    %v3108 = vmul.f32 %v3095, %v3106
    %3110 = vrot.lane.b32.xlu0 %v3108, 32
    %v3111 = vpop.permute.xlu0 %3110
    %v3113 = vadd.f32 %v3102, %v3111
    %v3114 = vmul.f32 %v1395, %v3086
    %v3115 = vadd.f32 %v3114, %v1404
    %v3116 = vmul.f32 %v1409, %v3113
    %vm3117 = vcmp.eq.s32.totalorder %v132, 8
    %v3118 = vsel %vm3117, 1, 0
    %v3119 = vcvt.s32.f32 %v3118
    %3121 = vset.pattern.permute.xlu0 0
    %3122 = vperm.xlu0 %3121, %v3119
    %v3123 = vpop.permute.xlu0 %3122
    %v3125 = vmul.f32 %v3123, %v3116
    %v3126 = vadd.f32 %v3125, 0.0
    %3128 = vrot.lane.b32.xlu0 %v3115, 64
    %v3129 = vpop.permute.xlu0 %3128
    %3132 = vrot.lane.b32.xlu0 %v3116, 96
    %v3133 = vpop.permute.xlu0 %3132
    %v3135 = vsel %vm215, %v3129, %v3133
    %v3136 = vpack.c.bf16 %v3135, %v3135
    %v3145 = vunpack.c.l.b16 %v3052
    %v3146 = vunpack.c.h.b16 %v3052
    %v3147 = vunpack.c.l.b16 %v3053
    %v3148 = vunpack.c.h.b16 %v3053
    %v3149 = vunpack.c.l.b16 %v3054
    %v3150 = vunpack.c.h.b16 %v3054
    %v3151 = vunpack.c.l.b16 %v3055
    %v3152 = vunpack.c.h.b16 %v3055
    %v3153 = vunpack.c.l.b16 %v3056
    %v3154 = vunpack.c.h.b16 %v3056
    %v3155 = vunpack.c.l.b16 %v3057
    %v3156 = vunpack.c.h.b16 %v3057
    %v3157 = vunpack.c.l.b16 %v3058
    %v3158 = vunpack.c.h.b16 %v3058
    %v3159 = vunpack.c.l.b16 %v3059
    %v3160 = vunpack.c.h.b16 %v3059
    %v3161 = vpack.c.b16 %v3147, %v3145
    %v3162 = vpack.c.b16 %v3148, %v3146
    %v3163 = vpack.c.b16 %v3151, %v3149
    %v3164 = vpack.c.b16 %v3152, %v3150
    %v3165 = vpack.c.b16 %v3155, %v3153
    %v3166 = vpack.c.b16 %v3156, %v3154
    %v3167 = vpack.c.b16 %v3159, %v3157
    %v3168 = vpack.c.b16 %v3160, %v3158
    %v3178 = vsel %vm1480, %v3136, 0
    %3180 = vmatprep.subr.bf16.mxu0 %v3162
    %3181 = vmatpush1.bf16.msra.mxu0 %v3161
    %3182 = vmatprep.subr.bf16.mxu0 %v3164
    %3183 = vmatpush1.bf16.msra.mxu0 %v3163
    %3184 = vmatprep.subr.bf16.mxu0 %v3166
    %3185 = vmatpush1.bf16.msra.mxu0 %v3165
    %3186 = vmatprep.subr.bf16.mxu0 %v3168
    %3187 = vmatpush1.bf16.msra.mxu0 %v3167
    %3188 = vmatprep.subr.bf16.mxu0 0
    %3189 = vmatpush1.bf16.msra.mxu0 0
    %3190 = vmatprep.subr.bf16.mxu0 0
    %3191 = vmatpush1.bf16.msra.mxu0 0
    %3192 = vmatprep.subr.bf16.mxu0 0
    %3193 = vmatpush1.bf16.msra.mxu0 0
    %3194 = vmatprep.subr.bf16.mxu0 0
    %3195 = vmatpush1.bf16.msra.mxu0 0
    %3196 = vmatprep.subr.bf16.mxu0 0
    %3197 = vmatpush1.bf16.msra.mxu0 0
    %3198 = vmatprep.subr.bf16.mxu0 0
    %3199 = vmatpush1.bf16.msra.mxu0 0
    %3200 = vmatprep.subr.bf16.mxu0 0
    %3201 = vmatpush1.bf16.msra.mxu0 0
    %3202 = vmatprep.subr.bf16.mxu0 0
    %3203 = vmatpush1.bf16.msra.mxu0 0
    %3204 = vmatprep.subr.bf16.mxu0 0
    %3205 = vmatpush1.bf16.msra.mxu0 0
    %3206 = vmatprep.subr.bf16.mxu0 0
    %3207 = vmatpush1.bf16.msra.mxu0 0
    %3208 = vmatprep.subr.bf16.mxu0 0
    %3209 = vmatpush1.bf16.msra.mxu0 0
    %3210 = vmatprep.subr.bf16.mxu0 0
    %3211 = vmatpush1.bf16.msra.mxu0 0
    %3212 = vmatprep.mubr.bf16.mxu0 0
    %3213 = vmatmul.mubr.bf16.gmra.mrb[0].mxu0 %v3178
    %v3214 = vpop.f32.mrb[0].mxu0
    %v3215 = vadd.f32 0.0, %v3214
    %v3216 = vpop.f32.mrb[0].mxu0
    %v3217 = vadd.f32 0.0, %v3216
    %v3218 = vpop.f32.mrb[0].mxu0
    %v3219 = vpop.f32.mrb[0].mxu0
    %3220 = vdwg.mxu0
    %v3221 = vld [vmem:[%s415] sm:$0xf]
    %v3222 = vunpack.c.l.bf16 %v3221
    %v3223 = vadd.f32 %v3222, %v3215
    %v3224 = vxor.u32 %v3223, 2147483648
    %v3225 = vmul.f32 %v3224, 1.442695
    %v3226 = vpow.pop %v3225
    %v3227 = vadd.f32 %v3226, 1.0
    %v3228 = vrcp.pop %v3227
    %v3229 = vmul.f32 1.0, %v3228
    %3231 = vrot.lane.b32.xlu0 %v3215, 64
    %v3232 = vpop.permute.xlu0 %3231
    %v3234 = vmul.f32 %v3229, %v3232
    %3236 = vrot.lane.b32.xlu0 %v3234, 64
    %v3237 = vpop.permute.xlu0 %3236
    %v3239 = vadd.f32 %v3222, %v3237
    %v3240 = vtanh.pop %v3239
    %v3241 = vsub.f32 %v3115, %v3240
    %3243 = vrot.lane.b32.xlu0 %v3241, 96
    %v3244 = vpop.permute.xlu0 %3243
    %v3246 = vmul.f32 %v3229, %v3244
    %3248 = vrot.lane.b32.xlu0 %v3246, 32
    %v3249 = vpop.permute.xlu0 %3248
    %v3251 = vadd.f32 %v3240, %v3249
    %v3252 = vld [vmem:[%s1178] sm:$0xf]
    %v3253 = vunpack.c.l.bf16 %v3252
    %3255 = vrot.lane.b32.xlu0 %v3215, 32
    %v3256 = vpop.permute.xlu0 %3255
    %3257 = vrot.lane.b32.xlu0 %v3217, 32
    %v3258 = vpop.permute.xlu0 %3257
    %v3259 = vsel %vm215, %v3256, %v3258
    %v3261 = vadd.f32 %v3253, %v3259
    %v3262 = vxor.u32 %v3261, 2147483648
    %v3263 = vmul.f32 %v3262, 1.442695
    %v3264 = vpow.pop %v3263
    %v3265 = vadd.f32 %v3264, 1.0
    %v3266 = vrcp.pop %v3265
    %v3267 = vmul.f32 1.0, %v3266
    %3268 = vrot.lane.b32.xlu0 %v3217, 96
    %v3269 = vpop.permute.xlu0 %3268
    %v3271 = vmul.f32 %v3267, %v3269
    %3273 = vrot.lane.b32.xlu0 %v3271, 64
    %v3274 = vpop.permute.xlu0 %3273
    %v3276 = vadd.f32 %v3253, %v3274
    %v3277 = vtanh.pop %v3276
    %v3278 = vsub.f32 %v3116, %v3277
    %3280 = vrot.lane.b32.xlu0 %v3278, 96
    %v3281 = vpop.permute.xlu0 %3280
    %v3283 = vmul.f32 %v3267, %v3281
    %3285 = vrot.lane.b32.xlu0 %v3283, 32
    %v3286 = vpop.permute.xlu0 %3285
    %v3288 = vadd.f32 %v3277, %v3286
    %v3289 = vmul.f32 %v1602, %v3251
    %v3290 = vmul.f32 %v1609, %v3115
    %v3291 = vadd.f32 %v3289, %v3290
    %v3292 = vmul.f32 %v1616, %v3288
    %vm3293 = vcmp.eq.s32.totalorder %v132, 7
    %v3294 = vsel %vm3293, 1, 0
    %v3295 = vcvt.s32.f32 %v3294
    %3297 = vset.pattern.permute.xlu0 0
    %3298 = vperm.xlu0 %3297, %v3295
    %v3299 = vpop.permute.xlu0 %3298
    %v3301 = vmul.f32 %v3299, %v3292
    %v3302 = vadd.f32 %v3126, %v3301
    %3304 = vrot.lane.b32.xlu0 %v3291, 64
    %v3305 = vpop.permute.xlu0 %3304
    %3308 = vrot.lane.b32.xlu0 %v3292, 96
    %v3309 = vpop.permute.xlu0 %3308
    %v3311 = vsel %vm215, %v3305, %v3309
    %v3312 = vpack.c.bf16 %v3311, %v3311
    %v3314 = vsel %vm1480, %v3312, 0
    %3316 = vmatprep.subr.bf16.mxu0 %v3162
    %3317 = vmatpush1.bf16.msra.mxu0 %v3161
    %3318 = vmatprep.subr.bf16.mxu0 %v3164
    %3319 = vmatpush1.bf16.msra.mxu0 %v3163
    %3320 = vmatprep.subr.bf16.mxu0 %v3166
    %3321 = vmatpush1.bf16.msra.mxu0 %v3165
    %3322 = vmatprep.subr.bf16.mxu0 %v3168
    %3323 = vmatpush1.bf16.msra.mxu0 %v3167
    %3324 = vmatprep.subr.bf16.mxu0 0
    %3325 = vmatpush1.bf16.msra.mxu0 0
    %3326 = vmatprep.subr.bf16.mxu0 0
    %3327 = vmatpush1.bf16.msra.mxu0 0
    %3328 = vmatprep.subr.bf16.mxu0 0
    %3329 = vmatpush1.bf16.msra.mxu0 0
    %3330 = vmatprep.subr.bf16.mxu0 0
    %3331 = vmatpush1.bf16.msra.mxu0 0
    %3332 = vmatprep.subr.bf16.mxu0 0
    %3333 = vmatpush1.bf16.msra.mxu0 0
    %3334 = vmatprep.subr.bf16.mxu0 0
    %3335 = vmatpush1.bf16.msra.mxu0 0
    %3336 = vmatprep.subr.bf16.mxu0 0
    %3337 = vmatpush1.bf16.msra.mxu0 0
    %3338 = vmatprep.subr.bf16.mxu0 0
    %3339 = vmatpush1.bf16.msra.mxu0 0
    %3340 = vmatprep.subr.bf16.mxu0 0
    %3341 = vmatpush1.bf16.msra.mxu0 0
    %3342 = vmatprep.subr.bf16.mxu0 0
    %3343 = vmatpush1.bf16.msra.mxu0 0
    %3344 = vmatprep.subr.bf16.mxu0 0
    %3345 = vmatpush1.bf16.msra.mxu0 0
    %3346 = vmatprep.subr.bf16.mxu0 0
    %3347 = vmatpush1.bf16.msra.mxu0 0
    %3348 = vmatprep.mubr.bf16.mxu0 0
    %3349 = vmatmul.mubr.bf16.gmra.mrb[0].mxu0 %v3314
    %v3350 = vpop.f32.mrb[0].mxu0
    %v3351 = vadd.f32 0.0, %v3350
    %v3352 = vpop.f32.mrb[0].mxu0
    %v3353 = vadd.f32 0.0, %v3352
    %v3354 = vpop.f32.mrb[0].mxu0
    %v3355 = vpop.f32.mrb[0].mxu0
    %3356 = vdwg.mxu0
    %v3357 = vld [vmem:[%s559] sm:$0xf]
    %v3358 = vunpack.c.l.bf16 %v3357
    %v3359 = vadd.f32 %v3358, %v3351
    %v3360 = vxor.u32 %v3359, 2147483648
    %v3361 = vmul.f32 %v3360, 1.442695
    %v3362 = vpow.pop %v3361
    %v3363 = vadd.f32 %v3362, 1.0
    %v3364 = vrcp.pop %v3363
    %v3365 = vmul.f32 1.0, %v3364
    %3367 = vrot.lane.b32.xlu0 %v3351, 64
    %v3368 = vpop.permute.xlu0 %3367
    %v3370 = vmul.f32 %v3365, %v3368
    %3372 = vrot.lane.b32.xlu0 %v3370, 64
    %v3373 = vpop.permute.xlu0 %3372
    %v3375 = vadd.f32 %v3358, %v3373
    %v3376 = vtanh.pop %v3375
    %v3377 = vsub.f32 %v3291, %v3376
    %3379 = vrot.lane.b32.xlu0 %v3377, 96
    %v3380 = vpop.permute.xlu0 %3379
    %v3382 = vmul.f32 %v3365, %v3380
    %3384 = vrot.lane.b32.xlu0 %v3382, 32
    %v3385 = vpop.permute.xlu0 %3384
    %v3387 = vadd.f32 %v3376, %v3385
    %v3388 = vld [vmem:[%s1034] sm:$0xf]
    %v3389 = vunpack.c.l.bf16 %v3388
    %3391 = vrot.lane.b32.xlu0 %v3351, 32
    %v3392 = vpop.permute.xlu0 %3391
    %3393 = vrot.lane.b32.xlu0 %v3353, 32
    %v3394 = vpop.permute.xlu0 %3393
    %v3395 = vsel %vm215, %v3392, %v3394
    %v3397 = vadd.f32 %v3389, %v3395
    %v3398 = vxor.u32 %v3397, 2147483648
    %v3399 = vmul.f32 %v3398, 1.442695
    %v3400 = vpow.pop %v3399
    %v3401 = vadd.f32 %v3400, 1.0
    %v3402 = vrcp.pop %v3401
    %v3403 = vmul.f32 1.0, %v3402
    %3404 = vrot.lane.b32.xlu0 %v3353, 96
    %v3405 = vpop.permute.xlu0 %3404
    %v3407 = vmul.f32 %v3403, %v3405
    %3409 = vrot.lane.b32.xlu0 %v3407, 64
    %v3410 = vpop.permute.xlu0 %3409
    %v3412 = vadd.f32 %v3389, %v3410
    %v3413 = vtanh.pop %v3412
    %v3414 = vsub.f32 %v3292, %v3413
    %3416 = vrot.lane.b32.xlu0 %v3414, 96
    %v3417 = vpop.permute.xlu0 %3416
    %v3419 = vmul.f32 %v3403, %v3417
    %3421 = vrot.lane.b32.xlu0 %v3419, 32
    %v3422 = vpop.permute.xlu0 %3421
    %v3424 = vadd.f32 %v3413, %v3422
    %v3425 = vmul.f32 %v1768, %v3387
    %v3426 = vmul.f32 %v1775, %v3291
    %v3427 = vadd.f32 %v3425, %v3426
    %v3428 = vmul.f32 %v1782, %v3424
    %vm3429 = vcmp.eq.s32.totalorder %v132, 6
    %v3430 = vsel %vm3429, 1, 0
    %v3431 = vcvt.s32.f32 %v3430
    %3433 = vset.pattern.permute.xlu0 0
    %3434 = vperm.xlu0 %3433, %v3431
    %v3435 = vpop.permute.xlu0 %3434
    %v3437 = vmul.f32 %v3435, %v3428
    %v3438 = vadd.f32 %v3302, %v3437
    %3440 = vrot.lane.b32.xlu0 %v3427, 64
    %v3441 = vpop.permute.xlu0 %3440
    %3444 = vrot.lane.b32.xlu0 %v3428, 96
    %v3445 = vpop.permute.xlu0 %3444
    %v3447 = vsel %vm215, %v3441, %v3445
    %v3448 = vpack.c.bf16 %v3447, %v3447
    %v3450 = vsel %vm1480, %v3448, 0
    %3452 = vmatprep.subr.bf16.mxu0 %v3162
    %3453 = vmatpush1.bf16.msra.mxu0 %v3161
    %3454 = vmatprep.subr.bf16.mxu0 %v3164
    %3455 = vmatpush1.bf16.msra.mxu0 %v3163
    %3456 = vmatprep.subr.bf16.mxu0 %v3166
    %3457 = vmatpush1.bf16.msra.mxu0 %v3165
    %3458 = vmatprep.subr.bf16.mxu0 %v3168
    %3459 = vmatpush1.bf16.msra.mxu0 %v3167
    %3460 = vmatprep.subr.bf16.mxu0 0
    %3461 = vmatpush1.bf16.msra.mxu0 0
    %3462 = vmatprep.subr.bf16.mxu0 0
    %3463 = vmatpush1.bf16.msra.mxu0 0
    %3464 = vmatprep.subr.bf16.mxu0 0
    %3465 = vmatpush1.bf16.msra.mxu0 0
    %3466 = vmatprep.subr.bf16.mxu0 0
    %3467 = vmatpush1.bf16.msra.mxu0 0
    %3468 = vmatprep.subr.bf16.mxu0 0
    %3469 = vmatpush1.bf16.msra.mxu0 0
    %3470 = vmatprep.subr.bf16.mxu0 0
    %3471 = vmatpush1.bf16.msra.mxu0 0
    %3472 = vmatprep.subr.bf16.mxu0 0
    %3473 = vmatpush1.bf16.msra.mxu0 0
    %3474 = vmatprep.subr.bf16.mxu0 0
    %3475 = vmatpush1.bf16.msra.mxu0 0
    %3476 = vmatprep.subr.bf16.mxu0 0
    %3477 = vmatpush1.bf16.msra.mxu0 0
    %3478 = vmatprep.subr.bf16.mxu0 0
    %3479 = vmatpush1.bf16.msra.mxu0 0
    %3480 = vmatprep.subr.bf16.mxu0 0
    %3481 = vmatpush1.bf16.msra.mxu0 0
    %3482 = vmatprep.subr.bf16.mxu0 0
    %3483 = vmatpush1.bf16.msra.mxu0 0
    %3484 = vmatprep.mubr.bf16.mxu0 0
    %3485 = vmatmul.mubr.bf16.gmra.mrb[0].mxu0 %v3450
    %v3486 = vpop.f32.mrb[0].mxu0
    %v3487 = vadd.f32 0.0, %v3486
    %v3488 = vpop.f32.mrb[0].mxu0
    %v3489 = vadd.f32 0.0, %v3488
    %v3490 = vpop.f32.mrb[0].mxu0
    %v3491 = vpop.f32.mrb[0].mxu0
    %3492 = vdwg.mxu0
    %v3493 = vld [vmem:[%s703] sm:$0xf]
    %v3494 = vunpack.c.l.bf16 %v3493
    %v3495 = vadd.f32 %v3494, %v3487
    %v3496 = vxor.u32 %v3495, 2147483648
    %v3497 = vmul.f32 %v3496, 1.442695
    %v3498 = vpow.pop %v3497
    %v3499 = vadd.f32 %v3498, 1.0
    %v3500 = vrcp.pop %v3499
    %v3501 = vmul.f32 1.0, %v3500
    %3503 = vrot.lane.b32.xlu0 %v3487, 64
    %v3504 = vpop.permute.xlu0 %3503
    %v3506 = vmul.f32 %v3501, %v3504
    %3508 = vrot.lane.b32.xlu0 %v3506, 64
    %v3509 = vpop.permute.xlu0 %3508
    %v3511 = vadd.f32 %v3494, %v3509
    %v3512 = vtanh.pop %v3511
    %v3513 = vsub.f32 %v3427, %v3512
    %3515 = vrot.lane.b32.xlu0 %v3513, 96
    %v3516 = vpop.permute.xlu0 %3515
    %v3518 = vmul.f32 %v3501, %v3516
    %3520 = vrot.lane.b32.xlu0 %v3518, 32
    %v3521 = vpop.permute.xlu0 %3520
    %v3523 = vadd.f32 %v3512, %v3521
    %v3524 = vld [vmem:[%s890] sm:$0xf]
    %v3525 = vunpack.c.l.bf16 %v3524
    %3527 = vrot.lane.b32.xlu0 %v3487, 32
    %v3528 = vpop.permute.xlu0 %3527
    %3529 = vrot.lane.b32.xlu0 %v3489, 32
    %v3530 = vpop.permute.xlu0 %3529
    %v3531 = vsel %vm215, %v3528, %v3530
    %v3533 = vadd.f32 %v3525, %v3531
    %v3534 = vxor.u32 %v3533, 2147483648
    %v3535 = vmul.f32 %v3534, 1.442695
    %v3536 = vpow.pop %v3535
    %v3537 = vadd.f32 %v3536, 1.0
    %v3538 = vrcp.pop %v3537
    %v3539 = vmul.f32 1.0, %v3538
    %3540 = vrot.lane.b32.xlu0 %v3489, 96
    %v3541 = vpop.permute.xlu0 %3540
    %v3543 = vmul.f32 %v3539, %v3541
    %3545 = vrot.lane.b32.xlu0 %v3543, 64
    %v3546 = vpop.permute.xlu0 %3545
    %v3548 = vadd.f32 %v3525, %v3546
    %v3549 = vtanh.pop %v3548
    %v3550 = vsub.f32 %v3428, %v3549
    %3552 = vrot.lane.b32.xlu0 %v3550, 96
    %v3553 = vpop.permute.xlu0 %3552
    %v3555 = vmul.f32 %v3539, %v3553
    %3557 = vrot.lane.b32.xlu0 %v3555, 32
    %v3558 = vpop.permute.xlu0 %3557
    %v3560 = vadd.f32 %v3549, %v3558
    %v3561 = vmul.f32 %v1934, %v3523
    %v3562 = vmul.f32 %v1941, %v3427
    %v3563 = vadd.f32 %v3561, %v3562
    %v3564 = vmul.f32 %v1948, %v3560
    %vm3565 = vcmp.eq.s32.totalorder %v132, 5
    %v3566 = vsel %vm3565, 1, 0
    %v3567 = vcvt.s32.f32 %v3566
    %3569 = vset.pattern.permute.xlu0 0
    %3570 = vperm.xlu0 %3569, %v3567
    %v3571 = vpop.permute.xlu0 %3570
    %v3573 = vmul.f32 %v3571, %v3564
    %v3574 = vadd.f32 %v3438, %v3573
    %3576 = vrot.lane.b32.xlu0 %v3563, 64
    %v3577 = vpop.permute.xlu0 %3576
    %3580 = vrot.lane.b32.xlu0 %v3564, 96
    %v3581 = vpop.permute.xlu0 %3580
    %v3583 = vsel %vm215, %v3577, %v3581
    %v3584 = vpack.c.bf16 %v3583, %v3583
    %v3586 = vsel %vm1480, %v3584, 0
    %3588 = vmatprep.subr.bf16.mxu0 %v3162
    %3589 = vmatpush1.bf16.msra.mxu0 %v3161
    %3590 = vmatprep.subr.bf16.mxu0 %v3164
    %3591 = vmatpush1.bf16.msra.mxu0 %v3163
    %3592 = vmatprep.subr.bf16.mxu0 %v3166
    %3593 = vmatpush1.bf16.msra.mxu0 %v3165
    %3594 = vmatprep.subr.bf16.mxu0 %v3168
    %3595 = vmatpush1.bf16.msra.mxu0 %v3167
    %3596 = vmatprep.subr.bf16.mxu0 0
    %3597 = vmatpush1.bf16.msra.mxu0 0
    %3598 = vmatprep.subr.bf16.mxu0 0
    %3599 = vmatpush1.bf16.msra.mxu0 0
    %3600 = vmatprep.subr.bf16.mxu0 0
    %3601 = vmatpush1.bf16.msra.mxu0 0
    %3602 = vmatprep.subr.bf16.mxu0 0
    %3603 = vmatpush1.bf16.msra.mxu0 0
    %3604 = vmatprep.subr.bf16.mxu0 0
    %3605 = vmatpush1.bf16.msra.mxu0 0
    %3606 = vmatprep.subr.bf16.mxu0 0
    %3607 = vmatpush1.bf16.msra.mxu0 0
    %3608 = vmatprep.subr.bf16.mxu0 0
    %3609 = vmatpush1.bf16.msra.mxu0 0
    %3610 = vmatprep.subr.bf16.mxu0 0
    %3611 = vmatpush1.bf16.msra.mxu0 0
    %3612 = vmatprep.subr.bf16.mxu0 0
    %3613 = vmatpush1.bf16.msra.mxu0 0
    %3614 = vmatprep.subr.bf16.mxu0 0
    %3615 = vmatpush1.bf16.msra.mxu0 0
    %3616 = vmatprep.subr.bf16.mxu0 0
    %3617 = vmatpush1.bf16.msra.mxu0 0
    %3618 = vmatprep.subr.bf16.mxu0 0
    %3619 = vmatpush1.bf16.msra.mxu0 0
    %3620 = vmatprep.mubr.bf16.mxu0 0
    %3621 = vmatmul.mubr.bf16.gmra.mrb[0].mxu0 %v3586
    %v3622 = vpop.f32.mrb[0].mxu0
    %v3623 = vadd.f32 0.0, %v3622
    %v3624 = vpop.f32.mrb[0].mxu0
    %v3625 = vadd.f32 0.0, %v3624
    %v3626 = vpop.f32.mrb[0].mxu0
    %v3627 = vpop.f32.mrb[0].mxu0
    %3628 = vdwg.mxu0
    %v3629 = vld [vmem:[%s847] sm:$0xf]
    %v3630 = vunpack.c.l.bf16 %v3629
    %v3631 = vadd.f32 %v3630, %v3623
    %v3632 = vxor.u32 %v3631, 2147483648
    %v3633 = vmul.f32 %v3632, 1.442695
    %v3634 = vpow.pop %v3633
    %v3635 = vadd.f32 %v3634, 1.0
    %v3636 = vrcp.pop %v3635
    %v3637 = vmul.f32 1.0, %v3636
    %3639 = vrot.lane.b32.xlu0 %v3623, 64
    %v3640 = vpop.permute.xlu0 %3639
    %v3642 = vmul.f32 %v3637, %v3640
    %3644 = vrot.lane.b32.xlu0 %v3642, 64
    %v3645 = vpop.permute.xlu0 %3644
    %v3647 = vadd.f32 %v3630, %v3645
    %v3648 = vtanh.pop %v3647
    %v3649 = vsub.f32 %v3563, %v3648
    %3651 = vrot.lane.b32.xlu0 %v3649, 96
    %v3652 = vpop.permute.xlu0 %3651
    %v3654 = vmul.f32 %v3637, %v3652
    %3656 = vrot.lane.b32.xlu0 %v3654, 32
    %v3657 = vpop.permute.xlu0 %3656
    %v3659 = vadd.f32 %v3648, %v3657
    %v3660 = vld [vmem:[%s746] sm:$0xf]
    %v3661 = vunpack.c.l.bf16 %v3660
    %3663 = vrot.lane.b32.xlu0 %v3623, 32
    %v3664 = vpop.permute.xlu0 %3663
    %3665 = vrot.lane.b32.xlu0 %v3625, 32
    %v3666 = vpop.permute.xlu0 %3665
    %v3667 = vsel %vm215, %v3664, %v3666
    %v3669 = vadd.f32 %v3661, %v3667
    %v3670 = vxor.u32 %v3669, 2147483648
    %v3671 = vmul.f32 %v3670, 1.442695
    %v3672 = vpow.pop %v3671
    %v3673 = vadd.f32 %v3672, 1.0
    %v3674 = vrcp.pop %v3673
    %v3675 = vmul.f32 1.0, %v3674
    %3676 = vrot.lane.b32.xlu0 %v3625, 96
    %v3677 = vpop.permute.xlu0 %3676
    %v3679 = vmul.f32 %v3675, %v3677
    %3681 = vrot.lane.b32.xlu0 %v3679, 64
    %v3682 = vpop.permute.xlu0 %3681
    %v3684 = vadd.f32 %v3661, %v3682
    %v3685 = vtanh.pop %v3684
    %v3686 = vsub.f32 %v3564, %v3685
    %3688 = vrot.lane.b32.xlu0 %v3686, 96
    %v3689 = vpop.permute.xlu0 %3688
    %v3691 = vmul.f32 %v3675, %v3689
    %3693 = vrot.lane.b32.xlu0 %v3691, 32
    %v3694 = vpop.permute.xlu0 %3693
    %v3696 = vadd.f32 %v3685, %v3694
    %v3697 = vmul.f32 %v1948, %v3659
    %v3698 = vmul.f32 %v2096, %v3563
    %v3699 = vadd.f32 %v3697, %v3698
    %v3700 = vmul.f32 %v1934, %v3696
    %vm3701 = vcmp.eq.s32.totalorder %v132, 4
    %v3702 = vsel %vm3701, 1, 0
    %v3703 = vcvt.s32.f32 %v3702
    %3705 = vset.pattern.permute.xlu0 0
    %3706 = vperm.xlu0 %3705, %v3703
    %v3707 = vpop.permute.xlu0 %3706
    %v3709 = vmul.f32 %v3707, %v3700
    %v3710 = vadd.f32 %v3574, %v3709
    %3712 = vrot.lane.b32.xlu0 %v3699, 64
    %v3713 = vpop.permute.xlu0 %3712
    %3716 = vrot.lane.b32.xlu0 %v3700, 96
    %v3717 = vpop.permute.xlu0 %3716
    %v3719 = vsel %vm215, %v3713, %v3717
    %v3720 = vpack.c.bf16 %v3719, %v3719
    %v3722 = vsel %vm1480, %v3720, 0
    %3724 = vmatprep.subr.bf16.mxu0 %v3162
    %3725 = vmatpush1.bf16.msra.mxu0 %v3161
    %3726 = vmatprep.subr.bf16.mxu0 %v3164
    %3727 = vmatpush1.bf16.msra.mxu0 %v3163
    %3728 = vmatprep.subr.bf16.mxu0 %v3166
    %3729 = vmatpush1.bf16.msra.mxu0 %v3165
    %3730 = vmatprep.subr.bf16.mxu0 %v3168
    %3731 = vmatpush1.bf16.msra.mxu0 %v3167
    %3732 = vmatprep.subr.bf16.mxu0 0
    %3733 = vmatpush1.bf16.msra.mxu0 0
    %3734 = vmatprep.subr.bf16.mxu0 0
    %3735 = vmatpush1.bf16.msra.mxu0 0
    %3736 = vmatprep.subr.bf16.mxu0 0
    %3737 = vmatpush1.bf16.msra.mxu0 0
    %3738 = vmatprep.subr.bf16.mxu0 0
    %3739 = vmatpush1.bf16.msra.mxu0 0
    %3740 = vmatprep.subr.bf16.mxu0 0
    %3741 = vmatpush1.bf16.msra.mxu0 0
    %3742 = vmatprep.subr.bf16.mxu0 0
    %3743 = vmatpush1.bf16.msra.mxu0 0
    %3744 = vmatprep.subr.bf16.mxu0 0
    %3745 = vmatpush1.bf16.msra.mxu0 0
    %3746 = vmatprep.subr.bf16.mxu0 0
    %3747 = vmatpush1.bf16.msra.mxu0 0
    %3748 = vmatprep.subr.bf16.mxu0 0
    %3749 = vmatpush1.bf16.msra.mxu0 0
    %3750 = vmatprep.subr.bf16.mxu0 0
    %3751 = vmatpush1.bf16.msra.mxu0 0
    %3752 = vmatprep.subr.bf16.mxu0 0
    %3753 = vmatpush1.bf16.msra.mxu0 0
    %3754 = vmatprep.subr.bf16.mxu0 0
    %3755 = vmatpush1.bf16.msra.mxu0 0
    %3756 = vmatprep.mubr.bf16.mxu0 0
    %3757 = vmatmul.mubr.bf16.gmra.mrb[0].mxu0 %v3722
    %v3758 = vpop.f32.mrb[0].mxu0
    %v3759 = vadd.f32 0.0, %v3758
    %v3760 = vpop.f32.mrb[0].mxu0
    %v3761 = vadd.f32 0.0, %v3760
    %v3762 = vpop.f32.mrb[0].mxu0
    %v3763 = vpop.f32.mrb[0].mxu0
    %3764 = vdwg.mxu0
    %v3765 = vld [vmem:[%s991] sm:$0xf]
    %v3766 = vunpack.c.l.bf16 %v3765
    %v3767 = vadd.f32 %v3766, %v3759
    %v3768 = vxor.u32 %v3767, 2147483648
    %v3769 = vmul.f32 %v3768, 1.442695
    %v3770 = vpow.pop %v3769
    %v3771 = vadd.f32 %v3770, 1.0
    %v3772 = vrcp.pop %v3771
    %v3773 = vmul.f32 1.0, %v3772
    %3775 = vrot.lane.b32.xlu0 %v3759, 64
    %v3776 = vpop.permute.xlu0 %3775
    %v3778 = vmul.f32 %v3773, %v3776
    %3780 = vrot.lane.b32.xlu0 %v3778, 64
    %v3781 = vpop.permute.xlu0 %3780
    %v3783 = vadd.f32 %v3766, %v3781
    %v3784 = vtanh.pop %v3783
    %v3785 = vsub.f32 %v3699, %v3784
    %3787 = vrot.lane.b32.xlu0 %v3785, 96
    %v3788 = vpop.permute.xlu0 %3787
    %v3790 = vmul.f32 %v3773, %v3788
    %3792 = vrot.lane.b32.xlu0 %v3790, 32
    %v3793 = vpop.permute.xlu0 %3792
    %v3795 = vadd.f32 %v3784, %v3793
    %v3796 = vld [vmem:[%s602] sm:$0xf]
    %v3797 = vunpack.c.l.bf16 %v3796
    %3799 = vrot.lane.b32.xlu0 %v3759, 32
    %v3800 = vpop.permute.xlu0 %3799
    %3801 = vrot.lane.b32.xlu0 %v3761, 32
    %v3802 = vpop.permute.xlu0 %3801
    %v3803 = vsel %vm215, %v3800, %v3802
    %v3805 = vadd.f32 %v3797, %v3803
    %v3806 = vxor.u32 %v3805, 2147483648
    %v3807 = vmul.f32 %v3806, 1.442695
    %v3808 = vpow.pop %v3807
    %v3809 = vadd.f32 %v3808, 1.0
    %v3810 = vrcp.pop %v3809
    %v3811 = vmul.f32 1.0, %v3810
    %3812 = vrot.lane.b32.xlu0 %v3761, 96
    %v3813 = vpop.permute.xlu0 %3812
    %v3815 = vmul.f32 %v3811, %v3813
    %3817 = vrot.lane.b32.xlu0 %v3815, 64
    %v3818 = vpop.permute.xlu0 %3817
    %v3820 = vadd.f32 %v3797, %v3818
    %v3821 = vtanh.pop %v3820
    %v3822 = vsub.f32 %v3700, %v3821
    %3824 = vrot.lane.b32.xlu0 %v3822, 96
    %v3825 = vpop.permute.xlu0 %3824
    %v3827 = vmul.f32 %v3811, %v3825
    %3829 = vrot.lane.b32.xlu0 %v3827, 32
    %v3830 = vpop.permute.xlu0 %3829
    %v3832 = vadd.f32 %v3821, %v3830
    %v3833 = vmul.f32 %v1782, %v3795
    %v3834 = vmul.f32 %v2246, %v3699
    %v3835 = vadd.f32 %v3833, %v3834
    %v3836 = vmul.f32 %v1768, %v3832
    %vm3837 = vcmp.eq.s32.totalorder %v132, 3
    %v3838 = vsel %vm3837, 1, 0
    %v3839 = vcvt.s32.f32 %v3838
    %3841 = vset.pattern.permute.xlu0 0
    %3842 = vperm.xlu0 %3841, %v3839
    %v3843 = vpop.permute.xlu0 %3842
    %v3845 = vmul.f32 %v3843, %v3836
    %v3846 = vadd.f32 %v3710, %v3845
    %3848 = vrot.lane.b32.xlu0 %v3835, 64
    %v3849 = vpop.permute.xlu0 %3848
    %3852 = vrot.lane.b32.xlu0 %v3836, 96
    %v3853 = vpop.permute.xlu0 %3852
    %v3855 = vsel %vm215, %v3849, %v3853
    %v3856 = vpack.c.bf16 %v3855, %v3855
    %v3858 = vsel %vm1480, %v3856, 0
    %3860 = vmatprep.subr.bf16.mxu0 %v3162
    %3861 = vmatpush1.bf16.msra.mxu0 %v3161
    %3862 = vmatprep.subr.bf16.mxu0 %v3164
    %3863 = vmatpush1.bf16.msra.mxu0 %v3163
    %3864 = vmatprep.subr.bf16.mxu0 %v3166
    %3865 = vmatpush1.bf16.msra.mxu0 %v3165
    %3866 = vmatprep.subr.bf16.mxu0 %v3168
    %3867 = vmatpush1.bf16.msra.mxu0 %v3167
    %3868 = vmatprep.subr.bf16.mxu0 0
    %3869 = vmatpush1.bf16.msra.mxu0 0
    %3870 = vmatprep.subr.bf16.mxu0 0
    %3871 = vmatpush1.bf16.msra.mxu0 0
    %3872 = vmatprep.subr.bf16.mxu0 0
    %3873 = vmatpush1.bf16.msra.mxu0 0
    %3874 = vmatprep.subr.bf16.mxu0 0
    %3875 = vmatpush1.bf16.msra.mxu0 0
    %3876 = vmatprep.subr.bf16.mxu0 0
    %3877 = vmatpush1.bf16.msra.mxu0 0
    %3878 = vmatprep.subr.bf16.mxu0 0
    %3879 = vmatpush1.bf16.msra.mxu0 0
    %3880 = vmatprep.subr.bf16.mxu0 0
    %3881 = vmatpush1.bf16.msra.mxu0 0
    %3882 = vmatprep.subr.bf16.mxu0 0
    %3883 = vmatpush1.bf16.msra.mxu0 0
    %3884 = vmatprep.subr.bf16.mxu0 0
    %3885 = vmatpush1.bf16.msra.mxu0 0
    %3886 = vmatprep.subr.bf16.mxu0 0
    %3887 = vmatpush1.bf16.msra.mxu0 0
    %3888 = vmatprep.subr.bf16.mxu0 0
    %3889 = vmatpush1.bf16.msra.mxu0 0
    %3890 = vmatprep.subr.bf16.mxu0 0
    %3891 = vmatpush1.bf16.msra.mxu0 0
    %3892 = vmatprep.mubr.bf16.mxu0 0
    %3893 = vmatmul.mubr.bf16.gmra.mrb[0].mxu0 %v3858
    %v3894 = vpop.f32.mrb[0].mxu0
    %v3895 = vadd.f32 0.0, %v3894
    %v3896 = vpop.f32.mrb[0].mxu0
    %v3897 = vadd.f32 0.0, %v3896
    %v3898 = vpop.f32.mrb[0].mxu0
    %v3899 = vpop.f32.mrb[0].mxu0
    %3900 = vdwg.mxu0
    %v3901 = vld [vmem:[%s1135] sm:$0xf]
    %v3902 = vunpack.c.l.bf16 %v3901
    %v3903 = vadd.f32 %v3902, %v3895
    %v3904 = vxor.u32 %v3903, 2147483648
    %v3905 = vmul.f32 %v3904, 1.442695
    %v3906 = vpow.pop %v3905
    %v3907 = vadd.f32 %v3906, 1.0
    %v3908 = vrcp.pop %v3907
    %v3909 = vmul.f32 1.0, %v3908
    %3911 = vrot.lane.b32.xlu0 %v3895, 64
    %v3912 = vpop.permute.xlu0 %3911
    %v3914 = vmul.f32 %v3909, %v3912
    %3916 = vrot.lane.b32.xlu0 %v3914, 64
    %v3917 = vpop.permute.xlu0 %3916
    %v3919 = vadd.f32 %v3902, %v3917
    %v3920 = vtanh.pop %v3919
    %v3921 = vsub.f32 %v3835, %v3920
    %3923 = vrot.lane.b32.xlu0 %v3921, 96
    %v3924 = vpop.permute.xlu0 %3923
    %v3926 = vmul.f32 %v3909, %v3924
    %3928 = vrot.lane.b32.xlu0 %v3926, 32
    %v3929 = vpop.permute.xlu0 %3928
    %v3931 = vadd.f32 %v3920, %v3929
    %v3932 = vld [vmem:[%s458] sm:$0xf]
    %v3933 = vunpack.c.l.bf16 %v3932
    %3935 = vrot.lane.b32.xlu0 %v3895, 32
    %v3936 = vpop.permute.xlu0 %3935
    %3937 = vrot.lane.b32.xlu0 %v3897, 32
    %v3938 = vpop.permute.xlu0 %3937
    %v3939 = vsel %vm215, %v3936, %v3938
    %v3941 = vadd.f32 %v3933, %v3939
    %v3942 = vxor.u32 %v3941, 2147483648
    %v3943 = vmul.f32 %v3942, 1.442695
    %v3944 = vpow.pop %v3943
    %v3945 = vadd.f32 %v3944, 1.0
    %v3946 = vrcp.pop %v3945
    %v3947 = vmul.f32 1.0, %v3946
    %3948 = vrot.lane.b32.xlu0 %v3897, 96
    %v3949 = vpop.permute.xlu0 %3948
    %v3951 = vmul.f32 %v3947, %v3949
    %3953 = vrot.lane.b32.xlu0 %v3951, 64
    %v3954 = vpop.permute.xlu0 %3953
    %v3956 = vadd.f32 %v3933, %v3954
    %v3957 = vtanh.pop %v3956
    %v3958 = vsub.f32 %v3836, %v3957
    %3960 = vrot.lane.b32.xlu0 %v3958, 96
    %v3961 = vpop.permute.xlu0 %3960
    %v3963 = vmul.f32 %v3947, %v3961
    %3965 = vrot.lane.b32.xlu0 %v3963, 32
    %v3966 = vpop.permute.xlu0 %3965
    %v3968 = vadd.f32 %v3957, %v3966
    %v3969 = vmul.f32 %v1616, %v3931
    %v3970 = vmul.f32 %v2396, %v3835
    %v3971 = vadd.f32 %v3969, %v3970
    %v3972 = vmul.f32 %v1602, %v3968
    %vm3973 = vcmp.eq.s32.totalorder %v132, 2
    %v3974 = vsel %vm3973, 1, 0
    %v3975 = vcvt.s32.f32 %v3974
    %3977 = vset.pattern.permute.xlu0 0
    %3978 = vperm.xlu0 %3977, %v3975
    %v3979 = vpop.permute.xlu0 %3978
    %v3981 = vmul.f32 %v3979, %v3972
    %v3982 = vadd.f32 %v3846, %v3981
    %3984 = vrot.lane.b32.xlu0 %v3971, 64
    %v3985 = vpop.permute.xlu0 %3984
    %3988 = vrot.lane.b32.xlu0 %v3972, 96
    %v3989 = vpop.permute.xlu0 %3988
    %v3991 = vsel %vm215, %v3985, %v3989
    %v3992 = vpack.c.bf16 %v3991, %v3991
    %v3994 = vsel %vm1480, %v3992, 0
    %3996 = vmatprep.subr.bf16.mxu0 %v3162
    %3997 = vmatpush1.bf16.msra.mxu0 %v3161
    %3998 = vmatprep.subr.bf16.mxu0 %v3164
    %3999 = vmatpush1.bf16.msra.mxu0 %v3163
    %4000 = vmatprep.subr.bf16.mxu0 %v3166
    %4001 = vmatpush1.bf16.msra.mxu0 %v3165
    %4002 = vmatprep.subr.bf16.mxu0 %v3168
    %4003 = vmatpush1.bf16.msra.mxu0 %v3167
    %4004 = vmatprep.subr.bf16.mxu0 0
    %4005 = vmatpush1.bf16.msra.mxu0 0
    %4006 = vmatprep.subr.bf16.mxu0 0
    %4007 = vmatpush1.bf16.msra.mxu0 0
    %4008 = vmatprep.subr.bf16.mxu0 0
    %4009 = vmatpush1.bf16.msra.mxu0 0
    %4010 = vmatprep.subr.bf16.mxu0 0
    %4011 = vmatpush1.bf16.msra.mxu0 0
    %4012 = vmatprep.subr.bf16.mxu0 0
    %4013 = vmatpush1.bf16.msra.mxu0 0
    %4014 = vmatprep.subr.bf16.mxu0 0
    %4015 = vmatpush1.bf16.msra.mxu0 0
    %4016 = vmatprep.subr.bf16.mxu0 0
    %4017 = vmatpush1.bf16.msra.mxu0 0
    %4018 = vmatprep.subr.bf16.mxu0 0
    %4019 = vmatpush1.bf16.msra.mxu0 0
    %4020 = vmatprep.subr.bf16.mxu0 0
    %4021 = vmatpush1.bf16.msra.mxu0 0
    %4022 = vmatprep.subr.bf16.mxu0 0
    %4023 = vmatpush1.bf16.msra.mxu0 0
    %4024 = vmatprep.subr.bf16.mxu0 0
    %4025 = vmatpush1.bf16.msra.mxu0 0
    %4026 = vmatprep.subr.bf16.mxu0 0
    %4027 = vmatpush1.bf16.msra.mxu0 0
    %4028 = vmatprep.mubr.bf16.mxu0 0
    %4029 = vmatmul.mubr.bf16.gmra.mrb[0].mxu0 %v3994
    %v4030 = vpop.f32.mrb[0].mxu0
    %v4031 = vadd.f32 0.0, %v4030
    %v4032 = vpop.f32.mrb[0].mxu0
    %v4033 = vadd.f32 0.0, %v4032
    %v4034 = vpop.f32.mrb[0].mxu0
    %v4035 = vpop.f32.mrb[0].mxu0
    %4036 = vdwg.mxu0
    %v4037 = vld [vmem:[%s1279] sm:$0xf]
    %v4038 = vunpack.c.l.bf16 %v4037
    %v4039 = vadd.f32 %v4038, %v4031
    %v4040 = vxor.u32 %v4039, 2147483648
    %v4041 = vmul.f32 %v4040, 1.442695
    %v4042 = vpow.pop %v4041
    %v4043 = vadd.f32 %v4042, 1.0
    %v4044 = vrcp.pop %v4043
    %v4045 = vmul.f32 1.0, %v4044
    %4047 = vrot.lane.b32.xlu0 %v4031, 64
    %v4048 = vpop.permute.xlu0 %4047
    %v4050 = vmul.f32 %v4045, %v4048
    %4052 = vrot.lane.b32.xlu0 %v4050, 64
    %v4053 = vpop.permute.xlu0 %4052
    %v4055 = vadd.f32 %v4038, %v4053
    %v4056 = vtanh.pop %v4055
    %v4057 = vsub.f32 %v3971, %v4056
    %4059 = vrot.lane.b32.xlu0 %v4057, 96
    %v4060 = vpop.permute.xlu0 %4059
    %v4062 = vmul.f32 %v4045, %v4060
    %4064 = vrot.lane.b32.xlu0 %v4062, 32
    %v4065 = vpop.permute.xlu0 %4064
    %v4067 = vadd.f32 %v4056, %v4065
    %v4068 = vld [vmem:[#allocation3] sm:$0xf]
    %v4069 = vunpack.c.l.bf16 %v4068
    %4071 = vrot.lane.b32.xlu0 %v4031, 32
    %v4072 = vpop.permute.xlu0 %4071
    %4073 = vrot.lane.b32.xlu0 %v4033, 32
    %v4074 = vpop.permute.xlu0 %4073
    %v4075 = vsel %vm215, %v4072, %v4074
    %v4077 = vadd.f32 %v4069, %v4075
    %v4078 = vxor.u32 %v4077, 2147483648
    %v4079 = vmul.f32 %v4078, 1.442695
    %v4080 = vpow.pop %v4079
    %v4081 = vadd.f32 %v4080, 1.0
    %v4082 = vrcp.pop %v4081
    %v4083 = vmul.f32 1.0, %v4082
    %4084 = vrot.lane.b32.xlu0 %v4033, 96
    %v4085 = vpop.permute.xlu0 %4084
    %v4087 = vmul.f32 %v4083, %v4085
    %4089 = vrot.lane.b32.xlu0 %v4087, 64
    %v4090 = vpop.permute.xlu0 %4089
    %v4092 = vadd.f32 %v4069, %v4090
    %v4093 = vtanh.pop %v4092
    %v4094 = vsub.f32 %v3972, %v4093
    %4096 = vrot.lane.b32.xlu0 %v4094, 96
    %v4097 = vpop.permute.xlu0 %4096
    %v4099 = vmul.f32 %v4083, %v4097
    %4101 = vrot.lane.b32.xlu0 %v4099, 32
    %v4102 = vpop.permute.xlu0 %4101
    %v4104 = vadd.f32 %v4093, %v4102
    %v4105 = vmul.f32 %v1409, %v4067
    %v4106 = vmul.f32 %v2546, %v3971
    %v4107 = vadd.f32 %v4105, %v4106
    %v4108 = vmul.f32 %v1395, %v4104
    %vm4109 = vcmp.eq.s32.totalorder %v132, 1
    %v4110 = vsel %vm4109, 1, 0
    %v4111 = vcvt.s32.f32 %v4110
    %4113 = vset.pattern.permute.xlu0 0
    %4114 = vperm.xlu0 %4113, %v4111
    %v4115 = vpop.permute.xlu0 %4114
    %v4117 = vmul.f32 %v4115, %v4108
    %v4118 = vadd.f32 %v3982, %v4117
    %4120 = vrot.lane.b32.xlu0 %v4107, 64
    %v4121 = vpop.permute.xlu0 %4120
    %4124 = vrot.lane.b32.xlu0 %v4118, 96
    %v4125 = vpop.permute.xlu0 %4124
    %v4127 = vsel %vm215, %v4121, %v4125
    %v4128 = vsel %vm1480, %v4127, 0.0
    %4129 = vst [vmem:[#allocation18] sm:$0xff] %v4128
    // Predicated region
    $region70: #{tpu_custom_call.1} parent=1 // pred_check
      _
    $region71: #{tpu_custom_call.1} parent=1 // pred_check_branch
      %4131 = sbr.rel (0) target = $region73
    $region72: #{tpu_custom_call.1} parent=1 // pred_region
      %s4133 = ssub.s32 128, 128
      %4134 = vsyncadd [#allocation8], %s4133
      %s4136 = sshll.u32 [#allocation18], 4
      %s4137 = int_to_ptr.vmem [resolvable:$true] %s4136
      %4139 = dma.vmem_to_hbm [thread:$0]  %s4137, 128, %s10, [#allocation8]
    $region73: #{tpu_custom_call.1} parent=1 // pred_fallthru
      _
    // Predicated region
    $region74: #{tpu_custom_call.1} parent=1 // pred_check
      _
    $region75: #{tpu_custom_call.1} parent=1 // pred_check_branch
      %4141 = sbr.rel (0) target = $region77
    $region76: #{tpu_custom_call.1} parent=1 // pred_region
      %4142 = dma.done [#allocation8], 128
    $region77: #{tpu_custom_call.1} parent=1 // pred_fallthru
      _
    %4143 = vsyncpa [#allocation7], 1
    %4144 = vsyncpa [#allocation10], 1
    %4145 = vsyncpa [#allocation13], 1
    %4146 = vsyncpa [#allocation16], 1
    %4147 = vsyncpa [#allocation8], 1

</llo_original>
